<compile_context>
chip_gen: v6e
topology: v6e:2x2x1
jax: 0.10.0
libtpu: 0.0.40
codegen_flags: <defaults>
</compile_context>

<pallas_src>
import functools

import jax
import jax.numpy as jnp
from jax.experimental import pallas as pl
from jax.experimental.pallas import tpu as pltpu


@functools.lru_cache(maxsize=1)
def _vmem_limit_bytes():
    """Generation-aware scoped-VMEM budget (v7x has only 64 MiB physical)."""
    cap = 128 * 1024 * 1024
    try:
        cap = int(pltpu.get_tpu_info().vmem_capacity_bytes)
    except Exception:
        pass
    if cap <= 64 * 1024 * 1024:          # v7x-class TensorCore (64 MiB VMEM)
        return 40 * 1024 * 1024
    return 96 * 1024 * 1024              # v5e / v6e (128 MiB VMEM)


def _pick_tile(n, min_blocks=1):
    # Larger tiles amortize the ~0.35us/grid-step overhead; min_blocks>=2
    # keeps a "parallel" extent available for megacore sharding when N==1.
    for t in (512, 256, 128, 64, 32, 16, 8):
        if n % t == 0 and (n // t) >= min_blocks:
            return t
    return n


def _layer_norm(x, w, b, eps=1e-5):
    # CLIP's LayerNorm subclass: compute in fp32, cast back to input dtype.
    orig = x.dtype
    xf = x.astype(jnp.float32)
    mu = jnp.mean(xf, axis=-1, keepdims=True)
    var = jnp.mean((xf - mu) ** 2, axis=-1, keepdims=True)
    y = (xf - mu) * jax.lax.rsqrt(var + eps)
    return (y * w + b).astype(orig)


# --------------------------- kernel 1: LN1 + QKV ---------------------------
def _qkv_kernel(x_ref, ln_w_ref, ln_b_ref, w_ref, b_ref, qkv_ref):
    # x_ref: (1, TL, E) f32 ; w_ref: (E, 3E) bf16 ; b_ref: (1, 3E) f32
    # qkv_ref: (1, TL, 3E) bf16  (lane-dense, unmasked stores)
    x = x_ref[0]
    h = _layer_norm(x, ln_w_ref[0], ln_b_ref[0])
    y = jnp.dot(h.astype(jnp.bfloat16), w_ref[...],
                preferred_element_type=jnp.float32) + b_ref[0]
    qkv_ref[0] = y.astype(jnp.bfloat16)


# ------------------- kernel 2: single-pass attention -----------------------
def _attn_kernel(q_ref, k_ref, v_ref, o_ref):
    # q_ref: (1, TQ, Dh) bf16 (pre-scaled) ; k/v_ref: (1, L, Dh) bf16
    # o_ref: (1, TQ, Dh) bf16 slice of the (N, L, E) ctx tensor
    q = q_ref[0]
    k = k_ref[0]
    v = v_ref[0]
    s = jax.lax.dot_general(q, k, (((1,), (1,)), ((), ())),
                            preferred_element_type=jnp.float32)     # (TQ, L)
    m = s.max(axis=-1, keepdims=True)
    p = jnp.exp(s - m)
    l = p.sum(axis=-1, keepdims=True)
    ctx = jnp.dot(p.astype(jnp.bfloat16), v,
                  preferred_element_type=jnp.float32)                # (TQ, Dh)
    o_ref[0] = (ctx * pl.reciprocal(l, approx=True)).astype(o_ref.dtype)


# ------------- kernel 3: out_proj + residual + LN2 + MLP + residual --------
def _out_mlp_kernel(x_ref, ctx_ref, wo_ref, bo_ref, ln2_w_ref, ln2_b_ref,
                    wfc_ref, bfc_ref, wpj_ref, bpj_ref, o_ref):
    # x_ref: (1, TL, E) f32 ; ctx_ref: (1, TL, E) bf16
    # wo: (E, E) bf16 ; wfc: (E, 4E) bf16 ; wpj: (4E, E) bf16
    x = x_ref[0]                                            # (TL, E) f32

    # attention out-projection: single (TL,E)@(E,E) MXU matmul (K = E)
    attn = jnp.dot(ctx_ref[0], wo_ref[...],
                   preferred_element_type=jnp.float32) + bo_ref[0]
    x = x + attn

    # MLP branch
    g = _layer_norm(x, ln2_w_ref[0], ln2_b_ref[0]).astype(jnp.bfloat16)
    u = jnp.dot(g, wfc_ref[...], preferred_element_type=jnp.float32) + bfc_ref[0]
    u = u * jax.nn.sigmoid(1.702 * u)                       # QuickGELU (f32)
    m = jnp.dot(u.astype(jnp.bfloat16), wpj_ref[...],
                preferred_element_type=jnp.float32) + bpj_ref[0]
    o_ref[0] = (x + m).astype(o_ref.dtype)


# ------------------------------ block wrapper ------------------------------
def residual_attention_block(x, p, n_head):
    # x: (N, L, E) f32 (batch-major internal layout)
    N, L, E = x.shape
    H = n_head
    Dh = E // H
    vmem = _vmem_limit_bytes()
    TL = _pick_tile(L, min_blocks=2 if N == 1 else 1)
    TQ = _pick_tile(L)

    cp2 = pltpu.CompilerParams(
        dimension_semantics=("parallel", "parallel"),
        vmem_limit_bytes=vmem)

    # ---- kernel 1: LN1 + fused QKV projection, single lane-dense output ----
    qkv = pl.pallas_call(
        _qkv_kernel,
        grid=(N, L // TL),
        in_specs=[
            pl.BlockSpec((1, TL, E), lambda n, li: (n, li, 0)),
            pl.BlockSpec((1, E), lambda n, li: (0, 0)),
            pl.BlockSpec((1, E), lambda n, li: (0, 0)),
            pl.BlockSpec((E, 3 * E), lambda n, li: (0, 0)),
            pl.BlockSpec((1, 3 * E), lambda n, li: (0, 0)),
        ],
        out_specs=pl.BlockSpec((1, TL, 3 * E), lambda n, li: (n, li, 0)),
        out_shape=jax.ShapeDtypeStruct((N, L, 3 * E), jnp.bfloat16),
        compiler_params=cp2,
    )(x, p['ln1_w'], p['ln1_b'], p['in_proj_w_t'], p['in_proj_b'])

    # ---- kernel 2: single-pass attention over (N, H, q-tile) ----
    # Q / K / V are per-head column slices of the qkv tensor (index over the
    # last axis by head); K/V index is constant across the q-tile axis so the
    # pipeline does not re-DMA them.  ctx is written directly in (N, L, E).
    ctx = pl.pallas_call(
        _attn_kernel,
        grid=(N, H, L // TQ),
        in_specs=[
            pl.BlockSpec((1, TQ, Dh), lambda n, h, qi: (n, qi, h)),
            pl.BlockSpec((1, L, Dh), lambda n, h, qi: (n, 0, H + h)),
            pl.BlockSpec((1, L, Dh), lambda n, h, qi: (n, 0, 2 * H + h)),
        ],
        out_specs=pl.BlockSpec((1, TQ, Dh), lambda n, h, qi: (n, qi, h)),
        out_shape=jax.ShapeDtypeStruct((N, L, E), jnp.bfloat16),
        compiler_params=pltpu.CompilerParams(
            dimension_semantics=("parallel", "parallel", "parallel"),
            vmem_limit_bytes=vmem),
    )(qkv, qkv, qkv)

    # ---- kernel 3: out_proj + residual + LN2 + MLP + residual ----
    out = pl.pallas_call(
        _out_mlp_kernel,
        grid=(N, L // TL),
        in_specs=[
            pl.BlockSpec((1, TL, E), lambda n, li: (n, li, 0)),
            pl.BlockSpec((1, TL, E), lambda n, li: (n, li, 0)),
            pl.BlockSpec((E, E), lambda n, li: (0, 0)),
            pl.BlockSpec((1, E), lambda n, li: (0, 0)),
            pl.BlockSpec((1, E), lambda n, li: (0, 0)),
            pl.BlockSpec((1, E), lambda n, li: (0, 0)),
            pl.BlockSpec((E, 4 * E), lambda n, li: (0, 0)),
            pl.BlockSpec((1, 4 * E), lambda n, li: (0, 0)),
            pl.BlockSpec((4 * E, E), lambda n, li: (0, 0)),
            pl.BlockSpec((1, E), lambda n, li: (0, 0)),
        ],
        out_specs=pl.BlockSpec((1, TL, E), lambda n, li: (n, li, 0)),
        out_shape=jax.ShapeDtypeStruct((N, L, E), x.dtype),
        input_output_aliases={0: 0},      # reuse the residual-input buffer
        compiler_params=cp2,
    )(x, ctx, p['out_proj_w_t'], p['out_proj_b'],
      p['ln2_w'], p['ln2_b'],
      p['fc_w_t'], p['fc_b'], p['proj_w_t'], p['proj_b'])
    return out


def transformer_forward(x, blocks_params, n_head):
    # x: (L, N, E), as in the PyTorch module (seq, batch, width).
    x = jnp.transpose(x, (1, 0, 2))          # batch-major internal layout
    for p in blocks_params:
        x = residual_attention_block(x, p, n_head)
    return jnp.transpose(x, (1, 0, 2))


# --------------------- deterministic parameter init -----------------------
def init_transformer_params(key, width, layers, heads, wdtype=jnp.bfloat16):
    E = width
    Dh = E // heads
    scale = 1.0 / (Dh ** 0.5)
    n_blocks = layers - 1        # the PyTorch module builds `layers - 1` resblocks
    blocks = []
    for _ in range(n_blocks):
        key, k1, k2, k3, k4, k5, k6, k7, k8 = jax.random.split(key, 9)
        # PyTorch Linear weights are (out, in); we store pre-transposed (in, out)
        # so kernels do y = x @ W_t + b.  Biases kept f32 (post-accumulation add).
        in_proj_w = 0.02 * jax.random.normal(k1, (3 * E, E), jnp.float32)
        out_proj_w = 0.02 * jax.random.normal(k2, (E, E), jnp.float32)
        fc_w = 0.02 * jax.random.normal(k3, (4 * E, E), jnp.float32)
        proj_w = 0.02 * jax.random.normal(k4, (E, 4 * E), jnp.float32)
        in_proj_b = 0.02 * jax.random.normal(k5, (3 * E,), jnp.float32)
        out_proj_b = 0.02 * jax.random.normal(k6, (E,), jnp.float32)
        fc_b = 0.02 * jax.random.normal(k7, (4 * E,), jnp.float32)
        proj_b = 0.02 * jax.random.normal(k8, (E,), jnp.float32)
        # Fold the 1/sqrt(Dh) attention scale into the q slice of in_proj.
        in_proj_w = jnp.concatenate([in_proj_w[:E] * scale, in_proj_w[E:]], axis=0)
        in_proj_b = jnp.concatenate([in_proj_b[:E] * scale, in_proj_b[E:]], axis=0)
        blocks.append({
            'ln1_w': jnp.ones((1, E), jnp.float32),
            'ln1_b': jnp.zeros((1, E), jnp.float32),
            'in_proj_w_t': in_proj_w.T.astype(wdtype),     # (E, 3E)
            'in_proj_b': in_proj_b.reshape(1, 3 * E),
            'out_proj_w_t': out_proj_w.T.astype(wdtype),   # (E, E)
            'out_proj_b': out_proj_b.reshape(1, E),
            'ln2_w': jnp.ones((1, E), jnp.float32),
            'ln2_b': jnp.zeros((1, E), jnp.float32),
            'fc_w_t': fc_w.T.astype(wdtype),               # (E, 4E)
            'fc_b': fc_b.reshape(1, 4 * E),
            'proj_w_t': proj_w.T.astype(wdtype),           # (4E, E)
            'proj_b': proj_b.reshape(1, E),
        })
    return blocks


# ----------------------- pure-JAX reference (check) ------------------------
def _resblock_ref(x, p, n_head):
    # x: (N, L, E) f32.  Mirrors the kernel's mixed-precision policy
    # (bf16 matmul operands, f32 accumulation; scale pre-folded into q weights).
    N, L, E = x.shape
    H, Dh = n_head, E // n_head
    h = _layer_norm(x, p['ln1_w'][0], p['ln1_b'][0]).astype(jnp.bfloat16)
    qkv = (jnp.einsum('nle,ef->nlf', h, p['in_proj_w_t'],
                      preferred_element_type=jnp.float32)
           + p['in_proj_b'][0]).astype(jnp.bfloat16)
    q = qkv[..., :E].reshape(N, L, H, Dh)
    k = qkv[..., E:2 * E].reshape(N, L, H, Dh)
    v = qkv[..., 2 * E:].reshape(N, L, H, Dh)
    s = jnp.einsum('nqhd,nkhd->nhqk', q, k, preferred_element_type=jnp.float32)
    a = jax.nn.softmax(s, axis=-1)
    ctx = jnp.einsum('nhqk,nkhd->nqhd', a.astype(jnp.bfloat16), v,
                     preferred_element_type=jnp.float32)
    ctx = ctx.astype(jnp.bfloat16).reshape(N, L, E)
    attn = (jnp.einsum('nle,ef->nlf', ctx, p['out_proj_w_t'],
                       preferred_element_type=jnp.float32) + p['out_proj_b'][0])
    x = x + attn
    g = _layer_norm(x, p['ln2_w'][0], p['ln2_b'][0]).astype(jnp.bfloat16)
    u = (jnp.einsum('nle,ef->nlf', g, p['fc_w_t'],
                    preferred_element_type=jnp.float32) + p['fc_b'][0])
    u = u * jax.nn.sigmoid(1.702 * u)
    m = (jnp.einsum('nlf,fe->nle', u.astype(jnp.bfloat16), p['proj_w_t'],
                    preferred_element_type=jnp.float32) + p['proj_b'][0])
    return x + m


def transformer_ref(x, blocks_params, n_head):
    x = jnp.transpose(x, (1, 0, 2))
    for p in blocks_params:
        x = _resblock_ref(x, p, n_head)
    return jnp.transpose(x, (1, 0, 2))


if __name__ == "__main__":
    # Small but TPU-tile-friendly shapes consistent with the module's forward:
    # x: (seq=128, batch=2, width=256), heads=2 (Dh=128), layers=3 -> 2 resblocks.
    L, N, E, H, LAYERS = 128, 2, 256, 2, 3

    key = jax.random.PRNGKey(0)
    kx, kp = jax.random.split(key)
    x = jax.random.normal(kx, (L, N, E), jnp.float32)
    params = init_transformer_params(kp, E, LAYERS, H)

    fwd = jax.jit(transformer_forward, static_argnums=2)
    out = jax.block_until_ready(fwd(x, params, H))

    ref = jax.block_until_ready(transformer_ref(x, params, H))
    assert out.shape == (L, N, E)
    assert bool(jnp.allclose(out, ref, atol=2e-2, rtol=2e-2)), "mismatch vs reference"

    print("KERNEL_OK")
</pallas_src>

<mosaic_0001>
module attributes {stable_mosaic.version = 11 : i64} {
  func.func @_attn_kernel(%arg0: i32, %arg1: i32, %arg2: i32, %arg3: memref<1x128x128xbf16, #tpu.memory_space<vmem>>, %arg4: memref<1x128x128xbf16, #tpu.memory_space<vmem>>, %arg5: memref<1x128x128xbf16, #tpu.memory_space<vmem>>, %arg6: memref<1x128x128xbf16, #tpu.memory_space<vmem>>) attributes {dimension_semantics = [#tpu.dimension_semantics<parallel>, #tpu.dimension_semantics<parallel>, #tpu.dimension_semantics<parallel>], iteration_bounds = array<i64: 2, 2, 1>, scalar_prefetch = 0 : i64, scratch_operands = 0 : i64, tpu.core_type = #tpu.core_type<tc>, window_params = [{transform_indices = @transform_0, window_bounds = array<i64: 1, 128, 128>}, {transform_indices = @transform_1, window_bounds = array<i64: 1, 128, 128>}, {transform_indices = @transform_2, window_bounds = array<i64: 1, 128, 128>}, {transform_indices = @transform_3, window_bounds = array<i64: 1, 128, 128>}]} {
    %c0 = arith.constant 0 : index
    %c0_0 = arith.constant 0 : index
    %c0_1 = arith.constant 0 : index
    %0 = vector.load %arg3[%c0, %c0_0, %c0_1] : memref<1x128x128xbf16, #tpu.memory_space<vmem>>, vector<1x128x128xbf16>
    %1 = vector.shape_cast %0 : vector<1x128x128xbf16> to vector<128x128xbf16>
    %c0_2 = arith.constant 0 : index
    %c0_3 = arith.constant 0 : index
    %c0_4 = arith.constant 0 : index
    %2 = vector.load %arg4[%c0_2, %c0_3, %c0_4] : memref<1x128x128xbf16, #tpu.memory_space<vmem>>, vector<1x128x128xbf16>
    %3 = vector.shape_cast %2 : vector<1x128x128xbf16> to vector<128x128xbf16>
    %c0_5 = arith.constant 0 : index
    %c0_6 = arith.constant 0 : index
    %c0_7 = arith.constant 0 : index
    %4 = vector.load %arg5[%c0_5, %c0_6, %c0_7] : memref<1x128x128xbf16, #tpu.memory_space<vmem>>, vector<1x128x128xbf16>
    %5 = vector.shape_cast %4 : vector<1x128x128xbf16> to vector<128x128xbf16>
    %cst = arith.constant dense<0.000000e+00> : vector<128x128xf32>
    %6 = tpu.matmul %1, %3, %cst {dimension_numbers = #tpu.dot_dimension_numbers<[1], [1], [0], [0], [0, 0, 1, 0], [], []>} : vector<128x128xbf16>, vector<128x128xbf16>, vector<128x128xf32> -> vector<128x128xf32>
    %cst_8 = arith.constant dense<0xFF800000> : vector<128xf32>
    %7 = vector.multi_reduction <maximumf>, %6, %cst_8 [1] : vector<128x128xf32> to vector<128xf32>
    %8 = vector.shape_cast %7 : vector<128xf32> to vector<128x1xf32>
    %9 = vector.broadcast %8 : vector<128x1xf32> to vector<128x128xf32>
    %10 = arith.subf %6, %9 : vector<128x128xf32>
    %11 = math.exp %10 : vector<128x128xf32>
    %cst_9 = arith.constant dense<0.000000e+00> : vector<128xf32>
    %12 = vector.multi_reduction <add>, %11, %cst_9 [1] : vector<128x128xf32> to vector<128xf32>
    %13 = vector.shape_cast %12 : vector<128xf32> to vector<128x1xf32>
    %14 = arith.truncf %11 : vector<128x128xf32> to vector<128x128xbf16>
    %cst_10 = arith.constant dense<0.000000e+00> : vector<128x128xf32>
    %15 = tpu.matmul %14, %5, %cst_10 {dimension_numbers = #tpu.dot_dimension_numbers<[1], [0], [0], [1], [0, 0, 1, 1], [], []>} : vector<128x128xbf16>, vector<128x128xbf16>, vector<128x128xf32> -> vector<128x128xf32>
    %16 = tpu.reciprocal %13 {approx = true} : vector<128x1xf32> -> vector<128x1xf32>
    %17 = vector.broadcast %16 : vector<128x1xf32> to vector<128x128xf32>
    %18 = arith.mulf %15, %17 : vector<128x128xf32>
    %19 = arith.truncf %18 : vector<128x128xf32> to vector<128x128xbf16>
    %c0_11 = arith.constant 0 : index
    %c0_12 = arith.constant 0 : index
    %c0_13 = arith.constant 0 : index
    %20 = vector.load %arg6[%c0_11, %c0_12, %c0_13] : memref<1x128x128xbf16, #tpu.memory_space<vmem>>, vector<1x128x128xbf16>
    %21 = vector.shape_cast %20 : vector<1x128x128xbf16> to vector<128x128xbf16>
    %22 = vector.shape_cast %19 : vector<128x128xbf16> to vector<1x128x128xbf16>
    tpu.vector_store %arg6[%c0_11, %c0_12, %c0_13], %22 {strides = array<i32>} : memref<1x128x128xbf16, #tpu.memory_space<vmem>>, vector<1x128x128xbf16>,
    return
  }
  func.func @transform_0(%arg0: i32, %arg1: i32, %arg2: i32) -> (i32, i32, i32) {
    %c0_i32 = arith.constant 0 : i32
    return %arg0, %arg2, %arg1 : i32, i32, i32
  }
  func.func @transform_1(%arg0: i32, %arg1: i32, %arg2: i32) -> (i32, i32, i32) {
    %c2_i32 = arith.constant 2 : i32
    %0 = arith.addi %c2_i32, %arg1 : i32
    %c0_i32 = arith.constant 0 : i32
    %c0_i32_0 = arith.constant 0 : i32
    return %arg0, %c0_i32, %0 : i32, i32, i32
  }
  func.func @transform_2(%arg0: i32, %arg1: i32, %arg2: i32) -> (i32, i32, i32) {
    %c4_i32 = arith.constant 4 : i32
    %0 = arith.addi %c4_i32, %arg1 : i32
    %c0_i32 = arith.constant 0 : i32
    %c0_i32_0 = arith.constant 0 : i32
    return %arg0, %c0_i32, %0 : i32, i32, i32
  }
  func.func @transform_3(%arg0: i32, %arg1: i32, %arg2: i32) -> (i32, i32, i32) {
    %c0_i32 = arith.constant 0 : i32
    return %arg0, %arg2, %arg1 : i32, i32, i32
  }
}

module attributes {stable_mosaic.version = 11 : i64} {
  func.func @_out_mlp_kernel(%arg0: i32, %arg1: i32, %arg2: memref<1x128x256xf32, #tpu.memory_space<vmem>>, %arg3: memref<1x128x256xbf16, #tpu.memory_space<vmem>>, %arg4: memref<256x256xbf16, #tpu.memory_space<vmem>>, %arg5: memref<1x256xf32, #tpu.memory_space<vmem>>, %arg6: memref<1x256xf32, #tpu.memory_space<vmem>>, %arg7: memref<1x256xf32, #tpu.memory_space<vmem>>, %arg8: memref<256x1024xbf16, #tpu.memory_space<vmem>>, %arg9: memref<1x1024xf32, #tpu.memory_space<vmem>>, %arg10: memref<1024x256xbf16, #tpu.memory_space<vmem>>, %arg11: memref<1x256xf32, #tpu.memory_space<vmem>>, %arg12: memref<1x128x256xf32, #tpu.memory_space<vmem>>) attributes {dimension_semantics = [#tpu.dimension_semantics<parallel>, #tpu.dimension_semantics<parallel>], iteration_bounds = array<i64: 2, 1>, scalar_prefetch = 0 : i64, scratch_operands = 0 : i64, tpu.core_type = #tpu.core_type<tc>, window_params = [{transform_indices = @transform_0, window_bounds = array<i64: 1, 128, 256>}, {transform_indices = @transform_1, window_bounds = array<i64: 1, 128, 256>}, {pipeline_mode = #tpu.pipeline_mode<synchronous>, transform_indices = @transform_2, window_bounds = array<i64: 256, 256>}, {pipeline_mode = #tpu.pipeline_mode<synchronous>, transform_indices = @transform_3, window_bounds = array<i64: 1, 256>}, {pipeline_mode = #tpu.pipeline_mode<synchronous>, transform_indices = @transform_4, window_bounds = array<i64: 1, 256>}, {pipeline_mode = #tpu.pipeline_mode<synchronous>, transform_indices = @transform_5, window_bounds = array<i64: 1, 256>}, {pipeline_mode = #tpu.pipeline_mode<synchronous>, transform_indices = @transform_6, window_bounds = array<i64: 256, 1024>}, {pipeline_mode = #tpu.pipeline_mode<synchronous>, transform_indices = @transform_7, window_bounds = array<i64: 1, 1024>}, {pipeline_mode = #tpu.pipeline_mode<synchronous>, transform_indices = @transform_8, window_bounds = array<i64: 1024, 256>}, {pipeline_mode = #tpu.pipeline_mode<synchronous>, transform_indices = @transform_9, window_bounds = array<i64: 1, 256>}, {transform_indices = @transform_10, window_bounds = array<i64: 1, 128, 256>}]} {
    %c0 = arith.constant 0 : index
    %c0_0 = arith.constant 0 : index
    %c0_1 = arith.constant 0 : index
    %0 = vector.load %arg2[%c0, %c0_0, %c0_1] : memref<1x128x256xf32, #tpu.memory_space<vmem>>, vector<1x128x256xf32>
    %1 = vector.shape_cast %0 : vector<1x128x256xf32> to vector<128x256xf32>
    %c0_2 = arith.constant 0 : index
    %c0_3 = arith.constant 0 : index
    %c0_4 = arith.constant 0 : index
    %2 = vector.load %arg3[%c0_2, %c0_3, %c0_4] : memref<1x128x256xbf16, #tpu.memory_space<vmem>>, vector<1x128x256xbf16>
    %3 = vector.shape_cast %2 : vector<1x128x256xbf16> to vector<128x256xbf16>
    %c0_5 = arith.constant 0 : index
    %c0_6 = arith.constant 0 : index
    %4 = vector.load %arg4[%c0_5, %c0_6] : memref<256x256xbf16, #tpu.memory_space<vmem>>, vector<256x256xbf16>
    %cst = arith.constant dense<0.000000e+00> : vector<128x256xf32>
    %5 = tpu.matmul %3, %4, %cst {dimension_numbers = #tpu.dot_dimension_numbers<[1], [0], [0], [1], [0, 0, 1, 1], [], []>} : vector<128x256xbf16>, vector<256x256xbf16>, vector<128x256xf32> -> vector<128x256xf32>
    %c0_7 = arith.constant 0 : index
    %c0_8 = arith.constant 0 : index
    %6 = vector.load %arg5[%c0_7, %c0_8] : memref<1x256xf32, #tpu.memory_space<vmem>>, vector<1x256xf32>
    %7 = vector.shape_cast %6 : vector<1x256xf32> to vector<256xf32>
    %8 = vector.shape_cast %7 : vector<256xf32> to vector<1x256xf32>
    %9 = vector.broadcast %8 : vector<1x256xf32> to vector<128x256xf32>
    %10 = arith.addf %5, %9 : vector<128x256xf32>
    %11 = arith.addf %1, %10 : vector<128x256xf32>
    %c0_9 = arith.constant 0 : index
    %c0_10 = arith.constant 0 : index
    %12 = vector.load %arg6[%c0_9, %c0_10] : memref<1x256xf32, #tpu.memory_space<vmem>>, vector<1x256xf32>
    %13 = vector.shape_cast %12 : vector<1x256xf32> to vector<256xf32>
    %c0_11 = arith.constant 0 : index
    %c0_12 = arith.constant 0 : index
    %14 = vector.load %arg7[%c0_11, %c0_12] : memref<1x256xf32, #tpu.memory_space<vmem>>, vector<1x256xf32>
    %15 = vector.shape_cast %14 : vector<1x256xf32> to vector<256xf32>
    %cst_13 = arith.constant dense<0.000000e+00> : vector<128xf32>
    %16 = vector.multi_reduction <add>, %11, %cst_13 [1] : vector<128x256xf32> to vector<128xf32>
    %17 = vector.shape_cast %16 : vector<128xf32> to vector<128x1xf32>
    %cst_14 = arith.constant 2.560000e+02 : f32
    %18 = vector.broadcast %cst_14 : f32 to vector<128x1xf32>
    %19 = arith.divf %17, %18 : vector<128x1xf32>
    %20 = vector.broadcast %19 : vector<128x1xf32> to vector<128x256xf32>
    %21 = arith.subf %11, %20 : vector<128x256xf32>
    %22 = arith.mulf %21, %21 : vector<128x256xf32>
    %cst_15 = arith.constant dense<0.000000e+00> : vector<128xf32>
    %23 = vector.multi_reduction <add>, %22, %cst_15 [1] : vector<128x256xf32> to vector<128xf32>
    %24 = vector.shape_cast %23 : vector<128xf32> to vector<128x1xf32>
    %cst_16 = arith.constant 2.560000e+02 : f32
    %25 = vector.broadcast %cst_16 : f32 to vector<128x1xf32>
    %26 = arith.divf %24, %25 : vector<128x1xf32>
    %27 = vector.broadcast %19 : vector<128x1xf32> to vector<128x256xf32>
    %28 = arith.subf %11, %27 : vector<128x256xf32>
    %cst_17 = arith.constant 9.99999974E-6 : f32
    %29 = vector.broadcast %cst_17 : f32 to vector<128x1xf32>
    %30 = arith.addf %26, %29 : vector<128x1xf32>
    %31 = math.rsqrt %30 : vector<128x1xf32>
    %32 = vector.broadcast %31 : vector<128x1xf32> to vector<128x256xf32>
    %33 = arith.mulf %28, %32 : vector<128x256xf32>
    %34 = vector.shape_cast %13 : vector<256xf32> to vector<1x256xf32>
    %35 = vector.broadcast %34 : vector<1x256xf32> to vector<128x256xf32>
    %36 = arith.mulf %33, %35 : vector<128x256xf32>
    %37 = vector.shape_cast %15 : vector<256xf32> to vector<1x256xf32>
    %38 = vector.broadcast %37 : vector<1x256xf32> to vector<128x256xf32>
    %39 = arith.addf %36, %38 : vector<128x256xf32>
    %40 = arith.truncf %39 : vector<128x256xf32> to vector<128x256xbf16>
    %c0_18 = arith.constant 0 : index
    %c0_19 = arith.constant 0 : index
    %41 = vector.load %arg8[%c0_18, %c0_19] : memref<256x1024xbf16, #tpu.memory_space<vmem>>, vector<256x1024xbf16>
    %cst_20 = arith.constant dense<0.000000e+00> : vector<128x1024xf32>
    %42 = tpu.matmul %40, %41, %cst_20 {dimension_numbers = #tpu.dot_dimension_numbers<[1], [0], [0], [1], [0, 0, 1, 1], [], []>} : vector<128x256xbf16>, vector<256x1024xbf16>, vector<128x1024xf32> -> vector<128x1024xf32>
    %c0_21 = arith.constant 0 : index
    %c0_22 = arith.constant 0 : index
    %43 = vector.load %arg9[%c0_21, %c0_22] : memref<1x1024xf32, #tpu.memory_space<vmem>>, vector<1x1024xf32>
    %44 = vector.shape_cast %43 : vector<1x1024xf32> to vector<1024xf32>
    %45 = vector.shape_cast %44 : vector<1024xf32> to vector<1x1024xf32>
    %46 = vector.broadcast %45 : vector<1x1024xf32> to vector<128x1024xf32>
    %47 = arith.addf %42, %46 : vector<128x1024xf32>
    %cst_23 = arith.constant 1.702000e+00 : f32
    %48 = vector.broadcast %cst_23 : f32 to vector<128x1024xf32>
    %49 = arith.mulf %48, %47 : vector<128x1024xf32>
    %50 = arith.negf %49 : vector<128x1024xf32>
    %51 = math.exp %50 : vector<128x1024xf32>
    %cst_24 = arith.constant 1.000000e+00 : f32
    %52 = vector.broadcast %cst_24 : f32 to vector<128x1024xf32>
    %53 = arith.addf %52, %51 : vector<128x1024xf32>
    %54 = arith.divf %52, %53 : vector<128x1024xf32>
    %55 = arith.mulf %47, %54 : vector<128x1024xf32>
    %56 = arith.truncf %55 : vector<128x1024xf32> to vector<128x1024xbf16>
    %c0_25 = arith.constant 0 : index
    %c0_26 = arith.constant 0 : index
    %57 = vector.load %arg10[%c0_25, %c0_26] : memref<1024x256xbf16, #tpu.memory_space<vmem>>, vector<1024x256xbf16>
    %cst_27 = arith.constant dense<0.000000e+00> : vector<128x256xf32>
    %58 = tpu.matmul %56, %57, %cst_27 {dimension_numbers = #tpu.dot_dimension_numbers<[1], [0], [0], [1], [0, 0, 1, 1], [], []>} : vector<128x1024xbf16>, vector<1024x256xbf16>, vector<128x256xf32> -> vector<128x256xf32>
    %c0_28 = arith.constant 0 : index
    %c0_29 = arith.constant 0 : index
    %59 = vector.load %arg11[%c0_28, %c0_29] : memref<1x256xf32, #tpu.memory_space<vmem>>, vector<1x256xf32>
    %60 = vector.shape_cast %59 : vector<1x256xf32> to vector<256xf32>
    %61 = vector.shape_cast %60 : vector<256xf32> to vector<1x256xf32>
    %62 = vector.broadcast %61 : vector<1x256xf32> to vector<128x256xf32>
    %63 = arith.addf %58, %62 : vector<128x256xf32>
    %64 = arith.addf %11, %63 : vector<128x256xf32>
    %c0_30 = arith.constant 0 : index
    %c0_31 = arith.constant 0 : index
    %c0_32 = arith.constant 0 : index
    %65 = vector.load %arg12[%c0_30, %c0_31, %c0_32] : memref<1x128x256xf32, #tpu.memory_space<vmem>>, vector<1x128x256xf32>
    %66 = vector.shape_cast %65 : vector<1x128x256xf32> to vector<128x256xf32>
    %67 = vector.shape_cast %64 : vector<128x256xf32> to vector<1x128x256xf32>
    tpu.vector_store %arg12[%c0_30, %c0_31, %c0_32], %67 {strides = array<i32>} : memref<1x128x256xf32, #tpu.memory_space<vmem>>, vector<1x128x256xf32>,
    return
  }
  func.func @transform_0(%arg0: i32, %arg1: i32) -> (i32, i32, i32) {
    %c0_i32 = arith.constant 0 : i32
    %c0_i32_0 = arith.constant 0 : i32
    return %arg0, %arg1, %c0_i32 : i32, i32, i32
  }
  func.func @transform_1(%arg0: i32, %arg1: i32) -> (i32, i32, i32) {
    %c0_i32 = arith.constant 0 : i32
    %c0_i32_0 = arith.constant 0 : i32
    return %arg0, %arg1, %c0_i32 : i32, i32, i32
  }
  func.func @transform_2(%arg0: i32, %arg1: i32) -> (i32, i32) {
    %c0_i32 = arith.constant 0 : i32
    %c0_i32_0 = arith.constant 0 : i32
    %c0_i32_1 = arith.constant 0 : i32
    return %c0_i32, %c0_i32_0 : i32, i32
  }
  func.func @transform_3(%arg0: i32, %arg1: i32) -> (i32, i32) {
    %c0_i32 = arith.constant 0 : i32
    %c0_i32_0 = arith.constant 0 : i32
    %c0_i32_1 = arith.constant 0 : i32
    return %c0_i32, %c0_i32_0 : i32, i32
  }
  func.func @transform_4(%arg0: i32, %arg1: i32) -> (i32, i32) {
    %c0_i32 = arith.constant 0 : i32
    %c0_i32_0 = arith.constant 0 : i32
    %c0_i32_1 = arith.constant 0 : i32
    return %c0_i32, %c0_i32_0 : i32, i32
  }
  func.func @transform_5(%arg0: i32, %arg1: i32) -> (i32, i32) {
    %c0_i32 = arith.constant 0 : i32
    %c0_i32_0 = arith.constant 0 : i32
    %c0_i32_1 = arith.constant 0 : i32
    return %c0_i32, %c0_i32_0 : i32, i32
  }
  func.func @transform_6(%arg0: i32, %arg1: i32) -> (i32, i32) {
    %c0_i32 = arith.constant 0 : i32
    %c0_i32_0 = arith.constant 0 : i32
    %c0_i32_1 = arith.constant 0 : i32
    return %c0_i32, %c0_i32_0 : i32, i32
  }
  func.func @transform_7(%arg0: i32, %arg1: i32) -> (i32, i32) {
    %c0_i32 = arith.constant 0 : i32
    %c0_i32_0 = arith.constant 0 : i32
    %c0_i32_1 = arith.constant 0 : i32
    return %c0_i32, %c0_i32_0 : i32, i32
  }
  func.func @transform_8(%arg0: i32, %arg1: i32) -> (i32, i32) {
    %c0_i32 = arith.constant 0 : i32
    %c0_i32_0 = arith.constant 0 : i32
    %c0_i32_1 = arith.constant 0 : i32
    return %c0_i32, %c0_i32_0 : i32, i32
  }
  func.func @transform_9(%arg0: i32, %arg1: i32) -> (i32, i32) {
    %c0_i32 = arith.constant 0 : i32
    %c0_i32_0 = arith.constant 0 : i32
    %c0_i32_1 = arith.constant 0 : i32
    return %c0_i32, %c0_i32_0 : i32, i32
  }
  func.func @transform_10(%arg0: i32, %arg1: i32) -> (i32, i32, i32) {
    %c0_i32 = arith.constant 0 : i32
    %c0_i32_0 = arith.constant 0 : i32
    return %arg0, %arg1, %c0_i32 : i32, i32, i32
  }
}

module attributes {stable_mosaic.version = 11 : i64} {
  func.func @_qkv_kernel(%arg0: i32, %arg1: i32, %arg2: memref<1x128x256xf32, #tpu.memory_space<vmem>>, %arg3: memref<1x256xf32, #tpu.memory_space<vmem>>, %arg4: memref<1x256xf32, #tpu.memory_space<vmem>>, %arg5: memref<256x768xbf16, #tpu.memory_space<vmem>>, %arg6: memref<1x768xf32, #tpu.memory_space<vmem>>, %arg7: memref<1x128x768xbf16, #tpu.memory_space<vmem>>) attributes {dimension_semantics = [#tpu.dimension_semantics<parallel>, #tpu.dimension_semantics<parallel>], iteration_bounds = array<i64: 2, 1>, scalar_prefetch = 0 : i64, scratch_operands = 0 : i64, tpu.core_type = #tpu.core_type<tc>, window_params = [{transform_indices = @transform_0, window_bounds = array<i64: 1, 128, 256>}, {pipeline_mode = #tpu.pipeline_mode<synchronous>, transform_indices = @transform_1, window_bounds = array<i64: 1, 256>}, {pipeline_mode = #tpu.pipeline_mode<synchronous>, transform_indices = @transform_2, window_bounds = array<i64: 1, 256>}, {pipeline_mode = #tpu.pipeline_mode<synchronous>, transform_indices = @transform_3, window_bounds = array<i64: 256, 768>}, {pipeline_mode = #tpu.pipeline_mode<synchronous>, transform_indices = @transform_4, window_bounds = array<i64: 1, 768>}, {transform_indices = @transform_5, window_bounds = array<i64: 1, 128, 768>}]} {
    %c0 = arith.constant 0 : index
    %c0_0 = arith.constant 0 : index
    %c0_1 = arith.constant 0 : index
    %0 = vector.load %arg2[%c0, %c0_0, %c0_1] : memref<1x128x256xf32, #tpu.memory_space<vmem>>, vector<1x128x256xf32>
    %1 = vector.shape_cast %0 : vector<1x128x256xf32> to vector<128x256xf32>
    %c0_2 = arith.constant 0 : index
    %c0_3 = arith.constant 0 : index
    %2 = vector.load %arg3[%c0_2, %c0_3] : memref<1x256xf32, #tpu.memory_space<vmem>>, vector<1x256xf32>
    %3 = vector.shape_cast %2 : vector<1x256xf32> to vector<256xf32>
    %c0_4 = arith.constant 0 : index
    %c0_5 = arith.constant 0 : index
    %4 = vector.load %arg4[%c0_4, %c0_5] : memref<1x256xf32, #tpu.memory_space<vmem>>, vector<1x256xf32>
    %5 = vector.shape_cast %4 : vector<1x256xf32> to vector<256xf32>
    %cst = arith.constant dense<0.000000e+00> : vector<128xf32>
    %6 = vector.multi_reduction <add>, %1, %cst [1] : vector<128x256xf32> to vector<128xf32>
    %7 = vector.shape_cast %6 : vector<128xf32> to vector<128x1xf32>
    %cst_6 = arith.constant 2.560000e+02 : f32
    %8 = vector.broadcast %cst_6 : f32 to vector<128x1xf32>
    %9 = arith.divf %7, %8 : vector<128x1xf32>
    %10 = vector.broadcast %9 : vector<128x1xf32> to vector<128x256xf32>
    %11 = arith.subf %1, %10 : vector<128x256xf32>
    %12 = arith.mulf %11, %11 : vector<128x256xf32>
    %cst_7 = arith.constant dense<0.000000e+00> : vector<128xf32>
    %13 = vector.multi_reduction <add>, %12, %cst_7 [1] : vector<128x256xf32> to vector<128xf32>
    %14 = vector.shape_cast %13 : vector<128xf32> to vector<128x1xf32>
    %cst_8 = arith.constant 2.560000e+02 : f32
    %15 = vector.broadcast %cst_8 : f32 to vector<128x1xf32>
    %16 = arith.divf %14, %15 : vector<128x1xf32>
    %17 = vector.broadcast %9 : vector<128x1xf32> to vector<128x256xf32>
    %18 = arith.subf %1, %17 : vector<128x256xf32>
    %cst_9 = arith.constant 9.99999974E-6 : f32
    %19 = vector.broadcast %cst_9 : f32 to vector<128x1xf32>
    %20 = arith.addf %16, %19 : vector<128x1xf32>
    %21 = math.rsqrt %20 : vector<128x1xf32>
    %22 = vector.broadcast %21 : vector<128x1xf32> to vector<128x256xf32>
    %23 = arith.mulf %18, %22 : vector<128x256xf32>
    %24 = vector.shape_cast %3 : vector<256xf32> to vector<1x256xf32>
    %25 = vector.broadcast %24 : vector<1x256xf32> to vector<128x256xf32>
    %26 = arith.mulf %23, %25 : vector<128x256xf32>
    %27 = vector.shape_cast %5 : vector<256xf32> to vector<1x256xf32>
    %28 = vector.broadcast %27 : vector<1x256xf32> to vector<128x256xf32>
    %29 = arith.addf %26, %28 : vector<128x256xf32>
    %30 = arith.truncf %29 : vector<128x256xf32> to vector<128x256xbf16>
    %c0_10 = arith.constant 0 : index
    %c0_11 = arith.constant 0 : index
    %31 = vector.load %arg5[%c0_10, %c0_11] : memref<256x768xbf16, #tpu.memory_space<vmem>>, vector<256x768xbf16>
    %cst_12 = arith.constant dense<0.000000e+00> : vector<128x768xf32>
    %32 = tpu.matmul %30, %31, %cst_12 {dimension_numbers = #tpu.dot_dimension_numbers<[1], [0], [0], [1], [0, 0, 1, 1], [], []>} : vector<128x256xbf16>, vector<256x768xbf16>, vector<128x768xf32> -> vector<128x768xf32>
    %c0_13 = arith.constant 0 : index
    %c0_14 = arith.constant 0 : index
    %33 = vector.load %arg6[%c0_13, %c0_14] : memref<1x768xf32, #tpu.memory_space<vmem>>, vector<1x768xf32>
    %34 = vector.shape_cast %33 : vector<1x768xf32> to vector<768xf32>
    %35 = vector.shape_cast %34 : vector<768xf32> to vector<1x768xf32>
    %36 = vector.broadcast %35 : vector<1x768xf32> to vector<128x768xf32>
    %37 = arith.addf %32, %36 : vector<128x768xf32>
    %38 = arith.truncf %37 : vector<128x768xf32> to vector<128x768xbf16>
    %c0_15 = arith.constant 0 : index
    %c0_16 = arith.constant 0 : index
    %c0_17 = arith.constant 0 : index
    %39 = vector.load %arg7[%c0_15, %c0_16, %c0_17] : memref<1x128x768xbf16, #tpu.memory_space<vmem>>, vector<1x128x768xbf16>
    %40 = vector.shape_cast %39 : vector<1x128x768xbf16> to vector<128x768xbf16>
    %41 = vector.shape_cast %38 : vector<128x768xbf16> to vector<1x128x768xbf16>
    tpu.vector_store %arg7[%c0_15, %c0_16, %c0_17], %41 {strides = array<i32>} : memref<1x128x768xbf16, #tpu.memory_space<vmem>>, vector<1x128x768xbf16>,
    return
  }
  func.func @transform_0(%arg0: i32, %arg1: i32) -> (i32, i32, i32) {
    %c0_i32 = arith.constant 0 : i32
    %c0_i32_0 = arith.constant 0 : i32
    return %arg0, %arg1, %c0_i32 : i32, i32, i32
  }
  func.func @transform_1(%arg0: i32, %arg1: i32) -> (i32, i32) {
    %c0_i32 = arith.constant 0 : i32
    %c0_i32_0 = arith.constant 0 : i32
    %c0_i32_1 = arith.constant 0 : i32
    return %c0_i32, %c0_i32_0 : i32, i32
  }
  func.func @transform_2(%arg0: i32, %arg1: i32) -> (i32, i32) {
    %c0_i32 = arith.constant 0 : i32
    %c0_i32_0 = arith.constant 0 : i32
    %c0_i32_1 = arith.constant 0 : i32
    return %c0_i32, %c0_i32_0 : i32, i32
  }
  func.func @transform_3(%arg0: i32, %arg1: i32) -> (i32, i32) {
    %c0_i32 = arith.constant 0 : i32
    %c0_i32_0 = arith.constant 0 : i32
    %c0_i32_1 = arith.constant 0 : i32
    return %c0_i32, %c0_i32_0 : i32, i32
  }
  func.func @transform_4(%arg0: i32, %arg1: i32) -> (i32, i32) {
    %c0_i32 = arith.constant 0 : i32
    %c0_i32_0 = arith.constant 0 : i32
    %c0_i32_1 = arith.constant 0 : i32
    return %c0_i32, %c0_i32_0 : i32, i32
  }
  func.func @transform_5(%arg0: i32, %arg1: i32) -> (i32, i32, i32) {
    %c0_i32 = arith.constant 0 : i32
    %c0_i32_0 = arith.constant 0 : i32
    return %arg0, %arg1, %c0_i32 : i32, i32, i32
  }
}

</mosaic_0001>

<llo_original>
// kernel: transformer_forward.7
$region0: #{transformer_forward.7}
  #allocation0 [shape = 'u32[]', space=smem, size = 0x4, offset = 0x4, fixed_abs, tag = 'smem constant byte address 0x4 - core index']
  #allocation1 [shape = 'u32[144,128]{1,0:T(1,128)}', space=vmem, size = 0x12000, scoped, tag = 'internal scratch']
  %s0 = inlined_call_operand.vmem [shape: bf16[2,128,768], index: 0, kind: input, shape index: {}, may-alias: {0,1,2}]
  %s1 = inlined_call_operand.vmem [shape: bf16[2,128,768], index: 1, kind: input, shape index: {}, may-alias: {0,1,2}]
  %s2 = inlined_call_operand.vmem [shape: bf16[2,128,768], index: 2, kind: input, shape index: {}, may-alias: {0,1,2}]
  %s3 = inlined_call_operand.vmem [shape: bf16[2,128,256], index: 3, kind: output, shape index: {}]
  %s4 = sld [smem:[#allocation0]]
  $region205: #{transformer_forward.7} parent=0
    _
  %s6 = ssub.s32 1, %s4
  %s7 = scalar_select 0, %s6, %s4
  $region1: #{transformer_forward.7} parent=0
    #allocation2 [shape = 'u8[65536]{0}', space=vmem, size = 0x10000, scoped, tag = 'input window, operand 0']
    #allocation3 [shape = 'u8[65536]{0}', space=vmem, size = 0x10000, scoped, tag = 'input window, operand 1']
    #allocation4 [shape = 'u8[65536]{0}', space=vmem, size = 0x10000, scoped, tag = 'input window, operand 2']
    #allocation5 [shape = 'u8[65536]{0}', space=vmem, size = 0x10000, scoped, tag = 'output window, operand 0']
    loop: start=0, step=1, limit=6
    $region2: #{transformer_forward.7} parent=1 // loop_pre_header
      _
    $region3: #{transformer_forward.7} parent=1 // loop_header
      %s9 = sphi 0, %s13
      %p10 = scmp.ge.s32.totalorder %s9, 6
      %s16 = sphi 0, %s35
      %s17 = sphi 0, %s31
      %s18 = sphi 0, %s27
      %s19 = sphi 0, %s16
      %s20 = sphi 0, %s17
      %s21 = sphi 0, %s18
      %s22 = sphi 0, %s19
      %s23 = sphi 0, %s20
      %s24 = sphi 0, %s21
      %s42 = sphi 0, %s44
      %s45 = sphi 0, %s42
      %s46 = sphi 0, %s45
      %s62 = sphi 0, %s46
      %s72 = sphi 0, %s74
      %s75 = sphi 0, %s72
      %s76 = sphi 0, %s75
      %s92 = sphi 0, %s76
      %s102 = sphi 0, %s104
      %s105 = sphi 0, %s102
      %s106 = sphi 0, %s105
      %s122 = sphi 0, %s106
      %s132 = sphi 0, %s134
      %s135 = sphi 0, %s132
      %s136 = sphi 0, %s135
      %s152 = sphi 0, %s136
    $region4: #{transformer_forward.7} parent=1 // loop_header_branch
      %12 = sbr.rel (%p10) target = $region8
    $region5: #{transformer_forward.7} parent=1 // loop_body
      %s14 = ssub.s32 %s9, 1
      %s15 = ssub.s32 %s9, 2
      %s25 = sadd.s32 1, %s18
      %p26 = scmp.ge.s32.totalorder %s25, 1
      %s27 = scalar_select %p26, 0, %s25
      %s28 = sadd.s32 1, %s17
      %s29 = scalar_select %p26, %s28, %s17
      %p30 = scmp.ge.s32.totalorder %s29, 2
      %s31 = scalar_select %p30, 0, %s29
      %s32 = sadd.s32 1, %s16
      %s33 = scalar_select %p30, %s32, %s16
      %p34 = scmp.ge.s32.totalorder %s33, 2
      %s35 = scalar_select %p34, 0, %s33
      %s36 = ssub.s32 %s16, %s35
      %s37 = ssub.s32 %s18, %s27
      %s38 = sor.u32 %s36, %s37
      %s39 = ssub.s32 %s17, %s31
      %s40 = sor.u32 %s38, %s39
      %p41 = scmp.eq.s32.totalorder %s40, 0
      %s43 = sadd.s32 %s42, 1
      %s44 = scalar_select %p41, %s42, %s43
      %p47 = pneg %p41
      %p48 = scmp.eq.s32.totalorder %s9, 3
      %p49 = por %p47, %p48
      %p50 = scmp.ne.s32.totalorder %s42, %s45
      %p51 = scmp.eq.s32.totalorder %s9, 0
      %p52 = por %p50, %p51
      %p53 = scmp.ne.s32.totalorder %s42, %s45
      %p54 = scmp.eq.s32.totalorder %s14, 3
      %p55 = por %p53, %p54
      %p56 = scmp.ne.s32.totalorder %s45, %s46
      %p57 = scmp.eq.s32.totalorder %s14, 0
      %p58 = por %p56, %p57
      %p59 = scmp.ne.s32.totalorder %s45, %s46
      %p60 = scmp.eq.s32.totalorder %s15, 3
      %p61 = por %p59, %p60
      %p63 = scmp.ne.s32.totalorder %s46, %s62
      %p64 = scmp.eq.s32.totalorder %s15, 0
      %p65 = por %p63, %p64
      %s66 = sadd.s32 %s17, 2
      %s67 = sadd.s32 %s31, 2
      %s68 = ssub.s32 %s16, %s35
      %s69 = ssub.s32 %s66, %s67
      %s70 = sor.u32 %s68, %s69
      %p71 = scmp.eq.s32.totalorder %s70, 0
      %s73 = sadd.s32 %s72, 1
      %s74 = scalar_select %p71, %s72, %s73
      %p77 = pneg %p71
      %p78 = scmp.eq.s32.totalorder %s9, 3
      %p79 = por %p77, %p78
      %p80 = scmp.ne.s32.totalorder %s72, %s75
      %p81 = scmp.eq.s32.totalorder %s9, 0
      %p82 = por %p80, %p81
      %p83 = scmp.ne.s32.totalorder %s72, %s75
      %p84 = scmp.eq.s32.totalorder %s14, 3
      %p85 = por %p83, %p84
      %p86 = scmp.ne.s32.totalorder %s75, %s76
      %p87 = scmp.eq.s32.totalorder %s14, 0
      %p88 = por %p86, %p87
      %p89 = scmp.ne.s32.totalorder %s75, %s76
      %p90 = scmp.eq.s32.totalorder %s15, 3
      %p91 = por %p89, %p90
      %p93 = scmp.ne.s32.totalorder %s76, %s92
      %p94 = scmp.eq.s32.totalorder %s15, 0
      %p95 = por %p93, %p94
      %s96 = sadd.s32 %s17, 4
      %s97 = sadd.s32 %s31, 4
      %s98 = ssub.s32 %s16, %s35
      %s99 = ssub.s32 %s96, %s97
      %s100 = sor.u32 %s98, %s99
      %p101 = scmp.eq.s32.totalorder %s100, 0
      %s103 = sadd.s32 %s102, 1
      %s104 = scalar_select %p101, %s102, %s103
      %p107 = pneg %p101
      %p108 = scmp.eq.s32.totalorder %s9, 3
      %p109 = por %p107, %p108
      %p110 = scmp.ne.s32.totalorder %s102, %s105
      %p111 = scmp.eq.s32.totalorder %s9, 0
      %p112 = por %p110, %p111
      %p113 = scmp.ne.s32.totalorder %s102, %s105
      %p114 = scmp.eq.s32.totalorder %s14, 3
      %p115 = por %p113, %p114
      %p116 = scmp.ne.s32.totalorder %s105, %s106
      %p117 = scmp.eq.s32.totalorder %s14, 0
      %p118 = por %p116, %p117
      %p119 = scmp.ne.s32.totalorder %s105, %s106
      %p120 = scmp.eq.s32.totalorder %s15, 3
      %p121 = por %p119, %p120
      %p123 = scmp.ne.s32.totalorder %s106, %s122
      %p124 = scmp.eq.s32.totalorder %s15, 0
      %p125 = por %p123, %p124
      %s126 = ssub.s32 %s16, %s35
      %s127 = ssub.s32 %s18, %s27
      %s128 = sor.u32 %s126, %s127
      %s129 = ssub.s32 %s17, %s31
      %s130 = sor.u32 %s128, %s129
      %p131 = scmp.eq.s32.totalorder %s130, 0
      %s133 = sadd.s32 %s132, 1
      %s134 = scalar_select %p131, %s132, %s133
      %p137 = pneg %p131
      %p138 = scmp.eq.s32.totalorder %s9, 3
      %p139 = por %p137, %p138
      %p140 = scmp.ne.s32.totalorder %s132, %s135
      %p141 = scmp.eq.s32.totalorder %s9, 0
      %p142 = por %p140, %p141
      %p143 = scmp.ne.s32.totalorder %s132, %s135
      %p144 = scmp.eq.s32.totalorder %s14, 3
      %p145 = por %p143, %p144
      %p146 = scmp.ne.s32.totalorder %s135, %s136
      %p147 = scmp.eq.s32.totalorder %s14, 0
      %p148 = por %p146, %p147
      %p149 = scmp.ne.s32.totalorder %s135, %s136
      %p150 = scmp.eq.s32.totalorder %s15, 3
      %p151 = por %p149, %p150
      %p153 = scmp.ne.s32.totalorder %s136, %s152
      %p154 = scmp.eq.s32.totalorder %s15, 0
      %p155 = por %p153, %p154
      %p156 = scmp.le.s32.totalorder 1, %s9
      %p157 = scmp.lt.s32.totalorder %s9, 5
      %p158 = pnand %p156, %p157
      %p159 = pneg %p158
      // Predicated region
      $region9: #{transformer_forward.7} parent=5 // pred_check
        _
      $region10: #{transformer_forward.7} parent=5 // pred_check_branch
        %161 = sbr.rel (%p158) target = $region12
      $region11: #{transformer_forward.7} parent=5 // pred_region
        %s162 = ssub.s32 %s9, 1
      $region12: #{transformer_forward.7} parent=5 // pred_fallthru
        _
      %p163 = scmp.lt.s32.totalorder %s9, 4
      // Predicated region
      $region13: #{transformer_forward.7} parent=5 // pred_check
        %p164 = pneg %p163
      $region14: #{transformer_forward.7} parent=5 // pred_check_branch
        %166 = sbr.rel (%p164) target = $region16
      $region15: #{transformer_forward.7} parent=5 // pred_region
        // Predicated region
        $region17: #{transformer_forward.7} parent=15 // pred_check
          %p167 = pneg %p52
        $region18: #{transformer_forward.7} parent=15 // pred_check_branch
          %169 = sbr.rel (%p167) target = $region20
        $region19: #{transformer_forward.7} parent=15 // pred_region
          %s170 = sand.u32 %s42, 1
          %s171 = sand.u32 %s42, 1
          %s172 = smul.addr %s171, 64
          %s173 = scalar_lea.vmem [#allocation2], %s172
          %s174 = smul.u32 16, %s18
          %s175 = smul.addr %s174, 6
          %s176 = sadd.s32 %s17, %s175
          %s177 = smul.addr %s16, 96
          %s178 = sadd.s32 %s176, %s177
          %s179 = smul.addr %s178, 4
          %s180 = scalar_lea.vmem %s0, %s179
          // Predicated region
          $region21: #{transformer_forward.7} parent=19 // pred_check
            _
          $region22: #{transformer_forward.7} parent=19 // pred_check_branch
            %182 = sbr.rel (0) target = $region24
          $region23: #{transformer_forward.7} parent=19 // pred_region
            // Predicated region
            $region25: #{transformer_forward.7} parent=23 // pred_check
              _
            $region26: #{transformer_forward.7} parent=23 // pred_check_branch
              %184 = sbr.rel target = $region28
            $region27: #{transformer_forward.7} parent=23 // pred_region
              // Predicated region
              $region40: #{transformer_forward.7} parent=27 // pred_check
                _
              $region41: #{transformer_forward.7} parent=27 // pred_check_branch
                %230 = sbr.rel (0) target = $region43
              $region42: #{transformer_forward.7} parent=27 // pred_region
                loop: start=0, step=1, limit=1
                $region44: #{transformer_forward.7} parent=42 // loop_pre_header
                  _
                $region45: #{transformer_forward.7} parent=42 // loop_header
                  %s232 = sphi 0, %s236
                  %p233 = scmp.ge.s32.totalorder %s232, 1
                  %s237 = sphi %s180, %s180
                  %s238 = sphi %s173, %s173
                $region46: #{transformer_forward.7} parent=42 // loop_header_branch
                  %235 = sbr.rel (%p233) target = $region50
                $region47: #{transformer_forward.7} parent=42 // loop_body
                  _
                $region48: #{transformer_forward.7} parent=42 // loop_footer
                  %s236 = sadd.s32 1, %s232
                $region49: #{transformer_forward.7} parent=42 // loop_footer_branch
                  %231 = sbr.rel target = $region45
                $region50: #{transformer_forward.7} parent=42 // loop_exit
                  _
                %s240 = ssub.s32 16, 1
                loop: start=0, step=1, limit=1
                $region51: #{transformer_forward.7} parent=42 // loop_pre_header
                  _
                $region52: #{transformer_forward.7} parent=42 // loop_header
                  %s242 = sphi 0, %s246
                  %p243 = scmp.ge.s32.totalorder %s242, 1
                  %s247 = sphi %s180, %s180
                  %s248 = sphi %s173, %s173
                $region53: #{transformer_forward.7} parent=42 // loop_header_branch
                  %245 = sbr.rel (%p243) target = $region57
                $region54: #{transformer_forward.7} parent=42 // loop_body
                  %v249 = vld [vmem:[%s247] sm:%s240]
                  %250 = vst [vmem:[%s248] sm:%s240] %v249
                  %v251 = vld [vmem:[%s247 + $0x18] sm:%s240]
                  %252 = vst [vmem:[%s248 + $0x4] sm:%s240] %v251
                  %v253 = vld [vmem:[%s247 + $0x30] sm:%s240]
                  %254 = vst [vmem:[%s248 + $0x8] sm:%s240] %v253
                  %v255 = vld [vmem:[%s247 + $0x48] sm:%s240]
                  %256 = vst [vmem:[%s248 + $0xc] sm:%s240] %v255
                  %v257 = vld [vmem:[%s247 + $0x60] sm:%s240]
                  %258 = vst [vmem:[%s248 + $0x10] sm:%s240] %v257
                  %v259 = vld [vmem:[%s247 + $0x78] sm:%s240]
                  %260 = vst [vmem:[%s248 + $0x14] sm:%s240] %v259
                  %v261 = vld [vmem:[%s247 + $0x90] sm:%s240]
                  %262 = vst [vmem:[%s248 + $0x18] sm:%s240] %v261
                  %v263 = vld [vmem:[%s247 + $0xa8] sm:%s240]
                  %264 = vst [vmem:[%s248 + $0x1c] sm:%s240] %v263
                  %v265 = vld [vmem:[%s247 + $0xc0] sm:%s240]
                  %266 = vst [vmem:[%s248 + $0x20] sm:%s240] %v265
                  %v267 = vld [vmem:[%s247 + $0xd8] sm:%s240]
                  %268 = vst [vmem:[%s248 + $0x24] sm:%s240] %v267
                  %v269 = vld [vmem:[%s247 + $0xf0] sm:%s240]
                  %270 = vst [vmem:[%s248 + $0x28] sm:%s240] %v269
                  %v271 = vld [vmem:[%s247 + $0x108] sm:%s240]
                  %272 = vst [vmem:[%s248 + $0x2c] sm:%s240] %v271
                  %v273 = vld [vmem:[%s247 + $0x120] sm:%s240]
                  %274 = vst [vmem:[%s248 + $0x30] sm:%s240] %v273
                  %v275 = vld [vmem:[%s247 + $0x138] sm:%s240]
                  %276 = vst [vmem:[%s248 + $0x34] sm:%s240] %v275
                  %v277 = vld [vmem:[%s247 + $0x150] sm:%s240]
                  %278 = vst [vmem:[%s248 + $0x38] sm:%s240] %v277
                  %v279 = vld [vmem:[%s247 + $0x168] sm:%s240]
                  %280 = vst [vmem:[%s248 + $0x3c] sm:%s240] %v279
                $region55: #{transformer_forward.7} parent=42 // loop_footer
                  %s246 = sadd.s32 1, %s242
                $region56: #{transformer_forward.7} parent=42 // loop_footer_branch
                  %241 = sbr.rel target = $region52
                $region57: #{transformer_forward.7} parent=42 // loop_exit
                  _
              $region43: #{transformer_forward.7} parent=27 // pred_fallthru
                _
            $region28: #{transformer_forward.7} parent=23 // pred_fallthru
              _
            // Predicated region
            $region29: #{transformer_forward.7} parent=23 // pred_check
              _
            $region30: #{transformer_forward.7} parent=23 // pred_check_branch
              %186 = sbr.rel (0) target = $region32
            $region31: #{transformer_forward.7} parent=23 // pred_region
              %s188 = ssub.s32 16, 1
              loop: start=0, step=1, limit=1
              $region33: #{transformer_forward.7} parent=31 // loop_pre_header
                _
              $region34: #{transformer_forward.7} parent=31 // loop_header
                %s190 = sphi 0, %s194
                %p191 = scmp.ge.s32.totalorder %s190, 1
                %s195 = sphi %s180, %s180
                %s196 = sphi %s173, %s173
              $region35: #{transformer_forward.7} parent=31 // loop_header_branch
                %193 = sbr.rel (%p191) target = $region39
              $region36: #{transformer_forward.7} parent=31 // loop_body
                %v197 = vld [vmem:[%s195] sm:%s188]
                %198 = vst [vmem:[%s196] sm:%s188] %v197
                %v199 = vld [vmem:[%s195 + $0x18] sm:%s188]
                %200 = vst [vmem:[%s196 + $0x4] sm:%s188] %v199
                %v201 = vld [vmem:[%s195 + $0x30] sm:%s188]
                %202 = vst [vmem:[%s196 + $0x8] sm:%s188] %v201
                %v203 = vld [vmem:[%s195 + $0x48] sm:%s188]
                %204 = vst [vmem:[%s196 + $0xc] sm:%s188] %v203
                %v205 = vld [vmem:[%s195 + $0x60] sm:%s188]
                %206 = vst [vmem:[%s196 + $0x10] sm:%s188] %v205
                %v207 = vld [vmem:[%s195 + $0x78] sm:%s188]
                %208 = vst [vmem:[%s196 + $0x14] sm:%s188] %v207
                %v209 = vld [vmem:[%s195 + $0x90] sm:%s188]
                %210 = vst [vmem:[%s196 + $0x18] sm:%s188] %v209
                %v211 = vld [vmem:[%s195 + $0xa8] sm:%s188]
                %212 = vst [vmem:[%s196 + $0x1c] sm:%s188] %v211
                %v213 = vld [vmem:[%s195 + $0xc0] sm:%s188]
                %214 = vst [vmem:[%s196 + $0x20] sm:%s188] %v213
                %v215 = vld [vmem:[%s195 + $0xd8] sm:%s188]
                %216 = vst [vmem:[%s196 + $0x24] sm:%s188] %v215
                %v217 = vld [vmem:[%s195 + $0xf0] sm:%s188]
                %218 = vst [vmem:[%s196 + $0x28] sm:%s188] %v217
                %v219 = vld [vmem:[%s195 + $0x108] sm:%s188]
                %220 = vst [vmem:[%s196 + $0x2c] sm:%s188] %v219
                %v221 = vld [vmem:[%s195 + $0x120] sm:%s188]
                %222 = vst [vmem:[%s196 + $0x30] sm:%s188] %v221
                %v223 = vld [vmem:[%s195 + $0x138] sm:%s188]
                %224 = vst [vmem:[%s196 + $0x34] sm:%s188] %v223
                %v225 = vld [vmem:[%s195 + $0x150] sm:%s188]
                %226 = vst [vmem:[%s196 + $0x38] sm:%s188] %v225
                %v227 = vld [vmem:[%s195 + $0x168] sm:%s188]
                %228 = vst [vmem:[%s196 + $0x3c] sm:%s188] %v227
              $region37: #{transformer_forward.7} parent=31 // loop_footer
                %s194 = sadd.s32 1, %s190
              $region38: #{transformer_forward.7} parent=31 // loop_footer_branch
                %189 = sbr.rel target = $region34
              $region39: #{transformer_forward.7} parent=31 // loop_exit
                _
            $region32: #{transformer_forward.7} parent=23 // pred_fallthru
              _
          $region24: #{transformer_forward.7} parent=19 // pred_fallthru
            _
          %281 = vnop
        $region20: #{transformer_forward.7} parent=15 // pred_fallthru
          _
        // Predicated region
        $region58: #{transformer_forward.7} parent=15 // pred_check
          %p282 = pneg %p82
        $region59: #{transformer_forward.7} parent=15 // pred_check_branch
          %284 = sbr.rel (%p282) target = $region61
        $region60: #{transformer_forward.7} parent=15 // pred_region
          %s285 = sand.u32 %s72, 1
          %s286 = sand.u32 %s72, 1
          %s287 = smul.addr %s286, 64
          %s288 = scalar_lea.vmem [#allocation3], %s287
          %s289 = sadd.s32 %s17, 2
          %s290 = smul.addr %s16, 96
          %s291 = sadd.s32 %s289, %s290
          %s292 = smul.addr %s291, 4
          %s293 = scalar_lea.vmem %s1, %s292
          // Predicated region
          $region62: #{transformer_forward.7} parent=60 // pred_check
            _
          $region63: #{transformer_forward.7} parent=60 // pred_check_branch
            %295 = sbr.rel (0) target = $region65
          $region64: #{transformer_forward.7} parent=60 // pred_region
            // Predicated region
            $region66: #{transformer_forward.7} parent=64 // pred_check
              _
            $region67: #{transformer_forward.7} parent=64 // pred_check_branch
              %297 = sbr.rel target = $region69
            $region68: #{transformer_forward.7} parent=64 // pred_region
              // Predicated region
              $region81: #{transformer_forward.7} parent=68 // pred_check
                _
              $region82: #{transformer_forward.7} parent=68 // pred_check_branch
                %343 = sbr.rel (0) target = $region84
              $region83: #{transformer_forward.7} parent=68 // pred_region
                loop: start=0, step=1, limit=1
                $region85: #{transformer_forward.7} parent=83 // loop_pre_header
                  _
                $region86: #{transformer_forward.7} parent=83 // loop_header
                  %s345 = sphi 0, %s349
                  %p346 = scmp.ge.s32.totalorder %s345, 1
                  %s350 = sphi %s293, %s293
                  %s351 = sphi %s288, %s288
                $region87: #{transformer_forward.7} parent=83 // loop_header_branch
                  %348 = sbr.rel (%p346) target = $region91
                $region88: #{transformer_forward.7} parent=83 // loop_body
                  _
                $region89: #{transformer_forward.7} parent=83 // loop_footer
                  %s349 = sadd.s32 1, %s345
                $region90: #{transformer_forward.7} parent=83 // loop_footer_branch
                  %344 = sbr.rel target = $region86
                $region91: #{transformer_forward.7} parent=83 // loop_exit
                  _
                %s353 = ssub.s32 16, 1
                loop: start=0, step=1, limit=1
                $region92: #{transformer_forward.7} parent=83 // loop_pre_header
                  _
                $region93: #{transformer_forward.7} parent=83 // loop_header
                  %s355 = sphi 0, %s359
                  %p356 = scmp.ge.s32.totalorder %s355, 1
                  %s360 = sphi %s293, %s293
                  %s361 = sphi %s288, %s288
                $region94: #{transformer_forward.7} parent=83 // loop_header_branch
                  %358 = sbr.rel (%p356) target = $region98
                $region95: #{transformer_forward.7} parent=83 // loop_body
                  %v362 = vld [vmem:[%s360] sm:%s353]
                  %363 = vst [vmem:[%s361] sm:%s353] %v362
                  %v364 = vld [vmem:[%s360 + $0x18] sm:%s353]
                  %365 = vst [vmem:[%s361 + $0x4] sm:%s353] %v364
                  %v366 = vld [vmem:[%s360 + $0x30] sm:%s353]
                  %367 = vst [vmem:[%s361 + $0x8] sm:%s353] %v366
                  %v368 = vld [vmem:[%s360 + $0x48] sm:%s353]
                  %369 = vst [vmem:[%s361 + $0xc] sm:%s353] %v368
                  %v370 = vld [vmem:[%s360 + $0x60] sm:%s353]
                  %371 = vst [vmem:[%s361 + $0x10] sm:%s353] %v370
                  %v372 = vld [vmem:[%s360 + $0x78] sm:%s353]
                  %373 = vst [vmem:[%s361 + $0x14] sm:%s353] %v372
                  %v374 = vld [vmem:[%s360 + $0x90] sm:%s353]
                  %375 = vst [vmem:[%s361 + $0x18] sm:%s353] %v374
                  %v376 = vld [vmem:[%s360 + $0xa8] sm:%s353]
                  %377 = vst [vmem:[%s361 + $0x1c] sm:%s353] %v376
                  %v378 = vld [vmem:[%s360 + $0xc0] sm:%s353]
                  %379 = vst [vmem:[%s361 + $0x20] sm:%s353] %v378
                  %v380 = vld [vmem:[%s360 + $0xd8] sm:%s353]
                  %381 = vst [vmem:[%s361 + $0x24] sm:%s353] %v380
                  %v382 = vld [vmem:[%s360 + $0xf0] sm:%s353]
                  %383 = vst [vmem:[%s361 + $0x28] sm:%s353] %v382
                  %v384 = vld [vmem:[%s360 + $0x108] sm:%s353]
                  %385 = vst [vmem:[%s361 + $0x2c] sm:%s353] %v384
                  %v386 = vld [vmem:[%s360 + $0x120] sm:%s353]
                  %387 = vst [vmem:[%s361 + $0x30] sm:%s353] %v386
                  %v388 = vld [vmem:[%s360 + $0x138] sm:%s353]
                  %389 = vst [vmem:[%s361 + $0x34] sm:%s353] %v388
                  %v390 = vld [vmem:[%s360 + $0x150] sm:%s353]
                  %391 = vst [vmem:[%s361 + $0x38] sm:%s353] %v390
                  %v392 = vld [vmem:[%s360 + $0x168] sm:%s353]
                  %393 = vst [vmem:[%s361 + $0x3c] sm:%s353] %v392
                $region96: #{transformer_forward.7} parent=83 // loop_footer
                  %s359 = sadd.s32 1, %s355
                $region97: #{transformer_forward.7} parent=83 // loop_footer_branch
                  %354 = sbr.rel target = $region93
                $region98: #{transformer_forward.7} parent=83 // loop_exit
                  _
              $region84: #{transformer_forward.7} parent=68 // pred_fallthru
                _
            $region69: #{transformer_forward.7} parent=64 // pred_fallthru
              _
            // Predicated region
            $region70: #{transformer_forward.7} parent=64 // pred_check
              _
            $region71: #{transformer_forward.7} parent=64 // pred_check_branch
              %299 = sbr.rel (0) target = $region73
            $region72: #{transformer_forward.7} parent=64 // pred_region
              %s301 = ssub.s32 16, 1
              loop: start=0, step=1, limit=1
              $region74: #{transformer_forward.7} parent=72 // loop_pre_header
                _
              $region75: #{transformer_forward.7} parent=72 // loop_header
                %s303 = sphi 0, %s307
                %p304 = scmp.ge.s32.totalorder %s303, 1
                %s308 = sphi %s293, %s293
                %s309 = sphi %s288, %s288
              $region76: #{transformer_forward.7} parent=72 // loop_header_branch
                %306 = sbr.rel (%p304) target = $region80
              $region77: #{transformer_forward.7} parent=72 // loop_body
                %v310 = vld [vmem:[%s308] sm:%s301]
                %311 = vst [vmem:[%s309] sm:%s301] %v310
                %v312 = vld [vmem:[%s308 + $0x18] sm:%s301]
                %313 = vst [vmem:[%s309 + $0x4] sm:%s301] %v312
                %v314 = vld [vmem:[%s308 + $0x30] sm:%s301]
                %315 = vst [vmem:[%s309 + $0x8] sm:%s301] %v314
                %v316 = vld [vmem:[%s308 + $0x48] sm:%s301]
                %317 = vst [vmem:[%s309 + $0xc] sm:%s301] %v316
                %v318 = vld [vmem:[%s308 + $0x60] sm:%s301]
                %319 = vst [vmem:[%s309 + $0x10] sm:%s301] %v318
                %v320 = vld [vmem:[%s308 + $0x78] sm:%s301]
                %321 = vst [vmem:[%s309 + $0x14] sm:%s301] %v320
                %v322 = vld [vmem:[%s308 + $0x90] sm:%s301]
                %323 = vst [vmem:[%s309 + $0x18] sm:%s301] %v322
                %v324 = vld [vmem:[%s308 + $0xa8] sm:%s301]
                %325 = vst [vmem:[%s309 + $0x1c] sm:%s301] %v324
                %v326 = vld [vmem:[%s308 + $0xc0] sm:%s301]
                %327 = vst [vmem:[%s309 + $0x20] sm:%s301] %v326
                %v328 = vld [vmem:[%s308 + $0xd8] sm:%s301]
                %329 = vst [vmem:[%s309 + $0x24] sm:%s301] %v328
                %v330 = vld [vmem:[%s308 + $0xf0] sm:%s301]
                %331 = vst [vmem:[%s309 + $0x28] sm:%s301] %v330
                %v332 = vld [vmem:[%s308 + $0x108] sm:%s301]
                %333 = vst [vmem:[%s309 + $0x2c] sm:%s301] %v332
                %v334 = vld [vmem:[%s308 + $0x120] sm:%s301]
                %335 = vst [vmem:[%s309 + $0x30] sm:%s301] %v334
                %v336 = vld [vmem:[%s308 + $0x138] sm:%s301]
                %337 = vst [vmem:[%s309 + $0x34] sm:%s301] %v336
                %v338 = vld [vmem:[%s308 + $0x150] sm:%s301]
                %339 = vst [vmem:[%s309 + $0x38] sm:%s301] %v338
                %v340 = vld [vmem:[%s308 + $0x168] sm:%s301]
                %341 = vst [vmem:[%s309 + $0x3c] sm:%s301] %v340
              $region78: #{transformer_forward.7} parent=72 // loop_footer
                %s307 = sadd.s32 1, %s303
              $region79: #{transformer_forward.7} parent=72 // loop_footer_branch
                %302 = sbr.rel target = $region75
              $region80: #{transformer_forward.7} parent=72 // loop_exit
                _
            $region73: #{transformer_forward.7} parent=64 // pred_fallthru
              _
          $region65: #{transformer_forward.7} parent=60 // pred_fallthru
            _
          %394 = vnop
        $region61: #{transformer_forward.7} parent=15 // pred_fallthru
          _
        // Predicated region
        $region99: #{transformer_forward.7} parent=15 // pred_check
          %p395 = pneg %p112
        $region100: #{transformer_forward.7} parent=15 // pred_check_branch
          %397 = sbr.rel (%p395) target = $region102
        $region101: #{transformer_forward.7} parent=15 // pred_region
          %s398 = sand.u32 %s102, 1
          %s399 = sand.u32 %s102, 1
          %s400 = smul.addr %s399, 64
          %s401 = scalar_lea.vmem [#allocation4], %s400
          %s402 = sadd.s32 %s17, 4
          %s403 = smul.addr %s16, 96
          %s404 = sadd.s32 %s402, %s403
          %s405 = smul.addr %s404, 4
          %s406 = scalar_lea.vmem %s2, %s405
          // Predicated region
          $region103: #{transformer_forward.7} parent=101 // pred_check
            _
          $region104: #{transformer_forward.7} parent=101 // pred_check_branch
            %408 = sbr.rel (0) target = $region106
          $region105: #{transformer_forward.7} parent=101 // pred_region
            // Predicated region
            $region107: #{transformer_forward.7} parent=105 // pred_check
              _
            $region108: #{transformer_forward.7} parent=105 // pred_check_branch
              %410 = sbr.rel target = $region110
            $region109: #{transformer_forward.7} parent=105 // pred_region
              // Predicated region
              $region122: #{transformer_forward.7} parent=109 // pred_check
                _
              $region123: #{transformer_forward.7} parent=109 // pred_check_branch
                %456 = sbr.rel (0) target = $region125
              $region124: #{transformer_forward.7} parent=109 // pred_region
                loop: start=0, step=1, limit=1
                $region126: #{transformer_forward.7} parent=124 // loop_pre_header
                  _
                $region127: #{transformer_forward.7} parent=124 // loop_header
                  %s458 = sphi 0, %s462
                  %p459 = scmp.ge.s32.totalorder %s458, 1
                  %s463 = sphi %s406, %s406
                  %s464 = sphi %s401, %s401
                $region128: #{transformer_forward.7} parent=124 // loop_header_branch
                  %461 = sbr.rel (%p459) target = $region132
                $region129: #{transformer_forward.7} parent=124 // loop_body
                  _
                $region130: #{transformer_forward.7} parent=124 // loop_footer
                  %s462 = sadd.s32 1, %s458
                $region131: #{transformer_forward.7} parent=124 // loop_footer_branch
                  %457 = sbr.rel target = $region127
                $region132: #{transformer_forward.7} parent=124 // loop_exit
                  _
                %s466 = ssub.s32 16, 1
                loop: start=0, step=1, limit=1
                $region133: #{transformer_forward.7} parent=124 // loop_pre_header
                  _
                $region134: #{transformer_forward.7} parent=124 // loop_header
                  %s468 = sphi 0, %s472
                  %p469 = scmp.ge.s32.totalorder %s468, 1
                  %s473 = sphi %s406, %s406
                  %s474 = sphi %s401, %s401
                $region135: #{transformer_forward.7} parent=124 // loop_header_branch
                  %471 = sbr.rel (%p469) target = $region139
                $region136: #{transformer_forward.7} parent=124 // loop_body
                  %v475 = vld [vmem:[%s473] sm:%s466]
                  %476 = vst [vmem:[%s474] sm:%s466] %v475
                  %v477 = vld [vmem:[%s473 + $0x18] sm:%s466]
                  %478 = vst [vmem:[%s474 + $0x4] sm:%s466] %v477
                  %v479 = vld [vmem:[%s473 + $0x30] sm:%s466]
                  %480 = vst [vmem:[%s474 + $0x8] sm:%s466] %v479
                  %v481 = vld [vmem:[%s473 + $0x48] sm:%s466]
                  %482 = vst [vmem:[%s474 + $0xc] sm:%s466] %v481
                  %v483 = vld [vmem:[%s473 + $0x60] sm:%s466]
                  %484 = vst [vmem:[%s474 + $0x10] sm:%s466] %v483
                  %v485 = vld [vmem:[%s473 + $0x78] sm:%s466]
                  %486 = vst [vmem:[%s474 + $0x14] sm:%s466] %v485
                  %v487 = vld [vmem:[%s473 + $0x90] sm:%s466]
                  %488 = vst [vmem:[%s474 + $0x18] sm:%s466] %v487
                  %v489 = vld [vmem:[%s473 + $0xa8] sm:%s466]
                  %490 = vst [vmem:[%s474 + $0x1c] sm:%s466] %v489
                  %v491 = vld [vmem:[%s473 + $0xc0] sm:%s466]
                  %492 = vst [vmem:[%s474 + $0x20] sm:%s466] %v491
                  %v493 = vld [vmem:[%s473 + $0xd8] sm:%s466]
                  %494 = vst [vmem:[%s474 + $0x24] sm:%s466] %v493
                  %v495 = vld [vmem:[%s473 + $0xf0] sm:%s466]
                  %496 = vst [vmem:[%s474 + $0x28] sm:%s466] %v495
                  %v497 = vld [vmem:[%s473 + $0x108] sm:%s466]
                  %498 = vst [vmem:[%s474 + $0x2c] sm:%s466] %v497
                  %v499 = vld [vmem:[%s473 + $0x120] sm:%s466]
                  %500 = vst [vmem:[%s474 + $0x30] sm:%s466] %v499
                  %v501 = vld [vmem:[%s473 + $0x138] sm:%s466]
                  %502 = vst [vmem:[%s474 + $0x34] sm:%s466] %v501
                  %v503 = vld [vmem:[%s473 + $0x150] sm:%s466]
                  %504 = vst [vmem:[%s474 + $0x38] sm:%s466] %v503
                  %v505 = vld [vmem:[%s473 + $0x168] sm:%s466]
                  %506 = vst [vmem:[%s474 + $0x3c] sm:%s466] %v505
                $region137: #{transformer_forward.7} parent=124 // loop_footer
                  %s472 = sadd.s32 1, %s468
                $region138: #{transformer_forward.7} parent=124 // loop_footer_branch
                  %467 = sbr.rel target = $region134
                $region139: #{transformer_forward.7} parent=124 // loop_exit
                  _
              $region125: #{transformer_forward.7} parent=109 // pred_fallthru
                _
            $region110: #{transformer_forward.7} parent=105 // pred_fallthru
              _
            // Predicated region
            $region111: #{transformer_forward.7} parent=105 // pred_check
              _
            $region112: #{transformer_forward.7} parent=105 // pred_check_branch
              %412 = sbr.rel (0) target = $region114
            $region113: #{transformer_forward.7} parent=105 // pred_region
              %s414 = ssub.s32 16, 1
              loop: start=0, step=1, limit=1
              $region115: #{transformer_forward.7} parent=113 // loop_pre_header
                _
              $region116: #{transformer_forward.7} parent=113 // loop_header
                %s416 = sphi 0, %s420
                %p417 = scmp.ge.s32.totalorder %s416, 1
                %s421 = sphi %s406, %s406
                %s422 = sphi %s401, %s401
              $region117: #{transformer_forward.7} parent=113 // loop_header_branch
                %419 = sbr.rel (%p417) target = $region121
              $region118: #{transformer_forward.7} parent=113 // loop_body
                %v423 = vld [vmem:[%s421] sm:%s414]
                %424 = vst [vmem:[%s422] sm:%s414] %v423
                %v425 = vld [vmem:[%s421 + $0x18] sm:%s414]
                %426 = vst [vmem:[%s422 + $0x4] sm:%s414] %v425
                %v427 = vld [vmem:[%s421 + $0x30] sm:%s414]
                %428 = vst [vmem:[%s422 + $0x8] sm:%s414] %v427
                %v429 = vld [vmem:[%s421 + $0x48] sm:%s414]
                %430 = vst [vmem:[%s422 + $0xc] sm:%s414] %v429
                %v431 = vld [vmem:[%s421 + $0x60] sm:%s414]
                %432 = vst [vmem:[%s422 + $0x10] sm:%s414] %v431
                %v433 = vld [vmem:[%s421 + $0x78] sm:%s414]
                %434 = vst [vmem:[%s422 + $0x14] sm:%s414] %v433
                %v435 = vld [vmem:[%s421 + $0x90] sm:%s414]
                %436 = vst [vmem:[%s422 + $0x18] sm:%s414] %v435
                %v437 = vld [vmem:[%s421 + $0xa8] sm:%s414]
                %438 = vst [vmem:[%s422 + $0x1c] sm:%s414] %v437
                %v439 = vld [vmem:[%s421 + $0xc0] sm:%s414]
                %440 = vst [vmem:[%s422 + $0x20] sm:%s414] %v439
                %v441 = vld [vmem:[%s421 + $0xd8] sm:%s414]
                %442 = vst [vmem:[%s422 + $0x24] sm:%s414] %v441
                %v443 = vld [vmem:[%s421 + $0xf0] sm:%s414]
                %444 = vst [vmem:[%s422 + $0x28] sm:%s414] %v443
                %v445 = vld [vmem:[%s421 + $0x108] sm:%s414]
                %446 = vst [vmem:[%s422 + $0x2c] sm:%s414] %v445
                %v447 = vld [vmem:[%s421 + $0x120] sm:%s414]
                %448 = vst [vmem:[%s422 + $0x30] sm:%s414] %v447
                %v449 = vld [vmem:[%s421 + $0x138] sm:%s414]
                %450 = vst [vmem:[%s422 + $0x34] sm:%s414] %v449
                %v451 = vld [vmem:[%s421 + $0x150] sm:%s414]
                %452 = vst [vmem:[%s422 + $0x38] sm:%s414] %v451
                %v453 = vld [vmem:[%s421 + $0x168] sm:%s414]
                %454 = vst [vmem:[%s422 + $0x3c] sm:%s414] %v453
              $region119: #{transformer_forward.7} parent=113 // loop_footer
                %s420 = sadd.s32 1, %s416
              $region120: #{transformer_forward.7} parent=113 // loop_footer_branch
                %415 = sbr.rel target = $region116
              $region121: #{transformer_forward.7} parent=113 // loop_exit
                _
            $region114: #{transformer_forward.7} parent=105 // pred_fallthru
              _
          $region106: #{transformer_forward.7} parent=101 // pred_fallthru
            _
          %507 = vnop
        $region102: #{transformer_forward.7} parent=15 // pred_fallthru
          _
      $region16: #{transformer_forward.7} parent=5 // pred_fallthru
        _
      %p508 = scmp.le.s32.totalorder 1, %s9
      %p509 = scmp.lt.s32.totalorder %s9, 5
      %p510 = pnand %p508, %p509
      %p511 = pneg %p510
      // Predicated region
      $region140: #{transformer_forward.7} parent=5 // pred_check
        _
      $region141: #{transformer_forward.7} parent=5 // pred_check_branch
        %513 = sbr.rel (%p510) target = $region143
      $region142: #{transformer_forward.7} parent=5 // pred_region
        %s514 = ssub.s32 %s9, 1
        %s515 = sand.u32 %s45, 1
        %s516 = sand.u32 %s45, 1
        %s517 = smul.addr %s516, 64
        %s518 = scalar_lea.vmem [#allocation2], %s517
        // Predicated region
        $region144: #{transformer_forward.7} parent=142 // pred_check
          %p519 = pneg %p58
        $region145: #{transformer_forward.7} parent=142 // pred_check_branch
          %521 = sbr.rel (%p519) target = $region147
        $region146: #{transformer_forward.7} parent=142 // pred_region
          _
        $region147: #{transformer_forward.7} parent=142 // pred_fallthru
          _
        %s522 = sand.u32 %s75, 1
        %s523 = sand.u32 %s75, 1
        %s524 = smul.addr %s523, 64
        %s525 = scalar_lea.vmem [#allocation3], %s524
        // Predicated region
        $region148: #{transformer_forward.7} parent=142 // pred_check
          %p526 = pneg %p88
        $region149: #{transformer_forward.7} parent=142 // pred_check_branch
          %528 = sbr.rel (%p526) target = $region151
        $region150: #{transformer_forward.7} parent=142 // pred_region
          _
        $region151: #{transformer_forward.7} parent=142 // pred_fallthru
          _
        %s529 = sand.u32 %s105, 1
        %s530 = sand.u32 %s105, 1
        %s531 = smul.addr %s530, 64
        %s532 = scalar_lea.vmem [#allocation4], %s531
        // Predicated region
        $region152: #{transformer_forward.7} parent=142 // pred_check
          %p533 = pneg %p118
        $region153: #{transformer_forward.7} parent=142 // pred_check_branch
          %535 = sbr.rel (%p533) target = $region155
        $region154: #{transformer_forward.7} parent=142 // pred_region
          _
        $region155: #{transformer_forward.7} parent=142 // pred_fallthru
          _
        %s536 = sand.u32 %s45, 1
        %s537 = sand.u32 %s45, 1
        %s538 = smul.addr %s537, 64
        %s539 = scalar_lea.vmem [#allocation2], %s538
        %p540 = pneg %p58
        %p541 = pneg %p55
        %s542 = sand.u32 %s75, 1
        %s543 = sand.u32 %s75, 1
        %s544 = smul.addr %s543, 64
        %s545 = scalar_lea.vmem [#allocation3], %s544
        %p546 = pneg %p88
        %p547 = pneg %p85
        %s548 = sand.u32 %s105, 1
        %s549 = sand.u32 %s105, 1
        %s550 = smul.addr %s549, 64
        %s551 = scalar_lea.vmem [#allocation4], %s550
        %p552 = pneg %p118
        %p553 = pneg %p115
        %p554 = pneg %p148
        %p555 = pneg %p145
        %s556 = sand.u32 %s135, 1
        %s557 = sand.u32 %s135, 1
        %s558 = smul.addr %s557, 64
        %s559 = scalar_lea.vmem [#allocation5], %s558
        %s560 = smul.u32 16, %s21
        %s561 = sadd.s32 %s20, 2
        %s562 = sadd.s32 %s20, 4
        %s563 = smul.u32 16, %s21
        %v565 = vld [vmem:[%s518] sm:$0xf]
        %v566 = vld [vmem:[%s518 + $0x4] sm:$0xf]
        %v567 = vld [vmem:[%s518 + $0x8] sm:$0xf]
        %v568 = vld [vmem:[%s518 + $0xc] sm:$0xf]
        %v569 = vld [vmem:[%s518 + $0x10] sm:$0xf]
        %v570 = vld [vmem:[%s518 + $0x14] sm:$0xf]
        %v571 = vld [vmem:[%s518 + $0x18] sm:$0xf]
        %v572 = vld [vmem:[%s518 + $0x1c] sm:$0xf]
        %v573 = vld [vmem:[%s518 + $0x20] sm:$0xf]
        %v574 = vld [vmem:[%s518 + $0x24] sm:$0xf]
        %v575 = vld [vmem:[%s518 + $0x28] sm:$0xf]
        %v576 = vld [vmem:[%s518 + $0x2c] sm:$0xf]
        %v577 = vld [vmem:[%s518 + $0x30] sm:$0xf]
        %v578 = vld [vmem:[%s518 + $0x34] sm:$0xf]
        %v579 = vld [vmem:[%s518 + $0x38] sm:$0xf]
        %v580 = vld [vmem:[%s518 + $0x3c] sm:$0xf]
        %v581 = vld [vmem:[%s525] sm:$0xf]
        %v582 = vld [vmem:[%s525 + $0x4] sm:$0xf]
        %v583 = vld [vmem:[%s525 + $0x8] sm:$0xf]
        %v584 = vld [vmem:[%s525 + $0xc] sm:$0xf]
        %v585 = vld [vmem:[%s525 + $0x10] sm:$0xf]
        %v586 = vld [vmem:[%s525 + $0x14] sm:$0xf]
        %v587 = vld [vmem:[%s525 + $0x18] sm:$0xf]
        %v588 = vld [vmem:[%s525 + $0x1c] sm:$0xf]
        %v589 = vld [vmem:[%s525 + $0x20] sm:$0xf]
        %v590 = vld [vmem:[%s525 + $0x24] sm:$0xf]
        %v591 = vld [vmem:[%s525 + $0x28] sm:$0xf]
        %v592 = vld [vmem:[%s525 + $0x2c] sm:$0xf]
        %v593 = vld [vmem:[%s525 + $0x30] sm:$0xf]
        %v594 = vld [vmem:[%s525 + $0x34] sm:$0xf]
        %v595 = vld [vmem:[%s525 + $0x38] sm:$0xf]
        %v596 = vld [vmem:[%s525 + $0x3c] sm:$0xf]
        %v597 = vld [vmem:[%s532] sm:$0xf]
        %v598 = vld [vmem:[%s532 + $0x4] sm:$0xf]
        %v599 = vld [vmem:[%s532 + $0x8] sm:$0xf]
        %v600 = vld [vmem:[%s532 + $0xc] sm:$0xf]
        %v601 = vld [vmem:[%s532 + $0x10] sm:$0xf]
        %v602 = vld [vmem:[%s532 + $0x14] sm:$0xf]
        %v603 = vld [vmem:[%s532 + $0x18] sm:$0xf]
        %v604 = vld [vmem:[%s532 + $0x1c] sm:$0xf]
        %v605 = vld [vmem:[%s532 + $0x20] sm:$0xf]
        %v606 = vld [vmem:[%s532 + $0x24] sm:$0xf]
        %v607 = vld [vmem:[%s532 + $0x28] sm:$0xf]
        %v608 = vld [vmem:[%s532 + $0x2c] sm:$0xf]
        %v609 = vld [vmem:[%s532 + $0x30] sm:$0xf]
        %v610 = vld [vmem:[%s532 + $0x34] sm:$0xf]
        %v611 = vld [vmem:[%s532 + $0x38] sm:$0xf]
        %v612 = vld [vmem:[%s532 + $0x3c] sm:$0xf]
        %v629 = vunpack.c.l.b16 %v565
        %v630 = vunpack.c.l.b16 %v566
        %v631 = vunpack.c.l.b16 %v567
        %v632 = vunpack.c.l.b16 %v568
        %v633 = vunpack.c.l.b16 %v569
        %v634 = vunpack.c.l.b16 %v570
        %v635 = vunpack.c.l.b16 %v571
        %v636 = vunpack.c.l.b16 %v572
        %v637 = vunpack.c.l.b16 %v573
        %v638 = vunpack.c.l.b16 %v574
        %v639 = vunpack.c.l.b16 %v575
        %v640 = vunpack.c.l.b16 %v576
        %v641 = vunpack.c.l.b16 %v577
        %v642 = vunpack.c.l.b16 %v578
        %v643 = vunpack.c.l.b16 %v579
        %v644 = vunpack.c.l.b16 %v580
        %v645 = vpack.c.b16 %v630, %v629
        %v646 = vpack.c.b16 %v632, %v631
        %v647 = vpack.c.b16 %v634, %v633
        %v648 = vpack.c.b16 %v636, %v635
        %v649 = vpack.c.b16 %v638, %v637
        %v650 = vpack.c.b16 %v640, %v639
        %v651 = vpack.c.b16 %v642, %v641
        %v652 = vpack.c.b16 %v644, %v643
        %v677 = vunpack.c.l.b16 %v581
        %v678 = vunpack.c.l.b16 %v582
        %v679 = vunpack.c.l.b16 %v583
        %v680 = vunpack.c.l.b16 %v584
        %v681 = vunpack.c.l.b16 %v585
        %v682 = vunpack.c.l.b16 %v586
        %v683 = vunpack.c.l.b16 %v587
        %v684 = vunpack.c.l.b16 %v588
        %v685 = vunpack.c.l.b16 %v589
        %v686 = vunpack.c.l.b16 %v590
        %v687 = vunpack.c.l.b16 %v591
        %v688 = vunpack.c.l.b16 %v592
        %v689 = vunpack.c.l.b16 %v593
        %v690 = vunpack.c.l.b16 %v594
        %v691 = vunpack.c.l.b16 %v595
        %v692 = vunpack.c.l.b16 %v596
        %v693 = vpack.c.b16 %v678, %v677
        %v694 = vpack.c.b16 %v680, %v679
        %v695 = vpack.c.b16 %v682, %v681
        %v696 = vpack.c.b16 %v684, %v683
        %v697 = vpack.c.b16 %v686, %v685
        %v698 = vpack.c.b16 %v688, %v687
        %v699 = vpack.c.b16 %v690, %v689
        %v700 = vpack.c.b16 %v692, %v691
        %709 = vmatprep.subr.bf16.mxu0 0
        %710 = vmatpush1.bf16.xpose.msra.mxu0 %v700
        %711 = vmatprep.subr.bf16.mxu0 0
        %712 = vmatpush1.bf16.xpose.msra.mxu0 %v699
        %713 = vmatprep.subr.bf16.mxu0 0
        %714 = vmatpush1.bf16.xpose.msra.mxu0 %v698
        %715 = vmatprep.subr.bf16.mxu0 0
        %716 = vmatpush1.bf16.xpose.msra.mxu0 %v697
        %717 = vmatprep.subr.bf16.mxu0 0
        %718 = vmatpush1.bf16.xpose.msra.mxu0 %v696
        %719 = vmatprep.subr.bf16.mxu0 0
        %720 = vmatpush1.bf16.xpose.msra.mxu0 %v695
        %721 = vmatprep.subr.bf16.mxu0 0
        %722 = vmatpush1.bf16.xpose.msra.mxu0 %v694
        %723 = vmatprep.subr.bf16.mxu0 0
        %724 = vmatpush1.bf16.xpose.msra.mxu0 %v693
        %725 = vmatprep.subr.bf16.mxu0 0
        %726 = vmatpush2.bf16.xpose.msra.mxu0 0
        %727 = vmatprep.subr.bf16.mxu0 0
        %728 = vmatpush2.bf16.xpose.msra.mxu0 0
        %729 = vmatprep.subr.bf16.mxu0 0
        %730 = vmatpush2.bf16.xpose.msra.mxu0 0
        %731 = vmatprep.subr.bf16.mxu0 0
        %732 = vmatpush2.bf16.xpose.msra.mxu0 0
        %733 = vmatprep.subr.bf16.mxu0 0
        %734 = vmatpush2.bf16.xpose.msra.mxu0 0
        %735 = vmatprep.subr.bf16.mxu0 0
        %736 = vmatpush2.bf16.xpose.msra.mxu0 0
        %737 = vmatprep.subr.bf16.mxu0 0
        %738 = vmatpush2.bf16.xpose.msra.mxu0 0
        %739 = vmatprep.subr.bf16.mxu0 0
        %740 = vmatpush2.bf16.xpose.msra.mxu0 0
        %741 = vmatprep.mubr.bf16.mxu0 0
        %742 = vmatmul.mubr.bf16.gmra.mxu0 %v645
        %v743 = vpop.f32.mrf.mxu0
        %v744 = vadd.f32 0.0, %v743
        %v745 = vpop.f32.mrf.mxu0
        %v746 = vpop.f32.mrf.mxu0
        %v747 = vadd.f32 0.0, %v746
        %v748 = vpop.f32.mrf.mxu0
        %749 = vmatprep.mubr.bf16.mxu0 0
        %750 = vmatmul.mubr.bf16.gmra.mxu0 %v646
        %v751 = vpop.f32.mrf.mxu0
        %v752 = vadd.f32 0.0, %v751
        %v753 = vpop.f32.mrf.mxu0
        %v754 = vpop.f32.mrf.mxu0
        %v755 = vadd.f32 0.0, %v754
        %v756 = vpop.f32.mrf.mxu0
        %757 = vmatprep.mubr.bf16.mxu0 0
        %758 = vmatmul.mubr.bf16.gmra.mxu0 %v647
        %v759 = vpop.f32.mrf.mxu0
        %v760 = vadd.f32 0.0, %v759
        %v761 = vpop.f32.mrf.mxu0
        %v762 = vpop.f32.mrf.mxu0
        %v763 = vadd.f32 0.0, %v762
        %v764 = vpop.f32.mrf.mxu0
        %765 = vmatprep.mubr.bf16.mxu0 0
        %766 = vmatmul.mubr.bf16.gmra.mxu0 %v648
        %v767 = vpop.f32.mrf.mxu0
        %v768 = vadd.f32 0.0, %v767
        %v769 = vpop.f32.mrf.mxu0
        %v770 = vpop.f32.mrf.mxu0
        %v771 = vadd.f32 0.0, %v770
        %v772 = vpop.f32.mrf.mxu0
        %773 = vmatprep.mubr.bf16.mxu0 0
        %774 = vmatmul.mubr.bf16.gmra.mxu0 %v649
        %v775 = vpop.f32.mrf.mxu0
        %v776 = vadd.f32 0.0, %v775
        %v777 = vpop.f32.mrf.mxu0
        %v778 = vpop.f32.mrf.mxu0
        %v779 = vadd.f32 0.0, %v778
        %v780 = vpop.f32.mrf.mxu0
        %781 = vmatprep.mubr.bf16.mxu0 0
        %782 = vmatmul.mubr.bf16.gmra.mxu0 %v650
        %v783 = vpop.f32.mrf.mxu0
        %v784 = vadd.f32 0.0, %v783
        %v785 = vpop.f32.mrf.mxu0
        %v786 = vpop.f32.mrf.mxu0
        %v787 = vadd.f32 0.0, %v786
        %v788 = vpop.f32.mrf.mxu0
        %789 = vmatprep.mubr.bf16.mxu0 0
        %790 = vmatmul.mubr.bf16.gmra.mxu0 %v651
        %v791 = vpop.f32.mrf.mxu0
        %v792 = vadd.f32 0.0, %v791
        %v793 = vpop.f32.mrf.mxu0
        %v794 = vpop.f32.mrf.mxu0
        %v795 = vadd.f32 0.0, %v794
        %v796 = vpop.f32.mrf.mxu0
        %797 = vmatprep.mubr.bf16.mxu0 0
        %798 = vmatmul.mubr.bf16.gmra.mxu0 %v652
        %v799 = vpop.f32.mrf.mxu0
        %v800 = vadd.f32 0.0, %v799
        %v801 = vpop.f32.mrf.mxu0
        %v802 = vpop.f32.mrf.mxu0
        %v803 = vadd.f32 0.0, %v802
        %v804 = vpop.f32.mrf.mxu0
        %805 = vdwg.mxu0
        %806 = vmax.xlane.f32.xlu0 %v744
        %v807 = vpop.xlane.xlu0 %806
        %808 = vmax.xlane.f32.xlu0 %v747
        %v809 = vpop.xlane.xlu0 %808
        %810 = vmax.xlane.f32.xlu0 %v752
        %v811 = vpop.xlane.xlu0 %810
        %812 = vmax.xlane.f32.xlu0 %v755
        %v813 = vpop.xlane.xlu0 %812
        %814 = vmax.xlane.f32.xlu0 %v760
        %v815 = vpop.xlane.xlu0 %814
        %816 = vmax.xlane.f32.xlu0 %v763
        %v817 = vpop.xlane.xlu0 %816
        %818 = vmax.xlane.f32.xlu0 %v768
        %v819 = vpop.xlane.xlu0 %818
        %820 = vmax.xlane.f32.xlu0 %v771
        %v821 = vpop.xlane.xlu0 %820
        %822 = vmax.xlane.f32.xlu0 %v776
        %v823 = vpop.xlane.xlu0 %822
        %824 = vmax.xlane.f32.xlu0 %v779
        %v825 = vpop.xlane.xlu0 %824
        %826 = vmax.xlane.f32.xlu0 %v784
        %v827 = vpop.xlane.xlu0 %826
        %828 = vmax.xlane.f32.xlu0 %v787
        %v829 = vpop.xlane.xlu0 %828
        %830 = vmax.xlane.f32.xlu0 %v792
        %v831 = vpop.xlane.xlu0 %830
        %832 = vmax.xlane.f32.xlu0 %v795
        %v833 = vpop.xlane.xlu0 %832
        %834 = vmax.xlane.f32.xlu0 %v800
        %v835 = vpop.xlane.xlu0 %834
        %836 = vmax.xlane.f32.xlu0 %v803
        %v837 = vpop.xlane.xlu0 %836
        %v838 = vsub.f32 %v744, %v807
        %v839 = vsub.f32 %v747, %v809
        %v840 = vsub.f32 %v752, %v811
        %v841 = vsub.f32 %v755, %v813
        %v842 = vsub.f32 %v760, %v815
        %v843 = vsub.f32 %v763, %v817
        %v844 = vsub.f32 %v768, %v819
        %v845 = vsub.f32 %v771, %v821
        %v846 = vsub.f32 %v776, %v823
        %v847 = vsub.f32 %v779, %v825
        %v848 = vsub.f32 %v784, %v827
        %v849 = vsub.f32 %v787, %v829
        %v850 = vsub.f32 %v792, %v831
        %v851 = vsub.f32 %v795, %v833
        %v852 = vsub.f32 %v800, %v835
        %v853 = vsub.f32 %v803, %v837
        %v854 = vmul.f32 %v838, 1.442695
        %v855 = vpow.pop %v854
        %v856 = vmul.f32 %v839, 1.442695
        %v857 = vpow.pop %v856
        %v858 = vmul.f32 %v840, 1.442695
        %v859 = vpow.pop %v858
        %v860 = vmul.f32 %v841, 1.442695
        %v861 = vpow.pop %v860
        %v862 = vmul.f32 %v842, 1.442695
        %v863 = vpow.pop %v862
        %v864 = vmul.f32 %v843, 1.442695
        %v865 = vpow.pop %v864
        %v866 = vmul.f32 %v844, 1.442695
        %v867 = vpow.pop %v866
        %v868 = vmul.f32 %v845, 1.442695
        %v869 = vpow.pop %v868
        %v870 = vmul.f32 %v846, 1.442695
        %v871 = vpow.pop %v870
        %v872 = vmul.f32 %v847, 1.442695
        %v873 = vpow.pop %v872
        %v874 = vmul.f32 %v848, 1.442695
        %v875 = vpow.pop %v874
        %v876 = vmul.f32 %v849, 1.442695
        %v877 = vpow.pop %v876
        %v878 = vmul.f32 %v850, 1.442695
        %v879 = vpow.pop %v878
        %v880 = vmul.f32 %v851, 1.442695
        %v881 = vpow.pop %v880
        %v882 = vmul.f32 %v852, 1.442695
        %v883 = vpow.pop %v882
        %v884 = vmul.f32 %v853, 1.442695
        %v885 = vpow.pop %v884
        %886 = vadd.xlane.f32.xlu0 %v855
        %v887 = vpop.xlane.xlu0 %886
        %888 = vadd.xlane.f32.xlu0 %v857
        %v889 = vpop.xlane.xlu0 %888
        %890 = vadd.xlane.f32.xlu0 %v859
        %v891 = vpop.xlane.xlu0 %890
        %892 = vadd.xlane.f32.xlu0 %v861
        %v893 = vpop.xlane.xlu0 %892
        %894 = vadd.xlane.f32.xlu0 %v863
        %v895 = vpop.xlane.xlu0 %894
        %896 = vadd.xlane.f32.xlu0 %v865
        %v897 = vpop.xlane.xlu0 %896
        %898 = vadd.xlane.f32.xlu0 %v867
        %v899 = vpop.xlane.xlu0 %898
        %900 = vadd.xlane.f32.xlu0 %v869
        %v901 = vpop.xlane.xlu0 %900
        %902 = vadd.xlane.f32.xlu0 %v871
        %v903 = vpop.xlane.xlu0 %902
        %904 = vadd.xlane.f32.xlu0 %v873
        %v905 = vpop.xlane.xlu0 %904
        %906 = vadd.xlane.f32.xlu0 %v875
        %v907 = vpop.xlane.xlu0 %906
        %908 = vadd.xlane.f32.xlu0 %v877
        %v909 = vpop.xlane.xlu0 %908
        %910 = vadd.xlane.f32.xlu0 %v879
        %v911 = vpop.xlane.xlu0 %910
        %912 = vadd.xlane.f32.xlu0 %v881
        %v913 = vpop.xlane.xlu0 %912
        %914 = vadd.xlane.f32.xlu0 %v883
        %v915 = vpop.xlane.xlu0 %914
        %916 = vadd.xlane.f32.xlu0 %v885
        %v917 = vpop.xlane.xlu0 %916
        %v918 = vpack.c.bf16 %v857, %v855
        %v919 = vpack.c.bf16 %v861, %v859
        %v920 = vpack.c.bf16 %v865, %v863
        %v921 = vpack.c.bf16 %v869, %v867
        %v922 = vpack.c.bf16 %v873, %v871
        %v923 = vpack.c.bf16 %v877, %v875
        %v924 = vpack.c.bf16 %v881, %v879
        %v925 = vpack.c.bf16 %v885, %v883
        %v942 = vunpack.c.l.b16 %v597
        %v943 = vunpack.c.l.b16 %v598
        %v944 = vunpack.c.l.b16 %v599
        %v945 = vunpack.c.l.b16 %v600
        %v946 = vunpack.c.l.b16 %v601
        %v947 = vunpack.c.l.b16 %v602
        %v948 = vunpack.c.l.b16 %v603
        %v949 = vunpack.c.l.b16 %v604
        %v950 = vunpack.c.l.b16 %v605
        %v951 = vunpack.c.l.b16 %v606
        %v952 = vunpack.c.l.b16 %v607
        %v953 = vunpack.c.l.b16 %v608
        %v954 = vunpack.c.l.b16 %v609
        %v955 = vunpack.c.l.b16 %v610
        %v956 = vunpack.c.l.b16 %v611
        %v957 = vunpack.c.l.b16 %v612
        %v958 = vpack.c.b16 %v943, %v942
        %v959 = vpack.c.b16 %v945, %v944
        %v960 = vpack.c.b16 %v947, %v946
        %v961 = vpack.c.b16 %v949, %v948
        %v962 = vpack.c.b16 %v951, %v950
        %v963 = vpack.c.b16 %v953, %v952
        %v964 = vpack.c.b16 %v955, %v954
        %v965 = vpack.c.b16 %v957, %v956
        %974 = vmatprep.subr.bf16.mxu0 0
        %975 = vmatpush1.bf16.msra.mxu0 %v965
        %976 = vmatprep.subr.bf16.mxu0 0
        %977 = vmatpush1.bf16.msra.mxu0 %v964
        %978 = vmatprep.subr.bf16.mxu0 0
        %979 = vmatpush1.bf16.msra.mxu0 %v963
        %980 = vmatprep.subr.bf16.mxu0 0
        %981 = vmatpush1.bf16.msra.mxu0 %v962
        %982 = vmatprep.subr.bf16.mxu0 0
        %983 = vmatpush1.bf16.msra.mxu0 %v961
        %984 = vmatprep.subr.bf16.mxu0 0
        %985 = vmatpush1.bf16.msra.mxu0 %v960
        %986 = vmatprep.subr.bf16.mxu0 0
        %987 = vmatpush1.bf16.msra.mxu0 %v959
        %988 = vmatprep.subr.bf16.mxu0 0
        %989 = vmatpush1.bf16.msra.mxu0 %v958
        %990 = vmatprep.subr.bf16.mxu0 0
        %991 = vmatpush2.bf16.msra.mxu0 0
        %992 = vmatprep.subr.bf16.mxu0 0
        %993 = vmatpush2.bf16.msra.mxu0 0
        %994 = vmatprep.subr.bf16.mxu0 0
        %995 = vmatpush2.bf16.msra.mxu0 0
        %996 = vmatprep.subr.bf16.mxu0 0
        %997 = vmatpush2.bf16.msra.mxu0 0
        %998 = vmatprep.subr.bf16.mxu0 0
        %999 = vmatpush2.bf16.msra.mxu0 0
        %1000 = vmatprep.subr.bf16.mxu0 0
        %1001 = vmatpush2.bf16.msra.mxu0 0
        %1002 = vmatprep.subr.bf16.mxu0 0
        %1003 = vmatpush2.bf16.msra.mxu0 0
        %1004 = vmatprep.subr.bf16.mxu0 0
        %1005 = vmatpush2.bf16.msra.mxu0 0
        %1006 = vmatprep.mubr.bf16.mxu0 0
        %1007 = vmatmul.mubr.bf16.gmra.mxu0 %v918
        %v1008 = vpop.f32.mrf.mxu0
        %v1009 = vadd.f32 0.0, %v1008
        %v1010 = vpop.f32.mrf.mxu0
        %v1011 = vpop.f32.mrf.mxu0
        %v1012 = vadd.f32 0.0, %v1011
        %v1013 = vpop.f32.mrf.mxu0
        %1014 = vmatprep.mubr.bf16.mxu0 0
        %1015 = vmatmul.mubr.bf16.gmra.mxu0 %v919
        %v1016 = vpop.f32.mrf.mxu0
        %v1017 = vadd.f32 0.0, %v1016
        %v1018 = vpop.f32.mrf.mxu0
        %v1019 = vpop.f32.mrf.mxu0
        %v1020 = vadd.f32 0.0, %v1019
        %v1021 = vpop.f32.mrf.mxu0
        %1022 = vmatprep.mubr.bf16.mxu0 0
        %1023 = vmatmul.mubr.bf16.gmra.mxu0 %v920
        %v1024 = vpop.f32.mrf.mxu0
        %v1025 = vadd.f32 0.0, %v1024
        %v1026 = vpop.f32.mrf.mxu0
        %v1027 = vpop.f32.mrf.mxu0
        %v1028 = vadd.f32 0.0, %v1027
        %v1029 = vpop.f32.mrf.mxu0
        %1030 = vmatprep.mubr.bf16.mxu0 0
        %1031 = vmatmul.mubr.bf16.gmra.mxu0 %v921
        %v1032 = vpop.f32.mrf.mxu0
        %v1033 = vadd.f32 0.0, %v1032
        %v1034 = vpop.f32.mrf.mxu0
        %v1035 = vpop.f32.mrf.mxu0
        %v1036 = vadd.f32 0.0, %v1035
        %v1037 = vpop.f32.mrf.mxu0
        %1038 = vmatprep.mubr.bf16.mxu0 0
        %1039 = vmatmul.mubr.bf16.gmra.mxu0 %v922
        %v1040 = vpop.f32.mrf.mxu0
        %v1041 = vadd.f32 0.0, %v1040
        %v1042 = vpop.f32.mrf.mxu0
        %v1043 = vpop.f32.mrf.mxu0
        %v1044 = vadd.f32 0.0, %v1043
        %v1045 = vpop.f32.mrf.mxu0
        %1046 = vmatprep.mubr.bf16.mxu0 0
        %1047 = vmatmul.mubr.bf16.gmra.mxu0 %v923
        %v1048 = vpop.f32.mrf.mxu0
        %v1049 = vadd.f32 0.0, %v1048
        %v1050 = vpop.f32.mrf.mxu0
        %v1051 = vpop.f32.mrf.mxu0
        %v1052 = vadd.f32 0.0, %v1051
        %v1053 = vpop.f32.mrf.mxu0
        %1054 = vmatprep.mubr.bf16.mxu0 0
        %1055 = vmatmul.mubr.bf16.gmra.mxu0 %v924
        %v1056 = vpop.f32.mrf.mxu0
        %v1057 = vadd.f32 0.0, %v1056
        %v1058 = vpop.f32.mrf.mxu0
        %v1059 = vpop.f32.mrf.mxu0
        %v1060 = vadd.f32 0.0, %v1059
        %v1061 = vpop.f32.mrf.mxu0
        %1062 = vmatprep.mubr.bf16.mxu0 0
        %1063 = vmatmul.mubr.bf16.gmra.mxu0 %v925
        %v1064 = vpop.f32.mrf.mxu0
        %v1065 = vadd.f32 0.0, %v1064
        %v1066 = vpop.f32.mrf.mxu0
        %v1067 = vpop.f32.mrf.mxu0
        %v1068 = vadd.f32 0.0, %v1067
        %v1069 = vpop.f32.mrf.mxu0
        %1070 = vdwg.mxu0
        %v1071 = vrcp.pop %v887
        %v1072 = vrcp.pop %v889
        %v1073 = vrcp.pop %v891
        %v1074 = vrcp.pop %v893
        %v1075 = vrcp.pop %v895
        %v1076 = vrcp.pop %v897
        %v1077 = vrcp.pop %v899
        %v1078 = vrcp.pop %v901
        %v1079 = vrcp.pop %v903
        %v1080 = vrcp.pop %v905
        %v1081 = vrcp.pop %v907
        %v1082 = vrcp.pop %v909
        %v1083 = vrcp.pop %v911
        %v1084 = vrcp.pop %v913
        %v1085 = vrcp.pop %v915
        %v1086 = vrcp.pop %v917
        %v1087 = vmul.f32 %v1009, %v1071
        %v1088 = vmul.f32 %v1012, %v1072
        %v1089 = vmul.f32 %v1017, %v1073
        %v1090 = vmul.f32 %v1020, %v1074
        %v1091 = vmul.f32 %v1025, %v1075
        %v1092 = vmul.f32 %v1028, %v1076
        %v1093 = vmul.f32 %v1033, %v1077
        %v1094 = vmul.f32 %v1036, %v1078
        %v1095 = vmul.f32 %v1041, %v1079
        %v1096 = vmul.f32 %v1044, %v1080
        %v1097 = vmul.f32 %v1049, %v1081
        %v1098 = vmul.f32 %v1052, %v1082
        %v1099 = vmul.f32 %v1057, %v1083
        %v1100 = vmul.f32 %v1060, %v1084
        %v1101 = vmul.f32 %v1065, %v1085
        %v1102 = vmul.f32 %v1068, %v1086
        %v1103 = vpack.c.bf16 %v1088, %v1087
        %v1104 = vpack.c.bf16 %v1090, %v1089
        %v1105 = vpack.c.bf16 %v1092, %v1091
        %v1106 = vpack.c.bf16 %v1094, %v1093
        %v1107 = vpack.c.bf16 %v1096, %v1095
        %v1108 = vpack.c.bf16 %v1098, %v1097
        %v1109 = vpack.c.bf16 %v1100, %v1099
        %v1110 = vpack.c.bf16 %v1102, %v1101
        %v1119 = vunpack.c.l.b16 %v1103
        %v1120 = vunpack.c.h.b16 %v1103
        %v1121 = vunpack.c.l.b16 %v1104
        %v1122 = vunpack.c.h.b16 %v1104
        %v1123 = vunpack.c.l.b16 %v1105
        %v1124 = vunpack.c.h.b16 %v1105
        %v1125 = vunpack.c.l.b16 %v1106
        %v1126 = vunpack.c.h.b16 %v1106
        %v1127 = vunpack.c.l.b16 %v1107
        %v1128 = vunpack.c.h.b16 %v1107
        %v1129 = vunpack.c.l.b16 %v1108
        %v1130 = vunpack.c.h.b16 %v1108
        %v1131 = vunpack.c.l.b16 %v1109
        %v1132 = vunpack.c.h.b16 %v1109
        %v1133 = vunpack.c.l.b16 %v1110
        %v1134 = vunpack.c.h.b16 %v1110
        %v1135 = vpack.c.b16 %v1119, %v1119
        %v1136 = vpack.c.b16 %v1120, %v1120
        %v1137 = vpack.c.b16 %v1121, %v1121
        %v1138 = vpack.c.b16 %v1122, %v1122
        %v1139 = vpack.c.b16 %v1123, %v1123
        %v1140 = vpack.c.b16 %v1124, %v1124
        %v1141 = vpack.c.b16 %v1125, %v1125
        %v1142 = vpack.c.b16 %v1126, %v1126
        %v1143 = vpack.c.b16 %v1127, %v1127
        %v1144 = vpack.c.b16 %v1128, %v1128
        %v1145 = vpack.c.b16 %v1129, %v1129
        %v1146 = vpack.c.b16 %v1130, %v1130
        %v1147 = vpack.c.b16 %v1131, %v1131
        %v1148 = vpack.c.b16 %v1132, %v1132
        %v1149 = vpack.c.b16 %v1133, %v1133
        %v1150 = vpack.c.b16 %v1134, %v1134
        %1167 = vst [vmem:[%s559] sm:$0xf] %v1135
        %1168 = vst [vmem:[%s559 + $0x4] sm:$0xf] %v1136
        %1169 = vst [vmem:[%s559 + $0x8] sm:$0xf] %v1137
        %1170 = vst [vmem:[%s559 + $0xc] sm:$0xf] %v1138
        %1171 = vst [vmem:[%s559 + $0x10] sm:$0xf] %v1139
        %1172 = vst [vmem:[%s559 + $0x14] sm:$0xf] %v1140
        %1173 = vst [vmem:[%s559 + $0x18] sm:$0xf] %v1141
        %1174 = vst [vmem:[%s559 + $0x1c] sm:$0xf] %v1142
        %1175 = vst [vmem:[%s559 + $0x20] sm:$0xf] %v1143
        %1176 = vst [vmem:[%s559 + $0x24] sm:$0xf] %v1144
        %1177 = vst [vmem:[%s559 + $0x28] sm:$0xf] %v1145
        %1178 = vst [vmem:[%s559 + $0x2c] sm:$0xf] %v1146
        %1179 = vst [vmem:[%s559 + $0x30] sm:$0xf] %v1147
        %1180 = vst [vmem:[%s559 + $0x34] sm:$0xf] %v1148
        %1181 = vst [vmem:[%s559 + $0x38] sm:$0xf] %v1149
        %1182 = vst [vmem:[%s559 + $0x3c] sm:$0xf] %v1150
        %s1183 = sand.u32 %s135, 1
        %s1184 = sand.u32 %s135, 1
        %s1185 = smul.addr %s1184, 64
        %s1186 = scalar_lea.vmem [#allocation5], %s1185
        // Predicated region
        $region156: #{transformer_forward.7} parent=142 // pred_check
          %p1187 = pneg %p145
        $region157: #{transformer_forward.7} parent=142 // pred_check_branch
          %1189 = sbr.rel (%p1187) target = $region159
        $region158: #{transformer_forward.7} parent=142 // pred_region
          %s1190 = smul.u32 16, %s21
          %s1191 = smul.addr %s1190, 2
          %s1192 = sadd.s32 %s20, %s1191
          %s1193 = smul.addr %s19, 32
          %s1194 = sadd.s32 %s1192, %s1193
          %s1195 = smul.addr %s1194, 4
          %s1196 = scalar_lea.vmem %s3, %s1195
          // Predicated region
          $region160: #{transformer_forward.7} parent=158 // pred_check
            _
          $region161: #{transformer_forward.7} parent=158 // pred_check_branch
            %1198 = sbr.rel (0) target = $region163
          $region162: #{transformer_forward.7} parent=158 // pred_region
            // Predicated region
            $region164: #{transformer_forward.7} parent=162 // pred_check
              _
            $region165: #{transformer_forward.7} parent=162 // pred_check_branch
              %1200 = sbr.rel target = $region167
            $region166: #{transformer_forward.7} parent=162 // pred_region
              // Predicated region
              $region179: #{transformer_forward.7} parent=166 // pred_check
                _
              $region180: #{transformer_forward.7} parent=166 // pred_check_branch
                %1246 = sbr.rel (0) target = $region182
              $region181: #{transformer_forward.7} parent=166 // pred_region
                loop: start=0, step=1, limit=1
                $region183: #{transformer_forward.7} parent=181 // loop_pre_header
                  _
                $region184: #{transformer_forward.7} parent=181 // loop_header
                  %s1248 = sphi 0, %s1252
                  %p1249 = scmp.ge.s32.totalorder %s1248, 1
                  %s1253 = sphi %s1186, %s1186
                  %s1254 = sphi %s1196, %s1196
                $region185: #{transformer_forward.7} parent=181 // loop_header_branch
                  %1251 = sbr.rel (%p1249) target = $region189
                $region186: #{transformer_forward.7} parent=181 // loop_body
                  _
                $region187: #{transformer_forward.7} parent=181 // loop_footer
                  %s1252 = sadd.s32 1, %s1248
                $region188: #{transformer_forward.7} parent=181 // loop_footer_branch
                  %1247 = sbr.rel target = $region184
                $region189: #{transformer_forward.7} parent=181 // loop_exit
                  _
                %s1256 = ssub.s32 16, 1
                loop: start=0, step=1, limit=1
                $region190: #{transformer_forward.7} parent=181 // loop_pre_header
                  _
                $region191: #{transformer_forward.7} parent=181 // loop_header
                  %s1258 = sphi 0, %s1262
                  %p1259 = scmp.ge.s32.totalorder %s1258, 1
                  %s1263 = sphi %s1186, %s1186
                  %s1264 = sphi %s1196, %s1196
                $region192: #{transformer_forward.7} parent=181 // loop_header_branch
                  %1261 = sbr.rel (%p1259) target = $region196
                $region193: #{transformer_forward.7} parent=181 // loop_body
                  %v1265 = vld [vmem:[%s1263] sm:%s1256]
                  %1266 = vst [vmem:[%s1264] sm:%s1256] %v1265
                  %v1267 = vld [vmem:[%s1263 + $0x4] sm:%s1256]
                  %1268 = vst [vmem:[%s1264 + $0x8] sm:%s1256] %v1267
                  %v1269 = vld [vmem:[%s1263 + $0x8] sm:%s1256]
                  %1270 = vst [vmem:[%s1264 + $0x10] sm:%s1256] %v1269
                  %v1271 = vld [vmem:[%s1263 + $0xc] sm:%s1256]
                  %1272 = vst [vmem:[%s1264 + $0x18] sm:%s1256] %v1271
                  %v1273 = vld [vmem:[%s1263 + $0x10] sm:%s1256]
                  %1274 = vst [vmem:[%s1264 + $0x20] sm:%s1256] %v1273
                  %v1275 = vld [vmem:[%s1263 + $0x14] sm:%s1256]
                  %1276 = vst [vmem:[%s1264 + $0x28] sm:%s1256] %v1275
                  %v1277 = vld [vmem:[%s1263 + $0x18] sm:%s1256]
                  %1278 = vst [vmem:[%s1264 + $0x30] sm:%s1256] %v1277
                  %v1279 = vld [vmem:[%s1263 + $0x1c] sm:%s1256]
                  %1280 = vst [vmem:[%s1264 + $0x38] sm:%s1256] %v1279
                  %v1281 = vld [vmem:[%s1263 + $0x20] sm:%s1256]
                  %1282 = vst [vmem:[%s1264 + $0x40] sm:%s1256] %v1281
                  %v1283 = vld [vmem:[%s1263 + $0x24] sm:%s1256]
                  %1284 = vst [vmem:[%s1264 + $0x48] sm:%s1256] %v1283
                  %v1285 = vld [vmem:[%s1263 + $0x28] sm:%s1256]
                  %1286 = vst [vmem:[%s1264 + $0x50] sm:%s1256] %v1285
                  %v1287 = vld [vmem:[%s1263 + $0x2c] sm:%s1256]
                  %1288 = vst [vmem:[%s1264 + $0x58] sm:%s1256] %v1287
                  %v1289 = vld [vmem:[%s1263 + $0x30] sm:%s1256]
                  %1290 = vst [vmem:[%s1264 + $0x60] sm:%s1256] %v1289
                  %v1291 = vld [vmem:[%s1263 + $0x34] sm:%s1256]
                  %1292 = vst [vmem:[%s1264 + $0x68] sm:%s1256] %v1291
                  %v1293 = vld [vmem:[%s1263 + $0x38] sm:%s1256]
                  %1294 = vst [vmem:[%s1264 + $0x70] sm:%s1256] %v1293
                  %v1295 = vld [vmem:[%s1263 + $0x3c] sm:%s1256]
                  %1296 = vst [vmem:[%s1264 + $0x78] sm:%s1256] %v1295
                $region194: #{transformer_forward.7} parent=181 // loop_footer
                  %s1262 = sadd.s32 1, %s1258
                $region195: #{transformer_forward.7} parent=181 // loop_footer_branch
                  %1257 = sbr.rel target = $region191
                $region196: #{transformer_forward.7} parent=181 // loop_exit
                  _
              $region182: #{transformer_forward.7} parent=166 // pred_fallthru
                _
            $region167: #{transformer_forward.7} parent=162 // pred_fallthru
              _
            // Predicated region
            $region168: #{transformer_forward.7} parent=162 // pred_check
              _
            $region169: #{transformer_forward.7} parent=162 // pred_check_branch
              %1202 = sbr.rel (0) target = $region171
            $region170: #{transformer_forward.7} parent=162 // pred_region
              %s1204 = ssub.s32 16, 1
              loop: start=0, step=1, limit=1
              $region172: #{transformer_forward.7} parent=170 // loop_pre_header
                _
              $region173: #{transformer_forward.7} parent=170 // loop_header
                %s1206 = sphi 0, %s1210
                %p1207 = scmp.ge.s32.totalorder %s1206, 1
                %s1211 = sphi %s1186, %s1186
                %s1212 = sphi %s1196, %s1196
              $region174: #{transformer_forward.7} parent=170 // loop_header_branch
                %1209 = sbr.rel (%p1207) target = $region178
              $region175: #{transformer_forward.7} parent=170 // loop_body
                %v1213 = vld [vmem:[%s1211] sm:%s1204]
                %1214 = vst [vmem:[%s1212] sm:%s1204] %v1213
                %v1215 = vld [vmem:[%s1211 + $0x4] sm:%s1204]
                %1216 = vst [vmem:[%s1212 + $0x8] sm:%s1204] %v1215
                %v1217 = vld [vmem:[%s1211 + $0x8] sm:%s1204]
                %1218 = vst [vmem:[%s1212 + $0x10] sm:%s1204] %v1217
                %v1219 = vld [vmem:[%s1211 + $0xc] sm:%s1204]
                %1220 = vst [vmem:[%s1212 + $0x18] sm:%s1204] %v1219
                %v1221 = vld [vmem:[%s1211 + $0x10] sm:%s1204]
                %1222 = vst [vmem:[%s1212 + $0x20] sm:%s1204] %v1221
                %v1223 = vld [vmem:[%s1211 + $0x14] sm:%s1204]
                %1224 = vst [vmem:[%s1212 + $0x28] sm:%s1204] %v1223
                %v1225 = vld [vmem:[%s1211 + $0x18] sm:%s1204]
                %1226 = vst [vmem:[%s1212 + $0x30] sm:%s1204] %v1225
                %v1227 = vld [vmem:[%s1211 + $0x1c] sm:%s1204]
                %1228 = vst [vmem:[%s1212 + $0x38] sm:%s1204] %v1227
                %v1229 = vld [vmem:[%s1211 + $0x20] sm:%s1204]
                %1230 = vst [vmem:[%s1212 + $0x40] sm:%s1204] %v1229
                %v1231 = vld [vmem:[%s1211 + $0x24] sm:%s1204]
                %1232 = vst [vmem:[%s1212 + $0x48] sm:%s1204] %v1231
                %v1233 = vld [vmem:[%s1211 + $0x28] sm:%s1204]
                %1234 = vst [vmem:[%s1212 + $0x50] sm:%s1204] %v1233
                %v1235 = vld [vmem:[%s1211 + $0x2c] sm:%s1204]
                %1236 = vst [vmem:[%s1212 + $0x58] sm:%s1204] %v1235
                %v1237 = vld [vmem:[%s1211 + $0x30] sm:%s1204]
                %1238 = vst [vmem:[%s1212 + $0x60] sm:%s1204] %v1237
                %v1239 = vld [vmem:[%s1211 + $0x34] sm:%s1204]
                %1240 = vst [vmem:[%s1212 + $0x68] sm:%s1204] %v1239
                %v1241 = vld [vmem:[%s1211 + $0x38] sm:%s1204]
                %1242 = vst [vmem:[%s1212 + $0x70] sm:%s1204] %v1241
                %v1243 = vld [vmem:[%s1211 + $0x3c] sm:%s1204]
                %1244 = vst [vmem:[%s1212 + $0x78] sm:%s1204] %v1243
              $region176: #{transformer_forward.7} parent=170 // loop_footer
                %s1210 = sadd.s32 1, %s1206
              $region177: #{transformer_forward.7} parent=170 // loop_footer_branch
                %1205 = sbr.rel target = $region173
              $region178: #{transformer_forward.7} parent=170 // loop_exit
                _
            $region171: #{transformer_forward.7} parent=162 // pred_fallthru
              _
          $region163: #{transformer_forward.7} parent=158 // pred_fallthru
            _
          %1297 = vnop
        $region159: #{transformer_forward.7} parent=142 // pred_fallthru
          _
      $region143: #{transformer_forward.7} parent=5 // pred_fallthru
        _
      %p1298 = scmp.le.s32.totalorder 2, %s9
      // Predicated region
      $region197: #{transformer_forward.7} parent=5 // pred_check
        %p1299 = pneg %p1298
      $region198: #{transformer_forward.7} parent=5 // pred_check_branch
        %1301 = sbr.rel (%p1299) target = $region200
      $region199: #{transformer_forward.7} parent=5 // pred_region
        %s1302 = ssub.s32 %s9, 2
        // Predicated region
        $region201: #{transformer_forward.7} parent=199 // pred_check
          %p1303 = pneg %p151
        $region202: #{transformer_forward.7} parent=199 // pred_check_branch
          %1305 = sbr.rel (%p1303) target = $region204
        $region203: #{transformer_forward.7} parent=199 // pred_region
          %s1306 = sand.u32 %s136, 1
          %s1307 = sand.u32 %s136, 1
          %s1308 = smul.addr %s1307, 64
          %s1309 = scalar_lea.vmem [#allocation5], %s1308
        $region204: #{transformer_forward.7} parent=199 // pred_fallthru
          _
      $region200: #{transformer_forward.7} parent=5 // pred_fallthru
        _
    $region6: #{transformer_forward.7} parent=1 // loop_footer
      %s13 = sadd.s32 1, %s9
    $region7: #{transformer_forward.7} parent=1 // loop_footer_branch
      %8 = sbr.rel target = $region3
    $region8: #{transformer_forward.7} parent=1 // loop_exit
      _

// kernel: transformer_forward.6
$region0: #{transformer_forward.6}
  #allocation0 [shape = 'u32[]', space=smem, size = 0x4, offset = 0x4, fixed_abs, tag = 'smem constant byte address 0x4 - core index']
  #allocation1 [shape = 'u32[144,128]{1,0:T(1,128)}', space=vmem, size = 0x12000, scoped, tag = 'internal scratch']
  %s0 = inlined_call_operand.vmem [shape: f32[2,128,256], index: 0, kind: input, shape index: {}]
  %s1 = inlined_call_operand.vmem [shape: f32[1,256], index: 1, kind: input, shape index: {}]
  %s2 = inlined_call_operand.vmem [shape: f32[1,256], index: 2, kind: input, shape index: {}]
  %s3 = inlined_call_operand.vmem [shape: bf16[256,768], index: 3, kind: input, shape index: {}]
  %s4 = inlined_call_operand.vmem [shape: f32[1,768], index: 4, kind: input, shape index: {}]
  %s5 = inlined_call_operand.vmem [shape: bf16[2,128,768], index: 5, kind: output, shape index: {}]
  %s6 = sld [smem:[#allocation0]]
  $region53: #{transformer_forward.6} parent=0
    _
  %s8 = ssub.s32 1, %s6
  %s9 = scalar_select 0, %s8, %s6
  loop: start=0, step=1, limit=4
  $region2: #{transformer_forward.6} parent=0 // loop_pre_header
    _
  $region3: #{transformer_forward.6} parent=0 // loop_header
    %s11 = sphi 0, %s15
    %p12 = scmp.ge.s32.totalorder %s11, 4
    %s18 = sphi 0, %s30
    %s19 = sphi 0, %s26
    %s20 = sphi 0, %s18
    %s21 = sphi 0, %s19
    %s22 = sphi 0, %s20
    %s23 = sphi 0, %s21
    %s35 = sphi 0, %s37
    %s38 = sphi 0, %s35
    %s39 = sphi 0, %s38
    %s55 = sphi 0, %s39
    %s59 = sphi 0, %s59
    %s61 = sphi 0, %s59
    %s62 = sphi 0, %s61
    %s76 = sphi 0, %s62
    %s80 = sphi 0, %s80
    %s82 = sphi 0, %s80
    %s83 = sphi 0, %s82
    %s97 = sphi 0, %s83
    %s101 = sphi 0, %s101
    %s103 = sphi 0, %s101
    %s104 = sphi 0, %s103
    %s118 = sphi 0, %s104
    %s122 = sphi 0, %s122
    %s124 = sphi 0, %s122
    %s125 = sphi 0, %s124
    %s139 = sphi 0, %s125
    %s147 = sphi 0, %s149
    %s150 = sphi 0, %s147
    %s151 = sphi 0, %s150
    %s167 = sphi 0, %s151
  $region4: #{transformer_forward.6} parent=0 // loop_header_branch
    %14 = sbr.rel (%p12) target = $region8
  $region5: #{transformer_forward.6} parent=0 // loop_body
    %s16 = ssub.s32 %s11, 1
    %s17 = ssub.s32 %s11, 2
    %s24 = sadd.s32 1, %s19
    %p25 = scmp.ge.s32.totalorder %s24, 1
    %s26 = scalar_select %p25, 0, %s24
    %s27 = sadd.s32 1, %s18
    %s28 = scalar_select %p25, %s27, %s18
    %p29 = scmp.ge.s32.totalorder %s28, 2
    %s30 = scalar_select %p29, 0, %s28
    %s31 = ssub.s32 %s18, %s30
    %s32 = ssub.s32 %s19, %s26
    %s33 = sor.u32 %s31, %s32
    %p34 = scmp.eq.s32.totalorder %s33, 0
    %s36 = sadd.s32 %s35, 1
    %s37 = scalar_select %p34, %s35, %s36
    %p40 = pneg %p34
    %p41 = scmp.eq.s32.totalorder %s11, 1
    %p42 = por %p40, %p41
    %p43 = scmp.ne.s32.totalorder %s35, %s38
    %p44 = scmp.eq.s32.totalorder %s11, 0
    %p45 = por %p43, %p44
    %p46 = scmp.ne.s32.totalorder %s35, %s38
    %p47 = scmp.eq.s32.totalorder %s16, 1
    %p48 = por %p46, %p47
    %p49 = scmp.ne.s32.totalorder %s38, %s39
    %p50 = scmp.eq.s32.totalorder %s16, 0
    %p51 = por %p49, %p50
    %p52 = scmp.ne.s32.totalorder %s38, %s39
    %p53 = scmp.eq.s32.totalorder %s17, 1
    %p54 = por %p52, %p53
    %p56 = scmp.ne.s32.totalorder %s39, %s55
    %p57 = scmp.eq.s32.totalorder %s17, 0
    %p58 = por %p56, %p57
    %s60 = sadd.s32 %s59, 1
    %p63 = scmp.eq.s32.totalorder %s11, 1
    %p64 = scmp.ne.s32.totalorder %s59, %s61
    %p65 = scmp.eq.s32.totalorder %s11, 0
    %p66 = por %p64, %p65
    %p67 = scmp.ne.s32.totalorder %s59, %s61
    %p68 = scmp.eq.s32.totalorder %s16, 1
    %p69 = por %p67, %p68
    %p70 = scmp.ne.s32.totalorder %s61, %s62
    %p71 = scmp.eq.s32.totalorder %s16, 0
    %p72 = por %p70, %p71
    %p73 = scmp.ne.s32.totalorder %s61, %s62
    %p74 = scmp.eq.s32.totalorder %s17, 1
    %p75 = por %p73, %p74
    %p77 = scmp.ne.s32.totalorder %s62, %s76
    %p78 = scmp.eq.s32.totalorder %s17, 0
    %p79 = por %p77, %p78
    %s81 = sadd.s32 %s80, 1
    %p84 = scmp.eq.s32.totalorder %s11, 1
    %p85 = scmp.ne.s32.totalorder %s80, %s82
    %p86 = scmp.eq.s32.totalorder %s11, 0
    %p87 = por %p85, %p86
    %p88 = scmp.ne.s32.totalorder %s80, %s82
    %p89 = scmp.eq.s32.totalorder %s16, 1
    %p90 = por %p88, %p89
    %p91 = scmp.ne.s32.totalorder %s82, %s83
    %p92 = scmp.eq.s32.totalorder %s16, 0
    %p93 = por %p91, %p92
    %p94 = scmp.ne.s32.totalorder %s82, %s83
    %p95 = scmp.eq.s32.totalorder %s17, 1
    %p96 = por %p94, %p95
    %p98 = scmp.ne.s32.totalorder %s83, %s97
    %p99 = scmp.eq.s32.totalorder %s17, 0
    %p100 = por %p98, %p99
    %s102 = sadd.s32 %s101, 1
    %p105 = scmp.eq.s32.totalorder %s11, 1
    %p106 = scmp.ne.s32.totalorder %s101, %s103
    %p107 = scmp.eq.s32.totalorder %s11, 0
    %p108 = por %p106, %p107
    %p109 = scmp.ne.s32.totalorder %s101, %s103
    %p110 = scmp.eq.s32.totalorder %s16, 1
    %p111 = por %p109, %p110
    %p112 = scmp.ne.s32.totalorder %s103, %s104
    %p113 = scmp.eq.s32.totalorder %s16, 0
    %p114 = por %p112, %p113
    %p115 = scmp.ne.s32.totalorder %s103, %s104
    %p116 = scmp.eq.s32.totalorder %s17, 1
    %p117 = por %p115, %p116
    %p119 = scmp.ne.s32.totalorder %s104, %s118
    %p120 = scmp.eq.s32.totalorder %s17, 0
    %p121 = por %p119, %p120
    %s123 = sadd.s32 %s122, 1
    %p126 = scmp.eq.s32.totalorder %s11, 1
    %p127 = scmp.ne.s32.totalorder %s122, %s124
    %p128 = scmp.eq.s32.totalorder %s11, 0
    %p129 = por %p127, %p128
    %p130 = scmp.ne.s32.totalorder %s122, %s124
    %p131 = scmp.eq.s32.totalorder %s16, 1
    %p132 = por %p130, %p131
    %p133 = scmp.ne.s32.totalorder %s124, %s125
    %p134 = scmp.eq.s32.totalorder %s16, 0
    %p135 = por %p133, %p134
    %p136 = scmp.ne.s32.totalorder %s124, %s125
    %p137 = scmp.eq.s32.totalorder %s17, 1
    %p138 = por %p136, %p137
    %p140 = scmp.ne.s32.totalorder %s125, %s139
    %p141 = scmp.eq.s32.totalorder %s17, 0
    %p142 = por %p140, %p141
    %s143 = ssub.s32 %s18, %s30
    %s144 = ssub.s32 %s19, %s26
    %s145 = sor.u32 %s143, %s144
    %p146 = scmp.eq.s32.totalorder %s145, 0
    %s148 = sadd.s32 %s147, 1
    %s149 = scalar_select %p146, %s147, %s148
    %p152 = pneg %p146
    %p153 = scmp.eq.s32.totalorder %s11, 1
    %p154 = por %p152, %p153
    %p155 = scmp.ne.s32.totalorder %s147, %s150
    %p156 = scmp.eq.s32.totalorder %s11, 0
    %p157 = por %p155, %p156
    %p158 = scmp.ne.s32.totalorder %s147, %s150
    %p159 = scmp.eq.s32.totalorder %s16, 1
    %p160 = por %p158, %p159
    %p161 = scmp.ne.s32.totalorder %s150, %s151
    %p162 = scmp.eq.s32.totalorder %s16, 0
    %p163 = por %p161, %p162
    %p164 = scmp.ne.s32.totalorder %s150, %s151
    %p165 = scmp.eq.s32.totalorder %s17, 1
    %p166 = por %p164, %p165
    %p168 = scmp.ne.s32.totalorder %s151, %s167
    %p169 = scmp.eq.s32.totalorder %s17, 0
    %p170 = por %p168, %p169
    %p171 = scmp.le.s32.totalorder 1, %s11
    %p172 = scmp.lt.s32.totalorder %s11, 3
    %p173 = pnand %p171, %p172
    %p174 = pneg %p173
    // Predicated region
    $region9: #{transformer_forward.6} parent=5 // pred_check
      _
    $region10: #{transformer_forward.6} parent=5 // pred_check_branch
      %176 = sbr.rel (%p173) target = $region12
    $region11: #{transformer_forward.6} parent=5 // pred_region
      %s177 = ssub.s32 %s11, 1
      // Predicated region
      $region13: #{transformer_forward.6} parent=11 // pred_check
        %p178 = pneg %p72
      $region14: #{transformer_forward.6} parent=11 // pred_check_branch
        %180 = sbr.rel (%p178) target = $region16
      $region15: #{transformer_forward.6} parent=11 // pred_region
        _
      $region16: #{transformer_forward.6} parent=11 // pred_fallthru
        _
      // Predicated region
      $region17: #{transformer_forward.6} parent=11 // pred_check
        %p181 = pneg %p93
      $region18: #{transformer_forward.6} parent=11 // pred_check_branch
        %183 = sbr.rel (%p181) target = $region20
      $region19: #{transformer_forward.6} parent=11 // pred_region
        _
      $region20: #{transformer_forward.6} parent=11 // pred_fallthru
        _
      // Predicated region
      $region21: #{transformer_forward.6} parent=11 // pred_check
        %p184 = pneg %p114
      $region22: #{transformer_forward.6} parent=11 // pred_check_branch
        %186 = sbr.rel (%p184) target = $region24
      $region23: #{transformer_forward.6} parent=11 // pred_region
        _
      $region24: #{transformer_forward.6} parent=11 // pred_fallthru
        _
      // Predicated region
      $region25: #{transformer_forward.6} parent=11 // pred_check
        %p187 = pneg %p135
      $region26: #{transformer_forward.6} parent=11 // pred_check_branch
        %189 = sbr.rel (%p187) target = $region28
      $region27: #{transformer_forward.6} parent=11 // pred_region
        _
      $region28: #{transformer_forward.6} parent=11 // pred_fallthru
        _
    $region12: #{transformer_forward.6} parent=5 // pred_fallthru
      _
    %p190 = scmp.lt.s32.totalorder %s11, 2
    // Predicated region
    $region29: #{transformer_forward.6} parent=5 // pred_check
      %p191 = pneg %p190
    $region30: #{transformer_forward.6} parent=5 // pred_check_branch
      %193 = sbr.rel (%p191) target = $region32
    $region31: #{transformer_forward.6} parent=5 // pred_region
      // Predicated region
      $region33: #{transformer_forward.6} parent=31 // pred_check
        %p194 = pneg %p45
      $region34: #{transformer_forward.6} parent=31 // pred_check_branch
        %196 = sbr.rel (%p194) target = $region36
      $region35: #{transformer_forward.6} parent=31 // pred_region
        %s197 = smul.u32 16, %s19
        %p198 = scmp.lt.s32.totalorder %s18, 1
        %s199 = scalar_select %p198, %s18, 1
        %p200 = scmp.lt.s32.totalorder %s197, 15
        %s201 = scalar_select %p200, %s197, 15
        %s202 = smul.addr %s201, 2
        %s203 = smul.addr %s199, 32
        %s204 = sadd.s32 %s202, %s203
        %s205 = smul.addr %s204, 8
        %s206 = scalar_lea.vmem %s0, %s205
        %s207 = smul.u32 16, %s19
      $region36: #{transformer_forward.6} parent=31 // pred_fallthru
        _
    $region32: #{transformer_forward.6} parent=5 // pred_fallthru
      _
    %p208 = scmp.le.s32.totalorder 1, %s11
    %p209 = scmp.lt.s32.totalorder %s11, 3
    %p210 = pnand %p208, %p209
    %p211 = pneg %p210
    // Predicated region
    $region37: #{transformer_forward.6} parent=5 // pred_check
      _
    $region38: #{transformer_forward.6} parent=5 // pred_check_branch
      %213 = sbr.rel (%p210) target = $region40
    $region39: #{transformer_forward.6} parent=5 // pred_region
      %s214 = ssub.s32 %s11, 1
      %s215 = smul.u32 16, %s21
      %p216 = scmp.lt.s32.totalorder %s20, 1
      %s217 = scalar_select %p216, %s20, 1
      %p218 = scmp.lt.s32.totalorder %s215, 15
      %s219 = scalar_select %p218, %s215, 15
      %s220 = smul.addr %s219, 2
      %s221 = smul.addr %s217, 32
      %s222 = sadd.s32 %s220, %s221
      %s223 = smul.addr %s222, 8
      %s224 = scalar_lea.vmem %s0, %s223
      %p225 = pneg %p51
      %p226 = pneg %p48
      %p227 = pneg %p72
      %p228 = pneg %p69
      %p229 = pneg %p93
      %p230 = pneg %p90
      %p231 = pneg %p114
      %p232 = pneg %p111
      %p233 = pneg %p135
      %p234 = pneg %p132
      %p235 = pneg %p163
      %p236 = pneg %p160
      %s237 = smul.u32 16, %s21
      %p238 = scmp.lt.s32.totalorder %s20, 1
      %s239 = scalar_select %p238, %s20, 1
      %p240 = scmp.lt.s32.totalorder %s237, 15
      %s241 = scalar_select %p240, %s237, 15
      %s242 = smul.addr %s241, 6
      %s243 = smul.addr %s239, 96
      %s244 = sadd.s32 %s242, %s243
      %s245 = smul.addr %s244, 4
      %s246 = scalar_lea.vmem %s5, %s245
      %s247 = smul.u32 16, %s21
      %p248 = scmp.lt.s32.totalorder %s20, 1
      %s249 = scalar_select %p248, %s20, 1
      %p250 = scmp.lt.s32.totalorder %s247, 15
      %s251 = scalar_select %p250, %s247, 15
      %s252 = smul.addr %s251, 2
      %s253 = smul.addr %s249, 32
      %s254 = sadd.s32 %s252, %s253
      %s255 = smul.addr %s254, 8
      %s256 = scalar_lea.vmem %s0, %s255
      %s257 = smul.u32 16, %s21
      %s258 = smul.u32 16, %s21
      %p259 = scmp.lt.s32.totalorder %s20, 1
      %s260 = scalar_select %p259, %s20, 1
      %p261 = scmp.lt.s32.totalorder %s258, 15
      %s262 = scalar_select %p261, %s258, 15
      %s263 = smul.addr %s262, 6
      %s264 = smul.addr %s260, 96
      %s265 = sadd.s32 %s263, %s264
      %s266 = smul.addr %s265, 4
      %s267 = scalar_lea.vmem %s5, %s266
      %s268 = smul.u32 16, %s21
      %v269 = vld [vmem:[%s256] sm:$0xff]
      %v270 = vld [vmem:[%s256 + $0x8] sm:$0xff]
      %v271 = vld [vmem:[%s256 + $0x10] sm:$0xff]
      %v272 = vld [vmem:[%s256 + $0x18] sm:$0xff]
      %v273 = vld [vmem:[%s256 + $0x20] sm:$0xff]
      %v274 = vld [vmem:[%s256 + $0x28] sm:$0xff]
      %v275 = vld [vmem:[%s256 + $0x30] sm:$0xff]
      %v276 = vld [vmem:[%s256 + $0x38] sm:$0xff]
      %v277 = vld [vmem:[%s256 + $0x40] sm:$0xff]
      %v278 = vld [vmem:[%s256 + $0x48] sm:$0xff]
      %v279 = vld [vmem:[%s256 + $0x50] sm:$0xff]
      %v280 = vld [vmem:[%s256 + $0x58] sm:$0xff]
      %v281 = vld [vmem:[%s256 + $0x60] sm:$0xff]
      %v282 = vld [vmem:[%s256 + $0x68] sm:$0xff]
      %v283 = vld [vmem:[%s256 + $0x70] sm:$0xff]
      %v284 = vld [vmem:[%s256 + $0x78] sm:$0xff]
      %v285 = vld [vmem:[%s256 + $0x80] sm:$0xff]
      %v286 = vld [vmem:[%s256 + $0x88] sm:$0xff]
      %v287 = vld [vmem:[%s256 + $0x90] sm:$0xff]
      %v288 = vld [vmem:[%s256 + $0x98] sm:$0xff]
      %v289 = vld [vmem:[%s256 + $0xa0] sm:$0xff]
      %v290 = vld [vmem:[%s256 + $0xa8] sm:$0xff]
      %v291 = vld [vmem:[%s256 + $0xb0] sm:$0xff]
      %v292 = vld [vmem:[%s256 + $0xb8] sm:$0xff]
      %v293 = vld [vmem:[%s256 + $0xc0] sm:$0xff]
      %v294 = vld [vmem:[%s256 + $0xc8] sm:$0xff]
      %v295 = vld [vmem:[%s256 + $0xd0] sm:$0xff]
      %v296 = vld [vmem:[%s256 + $0xd8] sm:$0xff]
      %v297 = vld [vmem:[%s256 + $0xe0] sm:$0xff]
      %v298 = vld [vmem:[%s256 + $0xe8] sm:$0xff]
      %v299 = vld [vmem:[%s256 + $0xf0] sm:$0xff]
      %v300 = vld [vmem:[%s256 + $0xf8] sm:$0xff]
      %v301 = vld [vmem:[%s1] sm:$0x3]
      %v302 = vld [vmem:[%s2] sm:$0x3]
      %v303 = vadd.f32 %v269, %v270
      %304 = vadd.xlane.f32.xlu0 %v303
      %v305 = vpop.xlane.xlu0 %304
      %v306 = vadd.f32 %v271, %v272
      %307 = vadd.xlane.f32.xlu0 %v306
      %v308 = vpop.xlane.xlu0 %307
      %v309 = vadd.f32 %v273, %v274
      %310 = vadd.xlane.f32.xlu0 %v309
      %v311 = vpop.xlane.xlu0 %310
      %v312 = vadd.f32 %v275, %v276
      %313 = vadd.xlane.f32.xlu0 %v312
      %v314 = vpop.xlane.xlu0 %313
      %v315 = vadd.f32 %v277, %v278
      %316 = vadd.xlane.f32.xlu0 %v315
      %v317 = vpop.xlane.xlu0 %316
      %v318 = vadd.f32 %v279, %v280
      %319 = vadd.xlane.f32.xlu0 %v318
      %v320 = vpop.xlane.xlu0 %319
      %v321 = vadd.f32 %v281, %v282
      %322 = vadd.xlane.f32.xlu0 %v321
      %v323 = vpop.xlane.xlu0 %322
      %v324 = vadd.f32 %v283, %v284
      %325 = vadd.xlane.f32.xlu0 %v324
      %v326 = vpop.xlane.xlu0 %325
      %v327 = vadd.f32 %v285, %v286
      %328 = vadd.xlane.f32.xlu0 %v327
      %v329 = vpop.xlane.xlu0 %328
      %v330 = vadd.f32 %v287, %v288
      %331 = vadd.xlane.f32.xlu0 %v330
      %v332 = vpop.xlane.xlu0 %331
      %v333 = vadd.f32 %v289, %v290
      %334 = vadd.xlane.f32.xlu0 %v333
      %v335 = vpop.xlane.xlu0 %334
      %v336 = vadd.f32 %v291, %v292
      %337 = vadd.xlane.f32.xlu0 %v336
      %v338 = vpop.xlane.xlu0 %337
      %v339 = vadd.f32 %v293, %v294
      %340 = vadd.xlane.f32.xlu0 %v339
      %v341 = vpop.xlane.xlu0 %340
      %v342 = vadd.f32 %v295, %v296
      %343 = vadd.xlane.f32.xlu0 %v342
      %v344 = vpop.xlane.xlu0 %343
      %v345 = vadd.f32 %v297, %v298
      %346 = vadd.xlane.f32.xlu0 %v345
      %v347 = vpop.xlane.xlu0 %346
      %v348 = vadd.f32 %v299, %v300
      %349 = vadd.xlane.f32.xlu0 %v348
      %v350 = vpop.xlane.xlu0 %349
      %v351 = vrcp.pop 256.0
      %v352 = vmul.f32 %v305, %v351
      %v353 = vmul.f32 %v308, %v351
      %v354 = vmul.f32 %v311, %v351
      %v355 = vmul.f32 %v314, %v351
      %v356 = vmul.f32 %v317, %v351
      %v357 = vmul.f32 %v320, %v351
      %v358 = vmul.f32 %v323, %v351
      %v359 = vmul.f32 %v326, %v351
      %v360 = vmul.f32 %v329, %v351
      %v361 = vmul.f32 %v332, %v351
      %v362 = vmul.f32 %v335, %v351
      %v363 = vmul.f32 %v338, %v351
      %v364 = vmul.f32 %v341, %v351
      %v365 = vmul.f32 %v344, %v351
      %v366 = vmul.f32 %v347, %v351
      %v367 = vmul.f32 %v350, %v351
      %v368 = vsub.f32 %v269, %v352
      %v369 = vsub.f32 %v270, %v352
      %v370 = vsub.f32 %v271, %v353
      %v371 = vsub.f32 %v272, %v353
      %v372 = vsub.f32 %v273, %v354
      %v373 = vsub.f32 %v274, %v354
      %v374 = vsub.f32 %v275, %v355
      %v375 = vsub.f32 %v276, %v355
      %v376 = vsub.f32 %v277, %v356
      %v377 = vsub.f32 %v278, %v356
      %v378 = vsub.f32 %v279, %v357
      %v379 = vsub.f32 %v280, %v357
      %v380 = vsub.f32 %v281, %v358
      %v381 = vsub.f32 %v282, %v358
      %v382 = vsub.f32 %v283, %v359
      %v383 = vsub.f32 %v284, %v359
      %v384 = vsub.f32 %v285, %v360
      %v385 = vsub.f32 %v286, %v360
      %v386 = vsub.f32 %v287, %v361
      %v387 = vsub.f32 %v288, %v361
      %v388 = vsub.f32 %v289, %v362
      %v389 = vsub.f32 %v290, %v362
      %v390 = vsub.f32 %v291, %v363
      %v391 = vsub.f32 %v292, %v363
      %v392 = vsub.f32 %v293, %v364
      %v393 = vsub.f32 %v294, %v364
      %v394 = vsub.f32 %v295, %v365
      %v395 = vsub.f32 %v296, %v365
      %v396 = vsub.f32 %v297, %v366
      %v397 = vsub.f32 %v298, %v366
      %v398 = vsub.f32 %v299, %v367
      %v399 = vsub.f32 %v300, %v367
      %v400 = vmul.f32 %v368, %v368
      %v401 = vmul.f32 %v369, %v369
      %v402 = vmul.f32 %v370, %v370
      %v403 = vmul.f32 %v371, %v371
      %v404 = vmul.f32 %v372, %v372
      %v405 = vmul.f32 %v373, %v373
      %v406 = vmul.f32 %v374, %v374
      %v407 = vmul.f32 %v375, %v375
      %v408 = vmul.f32 %v376, %v376
      %v409 = vmul.f32 %v377, %v377
      %v410 = vmul.f32 %v378, %v378
      %v411 = vmul.f32 %v379, %v379
      %v412 = vmul.f32 %v380, %v380
      %v413 = vmul.f32 %v381, %v381
      %v414 = vmul.f32 %v382, %v382
      %v415 = vmul.f32 %v383, %v383
      %v416 = vmul.f32 %v384, %v384
      %v417 = vmul.f32 %v385, %v385
      %v418 = vmul.f32 %v386, %v386
      %v419 = vmul.f32 %v387, %v387
      %v420 = vmul.f32 %v388, %v388
      %v421 = vmul.f32 %v389, %v389
      %v422 = vmul.f32 %v390, %v390
      %v423 = vmul.f32 %v391, %v391
      %v424 = vmul.f32 %v392, %v392
      %v425 = vmul.f32 %v393, %v393
      %v426 = vmul.f32 %v394, %v394
      %v427 = vmul.f32 %v395, %v395
      %v428 = vmul.f32 %v396, %v396
      %v429 = vmul.f32 %v397, %v397
      %v430 = vmul.f32 %v398, %v398
      %v431 = vmul.f32 %v399, %v399
      %v432 = vadd.f32 %v400, %v401
      %433 = vadd.xlane.f32.xlu0 %v432
      %v434 = vpop.xlane.xlu0 %433
      %v435 = vadd.f32 %v402, %v403
      %436 = vadd.xlane.f32.xlu0 %v435
      %v437 = vpop.xlane.xlu0 %436
      %v438 = vadd.f32 %v404, %v405
      %439 = vadd.xlane.f32.xlu0 %v438
      %v440 = vpop.xlane.xlu0 %439
      %v441 = vadd.f32 %v406, %v407
      %442 = vadd.xlane.f32.xlu0 %v441
      %v443 = vpop.xlane.xlu0 %442
      %v444 = vadd.f32 %v408, %v409
      %445 = vadd.xlane.f32.xlu0 %v444
      %v446 = vpop.xlane.xlu0 %445
      %v447 = vadd.f32 %v410, %v411
      %448 = vadd.xlane.f32.xlu0 %v447
      %v449 = vpop.xlane.xlu0 %448
      %v450 = vadd.f32 %v412, %v413
      %451 = vadd.xlane.f32.xlu0 %v450
      %v452 = vpop.xlane.xlu0 %451
      %v453 = vadd.f32 %v414, %v415
      %454 = vadd.xlane.f32.xlu0 %v453
      %v455 = vpop.xlane.xlu0 %454
      %v456 = vadd.f32 %v416, %v417
      %457 = vadd.xlane.f32.xlu0 %v456
      %v458 = vpop.xlane.xlu0 %457
      %v459 = vadd.f32 %v418, %v419
      %460 = vadd.xlane.f32.xlu0 %v459
      %v461 = vpop.xlane.xlu0 %460
      %v462 = vadd.f32 %v420, %v421
      %463 = vadd.xlane.f32.xlu0 %v462
      %v464 = vpop.xlane.xlu0 %463
      %v465 = vadd.f32 %v422, %v423
      %466 = vadd.xlane.f32.xlu0 %v465
      %v467 = vpop.xlane.xlu0 %466
      %v468 = vadd.f32 %v424, %v425
      %469 = vadd.xlane.f32.xlu0 %v468
      %v470 = vpop.xlane.xlu0 %469
      %v471 = vadd.f32 %v426, %v427
      %472 = vadd.xlane.f32.xlu0 %v471
      %v473 = vpop.xlane.xlu0 %472
      %v474 = vadd.f32 %v428, %v429
      %475 = vadd.xlane.f32.xlu0 %v474
      %v476 = vpop.xlane.xlu0 %475
      %v477 = vadd.f32 %v430, %v431
      %478 = vadd.xlane.f32.xlu0 %v477
      %v479 = vpop.xlane.xlu0 %478
      %v480 = vmul.f32 %v434, %v351
      %v481 = vmul.f32 %v437, %v351
      %v482 = vmul.f32 %v440, %v351
      %v483 = vmul.f32 %v443, %v351
      %v484 = vmul.f32 %v446, %v351
      %v485 = vmul.f32 %v449, %v351
      %v486 = vmul.f32 %v452, %v351
      %v487 = vmul.f32 %v455, %v351
      %v488 = vmul.f32 %v458, %v351
      %v489 = vmul.f32 %v461, %v351
      %v490 = vmul.f32 %v464, %v351
      %v491 = vmul.f32 %v467, %v351
      %v492 = vmul.f32 %v470, %v351
      %v493 = vmul.f32 %v473, %v351
      %v494 = vmul.f32 %v476, %v351
      %v495 = vmul.f32 %v479, %v351
      %v496 = vadd.f32 %v480, 1e-05
      %v497 = vadd.f32 %v481, 1e-05
      %v498 = vadd.f32 %v482, 1e-05
      %v499 = vadd.f32 %v483, 1e-05
      %v500 = vadd.f32 %v484, 1e-05
      %v501 = vadd.f32 %v485, 1e-05
      %v502 = vadd.f32 %v486, 1e-05
      %v503 = vadd.f32 %v487, 1e-05
      %v504 = vadd.f32 %v488, 1e-05
      %v505 = vadd.f32 %v489, 1e-05
      %v506 = vadd.f32 %v490, 1e-05
      %v507 = vadd.f32 %v491, 1e-05
      %v508 = vadd.f32 %v492, 1e-05
      %v509 = vadd.f32 %v493, 1e-05
      %v510 = vadd.f32 %v494, 1e-05
      %v511 = vadd.f32 %v495, 1e-05
      %v512 = vrsqrt.pop %v496
      %v513 = vrsqrt.pop %v497
      %v514 = vrsqrt.pop %v498
      %v515 = vrsqrt.pop %v499
      %v516 = vrsqrt.pop %v500
      %v517 = vrsqrt.pop %v501
      %v518 = vrsqrt.pop %v502
      %v519 = vrsqrt.pop %v503
      %v520 = vrsqrt.pop %v504
      %v521 = vrsqrt.pop %v505
      %v522 = vrsqrt.pop %v506
      %v523 = vrsqrt.pop %v507
      %v524 = vrsqrt.pop %v508
      %v525 = vrsqrt.pop %v509
      %v526 = vrsqrt.pop %v510
      %v527 = vrsqrt.pop %v511
      %v528 = vmul.f32 %v368, %v512
      %v529 = vmul.f32 %v369, %v512
      %v530 = vmul.f32 %v370, %v513
      %v531 = vmul.f32 %v371, %v513
      %v532 = vmul.f32 %v372, %v514
      %v533 = vmul.f32 %v373, %v514
      %v534 = vmul.f32 %v374, %v515
      %v535 = vmul.f32 %v375, %v515
      %v536 = vmul.f32 %v376, %v516
      %v537 = vmul.f32 %v377, %v516
      %v538 = vmul.f32 %v378, %v517
      %v539 = vmul.f32 %v379, %v517
      %v540 = vmul.f32 %v380, %v518
      %v541 = vmul.f32 %v381, %v518
      %v542 = vmul.f32 %v382, %v519
      %v543 = vmul.f32 %v383, %v519
      %v544 = vmul.f32 %v384, %v520
      %v545 = vmul.f32 %v385, %v520
      %v546 = vmul.f32 %v386, %v521
      %v547 = vmul.f32 %v387, %v521
      %v548 = vmul.f32 %v388, %v522
      %v549 = vmul.f32 %v389, %v522
      %v550 = vmul.f32 %v390, %v523
      %v551 = vmul.f32 %v391, %v523
      %v552 = vmul.f32 %v392, %v524
      %v553 = vmul.f32 %v393, %v524
      %v554 = vmul.f32 %v394, %v525
      %v555 = vmul.f32 %v395, %v525
      %v556 = vmul.f32 %v396, %v526
      %v557 = vmul.f32 %v397, %v526
      %v558 = vmul.f32 %v398, %v527
      %v559 = vmul.f32 %v399, %v527
      %v561 = vlaneseq
      %v562 = vshrl.u32 %v561, 7
      %v563 = vsub.s32 0, %v562
      %v564 = vrot.slane %v301, %v563
      %v565 = vlaneseq
      %v566 = vshrl.u32 %v565, 7
      %v567 = vsub.s32 1, %v566
      %v568 = vrot.slane %v301, %v567
      %v571 = vmul.f32 %v528, %v564
      %v572 = vmul.f32 %v529, %v568
      %v573 = vmul.f32 %v530, %v564
      %v574 = vmul.f32 %v531, %v568
      %v575 = vmul.f32 %v532, %v564
      %v576 = vmul.f32 %v533, %v568
      %v577 = vmul.f32 %v534, %v564
      %v578 = vmul.f32 %v535, %v568
      %v579 = vmul.f32 %v536, %v564
      %v580 = vmul.f32 %v537, %v568
      %v581 = vmul.f32 %v538, %v564
      %v582 = vmul.f32 %v539, %v568
      %v583 = vmul.f32 %v540, %v564
      %v584 = vmul.f32 %v541, %v568
      %v585 = vmul.f32 %v542, %v564
      %v586 = vmul.f32 %v543, %v568
      %v587 = vmul.f32 %v544, %v564
      %v588 = vmul.f32 %v545, %v568
      %v589 = vmul.f32 %v546, %v564
      %v590 = vmul.f32 %v547, %v568
      %v591 = vmul.f32 %v548, %v564
      %v592 = vmul.f32 %v549, %v568
      %v593 = vmul.f32 %v550, %v564
      %v594 = vmul.f32 %v551, %v568
      %v595 = vmul.f32 %v552, %v564
      %v596 = vmul.f32 %v553, %v568
      %v597 = vmul.f32 %v554, %v564
      %v598 = vmul.f32 %v555, %v568
      %v599 = vmul.f32 %v556, %v564
      %v600 = vmul.f32 %v557, %v568
      %v601 = vmul.f32 %v558, %v564
      %v602 = vmul.f32 %v559, %v568
      %v604 = vlaneseq
      %v605 = vshrl.u32 %v604, 7
      %v606 = vsub.s32 0, %v605
      %v607 = vrot.slane %v302, %v606
      %v608 = vlaneseq
      %v609 = vshrl.u32 %v608, 7
      %v610 = vsub.s32 1, %v609
      %v611 = vrot.slane %v302, %v610
      %v614 = vadd.f32 %v571, %v607
      %v615 = vadd.f32 %v572, %v611
      %v616 = vadd.f32 %v573, %v607
      %v617 = vadd.f32 %v574, %v611
      %v618 = vadd.f32 %v575, %v607
      %v619 = vadd.f32 %v576, %v611
      %v620 = vadd.f32 %v577, %v607
      %v621 = vadd.f32 %v578, %v611
      %v622 = vadd.f32 %v579, %v607
      %v623 = vadd.f32 %v580, %v611
      %v624 = vadd.f32 %v581, %v607
      %v625 = vadd.f32 %v582, %v611
      %v626 = vadd.f32 %v583, %v607
      %v627 = vadd.f32 %v584, %v611
      %v628 = vadd.f32 %v585, %v607
      %v629 = vadd.f32 %v586, %v611
      %v630 = vadd.f32 %v587, %v607
      %v631 = vadd.f32 %v588, %v611
      %v632 = vadd.f32 %v589, %v607
      %v633 = vadd.f32 %v590, %v611
      %v634 = vadd.f32 %v591, %v607
      %v635 = vadd.f32 %v592, %v611
      %v636 = vadd.f32 %v593, %v607
      %v637 = vadd.f32 %v594, %v611
      %v638 = vadd.f32 %v595, %v607
      %v639 = vadd.f32 %v596, %v611
      %v640 = vadd.f32 %v597, %v607
      %v641 = vadd.f32 %v598, %v611
      %v642 = vadd.f32 %v599, %v607
      %v643 = vadd.f32 %v600, %v611
      %v644 = vadd.f32 %v601, %v607
      %v645 = vadd.f32 %v602, %v611
      %v646 = vpack.c.bf16 %v616, %v614
      %v647 = vpack.c.bf16 %v617, %v615
      %v648 = vpack.c.bf16 %v620, %v618
      %v649 = vpack.c.bf16 %v621, %v619
      %v650 = vpack.c.bf16 %v624, %v622
      %v651 = vpack.c.bf16 %v625, %v623
      %v652 = vpack.c.bf16 %v628, %v626
      %v653 = vpack.c.bf16 %v629, %v627
      %v654 = vpack.c.bf16 %v632, %v630
      %v655 = vpack.c.bf16 %v633, %v631
      %v656 = vpack.c.bf16 %v636, %v634
      %v657 = vpack.c.bf16 %v637, %v635
      %v658 = vpack.c.bf16 %v640, %v638
      %v659 = vpack.c.bf16 %v641, %v639
      %v660 = vpack.c.bf16 %v644, %v642
      %v661 = vpack.c.bf16 %v645, %v643
      %v662 = vld [vmem:[%s3] sm:$0xff]
      %v663 = vld [vmem:[%s3 + $0x8] sm:$0xff]
      %v664 = vld [vmem:[%s3 + $0x10] sm:$0xff]
      %v665 = vld [vmem:[%s3 + $0x18] sm:$0xff]
      %v666 = vld [vmem:[%s3 + $0x20] sm:$0xff]
      %v667 = vld [vmem:[%s3 + $0x28] sm:$0xff]
      %v668 = vld [vmem:[%s3 + $0x30] sm:$0xff]
      %v669 = vld [vmem:[%s3 + $0x38] sm:$0xff]
      %v670 = vld [vmem:[%s3 + $0x40] sm:$0xff]
      %v671 = vld [vmem:[%s3 + $0x48] sm:$0xff]
      %v672 = vld [vmem:[%s3 + $0x50] sm:$0xff]
      %v673 = vld [vmem:[%s3 + $0x58] sm:$0xff]
      %v674 = vld [vmem:[%s3 + $0x60] sm:$0xff]
      %v675 = vld [vmem:[%s3 + $0x68] sm:$0xff]
      %v676 = vld [vmem:[%s3 + $0x70] sm:$0xff]
      %v677 = vld [vmem:[%s3 + $0x78] sm:$0xff]
      %v678 = vld [vmem:[%s3 + $0x80] sm:$0xff]
      %v679 = vld [vmem:[%s3 + $0x88] sm:$0xff]
      %v680 = vld [vmem:[%s3 + $0x90] sm:$0xff]
      %v681 = vld [vmem:[%s3 + $0x98] sm:$0xff]
      %v682 = vld [vmem:[%s3 + $0xa0] sm:$0xff]
      %v683 = vld [vmem:[%s3 + $0xa8] sm:$0xff]
      %v684 = vld [vmem:[%s3 + $0xb0] sm:$0xff]
      %v685 = vld [vmem:[%s3 + $0xb8] sm:$0xff]
      %v686 = vld [vmem:[%s3 + $0xc0] sm:$0xff]
      %v687 = vld [vmem:[%s3 + $0xc8] sm:$0xff]
      %v688 = vld [vmem:[%s3 + $0xd0] sm:$0xff]
      %v689 = vld [vmem:[%s3 + $0xd8] sm:$0xff]
      %v690 = vld [vmem:[%s3 + $0xe0] sm:$0xff]
      %v691 = vld [vmem:[%s3 + $0xe8] sm:$0xff]
      %v692 = vld [vmem:[%s3 + $0xf0] sm:$0xff]
      %v693 = vld [vmem:[%s3 + $0xf8] sm:$0xff]
      %v694 = vld [vmem:[%s3 + $0x100] sm:$0xff]
      %v695 = vld [vmem:[%s3 + $0x108] sm:$0xff]
      %v696 = vld [vmem:[%s3 + $0x110] sm:$0xff]
      %v697 = vld [vmem:[%s3 + $0x118] sm:$0xff]
      %v698 = vld [vmem:[%s3 + $0x120] sm:$0xff]
      %v699 = vld [vmem:[%s3 + $0x128] sm:$0xff]
      %v700 = vld [vmem:[%s3 + $0x130] sm:$0xff]
      %v701 = vld [vmem:[%s3 + $0x138] sm:$0xff]
      %v702 = vld [vmem:[%s3 + $0x140] sm:$0xff]
      %v703 = vld [vmem:[%s3 + $0x148] sm:$0xff]
      %v704 = vld [vmem:[%s3 + $0x150] sm:$0xff]
      %v705 = vld [vmem:[%s3 + $0x158] sm:$0xff]
      %v706 = vld [vmem:[%s3 + $0x160] sm:$0xff]
      %v707 = vld [vmem:[%s3 + $0x168] sm:$0xff]
      %v708 = vld [vmem:[%s3 + $0x170] sm:$0xff]
      %v709 = vld [vmem:[%s3 + $0x178] sm:$0xff]
      %v710 = vld [vmem:[%s3 + $0x180] sm:$0xff]
      %v711 = vld [vmem:[%s3 + $0x188] sm:$0xff]
      %v712 = vld [vmem:[%s3 + $0x190] sm:$0xff]
      %v713 = vld [vmem:[%s3 + $0x198] sm:$0xff]
      %v714 = vld [vmem:[%s3 + $0x1a0] sm:$0xff]
      %v715 = vld [vmem:[%s3 + $0x1a8] sm:$0xff]
      %v716 = vld [vmem:[%s3 + $0x1b0] sm:$0xff]
      %v717 = vld [vmem:[%s3 + $0x1b8] sm:$0xff]
      %v718 = vld [vmem:[%s3 + $0x1c0] sm:$0xff]
      %v719 = vld [vmem:[%s3 + $0x1c8] sm:$0xff]
      %v720 = vld [vmem:[%s3 + $0x1d0] sm:$0xff]
      %v721 = vld [vmem:[%s3 + $0x1d8] sm:$0xff]
      %v722 = vld [vmem:[%s3 + $0x1e0] sm:$0xff]
      %v723 = vld [vmem:[%s3 + $0x1e8] sm:$0xff]
      %v724 = vld [vmem:[%s3 + $0x1f0] sm:$0xff]
      %v725 = vld [vmem:[%s3 + $0x1f8] sm:$0xff]
      %v726 = vld [vmem:[%s3 + $0x200] sm:$0xff]
      %v727 = vld [vmem:[%s3 + $0x208] sm:$0xff]
      %v728 = vld [vmem:[%s3 + $0x210] sm:$0xff]
      %v729 = vld [vmem:[%s3 + $0x218] sm:$0xff]
      %v730 = vld [vmem:[%s3 + $0x220] sm:$0xff]
      %v731 = vld [vmem:[%s3 + $0x228] sm:$0xff]
      %v732 = vld [vmem:[%s3 + $0x230] sm:$0xff]
      %v733 = vld [vmem:[%s3 + $0x238] sm:$0xff]
      %v734 = vld [vmem:[%s3 + $0x240] sm:$0xff]
      %v735 = vld [vmem:[%s3 + $0x248] sm:$0xff]
      %v736 = vld [vmem:[%s3 + $0x250] sm:$0xff]
      %v737 = vld [vmem:[%s3 + $0x258] sm:$0xff]
      %v738 = vld [vmem:[%s3 + $0x260] sm:$0xff]
      %v739 = vld [vmem:[%s3 + $0x268] sm:$0xff]
      %v740 = vld [vmem:[%s3 + $0x270] sm:$0xff]
      %v741 = vld [vmem:[%s3 + $0x278] sm:$0xff]
      %v742 = vld [vmem:[%s3 + $0x280] sm:$0xff]
      %v743 = vld [vmem:[%s3 + $0x288] sm:$0xff]
      %v744 = vld [vmem:[%s3 + $0x290] sm:$0xff]
      %v745 = vld [vmem:[%s3 + $0x298] sm:$0xff]
      %v746 = vld [vmem:[%s3 + $0x2a0] sm:$0xff]
      %v747 = vld [vmem:[%s3 + $0x2a8] sm:$0xff]
      %v748 = vld [vmem:[%s3 + $0x2b0] sm:$0xff]
      %v749 = vld [vmem:[%s3 + $0x2b8] sm:$0xff]
      %v750 = vld [vmem:[%s3 + $0x2c0] sm:$0xff]
      %v751 = vld [vmem:[%s3 + $0x2c8] sm:$0xff]
      %v752 = vld [vmem:[%s3 + $0x2d0] sm:$0xff]
      %v753 = vld [vmem:[%s3 + $0x2d8] sm:$0xff]
      %v754 = vld [vmem:[%s3 + $0x2e0] sm:$0xff]
      %v755 = vld [vmem:[%s3 + $0x2e8] sm:$0xff]
      %v756 = vld [vmem:[%s3 + $0x2f0] sm:$0xff]
      %v757 = vld [vmem:[%s3 + $0x2f8] sm:$0xff]
      %v758 = vld [vmem:[%s4] sm:$0x3f]
      %v760 = vlaneseq
      %v761 = vshrl.u32 %v760, 7
      %v762 = vsub.s32 0, %v761
      %v763 = vrot.slane %v758, %v762
      %v764 = vlaneseq
      %v765 = vshrl.u32 %v764, 7
      %v766 = vsub.s32 1, %v765
      %v767 = vrot.slane %v758, %v766
      %v768 = vlaneseq
      %v769 = vshrl.u32 %v768, 7
      %v770 = vsub.s32 2, %v769
      %v771 = vrot.slane %v758, %v770
      %v772 = vlaneseq
      %v773 = vshrl.u32 %v772, 7
      %v774 = vsub.s32 3, %v773
      %v775 = vrot.slane %v758, %v774
      %v776 = vlaneseq
      %v777 = vshrl.u32 %v776, 7
      %v778 = vsub.s32 4, %v777
      %v779 = vrot.slane %v758, %v778
      %v780 = vlaneseq
      %v781 = vshrl.u32 %v780, 7
      %v782 = vsub.s32 5, %v781
      %v783 = vrot.slane %v758, %v782
      %v886 = vunpack.c.l.b16 %v662
      %v887 = vunpack.c.h.b16 %v662
      %v888 = vunpack.c.l.b16 %v663
      %v889 = vunpack.c.h.b16 %v663
      %v890 = vunpack.c.l.b16 %v664
      %v891 = vunpack.c.h.b16 %v664
      %v892 = vunpack.c.l.b16 %v665
      %v893 = vunpack.c.h.b16 %v665
      %v894 = vunpack.c.l.b16 %v666
      %v895 = vunpack.c.h.b16 %v666
      %v896 = vunpack.c.l.b16 %v667
      %v897 = vunpack.c.h.b16 %v667
      %v898 = vunpack.c.l.b16 %v668
      %v899 = vunpack.c.h.b16 %v668
      %v900 = vunpack.c.l.b16 %v669
      %v901 = vunpack.c.h.b16 %v669
      %v902 = vunpack.c.l.b16 %v670
      %v903 = vunpack.c.h.b16 %v670
      %v904 = vunpack.c.l.b16 %v671
      %v905 = vunpack.c.h.b16 %v671
      %v906 = vunpack.c.l.b16 %v672
      %v907 = vunpack.c.h.b16 %v672
      %v908 = vunpack.c.l.b16 %v673
      %v909 = vunpack.c.h.b16 %v673
      %v910 = vunpack.c.l.b16 %v674
      %v911 = vunpack.c.h.b16 %v674
      %v912 = vunpack.c.l.b16 %v675
      %v913 = vunpack.c.h.b16 %v675
      %v914 = vunpack.c.l.b16 %v676
      %v915 = vunpack.c.h.b16 %v676
      %v916 = vunpack.c.l.b16 %v677
      %v917 = vunpack.c.h.b16 %v677
      %v918 = vunpack.c.l.b16 %v678
      %v919 = vunpack.c.h.b16 %v678
      %v920 = vunpack.c.l.b16 %v679
      %v921 = vunpack.c.h.b16 %v679
      %v922 = vunpack.c.l.b16 %v680
      %v923 = vunpack.c.h.b16 %v680
      %v924 = vunpack.c.l.b16 %v681
      %v925 = vunpack.c.h.b16 %v681
      %v926 = vunpack.c.l.b16 %v682
      %v927 = vunpack.c.h.b16 %v682
      %v928 = vunpack.c.l.b16 %v683
      %v929 = vunpack.c.h.b16 %v683
      %v930 = vunpack.c.l.b16 %v684
      %v931 = vunpack.c.h.b16 %v684
      %v932 = vunpack.c.l.b16 %v685
      %v933 = vunpack.c.h.b16 %v685
      %v934 = vunpack.c.l.b16 %v686
      %v935 = vunpack.c.h.b16 %v686
      %v936 = vunpack.c.l.b16 %v687
      %v937 = vunpack.c.h.b16 %v687
      %v938 = vunpack.c.l.b16 %v688
      %v939 = vunpack.c.h.b16 %v688
      %v940 = vunpack.c.l.b16 %v689
      %v941 = vunpack.c.h.b16 %v689
      %v942 = vunpack.c.l.b16 %v690
      %v943 = vunpack.c.h.b16 %v690
      %v944 = vunpack.c.l.b16 %v691
      %v945 = vunpack.c.h.b16 %v691
      %v946 = vunpack.c.l.b16 %v692
      %v947 = vunpack.c.h.b16 %v692
      %v948 = vunpack.c.l.b16 %v693
      %v949 = vunpack.c.h.b16 %v693
      %v950 = vunpack.c.l.b16 %v694
      %v951 = vunpack.c.h.b16 %v694
      %v952 = vunpack.c.l.b16 %v695
      %v953 = vunpack.c.h.b16 %v695
      %v954 = vunpack.c.l.b16 %v696
      %v955 = vunpack.c.h.b16 %v696
      %v956 = vunpack.c.l.b16 %v697
      %v957 = vunpack.c.h.b16 %v697
      %v958 = vunpack.c.l.b16 %v698
      %v959 = vunpack.c.h.b16 %v698
      %v960 = vunpack.c.l.b16 %v699
      %v961 = vunpack.c.h.b16 %v699
      %v962 = vunpack.c.l.b16 %v700
      %v963 = vunpack.c.h.b16 %v700
      %v964 = vunpack.c.l.b16 %v701
      %v965 = vunpack.c.h.b16 %v701
      %v966 = vunpack.c.l.b16 %v702
      %v967 = vunpack.c.h.b16 %v702
      %v968 = vunpack.c.l.b16 %v703
      %v969 = vunpack.c.h.b16 %v703
      %v970 = vunpack.c.l.b16 %v704
      %v971 = vunpack.c.h.b16 %v704
      %v972 = vunpack.c.l.b16 %v705
      %v973 = vunpack.c.h.b16 %v705
      %v974 = vunpack.c.l.b16 %v706
      %v975 = vunpack.c.h.b16 %v706
      %v976 = vunpack.c.l.b16 %v707
      %v977 = vunpack.c.h.b16 %v707
      %v978 = vunpack.c.l.b16 %v708
      %v979 = vunpack.c.h.b16 %v708
      %v980 = vunpack.c.l.b16 %v709
      %v981 = vunpack.c.h.b16 %v709
      %v982 = vunpack.c.l.b16 %v710
      %v983 = vunpack.c.h.b16 %v710
      %v984 = vunpack.c.l.b16 %v711
      %v985 = vunpack.c.h.b16 %v711
      %v986 = vunpack.c.l.b16 %v712
      %v987 = vunpack.c.h.b16 %v712
      %v988 = vunpack.c.l.b16 %v713
      %v989 = vunpack.c.h.b16 %v713
      %v990 = vunpack.c.l.b16 %v714
      %v991 = vunpack.c.h.b16 %v714
      %v992 = vunpack.c.l.b16 %v715
      %v993 = vunpack.c.h.b16 %v715
      %v994 = vunpack.c.l.b16 %v716
      %v995 = vunpack.c.h.b16 %v716
      %v996 = vunpack.c.l.b16 %v717
      %v997 = vunpack.c.h.b16 %v717
      %v998 = vunpack.c.l.b16 %v718
      %v999 = vunpack.c.h.b16 %v718
      %v1000 = vunpack.c.l.b16 %v719
      %v1001 = vunpack.c.h.b16 %v719
      %v1002 = vunpack.c.l.b16 %v720
      %v1003 = vunpack.c.h.b16 %v720
      %v1004 = vunpack.c.l.b16 %v721
      %v1005 = vunpack.c.h.b16 %v721
      %v1006 = vunpack.c.l.b16 %v722
      %v1007 = vunpack.c.h.b16 %v722
      %v1008 = vunpack.c.l.b16 %v723
      %v1009 = vunpack.c.h.b16 %v723
      %v1010 = vunpack.c.l.b16 %v724
      %v1011 = vunpack.c.h.b16 %v724
      %v1012 = vunpack.c.l.b16 %v725
      %v1013 = vunpack.c.h.b16 %v725
      %v1014 = vunpack.c.l.b16 %v726
      %v1015 = vunpack.c.h.b16 %v726
      %v1016 = vunpack.c.l.b16 %v727
      %v1017 = vunpack.c.h.b16 %v727
      %v1018 = vunpack.c.l.b16 %v728
      %v1019 = vunpack.c.h.b16 %v728
      %v1020 = vunpack.c.l.b16 %v729
      %v1021 = vunpack.c.h.b16 %v729
      %v1022 = vunpack.c.l.b16 %v730
      %v1023 = vunpack.c.h.b16 %v730
      %v1024 = vunpack.c.l.b16 %v731
      %v1025 = vunpack.c.h.b16 %v731
      %v1026 = vunpack.c.l.b16 %v732
      %v1027 = vunpack.c.h.b16 %v732
      %v1028 = vunpack.c.l.b16 %v733
      %v1029 = vunpack.c.h.b16 %v733
      %v1030 = vunpack.c.l.b16 %v734
      %v1031 = vunpack.c.h.b16 %v734
      %v1032 = vunpack.c.l.b16 %v735
      %v1033 = vunpack.c.h.b16 %v735
      %v1034 = vunpack.c.l.b16 %v736
      %v1035 = vunpack.c.h.b16 %v736
      %v1036 = vunpack.c.l.b16 %v737
      %v1037 = vunpack.c.h.b16 %v737
      %v1038 = vunpack.c.l.b16 %v738
      %v1039 = vunpack.c.h.b16 %v738
      %v1040 = vunpack.c.l.b16 %v739
      %v1041 = vunpack.c.h.b16 %v739
      %v1042 = vunpack.c.l.b16 %v740
      %v1043 = vunpack.c.h.b16 %v740
      %v1044 = vunpack.c.l.b16 %v741
      %v1045 = vunpack.c.h.b16 %v741
      %v1046 = vunpack.c.l.b16 %v742
      %v1047 = vunpack.c.h.b16 %v742
      %v1048 = vunpack.c.l.b16 %v743
      %v1049 = vunpack.c.h.b16 %v743
      %v1050 = vunpack.c.l.b16 %v744
      %v1051 = vunpack.c.h.b16 %v744
      %v1052 = vunpack.c.l.b16 %v745
      %v1053 = vunpack.c.h.b16 %v745
      %v1054 = vunpack.c.l.b16 %v746
      %v1055 = vunpack.c.h.b16 %v746
      %v1056 = vunpack.c.l.b16 %v747
      %v1057 = vunpack.c.h.b16 %v747
      %v1058 = vunpack.c.l.b16 %v748
      %v1059 = vunpack.c.h.b16 %v748
      %v1060 = vunpack.c.l.b16 %v749
      %v1061 = vunpack.c.h.b16 %v749
      %v1062 = vunpack.c.l.b16 %v750
      %v1063 = vunpack.c.h.b16 %v750
      %v1064 = vunpack.c.l.b16 %v751
      %v1065 = vunpack.c.h.b16 %v751
      %v1066 = vunpack.c.l.b16 %v752
      %v1067 = vunpack.c.h.b16 %v752
      %v1068 = vunpack.c.l.b16 %v753
      %v1069 = vunpack.c.h.b16 %v753
      %v1070 = vunpack.c.l.b16 %v754
      %v1071 = vunpack.c.h.b16 %v754
      %v1072 = vunpack.c.l.b16 %v755
      %v1073 = vunpack.c.h.b16 %v755
      %v1074 = vunpack.c.l.b16 %v756
      %v1075 = vunpack.c.h.b16 %v756
      %v1076 = vunpack.c.l.b16 %v757
      %v1077 = vunpack.c.h.b16 %v757
      %v1078 = vpack.c.b16 %v892, %v886
      %v1079 = vpack.c.b16 %v893, %v887
      %v1080 = vpack.c.b16 %v894, %v888
      %v1081 = vpack.c.b16 %v895, %v889
      %v1082 = vpack.c.b16 %v896, %v890
      %v1083 = vpack.c.b16 %v897, %v891
      %v1084 = vpack.c.b16 %v904, %v898
      %v1085 = vpack.c.b16 %v905, %v899
      %v1086 = vpack.c.b16 %v906, %v900
      %v1087 = vpack.c.b16 %v907, %v901
      %v1088 = vpack.c.b16 %v908, %v902
      %v1089 = vpack.c.b16 %v909, %v903
      %v1090 = vpack.c.b16 %v916, %v910
      %v1091 = vpack.c.b16 %v917, %v911
      %v1092 = vpack.c.b16 %v918, %v912
      %v1093 = vpack.c.b16 %v919, %v913
      %v1094 = vpack.c.b16 %v920, %v914
      %v1095 = vpack.c.b16 %v921, %v915
      %v1096 = vpack.c.b16 %v928, %v922
      %v1097 = vpack.c.b16 %v929, %v923
      %v1098 = vpack.c.b16 %v930, %v924
      %v1099 = vpack.c.b16 %v931, %v925
      %v1100 = vpack.c.b16 %v932, %v926
      %v1101 = vpack.c.b16 %v933, %v927
      %v1102 = vpack.c.b16 %v940, %v934
      %v1103 = vpack.c.b16 %v941, %v935
      %v1104 = vpack.c.b16 %v942, %v936
      %v1105 = vpack.c.b16 %v943, %v937
      %v1106 = vpack.c.b16 %v944, %v938
      %v1107 = vpack.c.b16 %v945, %v939
      %v1108 = vpack.c.b16 %v952, %v946
      %v1109 = vpack.c.b16 %v953, %v947
      %v1110 = vpack.c.b16 %v954, %v948
      %v1111 = vpack.c.b16 %v955, %v949
      %v1112 = vpack.c.b16 %v956, %v950
      %v1113 = vpack.c.b16 %v957, %v951
      %v1114 = vpack.c.b16 %v964, %v958
      %v1115 = vpack.c.b16 %v965, %v959
      %v1116 = vpack.c.b16 %v966, %v960
      %v1117 = vpack.c.b16 %v967, %v961
      %v1118 = vpack.c.b16 %v968, %v962
      %v1119 = vpack.c.b16 %v969, %v963
      %v1120 = vpack.c.b16 %v976, %v970
      %v1121 = vpack.c.b16 %v977, %v971
      %v1122 = vpack.c.b16 %v978, %v972
      %v1123 = vpack.c.b16 %v979, %v973
      %v1124 = vpack.c.b16 %v980, %v974
      %v1125 = vpack.c.b16 %v981, %v975
      %v1126 = vpack.c.b16 %v988, %v982
      %v1127 = vpack.c.b16 %v989, %v983
      %v1128 = vpack.c.b16 %v990, %v984
      %v1129 = vpack.c.b16 %v991, %v985
      %v1130 = vpack.c.b16 %v992, %v986
      %v1131 = vpack.c.b16 %v993, %v987
      %v1132 = vpack.c.b16 %v1000, %v994
      %v1133 = vpack.c.b16 %v1001, %v995
      %v1134 = vpack.c.b16 %v1002, %v996
      %v1135 = vpack.c.b16 %v1003, %v997
      %v1136 = vpack.c.b16 %v1004, %v998
      %v1137 = vpack.c.b16 %v1005, %v999
      %v1138 = vpack.c.b16 %v1012, %v1006
      %v1139 = vpack.c.b16 %v1013, %v1007
      %v1140 = vpack.c.b16 %v1014, %v1008
      %v1141 = vpack.c.b16 %v1015, %v1009
      %v1142 = vpack.c.b16 %v1016, %v1010
      %v1143 = vpack.c.b16 %v1017, %v1011
      %v1144 = vpack.c.b16 %v1024, %v1018
      %v1145 = vpack.c.b16 %v1025, %v1019
      %v1146 = vpack.c.b16 %v1026, %v1020
      %v1147 = vpack.c.b16 %v1027, %v1021
      %v1148 = vpack.c.b16 %v1028, %v1022
      %v1149 = vpack.c.b16 %v1029, %v1023
      %v1150 = vpack.c.b16 %v1036, %v1030
      %v1151 = vpack.c.b16 %v1037, %v1031
      %v1152 = vpack.c.b16 %v1038, %v1032
      %v1153 = vpack.c.b16 %v1039, %v1033
      %v1154 = vpack.c.b16 %v1040, %v1034
      %v1155 = vpack.c.b16 %v1041, %v1035
      %v1156 = vpack.c.b16 %v1048, %v1042
      %v1157 = vpack.c.b16 %v1049, %v1043
      %v1158 = vpack.c.b16 %v1050, %v1044
      %v1159 = vpack.c.b16 %v1051, %v1045
      %v1160 = vpack.c.b16 %v1052, %v1046
      %v1161 = vpack.c.b16 %v1053, %v1047
      %v1162 = vpack.c.b16 %v1060, %v1054
      %v1163 = vpack.c.b16 %v1061, %v1055
      %v1164 = vpack.c.b16 %v1062, %v1056
      %v1165 = vpack.c.b16 %v1063, %v1057
      %v1166 = vpack.c.b16 %v1064, %v1058
      %v1167 = vpack.c.b16 %v1065, %v1059
      %v1168 = vpack.c.b16 %v1072, %v1066
      %v1169 = vpack.c.b16 %v1073, %v1067
      %v1170 = vpack.c.b16 %v1074, %v1068
      %v1171 = vpack.c.b16 %v1075, %v1069
      %v1172 = vpack.c.b16 %v1076, %v1070
      %v1173 = vpack.c.b16 %v1077, %v1071
      %1270 = vmatprep.subr.bf16.mxu0 %v1121
      %1271 = vmatpush1.bf16.msra.mxu0 %v1120
      %1272 = vmatprep.subr.bf16.mxu0 %v1115
      %1273 = vmatpush1.bf16.msra.mxu0 %v1114
      %1274 = vmatprep.subr.bf16.mxu0 %v1109
      %1275 = vmatpush1.bf16.msra.mxu0 %v1108
      %1276 = vmatprep.subr.bf16.mxu0 %v1103
      %1277 = vmatpush1.bf16.msra.mxu0 %v1102
      %1278 = vmatprep.subr.bf16.mxu0 %v1097
      %1279 = vmatpush1.bf16.msra.mxu0 %v1096
      %1280 = vmatprep.subr.bf16.mxu0 %v1091
      %1281 = vmatpush1.bf16.msra.mxu0 %v1090
      %1282 = vmatprep.subr.bf16.mxu0 %v1085
      %1283 = vmatpush1.bf16.msra.mxu0 %v1084
      %1284 = vmatprep.subr.bf16.mxu0 %v1079
      %1285 = vmatpush1.bf16.msra.mxu0 %v1078
      %1286 = vmatprep.subr.bf16.mxu0 %v1169
      %1287 = vmatpush2.bf16.msra.mxu0 %v1168
      %1288 = vmatprep.subr.bf16.mxu0 %v1163
      %1289 = vmatpush2.bf16.msra.mxu0 %v1162
      %1290 = vmatprep.subr.bf16.mxu0 %v1157
      %1291 = vmatpush2.bf16.msra.mxu0 %v1156
      %1292 = vmatprep.subr.bf16.mxu0 %v1151
      %1293 = vmatpush2.bf16.msra.mxu0 %v1150
      %1294 = vmatprep.subr.bf16.mxu0 %v1145
      %1295 = vmatpush2.bf16.msra.mxu0 %v1144
      %1296 = vmatprep.subr.bf16.mxu0 %v1139
      %1297 = vmatpush2.bf16.msra.mxu0 %v1138
      %1298 = vmatprep.subr.bf16.mxu0 %v1133
      %1299 = vmatpush2.bf16.msra.mxu0 %v1132
      %1300 = vmatprep.subr.bf16.mxu0 %v1127
      %1301 = vmatpush2.bf16.msra.mxu0 %v1126
      %1302 = vmatprep.mubr.bf16.mxu0 %v647
      %1303 = vmatmul.mubr.bf16.gmra.mxu0 %v646
      %v1304 = vpop.f32.mrf.mxu0
      %v1305 = vadd.f32 %v763, %v1304
      %v1306 = vpop.f32.mrf.mxu0
      %v1307 = vadd.f32 %v767, %v1306
      %v1308 = vpop.f32.mrf.mxu0
      %v1309 = vadd.f32 %v763, %v1308
      %v1310 = vpop.f32.mrf.mxu0
      %v1311 = vadd.f32 %v767, %v1310
      %1312 = vmatprep.mubr.bf16.mxu0 %v649
      %1313 = vmatmul.mubr.bf16.gmra.mxu0 %v648
      %v1314 = vpop.f32.mrf.mxu0
      %v1315 = vadd.f32 %v763, %v1314
      %v1316 = vpop.f32.mrf.mxu0
      %v1317 = vadd.f32 %v767, %v1316
      %v1318 = vpop.f32.mrf.mxu0
      %v1319 = vadd.f32 %v763, %v1318
      %v1320 = vpop.f32.mrf.mxu0
      %v1321 = vadd.f32 %v767, %v1320
      %1322 = vmatprep.mubr.bf16.mxu0 %v651
      %1323 = vmatmul.mubr.bf16.gmra.mxu0 %v650
      %v1324 = vpop.f32.mrf.mxu0
      %v1325 = vadd.f32 %v763, %v1324
      %v1326 = vpop.f32.mrf.mxu0
      %v1327 = vadd.f32 %v767, %v1326
      %v1328 = vpop.f32.mrf.mxu0
      %v1329 = vadd.f32 %v763, %v1328
      %v1330 = vpop.f32.mrf.mxu0
      %v1331 = vadd.f32 %v767, %v1330
      %1332 = vmatprep.mubr.bf16.mxu0 %v653
      %1333 = vmatmul.mubr.bf16.gmra.mxu0 %v652
      %v1334 = vpop.f32.mrf.mxu0
      %v1335 = vadd.f32 %v763, %v1334
      %v1336 = vpop.f32.mrf.mxu0
      %v1337 = vadd.f32 %v767, %v1336
      %v1338 = vpop.f32.mrf.mxu0
      %v1339 = vadd.f32 %v763, %v1338
      %v1340 = vpop.f32.mrf.mxu0
      %v1341 = vadd.f32 %v767, %v1340
      %1342 = vmatprep.mubr.bf16.mxu0 %v655
      %1343 = vmatmul.mubr.bf16.gmra.mxu0 %v654
      %v1344 = vpop.f32.mrf.mxu0
      %v1345 = vadd.f32 %v763, %v1344
      %v1346 = vpop.f32.mrf.mxu0
      %v1347 = vadd.f32 %v767, %v1346
      %v1348 = vpop.f32.mrf.mxu0
      %v1349 = vadd.f32 %v763, %v1348
      %v1350 = vpop.f32.mrf.mxu0
      %v1351 = vadd.f32 %v767, %v1350
      %1352 = vmatprep.mubr.bf16.mxu0 %v657
      %1353 = vmatmul.mubr.bf16.gmra.mxu0 %v656
      %v1354 = vpop.f32.mrf.mxu0
      %v1355 = vadd.f32 %v763, %v1354
      %v1356 = vpop.f32.mrf.mxu0
      %v1357 = vadd.f32 %v767, %v1356
      %v1358 = vpop.f32.mrf.mxu0
      %v1359 = vadd.f32 %v763, %v1358
      %v1360 = vpop.f32.mrf.mxu0
      %v1361 = vadd.f32 %v767, %v1360
      %1362 = vmatprep.mubr.bf16.mxu0 %v659
      %1363 = vmatmul.mubr.bf16.gmra.mxu0 %v658
      %v1364 = vpop.f32.mrf.mxu0
      %v1365 = vadd.f32 %v763, %v1364
      %v1366 = vpop.f32.mrf.mxu0
      %v1367 = vadd.f32 %v767, %v1366
      %v1368 = vpop.f32.mrf.mxu0
      %v1369 = vadd.f32 %v763, %v1368
      %v1370 = vpop.f32.mrf.mxu0
      %v1371 = vadd.f32 %v767, %v1370
      %1372 = vmatprep.mubr.bf16.mxu0 %v661
      %1373 = vmatmul.mubr.bf16.gmra.mxu0 %v660
      %v1374 = vpop.f32.mrf.mxu0
      %v1375 = vadd.f32 %v763, %v1374
      %v1376 = vpop.f32.mrf.mxu0
      %v1377 = vadd.f32 %v767, %v1376
      %v1378 = vpop.f32.mrf.mxu0
      %v1379 = vadd.f32 %v763, %v1378
      %v1380 = vpop.f32.mrf.mxu0
      %v1381 = vadd.f32 %v767, %v1380
      %1382 = vdwg.mxu0
      %1383 = vmatprep.subr.bf16.mxu0 %v1123
      %1384 = vmatpush1.bf16.msra.mxu0 %v1122
      %1385 = vmatprep.subr.bf16.mxu0 %v1117
      %1386 = vmatpush1.bf16.msra.mxu0 %v1116
      %1387 = vmatprep.subr.bf16.mxu0 %v1111
      %1388 = vmatpush1.bf16.msra.mxu0 %v1110
      %1389 = vmatprep.subr.bf16.mxu0 %v1105
      %1390 = vmatpush1.bf16.msra.mxu0 %v1104
      %1391 = vmatprep.subr.bf16.mxu0 %v1099
      %1392 = vmatpush1.bf16.msra.mxu0 %v1098
      %1393 = vmatprep.subr.bf16.mxu0 %v1093
      %1394 = vmatpush1.bf16.msra.mxu0 %v1092
      %1395 = vmatprep.subr.bf16.mxu0 %v1087
      %1396 = vmatpush1.bf16.msra.mxu0 %v1086
      %1397 = vmatprep.subr.bf16.mxu0 %v1081
      %1398 = vmatpush1.bf16.msra.mxu0 %v1080
      %1399 = vmatprep.subr.bf16.mxu0 %v1171
      %1400 = vmatpush2.bf16.msra.mxu0 %v1170
      %1401 = vmatprep.subr.bf16.mxu0 %v1165
      %1402 = vmatpush2.bf16.msra.mxu0 %v1164
      %1403 = vmatprep.subr.bf16.mxu0 %v1159
      %1404 = vmatpush2.bf16.msra.mxu0 %v1158
      %1405 = vmatprep.subr.bf16.mxu0 %v1153
      %1406 = vmatpush2.bf16.msra.mxu0 %v1152
      %1407 = vmatprep.subr.bf16.mxu0 %v1147
      %1408 = vmatpush2.bf16.msra.mxu0 %v1146
      %1409 = vmatprep.subr.bf16.mxu0 %v1141
      %1410 = vmatpush2.bf16.msra.mxu0 %v1140
      %1411 = vmatprep.subr.bf16.mxu0 %v1135
      %1412 = vmatpush2.bf16.msra.mxu0 %v1134
      %1413 = vmatprep.subr.bf16.mxu0 %v1129
      %1414 = vmatpush2.bf16.msra.mxu0 %v1128
      %1415 = vmatprep.mubr.bf16.mxu0 %v647
      %1416 = vmatmul.mubr.bf16.gmra.mxu0 %v646
      %v1417 = vpop.f32.mrf.mxu0
      %v1418 = vadd.f32 %v771, %v1417
      %v1419 = vpop.f32.mrf.mxu0
      %v1420 = vadd.f32 %v775, %v1419
      %v1421 = vpop.f32.mrf.mxu0
      %v1422 = vadd.f32 %v771, %v1421
      %v1423 = vpop.f32.mrf.mxu0
      %v1424 = vadd.f32 %v775, %v1423
      %1425 = vmatprep.mubr.bf16.mxu0 %v649
      %1426 = vmatmul.mubr.bf16.gmra.mxu0 %v648
      %v1427 = vpop.f32.mrf.mxu0
      %v1428 = vadd.f32 %v771, %v1427
      %v1429 = vpop.f32.mrf.mxu0
      %v1430 = vadd.f32 %v775, %v1429
      %v1431 = vpop.f32.mrf.mxu0
      %v1432 = vadd.f32 %v771, %v1431
      %v1433 = vpop.f32.mrf.mxu0
      %v1434 = vadd.f32 %v775, %v1433
      %1435 = vmatprep.mubr.bf16.mxu0 %v651
      %1436 = vmatmul.mubr.bf16.gmra.mxu0 %v650
      %v1437 = vpop.f32.mrf.mxu0
      %v1438 = vadd.f32 %v771, %v1437
      %v1439 = vpop.f32.mrf.mxu0
      %v1440 = vadd.f32 %v775, %v1439
      %v1441 = vpop.f32.mrf.mxu0
      %v1442 = vadd.f32 %v771, %v1441
      %v1443 = vpop.f32.mrf.mxu0
      %v1444 = vadd.f32 %v775, %v1443
      %1445 = vmatprep.mubr.bf16.mxu0 %v653
      %1446 = vmatmul.mubr.bf16.gmra.mxu0 %v652
      %v1447 = vpop.f32.mrf.mxu0
      %v1448 = vadd.f32 %v771, %v1447
      %v1449 = vpop.f32.mrf.mxu0
      %v1450 = vadd.f32 %v775, %v1449
      %v1451 = vpop.f32.mrf.mxu0
      %v1452 = vadd.f32 %v771, %v1451
      %v1453 = vpop.f32.mrf.mxu0
      %v1454 = vadd.f32 %v775, %v1453
      %1455 = vmatprep.mubr.bf16.mxu0 %v655
      %1456 = vmatmul.mubr.bf16.gmra.mxu0 %v654
      %v1457 = vpop.f32.mrf.mxu0
      %v1458 = vadd.f32 %v771, %v1457
      %v1459 = vpop.f32.mrf.mxu0
      %v1460 = vadd.f32 %v775, %v1459
      %v1461 = vpop.f32.mrf.mxu0
      %v1462 = vadd.f32 %v771, %v1461
      %v1463 = vpop.f32.mrf.mxu0
      %v1464 = vadd.f32 %v775, %v1463
      %1465 = vmatprep.mubr.bf16.mxu0 %v657
      %1466 = vmatmul.mubr.bf16.gmra.mxu0 %v656
      %v1467 = vpop.f32.mrf.mxu0
      %v1468 = vadd.f32 %v771, %v1467
      %v1469 = vpop.f32.mrf.mxu0
      %v1470 = vadd.f32 %v775, %v1469
      %v1471 = vpop.f32.mrf.mxu0
      %v1472 = vadd.f32 %v771, %v1471
      %v1473 = vpop.f32.mrf.mxu0
      %v1474 = vadd.f32 %v775, %v1473
      %1475 = vmatprep.mubr.bf16.mxu0 %v659
      %1476 = vmatmul.mubr.bf16.gmra.mxu0 %v658
      %v1477 = vpop.f32.mrf.mxu0
      %v1478 = vadd.f32 %v771, %v1477
      %v1479 = vpop.f32.mrf.mxu0
      %v1480 = vadd.f32 %v775, %v1479
      %v1481 = vpop.f32.mrf.mxu0
      %v1482 = vadd.f32 %v771, %v1481
      %v1483 = vpop.f32.mrf.mxu0
      %v1484 = vadd.f32 %v775, %v1483
      %1485 = vmatprep.mubr.bf16.mxu0 %v661
      %1486 = vmatmul.mubr.bf16.gmra.mxu0 %v660
      %v1487 = vpop.f32.mrf.mxu0
      %v1488 = vadd.f32 %v771, %v1487
      %v1489 = vpop.f32.mrf.mxu0
      %v1490 = vadd.f32 %v775, %v1489
      %v1491 = vpop.f32.mrf.mxu0
      %v1492 = vadd.f32 %v771, %v1491
      %v1493 = vpop.f32.mrf.mxu0
      %v1494 = vadd.f32 %v775, %v1493
      %1495 = vdwg.mxu0
      %1496 = vmatprep.subr.bf16.mxu0 %v1125
      %1497 = vmatpush1.bf16.msra.mxu0 %v1124
      %1498 = vmatprep.subr.bf16.mxu0 %v1119
      %1499 = vmatpush1.bf16.msra.mxu0 %v1118
      %1500 = vmatprep.subr.bf16.mxu0 %v1113
      %1501 = vmatpush1.bf16.msra.mxu0 %v1112
      %1502 = vmatprep.subr.bf16.mxu0 %v1107
      %1503 = vmatpush1.bf16.msra.mxu0 %v1106
      %1504 = vmatprep.subr.bf16.mxu0 %v1101
      %1505 = vmatpush1.bf16.msra.mxu0 %v1100
      %1506 = vmatprep.subr.bf16.mxu0 %v1095
      %1507 = vmatpush1.bf16.msra.mxu0 %v1094
      %1508 = vmatprep.subr.bf16.mxu0 %v1089
      %1509 = vmatpush1.bf16.msra.mxu0 %v1088
      %1510 = vmatprep.subr.bf16.mxu0 %v1083
      %1511 = vmatpush1.bf16.msra.mxu0 %v1082
      %1512 = vmatprep.subr.bf16.mxu0 %v1173
      %1513 = vmatpush2.bf16.msra.mxu0 %v1172
      %1514 = vmatprep.subr.bf16.mxu0 %v1167
      %1515 = vmatpush2.bf16.msra.mxu0 %v1166
      %1516 = vmatprep.subr.bf16.mxu0 %v1161
      %1517 = vmatpush2.bf16.msra.mxu0 %v1160
      %1518 = vmatprep.subr.bf16.mxu0 %v1155
      %1519 = vmatpush2.bf16.msra.mxu0 %v1154
      %1520 = vmatprep.subr.bf16.mxu0 %v1149
      %1521 = vmatpush2.bf16.msra.mxu0 %v1148
      %1522 = vmatprep.subr.bf16.mxu0 %v1143
      %1523 = vmatpush2.bf16.msra.mxu0 %v1142
      %1524 = vmatprep.subr.bf16.mxu0 %v1137
      %1525 = vmatpush2.bf16.msra.mxu0 %v1136
      %1526 = vmatprep.subr.bf16.mxu0 %v1131
      %1527 = vmatpush2.bf16.msra.mxu0 %v1130
      %1528 = vmatprep.mubr.bf16.mxu0 %v647
      %1529 = vmatmul.mubr.bf16.gmra.mxu0 %v646
      %v1530 = vpop.f32.mrf.mxu0
      %v1531 = vadd.f32 %v779, %v1530
      %v1532 = vpop.f32.mrf.mxu0
      %v1533 = vadd.f32 %v783, %v1532
      %v1534 = vpop.f32.mrf.mxu0
      %v1535 = vadd.f32 %v779, %v1534
      %v1536 = vpop.f32.mrf.mxu0
      %v1537 = vadd.f32 %v783, %v1536
      %1538 = vmatprep.mubr.bf16.mxu0 %v649
      %1539 = vmatmul.mubr.bf16.gmra.mxu0 %v648
      %v1540 = vpop.f32.mrf.mxu0
      %v1541 = vadd.f32 %v779, %v1540
      %v1542 = vpop.f32.mrf.mxu0
      %v1543 = vadd.f32 %v783, %v1542
      %v1544 = vpop.f32.mrf.mxu0
      %v1545 = vadd.f32 %v779, %v1544
      %v1546 = vpop.f32.mrf.mxu0
      %v1547 = vadd.f32 %v783, %v1546
      %1548 = vmatprep.mubr.bf16.mxu0 %v651
      %1549 = vmatmul.mubr.bf16.gmra.mxu0 %v650
      %v1550 = vpop.f32.mrf.mxu0
      %v1551 = vadd.f32 %v779, %v1550
      %v1552 = vpop.f32.mrf.mxu0
      %v1553 = vadd.f32 %v783, %v1552
      %v1554 = vpop.f32.mrf.mxu0
      %v1555 = vadd.f32 %v779, %v1554
      %v1556 = vpop.f32.mrf.mxu0
      %v1557 = vadd.f32 %v783, %v1556
      %1558 = vmatprep.mubr.bf16.mxu0 %v653
      %1559 = vmatmul.mubr.bf16.gmra.mxu0 %v652
      %v1560 = vpop.f32.mrf.mxu0
      %v1561 = vadd.f32 %v779, %v1560
      %v1562 = vpop.f32.mrf.mxu0
      %v1563 = vadd.f32 %v783, %v1562
      %v1564 = vpop.f32.mrf.mxu0
      %v1565 = vadd.f32 %v779, %v1564
      %v1566 = vpop.f32.mrf.mxu0
      %v1567 = vadd.f32 %v783, %v1566
      %1568 = vmatprep.mubr.bf16.mxu0 %v655
      %1569 = vmatmul.mubr.bf16.gmra.mxu0 %v654
      %v1570 = vpop.f32.mrf.mxu0
      %v1571 = vadd.f32 %v779, %v1570
      %v1572 = vpop.f32.mrf.mxu0
      %v1573 = vadd.f32 %v783, %v1572
      %v1574 = vpop.f32.mrf.mxu0
      %v1575 = vadd.f32 %v779, %v1574
      %v1576 = vpop.f32.mrf.mxu0
      %v1577 = vadd.f32 %v783, %v1576
      %1578 = vmatprep.mubr.bf16.mxu0 %v657
      %1579 = vmatmul.mubr.bf16.gmra.mxu0 %v656
      %v1580 = vpop.f32.mrf.mxu0
      %v1581 = vadd.f32 %v779, %v1580
      %v1582 = vpop.f32.mrf.mxu0
      %v1583 = vadd.f32 %v783, %v1582
      %v1584 = vpop.f32.mrf.mxu0
      %v1585 = vadd.f32 %v779, %v1584
      %v1586 = vpop.f32.mrf.mxu0
      %v1587 = vadd.f32 %v783, %v1586
      %1588 = vmatprep.mubr.bf16.mxu0 %v659
      %1589 = vmatmul.mubr.bf16.gmra.mxu0 %v658
      %v1590 = vpop.f32.mrf.mxu0
      %v1591 = vadd.f32 %v779, %v1590
      %v1592 = vpop.f32.mrf.mxu0
      %v1593 = vadd.f32 %v783, %v1592
      %v1594 = vpop.f32.mrf.mxu0
      %v1595 = vadd.f32 %v779, %v1594
      %v1596 = vpop.f32.mrf.mxu0
      %v1597 = vadd.f32 %v783, %v1596
      %1598 = vmatprep.mubr.bf16.mxu0 %v661
      %1599 = vmatmul.mubr.bf16.gmra.mxu0 %v660
      %v1600 = vpop.f32.mrf.mxu0
      %v1601 = vadd.f32 %v779, %v1600
      %v1602 = vpop.f32.mrf.mxu0
      %v1603 = vadd.f32 %v783, %v1602
      %v1604 = vpop.f32.mrf.mxu0
      %v1605 = vadd.f32 %v779, %v1604
      %v1606 = vpop.f32.mrf.mxu0
      %v1607 = vadd.f32 %v783, %v1606
      %1608 = vdwg.mxu0
      %v1609 = vpack.c.bf16 %v1309, %v1305
      %v1610 = vpack.c.bf16 %v1311, %v1307
      %v1611 = vpack.c.bf16 %v1422, %v1418
      %v1612 = vpack.c.bf16 %v1424, %v1420
      %v1613 = vpack.c.bf16 %v1535, %v1531
      %v1614 = vpack.c.bf16 %v1537, %v1533
      %v1615 = vpack.c.bf16 %v1319, %v1315
      %v1616 = vpack.c.bf16 %v1321, %v1317
      %v1617 = vpack.c.bf16 %v1432, %v1428
      %v1618 = vpack.c.bf16 %v1434, %v1430
      %v1619 = vpack.c.bf16 %v1545, %v1541
      %v1620 = vpack.c.bf16 %v1547, %v1543
      %v1621 = vpack.c.bf16 %v1329, %v1325
      %v1622 = vpack.c.bf16 %v1331, %v1327
      %v1623 = vpack.c.bf16 %v1442, %v1438
      %v1624 = vpack.c.bf16 %v1444, %v1440
      %v1625 = vpack.c.bf16 %v1555, %v1551
      %v1626 = vpack.c.bf16 %v1557, %v1553
      %v1627 = vpack.c.bf16 %v1339, %v1335
      %v1628 = vpack.c.bf16 %v1341, %v1337
      %v1629 = vpack.c.bf16 %v1452, %v1448
      %v1630 = vpack.c.bf16 %v1454, %v1450
      %v1631 = vpack.c.bf16 %v1565, %v1561
      %v1632 = vpack.c.bf16 %v1567, %v1563
      %v1633 = vpack.c.bf16 %v1349, %v1345
      %v1634 = vpack.c.bf16 %v1351, %v1347
      %v1635 = vpack.c.bf16 %v1462, %v1458
      %v1636 = vpack.c.bf16 %v1464, %v1460
      %v1637 = vpack.c.bf16 %v1575, %v1571
      %v1638 = vpack.c.bf16 %v1577, %v1573
      %v1639 = vpack.c.bf16 %v1359, %v1355
      %v1640 = vpack.c.bf16 %v1361, %v1357
      %v1641 = vpack.c.bf16 %v1472, %v1468
      %v1642 = vpack.c.bf16 %v1474, %v1470
      %v1643 = vpack.c.bf16 %v1585, %v1581
      %v1644 = vpack.c.bf16 %v1587, %v1583
      %v1645 = vpack.c.bf16 %v1369, %v1365
      %v1646 = vpack.c.bf16 %v1371, %v1367
      %v1647 = vpack.c.bf16 %v1482, %v1478
      %v1648 = vpack.c.bf16 %v1484, %v1480
      %v1649 = vpack.c.bf16 %v1595, %v1591
      %v1650 = vpack.c.bf16 %v1597, %v1593
      %v1651 = vpack.c.bf16 %v1379, %v1375
      %v1652 = vpack.c.bf16 %v1381, %v1377
      %v1653 = vpack.c.bf16 %v1492, %v1488
      %v1654 = vpack.c.bf16 %v1494, %v1490
      %v1655 = vpack.c.bf16 %v1605, %v1601
      %v1656 = vpack.c.bf16 %v1607, %v1603
      %v1705 = vunpack.c.l.b16 %v1609
      %v1706 = vunpack.c.l.b16 %v1610
      %v1707 = vunpack.c.l.b16 %v1611
      %v1708 = vunpack.c.l.b16 %v1612
      %v1709 = vunpack.c.l.b16 %v1613
      %v1710 = vunpack.c.l.b16 %v1614
      %v1711 = vunpack.c.h.b16 %v1609
      %v1712 = vunpack.c.h.b16 %v1610
      %v1713 = vunpack.c.h.b16 %v1611
      %v1714 = vunpack.c.h.b16 %v1612
      %v1715 = vunpack.c.h.b16 %v1613
      %v1716 = vunpack.c.h.b16 %v1614
      %v1717 = vunpack.c.l.b16 %v1615
      %v1718 = vunpack.c.l.b16 %v1616
      %v1719 = vunpack.c.l.b16 %v1617
      %v1720 = vunpack.c.l.b16 %v1618
      %v1721 = vunpack.c.l.b16 %v1619
      %v1722 = vunpack.c.l.b16 %v1620
      %v1723 = vunpack.c.h.b16 %v1615
      %v1724 = vunpack.c.h.b16 %v1616
      %v1725 = vunpack.c.h.b16 %v1617
      %v1726 = vunpack.c.h.b16 %v1618
      %v1727 = vunpack.c.h.b16 %v1619
      %v1728 = vunpack.c.h.b16 %v1620
      %v1729 = vunpack.c.l.b16 %v1621
      %v1730 = vunpack.c.l.b16 %v1622
      %v1731 = vunpack.c.l.b16 %v1623
      %v1732 = vunpack.c.l.b16 %v1624
      %v1733 = vunpack.c.l.b16 %v1625
      %v1734 = vunpack.c.l.b16 %v1626
      %v1735 = vunpack.c.h.b16 %v1621
      %v1736 = vunpack.c.h.b16 %v1622
      %v1737 = vunpack.c.h.b16 %v1623
      %v1738 = vunpack.c.h.b16 %v1624
      %v1739 = vunpack.c.h.b16 %v1625
      %v1740 = vunpack.c.h.b16 %v1626
      %v1741 = vunpack.c.l.b16 %v1627
      %v1742 = vunpack.c.l.b16 %v1628
      %v1743 = vunpack.c.l.b16 %v1629
      %v1744 = vunpack.c.l.b16 %v1630
      %v1745 = vunpack.c.l.b16 %v1631
      %v1746 = vunpack.c.l.b16 %v1632
      %v1747 = vunpack.c.h.b16 %v1627
      %v1748 = vunpack.c.h.b16 %v1628
      %v1749 = vunpack.c.h.b16 %v1629
      %v1750 = vunpack.c.h.b16 %v1630
      %v1751 = vunpack.c.h.b16 %v1631
      %v1752 = vunpack.c.h.b16 %v1632
      %v1753 = vunpack.c.l.b16 %v1633
      %v1754 = vunpack.c.l.b16 %v1634
      %v1755 = vunpack.c.l.b16 %v1635
      %v1756 = vunpack.c.l.b16 %v1636
      %v1757 = vunpack.c.l.b16 %v1637
      %v1758 = vunpack.c.l.b16 %v1638
      %v1759 = vunpack.c.h.b16 %v1633
      %v1760 = vunpack.c.h.b16 %v1634
      %v1761 = vunpack.c.h.b16 %v1635
      %v1762 = vunpack.c.h.b16 %v1636
      %v1763 = vunpack.c.h.b16 %v1637
      %v1764 = vunpack.c.h.b16 %v1638
      %v1765 = vunpack.c.l.b16 %v1639
      %v1766 = vunpack.c.l.b16 %v1640
      %v1767 = vunpack.c.l.b16 %v1641
      %v1768 = vunpack.c.l.b16 %v1642
      %v1769 = vunpack.c.l.b16 %v1643
      %v1770 = vunpack.c.l.b16 %v1644
      %v1771 = vunpack.c.h.b16 %v1639
      %v1772 = vunpack.c.h.b16 %v1640
      %v1773 = vunpack.c.h.b16 %v1641
      %v1774 = vunpack.c.h.b16 %v1642
      %v1775 = vunpack.c.h.b16 %v1643
      %v1776 = vunpack.c.h.b16 %v1644
      %v1777 = vunpack.c.l.b16 %v1645
      %v1778 = vunpack.c.l.b16 %v1646
      %v1779 = vunpack.c.l.b16 %v1647
      %v1780 = vunpack.c.l.b16 %v1648
      %v1781 = vunpack.c.l.b16 %v1649
      %v1782 = vunpack.c.l.b16 %v1650
      %v1783 = vunpack.c.h.b16 %v1645
      %v1784 = vunpack.c.h.b16 %v1646
      %v1785 = vunpack.c.h.b16 %v1647
      %v1786 = vunpack.c.h.b16 %v1648
      %v1787 = vunpack.c.h.b16 %v1649
      %v1788 = vunpack.c.h.b16 %v1650
      %v1789 = vunpack.c.l.b16 %v1651
      %v1790 = vunpack.c.l.b16 %v1652
      %v1791 = vunpack.c.l.b16 %v1653
      %v1792 = vunpack.c.l.b16 %v1654
      %v1793 = vunpack.c.l.b16 %v1655
      %v1794 = vunpack.c.l.b16 %v1656
      %v1795 = vunpack.c.h.b16 %v1651
      %v1796 = vunpack.c.h.b16 %v1652
      %v1797 = vunpack.c.h.b16 %v1653
      %v1798 = vunpack.c.h.b16 %v1654
      %v1799 = vunpack.c.h.b16 %v1655
      %v1800 = vunpack.c.h.b16 %v1656
      %v1801 = vpack.c.b16 %v1706, %v1705
      %v1802 = vpack.c.b16 %v1708, %v1707
      %v1803 = vpack.c.b16 %v1710, %v1709
      %v1804 = vpack.c.b16 %v1712, %v1711
      %v1805 = vpack.c.b16 %v1714, %v1713
      %v1806 = vpack.c.b16 %v1716, %v1715
      %v1807 = vpack.c.b16 %v1718, %v1717
      %v1808 = vpack.c.b16 %v1720, %v1719
      %v1809 = vpack.c.b16 %v1722, %v1721
      %v1810 = vpack.c.b16 %v1724, %v1723
      %v1811 = vpack.c.b16 %v1726, %v1725
      %v1812 = vpack.c.b16 %v1728, %v1727
      %v1813 = vpack.c.b16 %v1730, %v1729
      %v1814 = vpack.c.b16 %v1732, %v1731
      %v1815 = vpack.c.b16 %v1734, %v1733
      %v1816 = vpack.c.b16 %v1736, %v1735
      %v1817 = vpack.c.b16 %v1738, %v1737
      %v1818 = vpack.c.b16 %v1740, %v1739
      %v1819 = vpack.c.b16 %v1742, %v1741
      %v1820 = vpack.c.b16 %v1744, %v1743
      %v1821 = vpack.c.b16 %v1746, %v1745
      %v1822 = vpack.c.b16 %v1748, %v1747
      %v1823 = vpack.c.b16 %v1750, %v1749
      %v1824 = vpack.c.b16 %v1752, %v1751
      %v1825 = vpack.c.b16 %v1754, %v1753
      %v1826 = vpack.c.b16 %v1756, %v1755
      %v1827 = vpack.c.b16 %v1758, %v1757
      %v1828 = vpack.c.b16 %v1760, %v1759
      %v1829 = vpack.c.b16 %v1762, %v1761
      %v1830 = vpack.c.b16 %v1764, %v1763
      %v1831 = vpack.c.b16 %v1766, %v1765
      %v1832 = vpack.c.b16 %v1768, %v1767
      %v1833 = vpack.c.b16 %v1770, %v1769
      %v1834 = vpack.c.b16 %v1772, %v1771
      %v1835 = vpack.c.b16 %v1774, %v1773
      %v1836 = vpack.c.b16 %v1776, %v1775
      %v1837 = vpack.c.b16 %v1778, %v1777
      %v1838 = vpack.c.b16 %v1780, %v1779
      %v1839 = vpack.c.b16 %v1782, %v1781
      %v1840 = vpack.c.b16 %v1784, %v1783
      %v1841 = vpack.c.b16 %v1786, %v1785
      %v1842 = vpack.c.b16 %v1788, %v1787
      %v1843 = vpack.c.b16 %v1790, %v1789
      %v1844 = vpack.c.b16 %v1792, %v1791
      %v1845 = vpack.c.b16 %v1794, %v1793
      %v1846 = vpack.c.b16 %v1796, %v1795
      %v1847 = vpack.c.b16 %v1798, %v1797
      %v1848 = vpack.c.b16 %v1800, %v1799
      %1897 = vst [vmem:[%s267] sm:$0xff] %v1801
      %1898 = vst [vmem:[%s267 + $0x8] sm:$0xff] %v1802
      %1899 = vst [vmem:[%s267 + $0x10] sm:$0xff] %v1803
      %1900 = vst [vmem:[%s267 + $0x18] sm:$0xff] %v1804
      %1901 = vst [vmem:[%s267 + $0x20] sm:$0xff] %v1805
      %1902 = vst [vmem:[%s267 + $0x28] sm:$0xff] %v1806
      %1903 = vst [vmem:[%s267 + $0x30] sm:$0xff] %v1807
      %1904 = vst [vmem:[%s267 + $0x38] sm:$0xff] %v1808
      %1905 = vst [vmem:[%s267 + $0x40] sm:$0xff] %v1809
      %1906 = vst [vmem:[%s267 + $0x48] sm:$0xff] %v1810
      %1907 = vst [vmem:[%s267 + $0x50] sm:$0xff] %v1811
      %1908 = vst [vmem:[%s267 + $0x58] sm:$0xff] %v1812
      %1909 = vst [vmem:[%s267 + $0x60] sm:$0xff] %v1813
      %1910 = vst [vmem:[%s267 + $0x68] sm:$0xff] %v1814
      %1911 = vst [vmem:[%s267 + $0x70] sm:$0xff] %v1815
      %1912 = vst [vmem:[%s267 + $0x78] sm:$0xff] %v1816
      %1913 = vst [vmem:[%s267 + $0x80] sm:$0xff] %v1817
      %1914 = vst [vmem:[%s267 + $0x88] sm:$0xff] %v1818
      %1915 = vst [vmem:[%s267 + $0x90] sm:$0xff] %v1819
      %1916 = vst [vmem:[%s267 + $0x98] sm:$0xff] %v1820
      %1917 = vst [vmem:[%s267 + $0xa0] sm:$0xff] %v1821
      %1918 = vst [vmem:[%s267 + $0xa8] sm:$0xff] %v1822
      %1919 = vst [vmem:[%s267 + $0xb0] sm:$0xff] %v1823
      %1920 = vst [vmem:[%s267 + $0xb8] sm:$0xff] %v1824
      %1921 = vst [vmem:[%s267 + $0xc0] sm:$0xff] %v1825
      %1922 = vst [vmem:[%s267 + $0xc8] sm:$0xff] %v1826
      %1923 = vst [vmem:[%s267 + $0xd0] sm:$0xff] %v1827
      %1924 = vst [vmem:[%s267 + $0xd8] sm:$0xff] %v1828
      %1925 = vst [vmem:[%s267 + $0xe0] sm:$0xff] %v1829
      %1926 = vst [vmem:[%s267 + $0xe8] sm:$0xff] %v1830
      %1927 = vst [vmem:[%s267 + $0xf0] sm:$0xff] %v1831
      %1928 = vst [vmem:[%s267 + $0xf8] sm:$0xff] %v1832
      %1929 = vst [vmem:[%s267 + $0x100] sm:$0xff] %v1833
      %1930 = vst [vmem:[%s267 + $0x108] sm:$0xff] %v1834
      %1931 = vst [vmem:[%s267 + $0x110] sm:$0xff] %v1835
      %1932 = vst [vmem:[%s267 + $0x118] sm:$0xff] %v1836
      %1933 = vst [vmem:[%s267 + $0x120] sm:$0xff] %v1837
      %1934 = vst [vmem:[%s267 + $0x128] sm:$0xff] %v1838
      %1935 = vst [vmem:[%s267 + $0x130] sm:$0xff] %v1839
      %1936 = vst [vmem:[%s267 + $0x138] sm:$0xff] %v1840
      %1937 = vst [vmem:[%s267 + $0x140] sm:$0xff] %v1841
      %1938 = vst [vmem:[%s267 + $0x148] sm:$0xff] %v1842
      %1939 = vst [vmem:[%s267 + $0x150] sm:$0xff] %v1843
      %1940 = vst [vmem:[%s267 + $0x158] sm:$0xff] %v1844
      %1941 = vst [vmem:[%s267 + $0x160] sm:$0xff] %v1845
      %1942 = vst [vmem:[%s267 + $0x168] sm:$0xff] %v1846
      %1943 = vst [vmem:[%s267 + $0x170] sm:$0xff] %v1847
      %1944 = vst [vmem:[%s267 + $0x178] sm:$0xff] %v1848
      %s1945 = smul.u32 16, %s21
      %p1946 = scmp.lt.s32.totalorder %s20, 1
      %s1947 = scalar_select %p1946, %s20, 1
      %p1948 = scmp.lt.s32.totalorder %s1945, 15
      %s1949 = scalar_select %p1948, %s1945, 15
      %s1950 = smul.addr %s1949, 6
      %s1951 = smul.addr %s1947, 96
      %s1952 = sadd.s32 %s1950, %s1951
      %s1953 = smul.addr %s1952, 4
      %s1954 = scalar_lea.vmem %s5, %s1953
      // Predicated region
      $region41: #{transformer_forward.6} parent=39 // pred_check
        %p1955 = pneg %p160
      $region42: #{transformer_forward.6} parent=39 // pred_check_branch
        %1957 = sbr.rel (%p1955) target = $region44
      $region43: #{transformer_forward.6} parent=39 // pred_region
        %s1958 = smul.u32 16, %s21
      $region44: #{transformer_forward.6} parent=39 // pred_fallthru
        _
    $region40: #{transformer_forward.6} parent=5 // pred_fallthru
      _
    %p1959 = scmp.le.s32.totalorder 2, %s11
    // Predicated region
    $region45: #{transformer_forward.6} parent=5 // pred_check
      %p1960 = pneg %p1959
    $region46: #{transformer_forward.6} parent=5 // pred_check_branch
      %1962 = sbr.rel (%p1960) target = $region48
    $region47: #{transformer_forward.6} parent=5 // pred_region
      %s1963 = ssub.s32 %s11, 2
      // Predicated region
      $region49: #{transformer_forward.6} parent=47 // pred_check
        %p1964 = pneg %p166
      $region50: #{transformer_forward.6} parent=47 // pred_check_branch
        %1966 = sbr.rel (%p1964) target = $region52
      $region51: #{transformer_forward.6} parent=47 // pred_region
        %s1967 = smul.u32 16, %s23
        %p1968 = scmp.lt.s32.totalorder %s22, 1
        %s1969 = scalar_select %p1968, %s22, 1
        %p1970 = scmp.lt.s32.totalorder %s1967, 15
        %s1971 = scalar_select %p1970, %s1967, 15
        %s1972 = smul.addr %s1971, 6
        %s1973 = smul.addr %s1969, 96
        %s1974 = sadd.s32 %s1972, %s1973
        %s1975 = smul.addr %s1974, 4
        %s1976 = scalar_lea.vmem %s5, %s1975
      $region52: #{transformer_forward.6} parent=47 // pred_fallthru
        _
    $region48: #{transformer_forward.6} parent=5 // pred_fallthru
      _
  $region6: #{transformer_forward.6} parent=0 // loop_footer
    %s15 = sadd.s32 1, %s11
  $region7: #{transformer_forward.6} parent=0 // loop_footer_branch
    %10 = sbr.rel target = $region3
  $region8: #{transformer_forward.6} parent=0 // loop_exit
    _

// kernel: transformer_forward.8
$region0: #{transformer_forward.8}
  #allocation0 [shape = 'u32[]', space=smem, size = 0x4, offset = 0x4, fixed_abs, tag = 'smem constant byte address 0x4 - core index']
  #allocation1 [shape = 'u32[144,128]{1,0:T(1,128)}', space=vmem, size = 0x12000, scoped, tag = 'internal scratch']
  %s0 = inlined_call_operand.vmem [shape: f32[2,128,256], index: 0, kind: input, shape index: {}, may-alias: {0,10}]
  %s1 = inlined_call_operand.vmem [shape: bf16[2,128,256], index: 1, kind: input, shape index: {}]
  %s2 = inlined_call_operand.vmem [shape: bf16[256,256], index: 2, kind: input, shape index: {}]
  %s3 = inlined_call_operand.vmem [shape: f32[1,256], index: 3, kind: input, shape index: {}]
  %s4 = inlined_call_operand.vmem [shape: f32[1,256], index: 4, kind: input, shape index: {}]
  %s5 = inlined_call_operand.vmem [shape: f32[1,256], index: 5, kind: input, shape index: {}]
  %s6 = inlined_call_operand.vmem [shape: bf16[256,1024], index: 6, kind: input, shape index: {}]
  %s7 = inlined_call_operand.vmem [shape: f32[1,1024], index: 7, kind: input, shape index: {}]
  %s8 = inlined_call_operand.vmem [shape: bf16[1024,256], index: 8, kind: input, shape index: {}]
  %s9 = inlined_call_operand.vmem [shape: f32[1,256], index: 9, kind: input, shape index: {}]
  %s10 = inlined_call_operand.vmem [shape: f32[2,128,256], index: 10, kind: output, shape index: {}, may-alias: {0,10}]
  %s11 = sld [smem:[#allocation0]]
  $region73: #{transformer_forward.8} parent=0
    _
  %s13 = ssub.s32 1, %s11
  %s14 = scalar_select 0, %s13, %s11
  loop: start=0, step=1, limit=4
  $region2: #{transformer_forward.8} parent=0 // loop_pre_header
    _
  $region3: #{transformer_forward.8} parent=0 // loop_header
    %s16 = sphi 0, %s20
    %p17 = scmp.ge.s32.totalorder %s16, 4
    %s23 = sphi 0, %s35
    %s24 = sphi 0, %s31
    %s25 = sphi 0, %s23
    %s26 = sphi 0, %s24
    %s27 = sphi 0, %s25
    %s28 = sphi 0, %s26
    %s40 = sphi 0, %s42
    %s43 = sphi 0, %s40
    %s44 = sphi 0, %s43
    %s60 = sphi 0, %s44
    %s68 = sphi 0, %s70
    %s71 = sphi 0, %s68
    %s72 = sphi 0, %s71
    %s88 = sphi 0, %s72
    %s92 = sphi 0, %s92
    %s94 = sphi 0, %s92
    %s95 = sphi 0, %s94
    %s109 = sphi 0, %s95
    %s113 = sphi 0, %s113
    %s115 = sphi 0, %s113
    %s116 = sphi 0, %s115
    %s130 = sphi 0, %s116
    %s134 = sphi 0, %s134
    %s136 = sphi 0, %s134
    %s137 = sphi 0, %s136
    %s151 = sphi 0, %s137
    %s155 = sphi 0, %s155
    %s157 = sphi 0, %s155
    %s158 = sphi 0, %s157
    %s172 = sphi 0, %s158
    %s176 = sphi 0, %s176
    %s178 = sphi 0, %s176
    %s179 = sphi 0, %s178
    %s193 = sphi 0, %s179
    %s197 = sphi 0, %s197
    %s199 = sphi 0, %s197
    %s200 = sphi 0, %s199
    %s214 = sphi 0, %s200
    %s218 = sphi 0, %s218
    %s220 = sphi 0, %s218
    %s221 = sphi 0, %s220
    %s235 = sphi 0, %s221
    %s239 = sphi 0, %s239
    %s241 = sphi 0, %s239
    %s242 = sphi 0, %s241
    %s256 = sphi 0, %s242
    %s264 = sphi 0, %s266
    %s267 = sphi 0, %s264
    %s268 = sphi 0, %s267
    %s284 = sphi 0, %s268
  $region4: #{transformer_forward.8} parent=0 // loop_header_branch
    %19 = sbr.rel (%p17) target = $region8
  $region5: #{transformer_forward.8} parent=0 // loop_body
    %s21 = ssub.s32 %s16, 1
    %s22 = ssub.s32 %s16, 2
    %s29 = sadd.s32 1, %s24
    %p30 = scmp.ge.s32.totalorder %s29, 1
    %s31 = scalar_select %p30, 0, %s29
    %s32 = sadd.s32 1, %s23
    %s33 = scalar_select %p30, %s32, %s23
    %p34 = scmp.ge.s32.totalorder %s33, 2
    %s35 = scalar_select %p34, 0, %s33
    %s36 = ssub.s32 %s23, %s35
    %s37 = ssub.s32 %s24, %s31
    %s38 = sor.u32 %s36, %s37
    %p39 = scmp.eq.s32.totalorder %s38, 0
    %s41 = sadd.s32 %s40, 1
    %s42 = scalar_select %p39, %s40, %s41
    %p45 = pneg %p39
    %p46 = scmp.eq.s32.totalorder %s16, 1
    %p47 = por %p45, %p46
    %p48 = scmp.ne.s32.totalorder %s40, %s43
    %p49 = scmp.eq.s32.totalorder %s16, 0
    %p50 = por %p48, %p49
    %p51 = scmp.ne.s32.totalorder %s40, %s43
    %p52 = scmp.eq.s32.totalorder %s21, 1
    %p53 = por %p51, %p52
    %p54 = scmp.ne.s32.totalorder %s43, %s44
    %p55 = scmp.eq.s32.totalorder %s21, 0
    %p56 = por %p54, %p55
    %p57 = scmp.ne.s32.totalorder %s43, %s44
    %p58 = scmp.eq.s32.totalorder %s22, 1
    %p59 = por %p57, %p58
    %p61 = scmp.ne.s32.totalorder %s44, %s60
    %p62 = scmp.eq.s32.totalorder %s22, 0
    %p63 = por %p61, %p62
    %s64 = ssub.s32 %s23, %s35
    %s65 = ssub.s32 %s24, %s31
    %s66 = sor.u32 %s64, %s65
    %p67 = scmp.eq.s32.totalorder %s66, 0
    %s69 = sadd.s32 %s68, 1
    %s70 = scalar_select %p67, %s68, %s69
    %p73 = pneg %p67
    %p74 = scmp.eq.s32.totalorder %s16, 1
    %p75 = por %p73, %p74
    %p76 = scmp.ne.s32.totalorder %s68, %s71
    %p77 = scmp.eq.s32.totalorder %s16, 0
    %p78 = por %p76, %p77
    %p79 = scmp.ne.s32.totalorder %s68, %s71
    %p80 = scmp.eq.s32.totalorder %s21, 1
    %p81 = por %p79, %p80
    %p82 = scmp.ne.s32.totalorder %s71, %s72
    %p83 = scmp.eq.s32.totalorder %s21, 0
    %p84 = por %p82, %p83
    %p85 = scmp.ne.s32.totalorder %s71, %s72
    %p86 = scmp.eq.s32.totalorder %s22, 1
    %p87 = por %p85, %p86
    %p89 = scmp.ne.s32.totalorder %s72, %s88
    %p90 = scmp.eq.s32.totalorder %s22, 0
    %p91 = por %p89, %p90
    %s93 = sadd.s32 %s92, 1
    %p96 = scmp.eq.s32.totalorder %s16, 1
    %p97 = scmp.ne.s32.totalorder %s92, %s94
    %p98 = scmp.eq.s32.totalorder %s16, 0
    %p99 = por %p97, %p98
    %p100 = scmp.ne.s32.totalorder %s92, %s94
    %p101 = scmp.eq.s32.totalorder %s21, 1
    %p102 = por %p100, %p101
    %p103 = scmp.ne.s32.totalorder %s94, %s95
    %p104 = scmp.eq.s32.totalorder %s21, 0
    %p105 = por %p103, %p104
    %p106 = scmp.ne.s32.totalorder %s94, %s95
    %p107 = scmp.eq.s32.totalorder %s22, 1
    %p108 = por %p106, %p107
    %p110 = scmp.ne.s32.totalorder %s95, %s109
    %p111 = scmp.eq.s32.totalorder %s22, 0
    %p112 = por %p110, %p111
    %s114 = sadd.s32 %s113, 1
    %p117 = scmp.eq.s32.totalorder %s16, 1
    %p118 = scmp.ne.s32.totalorder %s113, %s115
    %p119 = scmp.eq.s32.totalorder %s16, 0
    %p120 = por %p118, %p119
    %p121 = scmp.ne.s32.totalorder %s113, %s115
    %p122 = scmp.eq.s32.totalorder %s21, 1
    %p123 = por %p121, %p122
    %p124 = scmp.ne.s32.totalorder %s115, %s116
    %p125 = scmp.eq.s32.totalorder %s21, 0
    %p126 = por %p124, %p125
    %p127 = scmp.ne.s32.totalorder %s115, %s116
    %p128 = scmp.eq.s32.totalorder %s22, 1
    %p129 = por %p127, %p128
    %p131 = scmp.ne.s32.totalorder %s116, %s130
    %p132 = scmp.eq.s32.totalorder %s22, 0
    %p133 = por %p131, %p132
    %s135 = sadd.s32 %s134, 1
    %p138 = scmp.eq.s32.totalorder %s16, 1
    %p139 = scmp.ne.s32.totalorder %s134, %s136
    %p140 = scmp.eq.s32.totalorder %s16, 0
    %p141 = por %p139, %p140
    %p142 = scmp.ne.s32.totalorder %s134, %s136
    %p143 = scmp.eq.s32.totalorder %s21, 1
    %p144 = por %p142, %p143
    %p145 = scmp.ne.s32.totalorder %s136, %s137
    %p146 = scmp.eq.s32.totalorder %s21, 0
    %p147 = por %p145, %p146
    %p148 = scmp.ne.s32.totalorder %s136, %s137
    %p149 = scmp.eq.s32.totalorder %s22, 1
    %p150 = por %p148, %p149
    %p152 = scmp.ne.s32.totalorder %s137, %s151
    %p153 = scmp.eq.s32.totalorder %s22, 0
    %p154 = por %p152, %p153
    %s156 = sadd.s32 %s155, 1
    %p159 = scmp.eq.s32.totalorder %s16, 1
    %p160 = scmp.ne.s32.totalorder %s155, %s157
    %p161 = scmp.eq.s32.totalorder %s16, 0
    %p162 = por %p160, %p161
    %p163 = scmp.ne.s32.totalorder %s155, %s157
    %p164 = scmp.eq.s32.totalorder %s21, 1
    %p165 = por %p163, %p164
    %p166 = scmp.ne.s32.totalorder %s157, %s158
    %p167 = scmp.eq.s32.totalorder %s21, 0
    %p168 = por %p166, %p167
    %p169 = scmp.ne.s32.totalorder %s157, %s158
    %p170 = scmp.eq.s32.totalorder %s22, 1
    %p171 = por %p169, %p170
    %p173 = scmp.ne.s32.totalorder %s158, %s172
    %p174 = scmp.eq.s32.totalorder %s22, 0
    %p175 = por %p173, %p174
    %s177 = sadd.s32 %s176, 1
    %p180 = scmp.eq.s32.totalorder %s16, 1
    %p181 = scmp.ne.s32.totalorder %s176, %s178
    %p182 = scmp.eq.s32.totalorder %s16, 0
    %p183 = por %p181, %p182
    %p184 = scmp.ne.s32.totalorder %s176, %s178
    %p185 = scmp.eq.s32.totalorder %s21, 1
    %p186 = por %p184, %p185
    %p187 = scmp.ne.s32.totalorder %s178, %s179
    %p188 = scmp.eq.s32.totalorder %s21, 0
    %p189 = por %p187, %p188
    %p190 = scmp.ne.s32.totalorder %s178, %s179
    %p191 = scmp.eq.s32.totalorder %s22, 1
    %p192 = por %p190, %p191
    %p194 = scmp.ne.s32.totalorder %s179, %s193
    %p195 = scmp.eq.s32.totalorder %s22, 0
    %p196 = por %p194, %p195
    %s198 = sadd.s32 %s197, 1
    %p201 = scmp.eq.s32.totalorder %s16, 1
    %p202 = scmp.ne.s32.totalorder %s197, %s199
    %p203 = scmp.eq.s32.totalorder %s16, 0
    %p204 = por %p202, %p203
    %p205 = scmp.ne.s32.totalorder %s197, %s199
    %p206 = scmp.eq.s32.totalorder %s21, 1
    %p207 = por %p205, %p206
    %p208 = scmp.ne.s32.totalorder %s199, %s200
    %p209 = scmp.eq.s32.totalorder %s21, 0
    %p210 = por %p208, %p209
    %p211 = scmp.ne.s32.totalorder %s199, %s200
    %p212 = scmp.eq.s32.totalorder %s22, 1
    %p213 = por %p211, %p212
    %p215 = scmp.ne.s32.totalorder %s200, %s214
    %p216 = scmp.eq.s32.totalorder %s22, 0
    %p217 = por %p215, %p216
    %s219 = sadd.s32 %s218, 1
    %p222 = scmp.eq.s32.totalorder %s16, 1
    %p223 = scmp.ne.s32.totalorder %s218, %s220
    %p224 = scmp.eq.s32.totalorder %s16, 0
    %p225 = por %p223, %p224
    %p226 = scmp.ne.s32.totalorder %s218, %s220
    %p227 = scmp.eq.s32.totalorder %s21, 1
    %p228 = por %p226, %p227
    %p229 = scmp.ne.s32.totalorder %s220, %s221
    %p230 = scmp.eq.s32.totalorder %s21, 0
    %p231 = por %p229, %p230
    %p232 = scmp.ne.s32.totalorder %s220, %s221
    %p233 = scmp.eq.s32.totalorder %s22, 1
    %p234 = por %p232, %p233
    %p236 = scmp.ne.s32.totalorder %s221, %s235
    %p237 = scmp.eq.s32.totalorder %s22, 0
    %p238 = por %p236, %p237
    %s240 = sadd.s32 %s239, 1
    %p243 = scmp.eq.s32.totalorder %s16, 1
    %p244 = scmp.ne.s32.totalorder %s239, %s241
    %p245 = scmp.eq.s32.totalorder %s16, 0
    %p246 = por %p244, %p245
    %p247 = scmp.ne.s32.totalorder %s239, %s241
    %p248 = scmp.eq.s32.totalorder %s21, 1
    %p249 = por %p247, %p248
    %p250 = scmp.ne.s32.totalorder %s241, %s242
    %p251 = scmp.eq.s32.totalorder %s21, 0
    %p252 = por %p250, %p251
    %p253 = scmp.ne.s32.totalorder %s241, %s242
    %p254 = scmp.eq.s32.totalorder %s22, 1
    %p255 = por %p253, %p254
    %p257 = scmp.ne.s32.totalorder %s242, %s256
    %p258 = scmp.eq.s32.totalorder %s22, 0
    %p259 = por %p257, %p258
    %s260 = ssub.s32 %s23, %s35
    %s261 = ssub.s32 %s24, %s31
    %s262 = sor.u32 %s260, %s261
    %p263 = scmp.eq.s32.totalorder %s262, 0
    %s265 = sadd.s32 %s264, 1
    %s266 = scalar_select %p263, %s264, %s265
    %p269 = pneg %p263
    %p270 = scmp.eq.s32.totalorder %s16, 1
    %p271 = por %p269, %p270
    %p272 = scmp.ne.s32.totalorder %s264, %s267
    %p273 = scmp.eq.s32.totalorder %s16, 0
    %p274 = por %p272, %p273
    %p275 = scmp.ne.s32.totalorder %s264, %s267
    %p276 = scmp.eq.s32.totalorder %s21, 1
    %p277 = por %p275, %p276
    %p278 = scmp.ne.s32.totalorder %s267, %s268
    %p279 = scmp.eq.s32.totalorder %s21, 0
    %p280 = por %p278, %p279
    %p281 = scmp.ne.s32.totalorder %s267, %s268
    %p282 = scmp.eq.s32.totalorder %s22, 1
    %p283 = por %p281, %p282
    %p285 = scmp.ne.s32.totalorder %s268, %s284
    %p286 = scmp.eq.s32.totalorder %s22, 0
    %p287 = por %p285, %p286
    %p288 = scmp.le.s32.totalorder 1, %s16
    %p289 = scmp.lt.s32.totalorder %s16, 3
    %p290 = pnand %p288, %p289
    %p291 = pneg %p290
    // Predicated region
    $region9: #{transformer_forward.8} parent=5 // pred_check
      _
    $region10: #{transformer_forward.8} parent=5 // pred_check_branch
      %293 = sbr.rel (%p290) target = $region12
    $region11: #{transformer_forward.8} parent=5 // pred_region
      %s294 = ssub.s32 %s16, 1
      // Predicated region
      $region13: #{transformer_forward.8} parent=11 // pred_check
        %p295 = pneg %p105
      $region14: #{transformer_forward.8} parent=11 // pred_check_branch
        %297 = sbr.rel (%p295) target = $region16
      $region15: #{transformer_forward.8} parent=11 // pred_region
        _
      $region16: #{transformer_forward.8} parent=11 // pred_fallthru
        _
      // Predicated region
      $region17: #{transformer_forward.8} parent=11 // pred_check
        %p298 = pneg %p126
      $region18: #{transformer_forward.8} parent=11 // pred_check_branch
        %300 = sbr.rel (%p298) target = $region20
      $region19: #{transformer_forward.8} parent=11 // pred_region
        _
      $region20: #{transformer_forward.8} parent=11 // pred_fallthru
        _
      // Predicated region
      $region21: #{transformer_forward.8} parent=11 // pred_check
        %p301 = pneg %p147
      $region22: #{transformer_forward.8} parent=11 // pred_check_branch
        %303 = sbr.rel (%p301) target = $region24
      $region23: #{transformer_forward.8} parent=11 // pred_region
        _
      $region24: #{transformer_forward.8} parent=11 // pred_fallthru
        _
      // Predicated region
      $region25: #{transformer_forward.8} parent=11 // pred_check
        %p304 = pneg %p168
      $region26: #{transformer_forward.8} parent=11 // pred_check_branch
        %306 = sbr.rel (%p304) target = $region28
      $region27: #{transformer_forward.8} parent=11 // pred_region
        _
      $region28: #{transformer_forward.8} parent=11 // pred_fallthru
        _
      // Predicated region
      $region29: #{transformer_forward.8} parent=11 // pred_check
        %p307 = pneg %p189
      $region30: #{transformer_forward.8} parent=11 // pred_check_branch
        %309 = sbr.rel (%p307) target = $region32
      $region31: #{transformer_forward.8} parent=11 // pred_region
        _
      $region32: #{transformer_forward.8} parent=11 // pred_fallthru
        _
      // Predicated region
      $region33: #{transformer_forward.8} parent=11 // pred_check
        %p310 = pneg %p210
      $region34: #{transformer_forward.8} parent=11 // pred_check_branch
        %312 = sbr.rel (%p310) target = $region36
      $region35: #{transformer_forward.8} parent=11 // pred_region
        _
      $region36: #{transformer_forward.8} parent=11 // pred_fallthru
        _
      // Predicated region
      $region37: #{transformer_forward.8} parent=11 // pred_check
        %p313 = pneg %p231
      $region38: #{transformer_forward.8} parent=11 // pred_check_branch
        %315 = sbr.rel (%p313) target = $region40
      $region39: #{transformer_forward.8} parent=11 // pred_region
        _
      $region40: #{transformer_forward.8} parent=11 // pred_fallthru
        _
      // Predicated region
      $region41: #{transformer_forward.8} parent=11 // pred_check
        %p316 = pneg %p252
      $region42: #{transformer_forward.8} parent=11 // pred_check_branch
        %318 = sbr.rel (%p316) target = $region44
      $region43: #{transformer_forward.8} parent=11 // pred_region
        _
      $region44: #{transformer_forward.8} parent=11 // pred_fallthru
        _
    $region12: #{transformer_forward.8} parent=5 // pred_fallthru
      _
    %p319 = scmp.lt.s32.totalorder %s16, 2
    // Predicated region
    $region45: #{transformer_forward.8} parent=5 // pred_check
      %p320 = pneg %p319
    $region46: #{transformer_forward.8} parent=5 // pred_check_branch
      %322 = sbr.rel (%p320) target = $region48
    $region47: #{transformer_forward.8} parent=5 // pred_region
      // Predicated region
      $region49: #{transformer_forward.8} parent=47 // pred_check
        %p323 = pneg %p50
      $region50: #{transformer_forward.8} parent=47 // pred_check_branch
        %325 = sbr.rel (%p323) target = $region52
      $region51: #{transformer_forward.8} parent=47 // pred_region
        %s326 = smul.u32 16, %s24
        %p327 = scmp.lt.s32.totalorder %s23, 1
        %s328 = scalar_select %p327, %s23, 1
        %p329 = scmp.lt.s32.totalorder %s326, 15
        %s330 = scalar_select %p329, %s326, 15
        %s331 = smul.addr %s330, 2
        %s332 = smul.addr %s328, 32
        %s333 = sadd.s32 %s331, %s332
        %s334 = smul.addr %s333, 8
        %s335 = scalar_lea.vmem %s0, %s334
        %s336 = smul.u32 16, %s24
      $region52: #{transformer_forward.8} parent=47 // pred_fallthru
        _
      // Predicated region
      $region53: #{transformer_forward.8} parent=47 // pred_check
        %p337 = pneg %p78
      $region54: #{transformer_forward.8} parent=47 // pred_check_branch
        %339 = sbr.rel (%p337) target = $region56
      $region55: #{transformer_forward.8} parent=47 // pred_region
        %s340 = smul.u32 16, %s24
        %p341 = scmp.lt.s32.totalorder %s23, 1
        %s342 = scalar_select %p341, %s23, 1
        %p343 = scmp.lt.s32.totalorder %s340, 15
        %s344 = scalar_select %p343, %s340, 15
        %s345 = smul.addr %s344, 2
        %s346 = smul.addr %s342, 32
        %s347 = sadd.s32 %s345, %s346
        %s348 = smul.addr %s347, 4
        %s349 = scalar_lea.vmem %s1, %s348
        %s350 = smul.u32 16, %s24
      $region56: #{transformer_forward.8} parent=47 // pred_fallthru
        _
    $region48: #{transformer_forward.8} parent=5 // pred_fallthru
      _
    %p351 = scmp.le.s32.totalorder 1, %s16
    %p352 = scmp.lt.s32.totalorder %s16, 3
    %p353 = pnand %p351, %p352
    %p354 = pneg %p353
    // Predicated region
    $region57: #{transformer_forward.8} parent=5 // pred_check
      _
    $region58: #{transformer_forward.8} parent=5 // pred_check_branch
      %356 = sbr.rel (%p353) target = $region60
    $region59: #{transformer_forward.8} parent=5 // pred_region
      %s357 = ssub.s32 %s16, 1
      %s358 = smul.u32 16, %s26
      %p359 = scmp.lt.s32.totalorder %s25, 1
      %s360 = scalar_select %p359, %s25, 1
      %p361 = scmp.lt.s32.totalorder %s358, 15
      %s362 = scalar_select %p361, %s358, 15
      %s363 = smul.addr %s362, 2
      %s364 = smul.addr %s360, 32
      %s365 = sadd.s32 %s363, %s364
      %s366 = smul.addr %s365, 8
      %s367 = scalar_lea.vmem %s0, %s366
      %p368 = pneg %p56
      %p369 = pneg %p53
      %s370 = smul.u32 16, %s26
      %p371 = scmp.lt.s32.totalorder %s25, 1
      %s372 = scalar_select %p371, %s25, 1
      %p373 = scmp.lt.s32.totalorder %s370, 15
      %s374 = scalar_select %p373, %s370, 15
      %s375 = smul.addr %s374, 2
      %s376 = smul.addr %s372, 32
      %s377 = sadd.s32 %s375, %s376
      %s378 = smul.addr %s377, 4
      %s379 = scalar_lea.vmem %s1, %s378
      %p380 = pneg %p84
      %p381 = pneg %p81
      %p382 = pneg %p105
      %p383 = pneg %p102
      %p384 = pneg %p126
      %p385 = pneg %p123
      %p386 = pneg %p147
      %p387 = pneg %p144
      %p388 = pneg %p168
      %p389 = pneg %p165
      %p390 = pneg %p189
      %p391 = pneg %p186
      %p392 = pneg %p210
      %p393 = pneg %p207
      %p394 = pneg %p231
      %p395 = pneg %p228
      %p396 = pneg %p252
      %p397 = pneg %p249
      %p398 = pneg %p280
      %p399 = pneg %p277
      %s400 = smul.u32 16, %s26
      %p401 = scmp.lt.s32.totalorder %s25, 1
      %s402 = scalar_select %p401, %s25, 1
      %p403 = scmp.lt.s32.totalorder %s400, 15
      %s404 = scalar_select %p403, %s400, 15
      %s405 = smul.addr %s404, 2
      %s406 = smul.addr %s402, 32
      %s407 = sadd.s32 %s405, %s406
      %s408 = smul.addr %s407, 8
      %s409 = scalar_lea.vmem %s10, %s408
      %s410 = smul.u32 16, %s26
      %p411 = scmp.lt.s32.totalorder %s25, 1
      %s412 = scalar_select %p411, %s25, 1
      %p413 = scmp.lt.s32.totalorder %s410, 15
      %s414 = scalar_select %p413, %s410, 15
      %s415 = smul.addr %s414, 2
      %s416 = smul.addr %s412, 32
      %s417 = sadd.s32 %s415, %s416
      %s418 = smul.addr %s417, 8
      %s419 = scalar_lea.vmem %s0, %s418
      %s420 = smul.u32 16, %s26
      %s421 = smul.u32 16, %s26
      %p422 = scmp.lt.s32.totalorder %s25, 1
      %s423 = scalar_select %p422, %s25, 1
      %p424 = scmp.lt.s32.totalorder %s421, 15
      %s425 = scalar_select %p424, %s421, 15
      %s426 = smul.addr %s425, 2
      %s427 = smul.addr %s423, 32
      %s428 = sadd.s32 %s426, %s427
      %s429 = smul.addr %s428, 4
      %s430 = scalar_lea.vmem %s1, %s429
      %s431 = smul.u32 16, %s26
      %s432 = smul.u32 16, %s26
      %p433 = scmp.lt.s32.totalorder %s25, 1
      %s434 = scalar_select %p433, %s25, 1
      %p435 = scmp.lt.s32.totalorder %s432, 15
      %s436 = scalar_select %p435, %s432, 15
      %s437 = smul.addr %s436, 2
      %s438 = smul.addr %s434, 32
      %s439 = sadd.s32 %s437, %s438
      %s440 = smul.addr %s439, 8
      %s441 = scalar_lea.vmem %s10, %s440
      %s442 = smul.u32 16, %s26
      %v443 = vld [vmem:[%s419] sm:$0xff]
      %v444 = vld [vmem:[%s419 + $0x8] sm:$0xff]
      %v445 = vld [vmem:[%s419 + $0x10] sm:$0xff]
      %v446 = vld [vmem:[%s419 + $0x18] sm:$0xff]
      %v447 = vld [vmem:[%s419 + $0x20] sm:$0xff]
      %v448 = vld [vmem:[%s419 + $0x28] sm:$0xff]
      %v449 = vld [vmem:[%s419 + $0x30] sm:$0xff]
      %v450 = vld [vmem:[%s419 + $0x38] sm:$0xff]
      %v451 = vld [vmem:[%s419 + $0x40] sm:$0xff]
      %v452 = vld [vmem:[%s419 + $0x48] sm:$0xff]
      %v453 = vld [vmem:[%s419 + $0x50] sm:$0xff]
      %v454 = vld [vmem:[%s419 + $0x58] sm:$0xff]
      %v455 = vld [vmem:[%s419 + $0x60] sm:$0xff]
      %v456 = vld [vmem:[%s419 + $0x68] sm:$0xff]
      %v457 = vld [vmem:[%s419 + $0x70] sm:$0xff]
      %v458 = vld [vmem:[%s419 + $0x78] sm:$0xff]
      %v459 = vld [vmem:[%s419 + $0x80] sm:$0xff]
      %v460 = vld [vmem:[%s419 + $0x88] sm:$0xff]
      %v461 = vld [vmem:[%s419 + $0x90] sm:$0xff]
      %v462 = vld [vmem:[%s419 + $0x98] sm:$0xff]
      %v463 = vld [vmem:[%s419 + $0xa0] sm:$0xff]
      %v464 = vld [vmem:[%s419 + $0xa8] sm:$0xff]
      %v465 = vld [vmem:[%s419 + $0xb0] sm:$0xff]
      %v466 = vld [vmem:[%s419 + $0xb8] sm:$0xff]
      %v467 = vld [vmem:[%s419 + $0xc0] sm:$0xff]
      %v468 = vld [vmem:[%s419 + $0xc8] sm:$0xff]
      %v469 = vld [vmem:[%s419 + $0xd0] sm:$0xff]
      %v470 = vld [vmem:[%s419 + $0xd8] sm:$0xff]
      %v471 = vld [vmem:[%s419 + $0xe0] sm:$0xff]
      %v472 = vld [vmem:[%s419 + $0xe8] sm:$0xff]
      %v473 = vld [vmem:[%s419 + $0xf0] sm:$0xff]
      %v474 = vld [vmem:[%s419 + $0xf8] sm:$0xff]
      %v475 = vld [vmem:[%s430] sm:$0xff]
      %v476 = vld [vmem:[%s430 + $0x8] sm:$0xff]
      %v477 = vld [vmem:[%s430 + $0x10] sm:$0xff]
      %v478 = vld [vmem:[%s430 + $0x18] sm:$0xff]
      %v479 = vld [vmem:[%s430 + $0x20] sm:$0xff]
      %v480 = vld [vmem:[%s430 + $0x28] sm:$0xff]
      %v481 = vld [vmem:[%s430 + $0x30] sm:$0xff]
      %v482 = vld [vmem:[%s430 + $0x38] sm:$0xff]
      %v483 = vld [vmem:[%s430 + $0x40] sm:$0xff]
      %v484 = vld [vmem:[%s430 + $0x48] sm:$0xff]
      %v485 = vld [vmem:[%s430 + $0x50] sm:$0xff]
      %v486 = vld [vmem:[%s430 + $0x58] sm:$0xff]
      %v487 = vld [vmem:[%s430 + $0x60] sm:$0xff]
      %v488 = vld [vmem:[%s430 + $0x68] sm:$0xff]
      %v489 = vld [vmem:[%s430 + $0x70] sm:$0xff]
      %v490 = vld [vmem:[%s430 + $0x78] sm:$0xff]
      %v491 = vld [vmem:[%s2] sm:$0xff]
      %v492 = vld [vmem:[%s2 + $0x8] sm:$0xff]
      %v493 = vld [vmem:[%s2 + $0x10] sm:$0xff]
      %v494 = vld [vmem:[%s2 + $0x18] sm:$0xff]
      %v495 = vld [vmem:[%s2 + $0x20] sm:$0xff]
      %v496 = vld [vmem:[%s2 + $0x28] sm:$0xff]
      %v497 = vld [vmem:[%s2 + $0x30] sm:$0xff]
      %v498 = vld [vmem:[%s2 + $0x38] sm:$0xff]
      %v499 = vld [vmem:[%s2 + $0x40] sm:$0xff]
      %v500 = vld [vmem:[%s2 + $0x48] sm:$0xff]
      %v501 = vld [vmem:[%s2 + $0x50] sm:$0xff]
      %v502 = vld [vmem:[%s2 + $0x58] sm:$0xff]
      %v503 = vld [vmem:[%s2 + $0x60] sm:$0xff]
      %v504 = vld [vmem:[%s2 + $0x68] sm:$0xff]
      %v505 = vld [vmem:[%s2 + $0x70] sm:$0xff]
      %v506 = vld [vmem:[%s2 + $0x78] sm:$0xff]
      %v507 = vld [vmem:[%s2 + $0x80] sm:$0xff]
      %v508 = vld [vmem:[%s2 + $0x88] sm:$0xff]
      %v509 = vld [vmem:[%s2 + $0x90] sm:$0xff]
      %v510 = vld [vmem:[%s2 + $0x98] sm:$0xff]
      %v511 = vld [vmem:[%s2 + $0xa0] sm:$0xff]
      %v512 = vld [vmem:[%s2 + $0xa8] sm:$0xff]
      %v513 = vld [vmem:[%s2 + $0xb0] sm:$0xff]
      %v514 = vld [vmem:[%s2 + $0xb8] sm:$0xff]
      %v515 = vld [vmem:[%s2 + $0xc0] sm:$0xff]
      %v516 = vld [vmem:[%s2 + $0xc8] sm:$0xff]
      %v517 = vld [vmem:[%s2 + $0xd0] sm:$0xff]
      %v518 = vld [vmem:[%s2 + $0xd8] sm:$0xff]
      %v519 = vld [vmem:[%s2 + $0xe0] sm:$0xff]
      %v520 = vld [vmem:[%s2 + $0xe8] sm:$0xff]
      %v521 = vld [vmem:[%s2 + $0xf0] sm:$0xff]
      %v522 = vld [vmem:[%s2 + $0xf8] sm:$0xff]
      %v523 = vld [vmem:[%s3] sm:$0x3]
      %v525 = vlaneseq
      %v526 = vshrl.u32 %v525, 7
      %v527 = vsub.s32 0, %v526
      %v528 = vrot.slane %v523, %v527
      %v529 = vlaneseq
      %v530 = vshrl.u32 %v529, 7
      %v531 = vsub.s32 1, %v530
      %v532 = vrot.slane %v523, %v531
      %v551 = vunpack.c.l.b16 %v475
      %v552 = vunpack.c.h.b16 %v475
      %v553 = vunpack.c.l.b16 %v476
      %v554 = vunpack.c.h.b16 %v476
      %v555 = vunpack.c.l.b16 %v477
      %v556 = vunpack.c.h.b16 %v477
      %v557 = vunpack.c.l.b16 %v478
      %v558 = vunpack.c.h.b16 %v478
      %v559 = vunpack.c.l.b16 %v479
      %v560 = vunpack.c.h.b16 %v479
      %v561 = vunpack.c.l.b16 %v480
      %v562 = vunpack.c.h.b16 %v480
      %v563 = vunpack.c.l.b16 %v481
      %v564 = vunpack.c.h.b16 %v481
      %v565 = vunpack.c.l.b16 %v482
      %v566 = vunpack.c.h.b16 %v482
      %v567 = vunpack.c.l.b16 %v483
      %v568 = vunpack.c.h.b16 %v483
      %v569 = vunpack.c.l.b16 %v484
      %v570 = vunpack.c.h.b16 %v484
      %v571 = vunpack.c.l.b16 %v485
      %v572 = vunpack.c.h.b16 %v485
      %v573 = vunpack.c.l.b16 %v486
      %v574 = vunpack.c.h.b16 %v486
      %v575 = vunpack.c.l.b16 %v487
      %v576 = vunpack.c.h.b16 %v487
      %v577 = vunpack.c.l.b16 %v488
      %v578 = vunpack.c.h.b16 %v488
      %v579 = vunpack.c.l.b16 %v489
      %v580 = vunpack.c.h.b16 %v489
      %v581 = vunpack.c.l.b16 %v490
      %v582 = vunpack.c.h.b16 %v490
      %v583 = vpack.c.b16 %v553, %v551
      %v584 = vpack.c.b16 %v554, %v552
      %v585 = vpack.c.b16 %v557, %v555
      %v586 = vpack.c.b16 %v558, %v556
      %v587 = vpack.c.b16 %v561, %v559
      %v588 = vpack.c.b16 %v562, %v560
      %v589 = vpack.c.b16 %v565, %v563
      %v590 = vpack.c.b16 %v566, %v564
      %v591 = vpack.c.b16 %v569, %v567
      %v592 = vpack.c.b16 %v570, %v568
      %v593 = vpack.c.b16 %v573, %v571
      %v594 = vpack.c.b16 %v574, %v572
      %v595 = vpack.c.b16 %v577, %v575
      %v596 = vpack.c.b16 %v578, %v576
      %v597 = vpack.c.b16 %v581, %v579
      %v598 = vpack.c.b16 %v582, %v580
      %v647 = vunpack.c.l.b16 %v491
      %v648 = vunpack.c.h.b16 %v491
      %v649 = vunpack.c.l.b16 %v492
      %v650 = vunpack.c.h.b16 %v492
      %v651 = vunpack.c.l.b16 %v493
      %v652 = vunpack.c.h.b16 %v493
      %v653 = vunpack.c.l.b16 %v494
      %v654 = vunpack.c.h.b16 %v494
      %v655 = vunpack.c.l.b16 %v495
      %v656 = vunpack.c.h.b16 %v495
      %v657 = vunpack.c.l.b16 %v496
      %v658 = vunpack.c.h.b16 %v496
      %v659 = vunpack.c.l.b16 %v497
      %v660 = vunpack.c.h.b16 %v497
      %v661 = vunpack.c.l.b16 %v498
      %v662 = vunpack.c.h.b16 %v498
      %v663 = vunpack.c.l.b16 %v499
      %v664 = vunpack.c.h.b16 %v499
      %v665 = vunpack.c.l.b16 %v500
      %v666 = vunpack.c.h.b16 %v500
      %v667 = vunpack.c.l.b16 %v501
      %v668 = vunpack.c.h.b16 %v501
      %v669 = vunpack.c.l.b16 %v502
      %v670 = vunpack.c.h.b16 %v502
      %v671 = vunpack.c.l.b16 %v503
      %v672 = vunpack.c.h.b16 %v503
      %v673 = vunpack.c.l.b16 %v504
      %v674 = vunpack.c.h.b16 %v504
      %v675 = vunpack.c.l.b16 %v505
      %v676 = vunpack.c.h.b16 %v505
      %v677 = vunpack.c.l.b16 %v506
      %v678 = vunpack.c.h.b16 %v506
      %v679 = vunpack.c.l.b16 %v507
      %v680 = vunpack.c.h.b16 %v507
      %v681 = vunpack.c.l.b16 %v508
      %v682 = vunpack.c.h.b16 %v508
      %v683 = vunpack.c.l.b16 %v509
      %v684 = vunpack.c.h.b16 %v509
      %v685 = vunpack.c.l.b16 %v510
      %v686 = vunpack.c.h.b16 %v510
      %v687 = vunpack.c.l.b16 %v511
      %v688 = vunpack.c.h.b16 %v511
      %v689 = vunpack.c.l.b16 %v512
      %v690 = vunpack.c.h.b16 %v512
      %v691 = vunpack.c.l.b16 %v513
      %v692 = vunpack.c.h.b16 %v513
      %v693 = vunpack.c.l.b16 %v514
      %v694 = vunpack.c.h.b16 %v514
      %v695 = vunpack.c.l.b16 %v515
      %v696 = vunpack.c.h.b16 %v515
      %v697 = vunpack.c.l.b16 %v516
      %v698 = vunpack.c.h.b16 %v516
      %v699 = vunpack.c.l.b16 %v517
      %v700 = vunpack.c.h.b16 %v517
      %v701 = vunpack.c.l.b16 %v518
      %v702 = vunpack.c.h.b16 %v518
      %v703 = vunpack.c.l.b16 %v519
      %v704 = vunpack.c.h.b16 %v519
      %v705 = vunpack.c.l.b16 %v520
      %v706 = vunpack.c.h.b16 %v520
      %v707 = vunpack.c.l.b16 %v521
      %v708 = vunpack.c.h.b16 %v521
      %v709 = vunpack.c.l.b16 %v522
      %v710 = vunpack.c.h.b16 %v522
      %v711 = vpack.c.b16 %v649, %v647
      %v712 = vpack.c.b16 %v650, %v648
      %v713 = vpack.c.b16 %v653, %v651
      %v714 = vpack.c.b16 %v654, %v652
      %v715 = vpack.c.b16 %v657, %v655
      %v716 = vpack.c.b16 %v658, %v656
      %v717 = vpack.c.b16 %v661, %v659
      %v718 = vpack.c.b16 %v662, %v660
      %v719 = vpack.c.b16 %v665, %v663
      %v720 = vpack.c.b16 %v666, %v664
      %v721 = vpack.c.b16 %v669, %v667
      %v722 = vpack.c.b16 %v670, %v668
      %v723 = vpack.c.b16 %v673, %v671
      %v724 = vpack.c.b16 %v674, %v672
      %v725 = vpack.c.b16 %v677, %v675
      %v726 = vpack.c.b16 %v678, %v676
      %v727 = vpack.c.b16 %v681, %v679
      %v728 = vpack.c.b16 %v682, %v680
      %v729 = vpack.c.b16 %v685, %v683
      %v730 = vpack.c.b16 %v686, %v684
      %v731 = vpack.c.b16 %v689, %v687
      %v732 = vpack.c.b16 %v690, %v688
      %v733 = vpack.c.b16 %v693, %v691
      %v734 = vpack.c.b16 %v694, %v692
      %v735 = vpack.c.b16 %v697, %v695
      %v736 = vpack.c.b16 %v698, %v696
      %v737 = vpack.c.b16 %v701, %v699
      %v738 = vpack.c.b16 %v702, %v700
      %v739 = vpack.c.b16 %v705, %v703
      %v740 = vpack.c.b16 %v706, %v704
      %v741 = vpack.c.b16 %v709, %v707
      %v742 = vpack.c.b16 %v710, %v708
      %775 = vmatprep.subr.bf16.mxu0 %v726
      %776 = vmatpush1.bf16.msra.mxu0 %v725
      %777 = vmatprep.subr.bf16.mxu0 %v724
      %778 = vmatpush1.bf16.msra.mxu0 %v723
      %779 = vmatprep.subr.bf16.mxu0 %v722
      %780 = vmatpush1.bf16.msra.mxu0 %v721
      %781 = vmatprep.subr.bf16.mxu0 %v720
      %782 = vmatpush1.bf16.msra.mxu0 %v719
      %783 = vmatprep.subr.bf16.mxu0 %v718
      %784 = vmatpush1.bf16.msra.mxu0 %v717
      %785 = vmatprep.subr.bf16.mxu0 %v716
      %786 = vmatpush1.bf16.msra.mxu0 %v715
      %787 = vmatprep.subr.bf16.mxu0 %v714
      %788 = vmatpush1.bf16.msra.mxu0 %v713
      %789 = vmatprep.subr.bf16.mxu0 %v712
      %790 = vmatpush1.bf16.msra.mxu0 %v711
      %791 = vmatprep.subr.bf16.mxu0 %v742
      %792 = vmatpush2.bf16.msra.mxu0 %v741
      %793 = vmatprep.subr.bf16.mxu0 %v740
      %794 = vmatpush2.bf16.msra.mxu0 %v739
      %795 = vmatprep.subr.bf16.mxu0 %v738
      %796 = vmatpush2.bf16.msra.mxu0 %v737
      %797 = vmatprep.subr.bf16.mxu0 %v736
      %798 = vmatpush2.bf16.msra.mxu0 %v735
      %799 = vmatprep.subr.bf16.mxu0 %v734
      %800 = vmatpush2.bf16.msra.mxu0 %v733
      %801 = vmatprep.subr.bf16.mxu0 %v732
      %802 = vmatpush2.bf16.msra.mxu0 %v731
      %803 = vmatprep.subr.bf16.mxu0 %v730
      %804 = vmatpush2.bf16.msra.mxu0 %v729
      %805 = vmatprep.subr.bf16.mxu0 %v728
      %806 = vmatpush2.bf16.msra.mxu0 %v727
      %807 = vmatprep.mubr.bf16.mxu0 %v584
      %808 = vmatmul.mubr.bf16.gmra.mxu0 %v583
      %v809 = vpop.f32.mrf.mxu0
      %v810 = vadd.f32 %v528, %v809
      %v811 = vpop.f32.mrf.mxu0
      %v812 = vadd.f32 %v532, %v811
      %v813 = vpop.f32.mrf.mxu0
      %v814 = vadd.f32 %v528, %v813
      %v815 = vpop.f32.mrf.mxu0
      %v816 = vadd.f32 %v532, %v815
      %817 = vmatprep.mubr.bf16.mxu0 %v586
      %818 = vmatmul.mubr.bf16.gmra.mxu0 %v585
      %v819 = vpop.f32.mrf.mxu0
      %v820 = vadd.f32 %v528, %v819
      %v821 = vpop.f32.mrf.mxu0
      %v822 = vadd.f32 %v532, %v821
      %v823 = vpop.f32.mrf.mxu0
      %v824 = vadd.f32 %v528, %v823
      %v825 = vpop.f32.mrf.mxu0
      %v826 = vadd.f32 %v532, %v825
      %827 = vmatprep.mubr.bf16.mxu0 %v588
      %828 = vmatmul.mubr.bf16.gmra.mxu0 %v587
      %v829 = vpop.f32.mrf.mxu0
      %v830 = vadd.f32 %v528, %v829
      %v831 = vpop.f32.mrf.mxu0
      %v832 = vadd.f32 %v532, %v831
      %v833 = vpop.f32.mrf.mxu0
      %v834 = vadd.f32 %v528, %v833
      %v835 = vpop.f32.mrf.mxu0
      %v836 = vadd.f32 %v532, %v835
      %837 = vmatprep.mubr.bf16.mxu0 %v590
      %838 = vmatmul.mubr.bf16.gmra.mxu0 %v589
      %v839 = vpop.f32.mrf.mxu0
      %v840 = vadd.f32 %v528, %v839
      %v841 = vpop.f32.mrf.mxu0
      %v842 = vadd.f32 %v532, %v841
      %v843 = vpop.f32.mrf.mxu0
      %v844 = vadd.f32 %v528, %v843
      %v845 = vpop.f32.mrf.mxu0
      %v846 = vadd.f32 %v532, %v845
      %847 = vmatprep.mubr.bf16.mxu0 %v592
      %848 = vmatmul.mubr.bf16.gmra.mxu0 %v591
      %v849 = vpop.f32.mrf.mxu0
      %v850 = vadd.f32 %v528, %v849
      %v851 = vpop.f32.mrf.mxu0
      %v852 = vadd.f32 %v532, %v851
      %v853 = vpop.f32.mrf.mxu0
      %v854 = vadd.f32 %v528, %v853
      %v855 = vpop.f32.mrf.mxu0
      %v856 = vadd.f32 %v532, %v855
      %857 = vmatprep.mubr.bf16.mxu0 %v594
      %858 = vmatmul.mubr.bf16.gmra.mxu0 %v593
      %v859 = vpop.f32.mrf.mxu0
      %v860 = vadd.f32 %v528, %v859
      %v861 = vpop.f32.mrf.mxu0
      %v862 = vadd.f32 %v532, %v861
      %v863 = vpop.f32.mrf.mxu0
      %v864 = vadd.f32 %v528, %v863
      %v865 = vpop.f32.mrf.mxu0
      %v866 = vadd.f32 %v532, %v865
      %867 = vmatprep.mubr.bf16.mxu0 %v596
      %868 = vmatmul.mubr.bf16.gmra.mxu0 %v595
      %v869 = vpop.f32.mrf.mxu0
      %v870 = vadd.f32 %v528, %v869
      %v871 = vpop.f32.mrf.mxu0
      %v872 = vadd.f32 %v532, %v871
      %v873 = vpop.f32.mrf.mxu0
      %v874 = vadd.f32 %v528, %v873
      %v875 = vpop.f32.mrf.mxu0
      %v876 = vadd.f32 %v532, %v875
      %877 = vmatprep.mubr.bf16.mxu0 %v598
      %878 = vmatmul.mubr.bf16.gmra.mxu0 %v597
      %v879 = vpop.f32.mrf.mxu0
      %v880 = vadd.f32 %v528, %v879
      %v881 = vpop.f32.mrf.mxu0
      %v882 = vadd.f32 %v532, %v881
      %v883 = vpop.f32.mrf.mxu0
      %v884 = vadd.f32 %v528, %v883
      %v885 = vpop.f32.mrf.mxu0
      %v886 = vadd.f32 %v532, %v885
      %887 = vdwg.mxu0
      %v888 = vadd.f32 %v443, %v810
      %v889 = vadd.f32 %v444, %v812
      %v890 = vadd.f32 %v445, %v814
      %v891 = vadd.f32 %v446, %v816
      %v892 = vadd.f32 %v447, %v820
      %v893 = vadd.f32 %v448, %v822
      %v894 = vadd.f32 %v449, %v824
      %v895 = vadd.f32 %v450, %v826
      %v896 = vadd.f32 %v451, %v830
      %v897 = vadd.f32 %v452, %v832
      %v898 = vadd.f32 %v453, %v834
      %v899 = vadd.f32 %v454, %v836
      %v900 = vadd.f32 %v455, %v840
      %v901 = vadd.f32 %v456, %v842
      %v902 = vadd.f32 %v457, %v844
      %v903 = vadd.f32 %v458, %v846
      %v904 = vadd.f32 %v459, %v850
      %v905 = vadd.f32 %v460, %v852
      %v906 = vadd.f32 %v461, %v854
      %v907 = vadd.f32 %v462, %v856
      %v908 = vadd.f32 %v463, %v860
      %v909 = vadd.f32 %v464, %v862
      %v910 = vadd.f32 %v465, %v864
      %v911 = vadd.f32 %v466, %v866
      %v912 = vadd.f32 %v467, %v870
      %v913 = vadd.f32 %v468, %v872
      %v914 = vadd.f32 %v469, %v874
      %v915 = vadd.f32 %v470, %v876
      %v916 = vadd.f32 %v471, %v880
      %v917 = vadd.f32 %v472, %v882
      %v918 = vadd.f32 %v473, %v884
      %v919 = vadd.f32 %v474, %v886
      %v920 = vld [vmem:[%s4] sm:$0x3]
      %v921 = vld [vmem:[%s5] sm:$0x3]
      %v922 = vadd.f32 %v888, %v889
      %923 = vadd.xlane.f32.xlu0 %v922
      %v924 = vpop.xlane.xlu0 %923
      %v925 = vadd.f32 %v890, %v891
      %926 = vadd.xlane.f32.xlu0 %v925
      %v927 = vpop.xlane.xlu0 %926
      %v928 = vadd.f32 %v892, %v893
      %929 = vadd.xlane.f32.xlu0 %v928
      %v930 = vpop.xlane.xlu0 %929
      %v931 = vadd.f32 %v894, %v895
      %932 = vadd.xlane.f32.xlu0 %v931
      %v933 = vpop.xlane.xlu0 %932
      %v934 = vadd.f32 %v896, %v897
      %935 = vadd.xlane.f32.xlu0 %v934
      %v936 = vpop.xlane.xlu0 %935
      %v937 = vadd.f32 %v898, %v899
      %938 = vadd.xlane.f32.xlu0 %v937
      %v939 = vpop.xlane.xlu0 %938
      %v940 = vadd.f32 %v900, %v901
      %941 = vadd.xlane.f32.xlu0 %v940
      %v942 = vpop.xlane.xlu0 %941
      %v943 = vadd.f32 %v902, %v903
      %944 = vadd.xlane.f32.xlu0 %v943
      %v945 = vpop.xlane.xlu0 %944
      %v946 = vadd.f32 %v904, %v905
      %947 = vadd.xlane.f32.xlu0 %v946
      %v948 = vpop.xlane.xlu0 %947
      %v949 = vadd.f32 %v906, %v907
      %950 = vadd.xlane.f32.xlu0 %v949
      %v951 = vpop.xlane.xlu0 %950
      %v952 = vadd.f32 %v908, %v909
      %953 = vadd.xlane.f32.xlu0 %v952
      %v954 = vpop.xlane.xlu0 %953
      %v955 = vadd.f32 %v910, %v911
      %956 = vadd.xlane.f32.xlu0 %v955
      %v957 = vpop.xlane.xlu0 %956
      %v958 = vadd.f32 %v912, %v913
      %959 = vadd.xlane.f32.xlu0 %v958
      %v960 = vpop.xlane.xlu0 %959
      %v961 = vadd.f32 %v914, %v915
      %962 = vadd.xlane.f32.xlu0 %v961
      %v963 = vpop.xlane.xlu0 %962
      %v964 = vadd.f32 %v916, %v917
      %965 = vadd.xlane.f32.xlu0 %v964
      %v966 = vpop.xlane.xlu0 %965
      %v967 = vadd.f32 %v918, %v919
      %968 = vadd.xlane.f32.xlu0 %v967
      %v969 = vpop.xlane.xlu0 %968
      %v970 = vrcp.pop 256.0
      %v971 = vmul.f32 %v924, %v970
      %v972 = vmul.f32 %v927, %v970
      %v973 = vmul.f32 %v930, %v970
      %v974 = vmul.f32 %v933, %v970
      %v975 = vmul.f32 %v936, %v970
      %v976 = vmul.f32 %v939, %v970
      %v977 = vmul.f32 %v942, %v970
      %v978 = vmul.f32 %v945, %v970
      %v979 = vmul.f32 %v948, %v970
      %v980 = vmul.f32 %v951, %v970
      %v981 = vmul.f32 %v954, %v970
      %v982 = vmul.f32 %v957, %v970
      %v983 = vmul.f32 %v960, %v970
      %v984 = vmul.f32 %v963, %v970
      %v985 = vmul.f32 %v966, %v970
      %v986 = vmul.f32 %v969, %v970
      %v987 = vsub.f32 %v888, %v971
      %v988 = vsub.f32 %v889, %v971
      %v989 = vsub.f32 %v890, %v972
      %v990 = vsub.f32 %v891, %v972
      %v991 = vsub.f32 %v892, %v973
      %v992 = vsub.f32 %v893, %v973
      %v993 = vsub.f32 %v894, %v974
      %v994 = vsub.f32 %v895, %v974
      %v995 = vsub.f32 %v896, %v975
      %v996 = vsub.f32 %v897, %v975
      %v997 = vsub.f32 %v898, %v976
      %v998 = vsub.f32 %v899, %v976
      %v999 = vsub.f32 %v900, %v977
      %v1000 = vsub.f32 %v901, %v977
      %v1001 = vsub.f32 %v902, %v978
      %v1002 = vsub.f32 %v903, %v978
      %v1003 = vsub.f32 %v904, %v979
      %v1004 = vsub.f32 %v905, %v979
      %v1005 = vsub.f32 %v906, %v980
      %v1006 = vsub.f32 %v907, %v980
      %v1007 = vsub.f32 %v908, %v981
      %v1008 = vsub.f32 %v909, %v981
      %v1009 = vsub.f32 %v910, %v982
      %v1010 = vsub.f32 %v911, %v982
      %v1011 = vsub.f32 %v912, %v983
      %v1012 = vsub.f32 %v913, %v983
      %v1013 = vsub.f32 %v914, %v984
      %v1014 = vsub.f32 %v915, %v984
      %v1015 = vsub.f32 %v916, %v985
      %v1016 = vsub.f32 %v917, %v985
      %v1017 = vsub.f32 %v918, %v986
      %v1018 = vsub.f32 %v919, %v986
      %v1019 = vmul.f32 %v987, %v987
      %v1020 = vmul.f32 %v988, %v988
      %v1021 = vmul.f32 %v989, %v989
      %v1022 = vmul.f32 %v990, %v990
      %v1023 = vmul.f32 %v991, %v991
      %v1024 = vmul.f32 %v992, %v992
      %v1025 = vmul.f32 %v993, %v993
      %v1026 = vmul.f32 %v994, %v994
      %v1027 = vmul.f32 %v995, %v995
      %v1028 = vmul.f32 %v996, %v996
      %v1029 = vmul.f32 %v997, %v997
      %v1030 = vmul.f32 %v998, %v998
      %v1031 = vmul.f32 %v999, %v999
      %v1032 = vmul.f32 %v1000, %v1000
      %v1033 = vmul.f32 %v1001, %v1001
      %v1034 = vmul.f32 %v1002, %v1002
      %v1035 = vmul.f32 %v1003, %v1003
      %v1036 = vmul.f32 %v1004, %v1004
      %v1037 = vmul.f32 %v1005, %v1005
      %v1038 = vmul.f32 %v1006, %v1006
      %v1039 = vmul.f32 %v1007, %v1007
      %v1040 = vmul.f32 %v1008, %v1008
      %v1041 = vmul.f32 %v1009, %v1009
      %v1042 = vmul.f32 %v1010, %v1010
      %v1043 = vmul.f32 %v1011, %v1011
      %v1044 = vmul.f32 %v1012, %v1012
      %v1045 = vmul.f32 %v1013, %v1013
      %v1046 = vmul.f32 %v1014, %v1014
      %v1047 = vmul.f32 %v1015, %v1015
      %v1048 = vmul.f32 %v1016, %v1016
      %v1049 = vmul.f32 %v1017, %v1017
      %v1050 = vmul.f32 %v1018, %v1018
      %v1051 = vadd.f32 %v1019, %v1020
      %1052 = vadd.xlane.f32.xlu0 %v1051
      %v1053 = vpop.xlane.xlu0 %1052
      %v1054 = vadd.f32 %v1021, %v1022
      %1055 = vadd.xlane.f32.xlu0 %v1054
      %v1056 = vpop.xlane.xlu0 %1055
      %v1057 = vadd.f32 %v1023, %v1024
      %1058 = vadd.xlane.f32.xlu0 %v1057
      %v1059 = vpop.xlane.xlu0 %1058
      %v1060 = vadd.f32 %v1025, %v1026
      %1061 = vadd.xlane.f32.xlu0 %v1060
      %v1062 = vpop.xlane.xlu0 %1061
      %v1063 = vadd.f32 %v1027, %v1028
      %1064 = vadd.xlane.f32.xlu0 %v1063
      %v1065 = vpop.xlane.xlu0 %1064
      %v1066 = vadd.f32 %v1029, %v1030
      %1067 = vadd.xlane.f32.xlu0 %v1066
      %v1068 = vpop.xlane.xlu0 %1067
      %v1069 = vadd.f32 %v1031, %v1032
      %1070 = vadd.xlane.f32.xlu0 %v1069
      %v1071 = vpop.xlane.xlu0 %1070
      %v1072 = vadd.f32 %v1033, %v1034
      %1073 = vadd.xlane.f32.xlu0 %v1072
      %v1074 = vpop.xlane.xlu0 %1073
      %v1075 = vadd.f32 %v1035, %v1036
      %1076 = vadd.xlane.f32.xlu0 %v1075
      %v1077 = vpop.xlane.xlu0 %1076
      %v1078 = vadd.f32 %v1037, %v1038
      %1079 = vadd.xlane.f32.xlu0 %v1078
      %v1080 = vpop.xlane.xlu0 %1079
      %v1081 = vadd.f32 %v1039, %v1040
      %1082 = vadd.xlane.f32.xlu0 %v1081
      %v1083 = vpop.xlane.xlu0 %1082
      %v1084 = vadd.f32 %v1041, %v1042
      %1085 = vadd.xlane.f32.xlu0 %v1084
      %v1086 = vpop.xlane.xlu0 %1085
      %v1087 = vadd.f32 %v1043, %v1044
      %1088 = vadd.xlane.f32.xlu0 %v1087
      %v1089 = vpop.xlane.xlu0 %1088
      %v1090 = vadd.f32 %v1045, %v1046
      %1091 = vadd.xlane.f32.xlu0 %v1090
      %v1092 = vpop.xlane.xlu0 %1091
      %v1093 = vadd.f32 %v1047, %v1048
      %1094 = vadd.xlane.f32.xlu0 %v1093
      %v1095 = vpop.xlane.xlu0 %1094
      %v1096 = vadd.f32 %v1049, %v1050
      %1097 = vadd.xlane.f32.xlu0 %v1096
      %v1098 = vpop.xlane.xlu0 %1097
      %v1099 = vmul.f32 %v1053, %v970
      %v1100 = vmul.f32 %v1056, %v970
      %v1101 = vmul.f32 %v1059, %v970
      %v1102 = vmul.f32 %v1062, %v970
      %v1103 = vmul.f32 %v1065, %v970
      %v1104 = vmul.f32 %v1068, %v970
      %v1105 = vmul.f32 %v1071, %v970
      %v1106 = vmul.f32 %v1074, %v970
      %v1107 = vmul.f32 %v1077, %v970
      %v1108 = vmul.f32 %v1080, %v970
      %v1109 = vmul.f32 %v1083, %v970
      %v1110 = vmul.f32 %v1086, %v970
      %v1111 = vmul.f32 %v1089, %v970
      %v1112 = vmul.f32 %v1092, %v970
      %v1113 = vmul.f32 %v1095, %v970
      %v1114 = vmul.f32 %v1098, %v970
      %v1115 = vadd.f32 %v1099, 1e-05
      %v1116 = vadd.f32 %v1100, 1e-05
      %v1117 = vadd.f32 %v1101, 1e-05
      %v1118 = vadd.f32 %v1102, 1e-05
      %v1119 = vadd.f32 %v1103, 1e-05
      %v1120 = vadd.f32 %v1104, 1e-05
      %v1121 = vadd.f32 %v1105, 1e-05
      %v1122 = vadd.f32 %v1106, 1e-05
      %v1123 = vadd.f32 %v1107, 1e-05
      %v1124 = vadd.f32 %v1108, 1e-05
      %v1125 = vadd.f32 %v1109, 1e-05
      %v1126 = vadd.f32 %v1110, 1e-05
      %v1127 = vadd.f32 %v1111, 1e-05
      %v1128 = vadd.f32 %v1112, 1e-05
      %v1129 = vadd.f32 %v1113, 1e-05
      %v1130 = vadd.f32 %v1114, 1e-05
      %v1131 = vrsqrt.pop %v1115
      %v1132 = vrsqrt.pop %v1116
      %v1133 = vrsqrt.pop %v1117
      %v1134 = vrsqrt.pop %v1118
      %v1135 = vrsqrt.pop %v1119
      %v1136 = vrsqrt.pop %v1120
      %v1137 = vrsqrt.pop %v1121
      %v1138 = vrsqrt.pop %v1122
      %v1139 = vrsqrt.pop %v1123
      %v1140 = vrsqrt.pop %v1124
      %v1141 = vrsqrt.pop %v1125
      %v1142 = vrsqrt.pop %v1126
      %v1143 = vrsqrt.pop %v1127
      %v1144 = vrsqrt.pop %v1128
      %v1145 = vrsqrt.pop %v1129
      %v1146 = vrsqrt.pop %v1130
      %v1147 = vmul.f32 %v987, %v1131
      %v1148 = vmul.f32 %v988, %v1131
      %v1149 = vmul.f32 %v989, %v1132
      %v1150 = vmul.f32 %v990, %v1132
      %v1151 = vmul.f32 %v991, %v1133
      %v1152 = vmul.f32 %v992, %v1133
      %v1153 = vmul.f32 %v993, %v1134
      %v1154 = vmul.f32 %v994, %v1134
      %v1155 = vmul.f32 %v995, %v1135
      %v1156 = vmul.f32 %v996, %v1135
      %v1157 = vmul.f32 %v997, %v1136
      %v1158 = vmul.f32 %v998, %v1136
      %v1159 = vmul.f32 %v999, %v1137
      %v1160 = vmul.f32 %v1000, %v1137
      %v1161 = vmul.f32 %v1001, %v1138
      %v1162 = vmul.f32 %v1002, %v1138
      %v1163 = vmul.f32 %v1003, %v1139
      %v1164 = vmul.f32 %v1004, %v1139
      %v1165 = vmul.f32 %v1005, %v1140
      %v1166 = vmul.f32 %v1006, %v1140
      %v1167 = vmul.f32 %v1007, %v1141
      %v1168 = vmul.f32 %v1008, %v1141
      %v1169 = vmul.f32 %v1009, %v1142
      %v1170 = vmul.f32 %v1010, %v1142
      %v1171 = vmul.f32 %v1011, %v1143
      %v1172 = vmul.f32 %v1012, %v1143
      %v1173 = vmul.f32 %v1013, %v1144
      %v1174 = vmul.f32 %v1014, %v1144
      %v1175 = vmul.f32 %v1015, %v1145
      %v1176 = vmul.f32 %v1016, %v1145
      %v1177 = vmul.f32 %v1017, %v1146
      %v1178 = vmul.f32 %v1018, %v1146
      %v1180 = vlaneseq
      %v1181 = vshrl.u32 %v1180, 7
      %v1182 = vsub.s32 0, %v1181
      %v1183 = vrot.slane %v920, %v1182
      %v1184 = vlaneseq
      %v1185 = vshrl.u32 %v1184, 7
      %v1186 = vsub.s32 1, %v1185
      %v1187 = vrot.slane %v920, %v1186
      %v1190 = vmul.f32 %v1147, %v1183
      %v1191 = vmul.f32 %v1148, %v1187
      %v1192 = vmul.f32 %v1149, %v1183
      %v1193 = vmul.f32 %v1150, %v1187
      %v1194 = vmul.f32 %v1151, %v1183
      %v1195 = vmul.f32 %v1152, %v1187
      %v1196 = vmul.f32 %v1153, %v1183
      %v1197 = vmul.f32 %v1154, %v1187
      %v1198 = vmul.f32 %v1155, %v1183
      %v1199 = vmul.f32 %v1156, %v1187
      %v1200 = vmul.f32 %v1157, %v1183
      %v1201 = vmul.f32 %v1158, %v1187
      %v1202 = vmul.f32 %v1159, %v1183
      %v1203 = vmul.f32 %v1160, %v1187
      %v1204 = vmul.f32 %v1161, %v1183
      %v1205 = vmul.f32 %v1162, %v1187
      %v1206 = vmul.f32 %v1163, %v1183
      %v1207 = vmul.f32 %v1164, %v1187
      %v1208 = vmul.f32 %v1165, %v1183
      %v1209 = vmul.f32 %v1166, %v1187
      %v1210 = vmul.f32 %v1167, %v1183
      %v1211 = vmul.f32 %v1168, %v1187
      %v1212 = vmul.f32 %v1169, %v1183
      %v1213 = vmul.f32 %v1170, %v1187
      %v1214 = vmul.f32 %v1171, %v1183
      %v1215 = vmul.f32 %v1172, %v1187
      %v1216 = vmul.f32 %v1173, %v1183
      %v1217 = vmul.f32 %v1174, %v1187
      %v1218 = vmul.f32 %v1175, %v1183
      %v1219 = vmul.f32 %v1176, %v1187
      %v1220 = vmul.f32 %v1177, %v1183
      %v1221 = vmul.f32 %v1178, %v1187
      %v1223 = vlaneseq
      %v1224 = vshrl.u32 %v1223, 7
      %v1225 = vsub.s32 0, %v1224
      %v1226 = vrot.slane %v921, %v1225
      %v1227 = vlaneseq
      %v1228 = vshrl.u32 %v1227, 7
      %v1229 = vsub.s32 1, %v1228
      %v1230 = vrot.slane %v921, %v1229
      %v1233 = vadd.f32 %v1190, %v1226
      %v1234 = vadd.f32 %v1191, %v1230
      %v1235 = vadd.f32 %v1192, %v1226
      %v1236 = vadd.f32 %v1193, %v1230
      %v1237 = vadd.f32 %v1194, %v1226
      %v1238 = vadd.f32 %v1195, %v1230
      %v1239 = vadd.f32 %v1196, %v1226
      %v1240 = vadd.f32 %v1197, %v1230
      %v1241 = vadd.f32 %v1198, %v1226
      %v1242 = vadd.f32 %v1199, %v1230
      %v1243 = vadd.f32 %v1200, %v1226
      %v1244 = vadd.f32 %v1201, %v1230
      %v1245 = vadd.f32 %v1202, %v1226
      %v1246 = vadd.f32 %v1203, %v1230
      %v1247 = vadd.f32 %v1204, %v1226
      %v1248 = vadd.f32 %v1205, %v1230
      %v1249 = vadd.f32 %v1206, %v1226
      %v1250 = vadd.f32 %v1207, %v1230
      %v1251 = vadd.f32 %v1208, %v1226
      %v1252 = vadd.f32 %v1209, %v1230
      %v1253 = vadd.f32 %v1210, %v1226
      %v1254 = vadd.f32 %v1211, %v1230
      %v1255 = vadd.f32 %v1212, %v1226
      %v1256 = vadd.f32 %v1213, %v1230
      %v1257 = vadd.f32 %v1214, %v1226
      %v1258 = vadd.f32 %v1215, %v1230
      %v1259 = vadd.f32 %v1216, %v1226
      %v1260 = vadd.f32 %v1217, %v1230
      %v1261 = vadd.f32 %v1218, %v1226
      %v1262 = vadd.f32 %v1219, %v1230
      %v1263 = vadd.f32 %v1220, %v1226
      %v1264 = vadd.f32 %v1221, %v1230
      %v1265 = vpack.c.bf16 %v1235, %v1233
      %v1266 = vpack.c.bf16 %v1236, %v1234
      %v1267 = vpack.c.bf16 %v1239, %v1237
      %v1268 = vpack.c.bf16 %v1240, %v1238
      %v1269 = vpack.c.bf16 %v1243, %v1241
      %v1270 = vpack.c.bf16 %v1244, %v1242
      %v1271 = vpack.c.bf16 %v1247, %v1245
      %v1272 = vpack.c.bf16 %v1248, %v1246
      %v1273 = vpack.c.bf16 %v1251, %v1249
      %v1274 = vpack.c.bf16 %v1252, %v1250
      %v1275 = vpack.c.bf16 %v1255, %v1253
      %v1276 = vpack.c.bf16 %v1256, %v1254
      %v1277 = vpack.c.bf16 %v1259, %v1257
      %v1278 = vpack.c.bf16 %v1260, %v1258
      %v1279 = vpack.c.bf16 %v1263, %v1261
      %v1280 = vpack.c.bf16 %v1264, %v1262
      %v1281 = vld [vmem:[%s6] sm:$0xff]
      %v1282 = vld [vmem:[%s6 + $0x8] sm:$0xff]
      %v1283 = vld [vmem:[%s6 + $0x10] sm:$0xff]
      %v1284 = vld [vmem:[%s6 + $0x18] sm:$0xff]
      %v1285 = vld [vmem:[%s6 + $0x20] sm:$0xff]
      %v1286 = vld [vmem:[%s6 + $0x28] sm:$0xff]
      %v1287 = vld [vmem:[%s6 + $0x30] sm:$0xff]
      %v1288 = vld [vmem:[%s6 + $0x38] sm:$0xff]
      %v1289 = vld [vmem:[%s6 + $0x40] sm:$0xff]
      %v1290 = vld [vmem:[%s6 + $0x48] sm:$0xff]
      %v1291 = vld [vmem:[%s6 + $0x50] sm:$0xff]
      %v1292 = vld [vmem:[%s6 + $0x58] sm:$0xff]
      %v1293 = vld [vmem:[%s6 + $0x60] sm:$0xff]
      %v1294 = vld [vmem:[%s6 + $0x68] sm:$0xff]
      %v1295 = vld [vmem:[%s6 + $0x70] sm:$0xff]
      %v1296 = vld [vmem:[%s6 + $0x78] sm:$0xff]
      %v1297 = vld [vmem:[%s6 + $0x80] sm:$0xff]
      %v1298 = vld [vmem:[%s6 + $0x88] sm:$0xff]
      %v1299 = vld [vmem:[%s6 + $0x90] sm:$0xff]
      %v1300 = vld [vmem:[%s6 + $0x98] sm:$0xff]
      %v1301 = vld [vmem:[%s6 + $0xa0] sm:$0xff]
      %v1302 = vld [vmem:[%s6 + $0xa8] sm:$0xff]
      %v1303 = vld [vmem:[%s6 + $0xb0] sm:$0xff]
      %v1304 = vld [vmem:[%s6 + $0xb8] sm:$0xff]
      %v1305 = vld [vmem:[%s6 + $0xc0] sm:$0xff]
      %v1306 = vld [vmem:[%s6 + $0xc8] sm:$0xff]
      %v1307 = vld [vmem:[%s6 + $0xd0] sm:$0xff]
      %v1308 = vld [vmem:[%s6 + $0xd8] sm:$0xff]
      %v1309 = vld [vmem:[%s6 + $0xe0] sm:$0xff]
      %v1310 = vld [vmem:[%s6 + $0xe8] sm:$0xff]
      %v1311 = vld [vmem:[%s6 + $0xf0] sm:$0xff]
      %v1312 = vld [vmem:[%s6 + $0xf8] sm:$0xff]
      %v1313 = vld [vmem:[%s6 + $0x100] sm:$0xff]
      %v1314 = vld [vmem:[%s6 + $0x108] sm:$0xff]
      %v1315 = vld [vmem:[%s6 + $0x110] sm:$0xff]
      %v1316 = vld [vmem:[%s6 + $0x118] sm:$0xff]
      %v1317 = vld [vmem:[%s6 + $0x120] sm:$0xff]
      %v1318 = vld [vmem:[%s6 + $0x128] sm:$0xff]
      %v1319 = vld [vmem:[%s6 + $0x130] sm:$0xff]
      %v1320 = vld [vmem:[%s6 + $0x138] sm:$0xff]
      %v1321 = vld [vmem:[%s6 + $0x140] sm:$0xff]
      %v1322 = vld [vmem:[%s6 + $0x148] sm:$0xff]
      %v1323 = vld [vmem:[%s6 + $0x150] sm:$0xff]
      %v1324 = vld [vmem:[%s6 + $0x158] sm:$0xff]
      %v1325 = vld [vmem:[%s6 + $0x160] sm:$0xff]
      %v1326 = vld [vmem:[%s6 + $0x168] sm:$0xff]
      %v1327 = vld [vmem:[%s6 + $0x170] sm:$0xff]
      %v1328 = vld [vmem:[%s6 + $0x178] sm:$0xff]
      %v1329 = vld [vmem:[%s6 + $0x180] sm:$0xff]
      %v1330 = vld [vmem:[%s6 + $0x188] sm:$0xff]
      %v1331 = vld [vmem:[%s6 + $0x190] sm:$0xff]
      %v1332 = vld [vmem:[%s6 + $0x198] sm:$0xff]
      %v1333 = vld [vmem:[%s6 + $0x1a0] sm:$0xff]
      %v1334 = vld [vmem:[%s6 + $0x1a8] sm:$0xff]
      %v1335 = vld [vmem:[%s6 + $0x1b0] sm:$0xff]
      %v1336 = vld [vmem:[%s6 + $0x1b8] sm:$0xff]
      %v1337 = vld [vmem:[%s6 + $0x1c0] sm:$0xff]
      %v1338 = vld [vmem:[%s6 + $0x1c8] sm:$0xff]
      %v1339 = vld [vmem:[%s6 + $0x1d0] sm:$0xff]
      %v1340 = vld [vmem:[%s6 + $0x1d8] sm:$0xff]
      %v1341 = vld [vmem:[%s6 + $0x1e0] sm:$0xff]
      %v1342 = vld [vmem:[%s6 + $0x1e8] sm:$0xff]
      %v1343 = vld [vmem:[%s6 + $0x1f0] sm:$0xff]
      %v1344 = vld [vmem:[%s6 + $0x1f8] sm:$0xff]
      %v1345 = vld [vmem:[%s6 + $0x200] sm:$0xff]
      %v1346 = vld [vmem:[%s6 + $0x208] sm:$0xff]
      %v1347 = vld [vmem:[%s6 + $0x210] sm:$0xff]
      %v1348 = vld [vmem:[%s6 + $0x218] sm:$0xff]
      %v1349 = vld [vmem:[%s6 + $0x220] sm:$0xff]
      %v1350 = vld [vmem:[%s6 + $0x228] sm:$0xff]
      %v1351 = vld [vmem:[%s6 + $0x230] sm:$0xff]
      %v1352 = vld [vmem:[%s6 + $0x238] sm:$0xff]
      %v1353 = vld [vmem:[%s6 + $0x240] sm:$0xff]
      %v1354 = vld [vmem:[%s6 + $0x248] sm:$0xff]
      %v1355 = vld [vmem:[%s6 + $0x250] sm:$0xff]
      %v1356 = vld [vmem:[%s6 + $0x258] sm:$0xff]
      %v1357 = vld [vmem:[%s6 + $0x260] sm:$0xff]
      %v1358 = vld [vmem:[%s6 + $0x268] sm:$0xff]
      %v1359 = vld [vmem:[%s6 + $0x270] sm:$0xff]
      %v1360 = vld [vmem:[%s6 + $0x278] sm:$0xff]
      %v1361 = vld [vmem:[%s6 + $0x280] sm:$0xff]
      %v1362 = vld [vmem:[%s6 + $0x288] sm:$0xff]
      %v1363 = vld [vmem:[%s6 + $0x290] sm:$0xff]
      %v1364 = vld [vmem:[%s6 + $0x298] sm:$0xff]
      %v1365 = vld [vmem:[%s6 + $0x2a0] sm:$0xff]
      %v1366 = vld [vmem:[%s6 + $0x2a8] sm:$0xff]
      %v1367 = vld [vmem:[%s6 + $0x2b0] sm:$0xff]
      %v1368 = vld [vmem:[%s6 + $0x2b8] sm:$0xff]
      %v1369 = vld [vmem:[%s6 + $0x2c0] sm:$0xff]
      %v1370 = vld [vmem:[%s6 + $0x2c8] sm:$0xff]
      %v1371 = vld [vmem:[%s6 + $0x2d0] sm:$0xff]
      %v1372 = vld [vmem:[%s6 + $0x2d8] sm:$0xff]
      %v1373 = vld [vmem:[%s6 + $0x2e0] sm:$0xff]
      %v1374 = vld [vmem:[%s6 + $0x2e8] sm:$0xff]
      %v1375 = vld [vmem:[%s6 + $0x2f0] sm:$0xff]
      %v1376 = vld [vmem:[%s6 + $0x2f8] sm:$0xff]
      %v1377 = vld [vmem:[%s6 + $0x300] sm:$0xff]
      %v1378 = vld [vmem:[%s6 + $0x308] sm:$0xff]
      %v1379 = vld [vmem:[%s6 + $0x310] sm:$0xff]
      %v1380 = vld [vmem:[%s6 + $0x318] sm:$0xff]
      %v1381 = vld [vmem:[%s6 + $0x320] sm:$0xff]
      %v1382 = vld [vmem:[%s6 + $0x328] sm:$0xff]
      %v1383 = vld [vmem:[%s6 + $0x330] sm:$0xff]
      %v1384 = vld [vmem:[%s6 + $0x338] sm:$0xff]
      %v1385 = vld [vmem:[%s6 + $0x340] sm:$0xff]
      %v1386 = vld [vmem:[%s6 + $0x348] sm:$0xff]
      %v1387 = vld [vmem:[%s6 + $0x350] sm:$0xff]
      %v1388 = vld [vmem:[%s6 + $0x358] sm:$0xff]
      %v1389 = vld [vmem:[%s6 + $0x360] sm:$0xff]
      %v1390 = vld [vmem:[%s6 + $0x368] sm:$0xff]
      %v1391 = vld [vmem:[%s6 + $0x370] sm:$0xff]
      %v1392 = vld [vmem:[%s6 + $0x378] sm:$0xff]
      %v1393 = vld [vmem:[%s6 + $0x380] sm:$0xff]
      %v1394 = vld [vmem:[%s6 + $0x388] sm:$0xff]
      %v1395 = vld [vmem:[%s6 + $0x390] sm:$0xff]
      %v1396 = vld [vmem:[%s6 + $0x398] sm:$0xff]
      %v1397 = vld [vmem:[%s6 + $0x3a0] sm:$0xff]
      %v1398 = vld [vmem:[%s6 + $0x3a8] sm:$0xff]
      %v1399 = vld [vmem:[%s6 + $0x3b0] sm:$0xff]
      %v1400 = vld [vmem:[%s6 + $0x3b8] sm:$0xff]
      %v1401 = vld [vmem:[%s6 + $0x3c0] sm:$0xff]
      %v1402 = vld [vmem:[%s6 + $0x3c8] sm:$0xff]
      %v1403 = vld [vmem:[%s6 + $0x3d0] sm:$0xff]
      %v1404 = vld [vmem:[%s6 + $0x3d8] sm:$0xff]
      %v1405 = vld [vmem:[%s6 + $0x3e0] sm:$0xff]
      %v1406 = vld [vmem:[%s6 + $0x3e8] sm:$0xff]
      %v1407 = vld [vmem:[%s6 + $0x3f0] sm:$0xff]
      %v1408 = vld [vmem:[%s6 + $0x3f8] sm:$0xff]
      %v1409 = vld [vmem:[%s7] sm:$0xff]
      %v1411 = vlaneseq
      %v1412 = vshrl.u32 %v1411, 7
      %v1413 = vsub.s32 0, %v1412
      %v1414 = vrot.slane %v1409, %v1413
      %v1415 = vlaneseq
      %v1416 = vshrl.u32 %v1415, 7
      %v1417 = vsub.s32 1, %v1416
      %v1418 = vrot.slane %v1409, %v1417
      %v1419 = vlaneseq
      %v1420 = vshrl.u32 %v1419, 7
      %v1421 = vsub.s32 2, %v1420
      %v1422 = vrot.slane %v1409, %v1421
      %v1423 = vlaneseq
      %v1424 = vshrl.u32 %v1423, 7
      %v1425 = vsub.s32 3, %v1424
      %v1426 = vrot.slane %v1409, %v1425
      %v1427 = vlaneseq
      %v1428 = vshrl.u32 %v1427, 7
      %v1429 = vsub.s32 4, %v1428
      %v1430 = vrot.slane %v1409, %v1429
      %v1431 = vlaneseq
      %v1432 = vshrl.u32 %v1431, 7
      %v1433 = vsub.s32 5, %v1432
      %v1434 = vrot.slane %v1409, %v1433
      %v1435 = vlaneseq
      %v1436 = vshrl.u32 %v1435, 7
      %v1437 = vsub.s32 6, %v1436
      %v1438 = vrot.slane %v1409, %v1437
      %v1439 = vlaneseq
      %v1440 = vshrl.u32 %v1439, 7
      %v1441 = vsub.s32 7, %v1440
      %v1442 = vrot.slane %v1409, %v1441
      %v1579 = vunpack.c.l.b16 %v1281
      %v1580 = vunpack.c.h.b16 %v1281
      %v1581 = vunpack.c.l.b16 %v1282
      %v1582 = vunpack.c.h.b16 %v1282
      %v1583 = vunpack.c.l.b16 %v1283
      %v1584 = vunpack.c.h.b16 %v1283
      %v1585 = vunpack.c.l.b16 %v1284
      %v1586 = vunpack.c.h.b16 %v1284
      %v1587 = vunpack.c.l.b16 %v1285
      %v1588 = vunpack.c.h.b16 %v1285
      %v1589 = vunpack.c.l.b16 %v1286
      %v1590 = vunpack.c.h.b16 %v1286
      %v1591 = vunpack.c.l.b16 %v1287
      %v1592 = vunpack.c.h.b16 %v1287
      %v1593 = vunpack.c.l.b16 %v1288
      %v1594 = vunpack.c.h.b16 %v1288
      %v1595 = vunpack.c.l.b16 %v1289
      %v1596 = vunpack.c.h.b16 %v1289
      %v1597 = vunpack.c.l.b16 %v1290
      %v1598 = vunpack.c.h.b16 %v1290
      %v1599 = vunpack.c.l.b16 %v1291
      %v1600 = vunpack.c.h.b16 %v1291
      %v1601 = vunpack.c.l.b16 %v1292
      %v1602 = vunpack.c.h.b16 %v1292
      %v1603 = vunpack.c.l.b16 %v1293
      %v1604 = vunpack.c.h.b16 %v1293
      %v1605 = vunpack.c.l.b16 %v1294
      %v1606 = vunpack.c.h.b16 %v1294
      %v1607 = vunpack.c.l.b16 %v1295
      %v1608 = vunpack.c.h.b16 %v1295
      %v1609 = vunpack.c.l.b16 %v1296
      %v1610 = vunpack.c.h.b16 %v1296
      %v1611 = vunpack.c.l.b16 %v1297
      %v1612 = vunpack.c.h.b16 %v1297
      %v1613 = vunpack.c.l.b16 %v1298
      %v1614 = vunpack.c.h.b16 %v1298
      %v1615 = vunpack.c.l.b16 %v1299
      %v1616 = vunpack.c.h.b16 %v1299
      %v1617 = vunpack.c.l.b16 %v1300
      %v1618 = vunpack.c.h.b16 %v1300
      %v1619 = vunpack.c.l.b16 %v1301
      %v1620 = vunpack.c.h.b16 %v1301
      %v1621 = vunpack.c.l.b16 %v1302
      %v1622 = vunpack.c.h.b16 %v1302
      %v1623 = vunpack.c.l.b16 %v1303
      %v1624 = vunpack.c.h.b16 %v1303
      %v1625 = vunpack.c.l.b16 %v1304
      %v1626 = vunpack.c.h.b16 %v1304
      %v1627 = vunpack.c.l.b16 %v1305
      %v1628 = vunpack.c.h.b16 %v1305
      %v1629 = vunpack.c.l.b16 %v1306
      %v1630 = vunpack.c.h.b16 %v1306
      %v1631 = vunpack.c.l.b16 %v1307
      %v1632 = vunpack.c.h.b16 %v1307
      %v1633 = vunpack.c.l.b16 %v1308
      %v1634 = vunpack.c.h.b16 %v1308
      %v1635 = vunpack.c.l.b16 %v1309
      %v1636 = vunpack.c.h.b16 %v1309
      %v1637 = vunpack.c.l.b16 %v1310
      %v1638 = vunpack.c.h.b16 %v1310
      %v1639 = vunpack.c.l.b16 %v1311
      %v1640 = vunpack.c.h.b16 %v1311
      %v1641 = vunpack.c.l.b16 %v1312
      %v1642 = vunpack.c.h.b16 %v1312
      %v1643 = vunpack.c.l.b16 %v1313
      %v1644 = vunpack.c.h.b16 %v1313
      %v1645 = vunpack.c.l.b16 %v1314
      %v1646 = vunpack.c.h.b16 %v1314
      %v1647 = vunpack.c.l.b16 %v1315
      %v1648 = vunpack.c.h.b16 %v1315
      %v1649 = vunpack.c.l.b16 %v1316
      %v1650 = vunpack.c.h.b16 %v1316
      %v1651 = vunpack.c.l.b16 %v1317
      %v1652 = vunpack.c.h.b16 %v1317
      %v1653 = vunpack.c.l.b16 %v1318
      %v1654 = vunpack.c.h.b16 %v1318
      %v1655 = vunpack.c.l.b16 %v1319
      %v1656 = vunpack.c.h.b16 %v1319
      %v1657 = vunpack.c.l.b16 %v1320
      %v1658 = vunpack.c.h.b16 %v1320
      %v1659 = vunpack.c.l.b16 %v1321
      %v1660 = vunpack.c.h.b16 %v1321
      %v1661 = vunpack.c.l.b16 %v1322
      %v1662 = vunpack.c.h.b16 %v1322
      %v1663 = vunpack.c.l.b16 %v1323
      %v1664 = vunpack.c.h.b16 %v1323
      %v1665 = vunpack.c.l.b16 %v1324
      %v1666 = vunpack.c.h.b16 %v1324
      %v1667 = vunpack.c.l.b16 %v1325
      %v1668 = vunpack.c.h.b16 %v1325
      %v1669 = vunpack.c.l.b16 %v1326
      %v1670 = vunpack.c.h.b16 %v1326
      %v1671 = vunpack.c.l.b16 %v1327
      %v1672 = vunpack.c.h.b16 %v1327
      %v1673 = vunpack.c.l.b16 %v1328
      %v1674 = vunpack.c.h.b16 %v1328
      %v1675 = vunpack.c.l.b16 %v1329
      %v1676 = vunpack.c.h.b16 %v1329
      %v1677 = vunpack.c.l.b16 %v1330
      %v1678 = vunpack.c.h.b16 %v1330
      %v1679 = vunpack.c.l.b16 %v1331
      %v1680 = vunpack.c.h.b16 %v1331
      %v1681 = vunpack.c.l.b16 %v1332
      %v1682 = vunpack.c.h.b16 %v1332
      %v1683 = vunpack.c.l.b16 %v1333
      %v1684 = vunpack.c.h.b16 %v1333
      %v1685 = vunpack.c.l.b16 %v1334
      %v1686 = vunpack.c.h.b16 %v1334
      %v1687 = vunpack.c.l.b16 %v1335
      %v1688 = vunpack.c.h.b16 %v1335
      %v1689 = vunpack.c.l.b16 %v1336
      %v1690 = vunpack.c.h.b16 %v1336
      %v1691 = vunpack.c.l.b16 %v1337
      %v1692 = vunpack.c.h.b16 %v1337
      %v1693 = vunpack.c.l.b16 %v1338
      %v1694 = vunpack.c.h.b16 %v1338
      %v1695 = vunpack.c.l.b16 %v1339
      %v1696 = vunpack.c.h.b16 %v1339
      %v1697 = vunpack.c.l.b16 %v1340
      %v1698 = vunpack.c.h.b16 %v1340
      %v1699 = vunpack.c.l.b16 %v1341
      %v1700 = vunpack.c.h.b16 %v1341
      %v1701 = vunpack.c.l.b16 %v1342
      %v1702 = vunpack.c.h.b16 %v1342
      %v1703 = vunpack.c.l.b16 %v1343
      %v1704 = vunpack.c.h.b16 %v1343
      %v1705 = vunpack.c.l.b16 %v1344
      %v1706 = vunpack.c.h.b16 %v1344
      %v1707 = vunpack.c.l.b16 %v1345
      %v1708 = vunpack.c.h.b16 %v1345
      %v1709 = vunpack.c.l.b16 %v1346
      %v1710 = vunpack.c.h.b16 %v1346
      %v1711 = vunpack.c.l.b16 %v1347
      %v1712 = vunpack.c.h.b16 %v1347
      %v1713 = vunpack.c.l.b16 %v1348
      %v1714 = vunpack.c.h.b16 %v1348
      %v1715 = vunpack.c.l.b16 %v1349
      %v1716 = vunpack.c.h.b16 %v1349
      %v1717 = vunpack.c.l.b16 %v1350
      %v1718 = vunpack.c.h.b16 %v1350
      %v1719 = vunpack.c.l.b16 %v1351
      %v1720 = vunpack.c.h.b16 %v1351
      %v1721 = vunpack.c.l.b16 %v1352
      %v1722 = vunpack.c.h.b16 %v1352
      %v1723 = vunpack.c.l.b16 %v1353
      %v1724 = vunpack.c.h.b16 %v1353
      %v1725 = vunpack.c.l.b16 %v1354
      %v1726 = vunpack.c.h.b16 %v1354
      %v1727 = vunpack.c.l.b16 %v1355
      %v1728 = vunpack.c.h.b16 %v1355
      %v1729 = vunpack.c.l.b16 %v1356
      %v1730 = vunpack.c.h.b16 %v1356
      %v1731 = vunpack.c.l.b16 %v1357
      %v1732 = vunpack.c.h.b16 %v1357
      %v1733 = vunpack.c.l.b16 %v1358
      %v1734 = vunpack.c.h.b16 %v1358
      %v1735 = vunpack.c.l.b16 %v1359
      %v1736 = vunpack.c.h.b16 %v1359
      %v1737 = vunpack.c.l.b16 %v1360
      %v1738 = vunpack.c.h.b16 %v1360
      %v1739 = vunpack.c.l.b16 %v1361
      %v1740 = vunpack.c.h.b16 %v1361
      %v1741 = vunpack.c.l.b16 %v1362
      %v1742 = vunpack.c.h.b16 %v1362
      %v1743 = vunpack.c.l.b16 %v1363
      %v1744 = vunpack.c.h.b16 %v1363
      %v1745 = vunpack.c.l.b16 %v1364
      %v1746 = vunpack.c.h.b16 %v1364
      %v1747 = vunpack.c.l.b16 %v1365
      %v1748 = vunpack.c.h.b16 %v1365
      %v1749 = vunpack.c.l.b16 %v1366
      %v1750 = vunpack.c.h.b16 %v1366
      %v1751 = vunpack.c.l.b16 %v1367
      %v1752 = vunpack.c.h.b16 %v1367
      %v1753 = vunpack.c.l.b16 %v1368
      %v1754 = vunpack.c.h.b16 %v1368
      %v1755 = vunpack.c.l.b16 %v1369
      %v1756 = vunpack.c.h.b16 %v1369
      %v1757 = vunpack.c.l.b16 %v1370
      %v1758 = vunpack.c.h.b16 %v1370
      %v1759 = vunpack.c.l.b16 %v1371
      %v1760 = vunpack.c.h.b16 %v1371
      %v1761 = vunpack.c.l.b16 %v1372
      %v1762 = vunpack.c.h.b16 %v1372
      %v1763 = vunpack.c.l.b16 %v1373
      %v1764 = vunpack.c.h.b16 %v1373
      %v1765 = vunpack.c.l.b16 %v1374
      %v1766 = vunpack.c.h.b16 %v1374
      %v1767 = vunpack.c.l.b16 %v1375
      %v1768 = vunpack.c.h.b16 %v1375
      %v1769 = vunpack.c.l.b16 %v1376
      %v1770 = vunpack.c.h.b16 %v1376
      %v1771 = vunpack.c.l.b16 %v1377
      %v1772 = vunpack.c.h.b16 %v1377
      %v1773 = vunpack.c.l.b16 %v1378
      %v1774 = vunpack.c.h.b16 %v1378
      %v1775 = vunpack.c.l.b16 %v1379
      %v1776 = vunpack.c.h.b16 %v1379
      %v1777 = vunpack.c.l.b16 %v1380
      %v1778 = vunpack.c.h.b16 %v1380
      %v1779 = vunpack.c.l.b16 %v1381
      %v1780 = vunpack.c.h.b16 %v1381
      %v1781 = vunpack.c.l.b16 %v1382
      %v1782 = vunpack.c.h.b16 %v1382
      %v1783 = vunpack.c.l.b16 %v1383
      %v1784 = vunpack.c.h.b16 %v1383
      %v1785 = vunpack.c.l.b16 %v1384
      %v1786 = vunpack.c.h.b16 %v1384
      %v1787 = vunpack.c.l.b16 %v1385
      %v1788 = vunpack.c.h.b16 %v1385
      %v1789 = vunpack.c.l.b16 %v1386
      %v1790 = vunpack.c.h.b16 %v1386
      %v1791 = vunpack.c.l.b16 %v1387
      %v1792 = vunpack.c.h.b16 %v1387
      %v1793 = vunpack.c.l.b16 %v1388
      %v1794 = vunpack.c.h.b16 %v1388
      %v1795 = vunpack.c.l.b16 %v1389
      %v1796 = vunpack.c.h.b16 %v1389
      %v1797 = vunpack.c.l.b16 %v1390
      %v1798 = vunpack.c.h.b16 %v1390
      %v1799 = vunpack.c.l.b16 %v1391
      %v1800 = vunpack.c.h.b16 %v1391
      %v1801 = vunpack.c.l.b16 %v1392
      %v1802 = vunpack.c.h.b16 %v1392
      %v1803 = vunpack.c.l.b16 %v1393
      %v1804 = vunpack.c.h.b16 %v1393
      %v1805 = vunpack.c.l.b16 %v1394
      %v1806 = vunpack.c.h.b16 %v1394
      %v1807 = vunpack.c.l.b16 %v1395
      %v1808 = vunpack.c.h.b16 %v1395
      %v1809 = vunpack.c.l.b16 %v1396
      %v1810 = vunpack.c.h.b16 %v1396
      %v1811 = vunpack.c.l.b16 %v1397
      %v1812 = vunpack.c.h.b16 %v1397
      %v1813 = vunpack.c.l.b16 %v1398
      %v1814 = vunpack.c.h.b16 %v1398
      %v1815 = vunpack.c.l.b16 %v1399
      %v1816 = vunpack.c.h.b16 %v1399
      %v1817 = vunpack.c.l.b16 %v1400
      %v1818 = vunpack.c.h.b16 %v1400
      %v1819 = vunpack.c.l.b16 %v1401
      %v1820 = vunpack.c.h.b16 %v1401
      %v1821 = vunpack.c.l.b16 %v1402
      %v1822 = vunpack.c.h.b16 %v1402
      %v1823 = vunpack.c.l.b16 %v1403
      %v1824 = vunpack.c.h.b16 %v1403
      %v1825 = vunpack.c.l.b16 %v1404
      %v1826 = vunpack.c.h.b16 %v1404
      %v1827 = vunpack.c.l.b16 %v1405
      %v1828 = vunpack.c.h.b16 %v1405
      %v1829 = vunpack.c.l.b16 %v1406
      %v1830 = vunpack.c.h.b16 %v1406
      %v1831 = vunpack.c.l.b16 %v1407
      %v1832 = vunpack.c.h.b16 %v1407
      %v1833 = vunpack.c.l.b16 %v1408
      %v1834 = vunpack.c.h.b16 %v1408
      %v1835 = vpack.c.b16 %v1587, %v1579
      %v1836 = vpack.c.b16 %v1588, %v1580
      %v1837 = vpack.c.b16 %v1589, %v1581
      %v1838 = vpack.c.b16 %v1590, %v1582
      %v1839 = vpack.c.b16 %v1591, %v1583
      %v1840 = vpack.c.b16 %v1592, %v1584
      %v1841 = vpack.c.b16 %v1593, %v1585
      %v1842 = vpack.c.b16 %v1594, %v1586
      %v1843 = vpack.c.b16 %v1603, %v1595
      %v1844 = vpack.c.b16 %v1604, %v1596
      %v1845 = vpack.c.b16 %v1605, %v1597
      %v1846 = vpack.c.b16 %v1606, %v1598
      %v1847 = vpack.c.b16 %v1607, %v1599
      %v1848 = vpack.c.b16 %v1608, %v1600
      %v1849 = vpack.c.b16 %v1609, %v1601
      %v1850 = vpack.c.b16 %v1610, %v1602
      %v1851 = vpack.c.b16 %v1619, %v1611
      %v1852 = vpack.c.b16 %v1620, %v1612
      %v1853 = vpack.c.b16 %v1621, %v1613
      %v1854 = vpack.c.b16 %v1622, %v1614
      %v1855 = vpack.c.b16 %v1623, %v1615
      %v1856 = vpack.c.b16 %v1624, %v1616
      %v1857 = vpack.c.b16 %v1625, %v1617
      %v1858 = vpack.c.b16 %v1626, %v1618
      %v1859 = vpack.c.b16 %v1635, %v1627
      %v1860 = vpack.c.b16 %v1636, %v1628
      %v1861 = vpack.c.b16 %v1637, %v1629
      %v1862 = vpack.c.b16 %v1638, %v1630
      %v1863 = vpack.c.b16 %v1639, %v1631
      %v1864 = vpack.c.b16 %v1640, %v1632
      %v1865 = vpack.c.b16 %v1641, %v1633
      %v1866 = vpack.c.b16 %v1642, %v1634
      %v1867 = vpack.c.b16 %v1651, %v1643
      %v1868 = vpack.c.b16 %v1652, %v1644
      %v1869 = vpack.c.b16 %v1653, %v1645
      %v1870 = vpack.c.b16 %v1654, %v1646
      %v1871 = vpack.c.b16 %v1655, %v1647
      %v1872 = vpack.c.b16 %v1656, %v1648
      %v1873 = vpack.c.b16 %v1657, %v1649
      %v1874 = vpack.c.b16 %v1658, %v1650
      %v1875 = vpack.c.b16 %v1667, %v1659
      %v1876 = vpack.c.b16 %v1668, %v1660
      %v1877 = vpack.c.b16 %v1669, %v1661
      %v1878 = vpack.c.b16 %v1670, %v1662
      %v1879 = vpack.c.b16 %v1671, %v1663
      %v1880 = vpack.c.b16 %v1672, %v1664
      %v1881 = vpack.c.b16 %v1673, %v1665
      %v1882 = vpack.c.b16 %v1674, %v1666
      %v1883 = vpack.c.b16 %v1683, %v1675
      %v1884 = vpack.c.b16 %v1684, %v1676
      %v1885 = vpack.c.b16 %v1685, %v1677
      %v1886 = vpack.c.b16 %v1686, %v1678
      %v1887 = vpack.c.b16 %v1687, %v1679
      %v1888 = vpack.c.b16 %v1688, %v1680
      %v1889 = vpack.c.b16 %v1689, %v1681
      %v1890 = vpack.c.b16 %v1690, %v1682
      %v1891 = vpack.c.b16 %v1699, %v1691
      %v1892 = vpack.c.b16 %v1700, %v1692
      %v1893 = vpack.c.b16 %v1701, %v1693
      %v1894 = vpack.c.b16 %v1702, %v1694
      %v1895 = vpack.c.b16 %v1703, %v1695
      %v1896 = vpack.c.b16 %v1704, %v1696
      %v1897 = vpack.c.b16 %v1705, %v1697
      %v1898 = vpack.c.b16 %v1706, %v1698
      %v1899 = vpack.c.b16 %v1715, %v1707
      %v1900 = vpack.c.b16 %v1716, %v1708
      %v1901 = vpack.c.b16 %v1717, %v1709
      %v1902 = vpack.c.b16 %v1718, %v1710
      %v1903 = vpack.c.b16 %v1719, %v1711
      %v1904 = vpack.c.b16 %v1720, %v1712
      %v1905 = vpack.c.b16 %v1721, %v1713
      %v1906 = vpack.c.b16 %v1722, %v1714
      %v1907 = vpack.c.b16 %v1731, %v1723
      %v1908 = vpack.c.b16 %v1732, %v1724
      %v1909 = vpack.c.b16 %v1733, %v1725
      %v1910 = vpack.c.b16 %v1734, %v1726
      %v1911 = vpack.c.b16 %v1735, %v1727
      %v1912 = vpack.c.b16 %v1736, %v1728
      %v1913 = vpack.c.b16 %v1737, %v1729
      %v1914 = vpack.c.b16 %v1738, %v1730
      %v1915 = vpack.c.b16 %v1747, %v1739
      %v1916 = vpack.c.b16 %v1748, %v1740
      %v1917 = vpack.c.b16 %v1749, %v1741
      %v1918 = vpack.c.b16 %v1750, %v1742
      %v1919 = vpack.c.b16 %v1751, %v1743
      %v1920 = vpack.c.b16 %v1752, %v1744
      %v1921 = vpack.c.b16 %v1753, %v1745
      %v1922 = vpack.c.b16 %v1754, %v1746
      %v1923 = vpack.c.b16 %v1763, %v1755
      %v1924 = vpack.c.b16 %v1764, %v1756
      %v1925 = vpack.c.b16 %v1765, %v1757
      %v1926 = vpack.c.b16 %v1766, %v1758
      %v1927 = vpack.c.b16 %v1767, %v1759
      %v1928 = vpack.c.b16 %v1768, %v1760
      %v1929 = vpack.c.b16 %v1769, %v1761
      %v1930 = vpack.c.b16 %v1770, %v1762
      %v1931 = vpack.c.b16 %v1779, %v1771
      %v1932 = vpack.c.b16 %v1780, %v1772
      %v1933 = vpack.c.b16 %v1781, %v1773
      %v1934 = vpack.c.b16 %v1782, %v1774
      %v1935 = vpack.c.b16 %v1783, %v1775
      %v1936 = vpack.c.b16 %v1784, %v1776
      %v1937 = vpack.c.b16 %v1785, %v1777
      %v1938 = vpack.c.b16 %v1786, %v1778
      %v1939 = vpack.c.b16 %v1795, %v1787
      %v1940 = vpack.c.b16 %v1796, %v1788
      %v1941 = vpack.c.b16 %v1797, %v1789
      %v1942 = vpack.c.b16 %v1798, %v1790
      %v1943 = vpack.c.b16 %v1799, %v1791
      %v1944 = vpack.c.b16 %v1800, %v1792
      %v1945 = vpack.c.b16 %v1801, %v1793
      %v1946 = vpack.c.b16 %v1802, %v1794
      %v1947 = vpack.c.b16 %v1811, %v1803
      %v1948 = vpack.c.b16 %v1812, %v1804
      %v1949 = vpack.c.b16 %v1813, %v1805
      %v1950 = vpack.c.b16 %v1814, %v1806
      %v1951 = vpack.c.b16 %v1815, %v1807
      %v1952 = vpack.c.b16 %v1816, %v1808
      %v1953 = vpack.c.b16 %v1817, %v1809
      %v1954 = vpack.c.b16 %v1818, %v1810
      %v1955 = vpack.c.b16 %v1827, %v1819
      %v1956 = vpack.c.b16 %v1828, %v1820
      %v1957 = vpack.c.b16 %v1829, %v1821
      %v1958 = vpack.c.b16 %v1830, %v1822
      %v1959 = vpack.c.b16 %v1831, %v1823
      %v1960 = vpack.c.b16 %v1832, %v1824
      %v1961 = vpack.c.b16 %v1833, %v1825
      %v1962 = vpack.c.b16 %v1834, %v1826
      %2091 = vmatprep.subr.bf16.mxu0 %v1892
      %2092 = vmatpush1.bf16.msra.mxu0 %v1891
      %2093 = vmatprep.subr.bf16.mxu0 %v1884
      %2094 = vmatpush1.bf16.msra.mxu0 %v1883
      %2095 = vmatprep.subr.bf16.mxu0 %v1876
      %2096 = vmatpush1.bf16.msra.mxu0 %v1875
      %2097 = vmatprep.subr.bf16.mxu0 %v1868
      %2098 = vmatpush1.bf16.msra.mxu0 %v1867
      %2099 = vmatprep.subr.bf16.mxu0 %v1860
      %2100 = vmatpush1.bf16.msra.mxu0 %v1859
      %2101 = vmatprep.subr.bf16.mxu0 %v1852
      %2102 = vmatpush1.bf16.msra.mxu0 %v1851
      %2103 = vmatprep.subr.bf16.mxu0 %v1844
      %2104 = vmatpush1.bf16.msra.mxu0 %v1843
      %2105 = vmatprep.subr.bf16.mxu0 %v1836
      %2106 = vmatpush1.bf16.msra.mxu0 %v1835
      %2107 = vmatprep.subr.bf16.mxu0 %v1956
      %2108 = vmatpush2.bf16.msra.mxu0 %v1955
      %2109 = vmatprep.subr.bf16.mxu0 %v1948
      %2110 = vmatpush2.bf16.msra.mxu0 %v1947
      %2111 = vmatprep.subr.bf16.mxu0 %v1940
      %2112 = vmatpush2.bf16.msra.mxu0 %v1939
      %2113 = vmatprep.subr.bf16.mxu0 %v1932
      %2114 = vmatpush2.bf16.msra.mxu0 %v1931
      %2115 = vmatprep.subr.bf16.mxu0 %v1924
      %2116 = vmatpush2.bf16.msra.mxu0 %v1923
      %2117 = vmatprep.subr.bf16.mxu0 %v1916
      %2118 = vmatpush2.bf16.msra.mxu0 %v1915
      %2119 = vmatprep.subr.bf16.mxu0 %v1908
      %2120 = vmatpush2.bf16.msra.mxu0 %v1907
      %2121 = vmatprep.subr.bf16.mxu0 %v1900
      %2122 = vmatpush2.bf16.msra.mxu0 %v1899
      %2123 = vmatprep.mubr.bf16.mxu0 %v1266
      %2124 = vmatmul.mubr.bf16.gmra.mxu0 %v1265
      %v2125 = vpop.f32.mrf.mxu0
      %v2126 = vadd.f32 %v1414, %v2125
      %v2127 = vpop.f32.mrf.mxu0
      %v2128 = vadd.f32 %v1418, %v2127
      %v2129 = vpop.f32.mrf.mxu0
      %v2130 = vadd.f32 %v1414, %v2129
      %v2131 = vpop.f32.mrf.mxu0
      %v2132 = vadd.f32 %v1418, %v2131
      %2133 = vmatprep.mubr.bf16.mxu0 %v1268
      %2134 = vmatmul.mubr.bf16.gmra.mxu0 %v1267
      %v2135 = vpop.f32.mrf.mxu0
      %v2136 = vadd.f32 %v1414, %v2135
      %v2137 = vpop.f32.mrf.mxu0
      %v2138 = vadd.f32 %v1418, %v2137
      %v2139 = vpop.f32.mrf.mxu0
      %v2140 = vadd.f32 %v1414, %v2139
      %v2141 = vpop.f32.mrf.mxu0
      %v2142 = vadd.f32 %v1418, %v2141
      %2143 = vmatprep.mubr.bf16.mxu0 %v1270
      %2144 = vmatmul.mubr.bf16.gmra.mxu0 %v1269
      %v2145 = vpop.f32.mrf.mxu0
      %v2146 = vadd.f32 %v1414, %v2145
      %v2147 = vpop.f32.mrf.mxu0
      %v2148 = vadd.f32 %v1418, %v2147
      %v2149 = vpop.f32.mrf.mxu0
      %v2150 = vadd.f32 %v1414, %v2149
      %v2151 = vpop.f32.mrf.mxu0
      %v2152 = vadd.f32 %v1418, %v2151
      %2153 = vmatprep.mubr.bf16.mxu0 %v1272
      %2154 = vmatmul.mubr.bf16.gmra.mxu0 %v1271
      %v2155 = vpop.f32.mrf.mxu0
      %v2156 = vadd.f32 %v1414, %v2155
      %v2157 = vpop.f32.mrf.mxu0
      %v2158 = vadd.f32 %v1418, %v2157
      %v2159 = vpop.f32.mrf.mxu0
      %v2160 = vadd.f32 %v1414, %v2159
      %v2161 = vpop.f32.mrf.mxu0
      %v2162 = vadd.f32 %v1418, %v2161
      %2163 = vmatprep.mubr.bf16.mxu0 %v1274
      %2164 = vmatmul.mubr.bf16.gmra.mxu0 %v1273
      %v2165 = vpop.f32.mrf.mxu0
      %v2166 = vadd.f32 %v1414, %v2165
      %v2167 = vpop.f32.mrf.mxu0
      %v2168 = vadd.f32 %v1418, %v2167
      %v2169 = vpop.f32.mrf.mxu0
      %v2170 = vadd.f32 %v1414, %v2169
      %v2171 = vpop.f32.mrf.mxu0
      %v2172 = vadd.f32 %v1418, %v2171
      %2173 = vmatprep.mubr.bf16.mxu0 %v1276
      %2174 = vmatmul.mubr.bf16.gmra.mxu0 %v1275
      %v2175 = vpop.f32.mrf.mxu0
      %v2176 = vadd.f32 %v1414, %v2175
      %v2177 = vpop.f32.mrf.mxu0
      %v2178 = vadd.f32 %v1418, %v2177
      %v2179 = vpop.f32.mrf.mxu0
      %v2180 = vadd.f32 %v1414, %v2179
      %v2181 = vpop.f32.mrf.mxu0
      %v2182 = vadd.f32 %v1418, %v2181
      %2183 = vmatprep.mubr.bf16.mxu0 %v1278
      %2184 = vmatmul.mubr.bf16.gmra.mxu0 %v1277
      %v2185 = vpop.f32.mrf.mxu0
      %v2186 = vadd.f32 %v1414, %v2185
      %v2187 = vpop.f32.mrf.mxu0
      %v2188 = vadd.f32 %v1418, %v2187
      %v2189 = vpop.f32.mrf.mxu0
      %v2190 = vadd.f32 %v1414, %v2189
      %v2191 = vpop.f32.mrf.mxu0
      %v2192 = vadd.f32 %v1418, %v2191
      %2193 = vmatprep.mubr.bf16.mxu0 %v1280
      %2194 = vmatmul.mubr.bf16.gmra.mxu0 %v1279
      %v2195 = vpop.f32.mrf.mxu0
      %v2196 = vadd.f32 %v1414, %v2195
      %v2197 = vpop.f32.mrf.mxu0
      %v2198 = vadd.f32 %v1418, %v2197
      %v2199 = vpop.f32.mrf.mxu0
      %v2200 = vadd.f32 %v1414, %v2199
      %v2201 = vpop.f32.mrf.mxu0
      %v2202 = vadd.f32 %v1418, %v2201
      %2203 = vdwg.mxu0
      %2204 = vmatprep.subr.bf16.mxu0 %v1894
      %2205 = vmatpush1.bf16.msra.mxu0 %v1893
      %2206 = vmatprep.subr.bf16.mxu0 %v1886
      %2207 = vmatpush1.bf16.msra.mxu0 %v1885
      %2208 = vmatprep.subr.bf16.mxu0 %v1878
      %2209 = vmatpush1.bf16.msra.mxu0 %v1877
      %2210 = vmatprep.subr.bf16.mxu0 %v1870
      %2211 = vmatpush1.bf16.msra.mxu0 %v1869
      %2212 = vmatprep.subr.bf16.mxu0 %v1862
      %2213 = vmatpush1.bf16.msra.mxu0 %v1861
      %2214 = vmatprep.subr.bf16.mxu0 %v1854
      %2215 = vmatpush1.bf16.msra.mxu0 %v1853
      %2216 = vmatprep.subr.bf16.mxu0 %v1846
      %2217 = vmatpush1.bf16.msra.mxu0 %v1845
      %2218 = vmatprep.subr.bf16.mxu0 %v1838
      %2219 = vmatpush1.bf16.msra.mxu0 %v1837
      %2220 = vmatprep.subr.bf16.mxu0 %v1958
      %2221 = vmatpush2.bf16.msra.mxu0 %v1957
      %2222 = vmatprep.subr.bf16.mxu0 %v1950
      %2223 = vmatpush2.bf16.msra.mxu0 %v1949
      %2224 = vmatprep.subr.bf16.mxu0 %v1942
      %2225 = vmatpush2.bf16.msra.mxu0 %v1941
      %2226 = vmatprep.subr.bf16.mxu0 %v1934
      %2227 = vmatpush2.bf16.msra.mxu0 %v1933
      %2228 = vmatprep.subr.bf16.mxu0 %v1926
      %2229 = vmatpush2.bf16.msra.mxu0 %v1925
      %2230 = vmatprep.subr.bf16.mxu0 %v1918
      %2231 = vmatpush2.bf16.msra.mxu0 %v1917
      %2232 = vmatprep.subr.bf16.mxu0 %v1910
      %2233 = vmatpush2.bf16.msra.mxu0 %v1909
      %2234 = vmatprep.subr.bf16.mxu0 %v1902
      %2235 = vmatpush2.bf16.msra.mxu0 %v1901
      %2236 = vmatprep.mubr.bf16.mxu0 %v1266
      %2237 = vmatmul.mubr.bf16.gmra.mxu0 %v1265
      %v2238 = vpop.f32.mrf.mxu0
      %v2239 = vadd.f32 %v1422, %v2238
      %v2240 = vpop.f32.mrf.mxu0
      %v2241 = vadd.f32 %v1426, %v2240
      %v2242 = vpop.f32.mrf.mxu0
      %v2243 = vadd.f32 %v1422, %v2242
      %v2244 = vpop.f32.mrf.mxu0
      %v2245 = vadd.f32 %v1426, %v2244
      %2246 = vmatprep.mubr.bf16.mxu0 %v1268
      %2247 = vmatmul.mubr.bf16.gmra.mxu0 %v1267
      %v2248 = vpop.f32.mrf.mxu0
      %v2249 = vadd.f32 %v1422, %v2248
      %v2250 = vpop.f32.mrf.mxu0
      %v2251 = vadd.f32 %v1426, %v2250
      %v2252 = vpop.f32.mrf.mxu0
      %v2253 = vadd.f32 %v1422, %v2252
      %v2254 = vpop.f32.mrf.mxu0
      %v2255 = vadd.f32 %v1426, %v2254
      %2256 = vmatprep.mubr.bf16.mxu0 %v1270
      %2257 = vmatmul.mubr.bf16.gmra.mxu0 %v1269
      %v2258 = vpop.f32.mrf.mxu0
      %v2259 = vadd.f32 %v1422, %v2258
      %v2260 = vpop.f32.mrf.mxu0
      %v2261 = vadd.f32 %v1426, %v2260
      %v2262 = vpop.f32.mrf.mxu0
      %v2263 = vadd.f32 %v1422, %v2262
      %v2264 = vpop.f32.mrf.mxu0
      %v2265 = vadd.f32 %v1426, %v2264
      %2266 = vmatprep.mubr.bf16.mxu0 %v1272
      %2267 = vmatmul.mubr.bf16.gmra.mxu0 %v1271
      %v2268 = vpop.f32.mrf.mxu0
      %v2269 = vadd.f32 %v1422, %v2268
      %v2270 = vpop.f32.mrf.mxu0
      %v2271 = vadd.f32 %v1426, %v2270
      %v2272 = vpop.f32.mrf.mxu0
      %v2273 = vadd.f32 %v1422, %v2272
      %v2274 = vpop.f32.mrf.mxu0
      %v2275 = vadd.f32 %v1426, %v2274
      %2276 = vmatprep.mubr.bf16.mxu0 %v1274
      %2277 = vmatmul.mubr.bf16.gmra.mxu0 %v1273
      %v2278 = vpop.f32.mrf.mxu0
      %v2279 = vadd.f32 %v1422, %v2278
      %v2280 = vpop.f32.mrf.mxu0
      %v2281 = vadd.f32 %v1426, %v2280
      %v2282 = vpop.f32.mrf.mxu0
      %v2283 = vadd.f32 %v1422, %v2282
      %v2284 = vpop.f32.mrf.mxu0
      %v2285 = vadd.f32 %v1426, %v2284
      %2286 = vmatprep.mubr.bf16.mxu0 %v1276
      %2287 = vmatmul.mubr.bf16.gmra.mxu0 %v1275
      %v2288 = vpop.f32.mrf.mxu0
      %v2289 = vadd.f32 %v1422, %v2288
      %v2290 = vpop.f32.mrf.mxu0
      %v2291 = vadd.f32 %v1426, %v2290
      %v2292 = vpop.f32.mrf.mxu0
      %v2293 = vadd.f32 %v1422, %v2292
      %v2294 = vpop.f32.mrf.mxu0
      %v2295 = vadd.f32 %v1426, %v2294
      %2296 = vmatprep.mubr.bf16.mxu0 %v1278
      %2297 = vmatmul.mubr.bf16.gmra.mxu0 %v1277
      %v2298 = vpop.f32.mrf.mxu0
      %v2299 = vadd.f32 %v1422, %v2298
      %v2300 = vpop.f32.mrf.mxu0
      %v2301 = vadd.f32 %v1426, %v2300
      %v2302 = vpop.f32.mrf.mxu0
      %v2303 = vadd.f32 %v1422, %v2302
      %v2304 = vpop.f32.mrf.mxu0
      %v2305 = vadd.f32 %v1426, %v2304
      %2306 = vmatprep.mubr.bf16.mxu0 %v1280
      %2307 = vmatmul.mubr.bf16.gmra.mxu0 %v1279
      %v2308 = vpop.f32.mrf.mxu0
      %v2309 = vadd.f32 %v1422, %v2308
      %v2310 = vpop.f32.mrf.mxu0
      %v2311 = vadd.f32 %v1426, %v2310
      %v2312 = vpop.f32.mrf.mxu0
      %v2313 = vadd.f32 %v1422, %v2312
      %v2314 = vpop.f32.mrf.mxu0
      %v2315 = vadd.f32 %v1426, %v2314
      %2316 = vdwg.mxu0
      %2317 = vmatprep.subr.bf16.mxu0 %v1896
      %2318 = vmatpush1.bf16.msra.mxu0 %v1895
      %2319 = vmatprep.subr.bf16.mxu0 %v1888
      %2320 = vmatpush1.bf16.msra.mxu0 %v1887
      %2321 = vmatprep.subr.bf16.mxu0 %v1880
      %2322 = vmatpush1.bf16.msra.mxu0 %v1879
      %2323 = vmatprep.subr.bf16.mxu0 %v1872
      %2324 = vmatpush1.bf16.msra.mxu0 %v1871
      %2325 = vmatprep.subr.bf16.mxu0 %v1864
      %2326 = vmatpush1.bf16.msra.mxu0 %v1863
      %2327 = vmatprep.subr.bf16.mxu0 %v1856
      %2328 = vmatpush1.bf16.msra.mxu0 %v1855
      %2329 = vmatprep.subr.bf16.mxu0 %v1848
      %2330 = vmatpush1.bf16.msra.mxu0 %v1847
      %2331 = vmatprep.subr.bf16.mxu0 %v1840
      %2332 = vmatpush1.bf16.msra.mxu0 %v1839
      %2333 = vmatprep.subr.bf16.mxu0 %v1960
      %2334 = vmatpush2.bf16.msra.mxu0 %v1959
      %2335 = vmatprep.subr.bf16.mxu0 %v1952
      %2336 = vmatpush2.bf16.msra.mxu0 %v1951
      %2337 = vmatprep.subr.bf16.mxu0 %v1944
      %2338 = vmatpush2.bf16.msra.mxu0 %v1943
      %2339 = vmatprep.subr.bf16.mxu0 %v1936
      %2340 = vmatpush2.bf16.msra.mxu0 %v1935
      %2341 = vmatprep.subr.bf16.mxu0 %v1928
      %2342 = vmatpush2.bf16.msra.mxu0 %v1927
      %2343 = vmatprep.subr.bf16.mxu0 %v1920
      %2344 = vmatpush2.bf16.msra.mxu0 %v1919
      %2345 = vmatprep.subr.bf16.mxu0 %v1912
      %2346 = vmatpush2.bf16.msra.mxu0 %v1911
      %2347 = vmatprep.subr.bf16.mxu0 %v1904
      %2348 = vmatpush2.bf16.msra.mxu0 %v1903
      %2349 = vmatprep.mubr.bf16.mxu0 %v1266
      %2350 = vmatmul.mubr.bf16.gmra.mxu0 %v1265
      %v2351 = vpop.f32.mrf.mxu0
      %v2352 = vadd.f32 %v1430, %v2351
      %v2353 = vpop.f32.mrf.mxu0
      %v2354 = vadd.f32 %v1434, %v2353
      %v2355 = vpop.f32.mrf.mxu0
      %v2356 = vadd.f32 %v1430, %v2355
      %v2357 = vpop.f32.mrf.mxu0
      %v2358 = vadd.f32 %v1434, %v2357
      %2359 = vmatprep.mubr.bf16.mxu0 %v1268
      %2360 = vmatmul.mubr.bf16.gmra.mxu0 %v1267
      %v2361 = vpop.f32.mrf.mxu0
      %v2362 = vadd.f32 %v1430, %v2361
      %v2363 = vpop.f32.mrf.mxu0
      %v2364 = vadd.f32 %v1434, %v2363
      %v2365 = vpop.f32.mrf.mxu0
      %v2366 = vadd.f32 %v1430, %v2365
      %v2367 = vpop.f32.mrf.mxu0
      %v2368 = vadd.f32 %v1434, %v2367
      %2369 = vmatprep.mubr.bf16.mxu0 %v1270
      %2370 = vmatmul.mubr.bf16.gmra.mxu0 %v1269
      %v2371 = vpop.f32.mrf.mxu0
      %v2372 = vadd.f32 %v1430, %v2371
      %v2373 = vpop.f32.mrf.mxu0
      %v2374 = vadd.f32 %v1434, %v2373
      %v2375 = vpop.f32.mrf.mxu0
      %v2376 = vadd.f32 %v1430, %v2375
      %v2377 = vpop.f32.mrf.mxu0
      %v2378 = vadd.f32 %v1434, %v2377
      %2379 = vmatprep.mubr.bf16.mxu0 %v1272
      %2380 = vmatmul.mubr.bf16.gmra.mxu0 %v1271
      %v2381 = vpop.f32.mrf.mxu0
      %v2382 = vadd.f32 %v1430, %v2381
      %v2383 = vpop.f32.mrf.mxu0
      %v2384 = vadd.f32 %v1434, %v2383
      %v2385 = vpop.f32.mrf.mxu0
      %v2386 = vadd.f32 %v1430, %v2385
      %v2387 = vpop.f32.mrf.mxu0
      %v2388 = vadd.f32 %v1434, %v2387
      %2389 = vmatprep.mubr.bf16.mxu0 %v1274
      %2390 = vmatmul.mubr.bf16.gmra.mxu0 %v1273
      %v2391 = vpop.f32.mrf.mxu0
      %v2392 = vadd.f32 %v1430, %v2391
      %v2393 = vpop.f32.mrf.mxu0
      %v2394 = vadd.f32 %v1434, %v2393
      %v2395 = vpop.f32.mrf.mxu0
      %v2396 = vadd.f32 %v1430, %v2395
      %v2397 = vpop.f32.mrf.mxu0
      %v2398 = vadd.f32 %v1434, %v2397
      %2399 = vmatprep.mubr.bf16.mxu0 %v1276
      %2400 = vmatmul.mubr.bf16.gmra.mxu0 %v1275
      %v2401 = vpop.f32.mrf.mxu0
      %v2402 = vadd.f32 %v1430, %v2401
      %v2403 = vpop.f32.mrf.mxu0
      %v2404 = vadd.f32 %v1434, %v2403
      %v2405 = vpop.f32.mrf.mxu0
      %v2406 = vadd.f32 %v1430, %v2405
      %v2407 = vpop.f32.mrf.mxu0
      %v2408 = vadd.f32 %v1434, %v2407
      %2409 = vmatprep.mubr.bf16.mxu0 %v1278
      %2410 = vmatmul.mubr.bf16.gmra.mxu0 %v1277
      %v2411 = vpop.f32.mrf.mxu0
      %v2412 = vadd.f32 %v1430, %v2411
      %v2413 = vpop.f32.mrf.mxu0
      %v2414 = vadd.f32 %v1434, %v2413
      %v2415 = vpop.f32.mrf.mxu0
      %v2416 = vadd.f32 %v1430, %v2415
      %v2417 = vpop.f32.mrf.mxu0
      %v2418 = vadd.f32 %v1434, %v2417
      %2419 = vmatprep.mubr.bf16.mxu0 %v1280
      %2420 = vmatmul.mubr.bf16.gmra.mxu0 %v1279
      %v2421 = vpop.f32.mrf.mxu0
      %v2422 = vadd.f32 %v1430, %v2421
      %v2423 = vpop.f32.mrf.mxu0
      %v2424 = vadd.f32 %v1434, %v2423
      %v2425 = vpop.f32.mrf.mxu0
      %v2426 = vadd.f32 %v1430, %v2425
      %v2427 = vpop.f32.mrf.mxu0
      %v2428 = vadd.f32 %v1434, %v2427
      %2429 = vdwg.mxu0
      %2430 = vmatprep.subr.bf16.mxu0 %v1898
      %2431 = vmatpush1.bf16.msra.mxu0 %v1897
      %2432 = vmatprep.subr.bf16.mxu0 %v1890
      %2433 = vmatpush1.bf16.msra.mxu0 %v1889
      %2434 = vmatprep.subr.bf16.mxu0 %v1882
      %2435 = vmatpush1.bf16.msra.mxu0 %v1881
      %2436 = vmatprep.subr.bf16.mxu0 %v1874
      %2437 = vmatpush1.bf16.msra.mxu0 %v1873
      %2438 = vmatprep.subr.bf16.mxu0 %v1866
      %2439 = vmatpush1.bf16.msra.mxu0 %v1865
      %2440 = vmatprep.subr.bf16.mxu0 %v1858
      %2441 = vmatpush1.bf16.msra.mxu0 %v1857
      %2442 = vmatprep.subr.bf16.mxu0 %v1850
      %2443 = vmatpush1.bf16.msra.mxu0 %v1849
      %2444 = vmatprep.subr.bf16.mxu0 %v1842
      %2445 = vmatpush1.bf16.msra.mxu0 %v1841
      %2446 = vmatprep.subr.bf16.mxu0 %v1962
      %2447 = vmatpush2.bf16.msra.mxu0 %v1961
      %2448 = vmatprep.subr.bf16.mxu0 %v1954
      %2449 = vmatpush2.bf16.msra.mxu0 %v1953
      %2450 = vmatprep.subr.bf16.mxu0 %v1946
      %2451 = vmatpush2.bf16.msra.mxu0 %v1945
      %2452 = vmatprep.subr.bf16.mxu0 %v1938
      %2453 = vmatpush2.bf16.msra.mxu0 %v1937
      %2454 = vmatprep.subr.bf16.mxu0 %v1930
      %2455 = vmatpush2.bf16.msra.mxu0 %v1929
      %2456 = vmatprep.subr.bf16.mxu0 %v1922
      %2457 = vmatpush2.bf16.msra.mxu0 %v1921
      %2458 = vmatprep.subr.bf16.mxu0 %v1914
      %2459 = vmatpush2.bf16.msra.mxu0 %v1913
      %2460 = vmatprep.subr.bf16.mxu0 %v1906
      %2461 = vmatpush2.bf16.msra.mxu0 %v1905
      %2462 = vmatprep.mubr.bf16.mxu0 %v1266
      %2463 = vmatmul.mubr.bf16.gmra.mxu0 %v1265
      %v2464 = vpop.f32.mrf.mxu0
      %v2465 = vadd.f32 %v1438, %v2464
      %v2466 = vpop.f32.mrf.mxu0
      %v2467 = vadd.f32 %v1442, %v2466
      %v2468 = vpop.f32.mrf.mxu0
      %v2469 = vadd.f32 %v1438, %v2468
      %v2470 = vpop.f32.mrf.mxu0
      %v2471 = vadd.f32 %v1442, %v2470
      %2472 = vmatprep.mubr.bf16.mxu0 %v1268
      %2473 = vmatmul.mubr.bf16.gmra.mxu0 %v1267
      %v2474 = vpop.f32.mrf.mxu0
      %v2475 = vadd.f32 %v1438, %v2474
      %v2476 = vpop.f32.mrf.mxu0
      %v2477 = vadd.f32 %v1442, %v2476
      %v2478 = vpop.f32.mrf.mxu0
      %v2479 = vadd.f32 %v1438, %v2478
      %v2480 = vpop.f32.mrf.mxu0
      %v2481 = vadd.f32 %v1442, %v2480
      %2482 = vmatprep.mubr.bf16.mxu0 %v1270
      %2483 = vmatmul.mubr.bf16.gmra.mxu0 %v1269
      %v2484 = vpop.f32.mrf.mxu0
      %v2485 = vadd.f32 %v1438, %v2484
      %v2486 = vpop.f32.mrf.mxu0
      %v2487 = vadd.f32 %v1442, %v2486
      %v2488 = vpop.f32.mrf.mxu0
      %v2489 = vadd.f32 %v1438, %v2488
      %v2490 = vpop.f32.mrf.mxu0
      %v2491 = vadd.f32 %v1442, %v2490
      %2492 = vmatprep.mubr.bf16.mxu0 %v1272
      %2493 = vmatmul.mubr.bf16.gmra.mxu0 %v1271
      %v2494 = vpop.f32.mrf.mxu0
      %v2495 = vadd.f32 %v1438, %v2494
      %v2496 = vpop.f32.mrf.mxu0
      %v2497 = vadd.f32 %v1442, %v2496
      %v2498 = vpop.f32.mrf.mxu0
      %v2499 = vadd.f32 %v1438, %v2498
      %v2500 = vpop.f32.mrf.mxu0
      %v2501 = vadd.f32 %v1442, %v2500
      %2502 = vmatprep.mubr.bf16.mxu0 %v1274
      %2503 = vmatmul.mubr.bf16.gmra.mxu0 %v1273
      %v2504 = vpop.f32.mrf.mxu0
      %v2505 = vadd.f32 %v1438, %v2504
      %v2506 = vpop.f32.mrf.mxu0
      %v2507 = vadd.f32 %v1442, %v2506
      %v2508 = vpop.f32.mrf.mxu0
      %v2509 = vadd.f32 %v1438, %v2508
      %v2510 = vpop.f32.mrf.mxu0
      %v2511 = vadd.f32 %v1442, %v2510
      %2512 = vmatprep.mubr.bf16.mxu0 %v1276
      %2513 = vmatmul.mubr.bf16.gmra.mxu0 %v1275
      %v2514 = vpop.f32.mrf.mxu0
      %v2515 = vadd.f32 %v1438, %v2514
      %v2516 = vpop.f32.mrf.mxu0
      %v2517 = vadd.f32 %v1442, %v2516
      %v2518 = vpop.f32.mrf.mxu0
      %v2519 = vadd.f32 %v1438, %v2518
      %v2520 = vpop.f32.mrf.mxu0
      %v2521 = vadd.f32 %v1442, %v2520
      %2522 = vmatprep.mubr.bf16.mxu0 %v1278
      %2523 = vmatmul.mubr.bf16.gmra.mxu0 %v1277
      %v2524 = vpop.f32.mrf.mxu0
      %v2525 = vadd.f32 %v1438, %v2524
      %v2526 = vpop.f32.mrf.mxu0
      %v2527 = vadd.f32 %v1442, %v2526
      %v2528 = vpop.f32.mrf.mxu0
      %v2529 = vadd.f32 %v1438, %v2528
      %v2530 = vpop.f32.mrf.mxu0
      %v2531 = vadd.f32 %v1442, %v2530
      %2532 = vmatprep.mubr.bf16.mxu0 %v1280
      %2533 = vmatmul.mubr.bf16.gmra.mxu0 %v1279
      %v2534 = vpop.f32.mrf.mxu0
      %v2535 = vadd.f32 %v1438, %v2534
      %v2536 = vpop.f32.mrf.mxu0
      %v2537 = vadd.f32 %v1442, %v2536
      %v2538 = vpop.f32.mrf.mxu0
      %v2539 = vadd.f32 %v1438, %v2538
      %v2540 = vpop.f32.mrf.mxu0
      %v2541 = vadd.f32 %v1442, %v2540
      %2542 = vdwg.mxu0
      %v2543 = vmul.f32 %v2126, 1.702
      %v2544 = vmul.f32 %v2128, 1.702
      %v2545 = vmul.f32 %v2239, 1.702
      %v2546 = vmul.f32 %v2241, 1.702
      %v2547 = vmul.f32 %v2352, 1.702
      %v2548 = vmul.f32 %v2354, 1.702
      %v2549 = vmul.f32 %v2465, 1.702
      %v2550 = vmul.f32 %v2467, 1.702
      %v2551 = vmul.f32 %v2130, 1.702
      %v2552 = vmul.f32 %v2132, 1.702
      %v2553 = vmul.f32 %v2243, 1.702
      %v2554 = vmul.f32 %v2245, 1.702
      %v2555 = vmul.f32 %v2356, 1.702
      %v2556 = vmul.f32 %v2358, 1.702
      %v2557 = vmul.f32 %v2469, 1.702
      %v2558 = vmul.f32 %v2471, 1.702
      %v2559 = vmul.f32 %v2136, 1.702
      %v2560 = vmul.f32 %v2138, 1.702
      %v2561 = vmul.f32 %v2249, 1.702
      %v2562 = vmul.f32 %v2251, 1.702
      %v2563 = vmul.f32 %v2362, 1.702
      %v2564 = vmul.f32 %v2364, 1.702
      %v2565 = vmul.f32 %v2475, 1.702
      %v2566 = vmul.f32 %v2477, 1.702
      %v2567 = vmul.f32 %v2140, 1.702
      %v2568 = vmul.f32 %v2142, 1.702
      %v2569 = vmul.f32 %v2253, 1.702
      %v2570 = vmul.f32 %v2255, 1.702
      %v2571 = vmul.f32 %v2366, 1.702
      %v2572 = vmul.f32 %v2368, 1.702
      %v2573 = vmul.f32 %v2479, 1.702
      %v2574 = vmul.f32 %v2481, 1.702
      %v2575 = vmul.f32 %v2146, 1.702
      %v2576 = vmul.f32 %v2148, 1.702
      %v2577 = vmul.f32 %v2259, 1.702
      %v2578 = vmul.f32 %v2261, 1.702
      %v2579 = vmul.f32 %v2372, 1.702
      %v2580 = vmul.f32 %v2374, 1.702
      %v2581 = vmul.f32 %v2485, 1.702
      %v2582 = vmul.f32 %v2487, 1.702
      %v2583 = vmul.f32 %v2150, 1.702
      %v2584 = vmul.f32 %v2152, 1.702
      %v2585 = vmul.f32 %v2263, 1.702
      %v2586 = vmul.f32 %v2265, 1.702
      %v2587 = vmul.f32 %v2376, 1.702
      %v2588 = vmul.f32 %v2378, 1.702
      %v2589 = vmul.f32 %v2489, 1.702
      %v2590 = vmul.f32 %v2491, 1.702
      %v2591 = vmul.f32 %v2156, 1.702
      %v2592 = vmul.f32 %v2158, 1.702
      %v2593 = vmul.f32 %v2269, 1.702
      %v2594 = vmul.f32 %v2271, 1.702
      %v2595 = vmul.f32 %v2382, 1.702
      %v2596 = vmul.f32 %v2384, 1.702
      %v2597 = vmul.f32 %v2495, 1.702
      %v2598 = vmul.f32 %v2497, 1.702
      %v2599 = vmul.f32 %v2160, 1.702
      %v2600 = vmul.f32 %v2162, 1.702
      %v2601 = vmul.f32 %v2273, 1.702
      %v2602 = vmul.f32 %v2275, 1.702
      %v2603 = vmul.f32 %v2386, 1.702
      %v2604 = vmul.f32 %v2388, 1.702
      %v2605 = vmul.f32 %v2499, 1.702
      %v2606 = vmul.f32 %v2501, 1.702
      %v2607 = vmul.f32 %v2166, 1.702
      %v2608 = vmul.f32 %v2168, 1.702
      %v2609 = vmul.f32 %v2279, 1.702
      %v2610 = vmul.f32 %v2281, 1.702
      %v2611 = vmul.f32 %v2392, 1.702
      %v2612 = vmul.f32 %v2394, 1.702
      %v2613 = vmul.f32 %v2505, 1.702
      %v2614 = vmul.f32 %v2507, 1.702
      %v2615 = vmul.f32 %v2170, 1.702
      %v2616 = vmul.f32 %v2172, 1.702
      %v2617 = vmul.f32 %v2283, 1.702
      %v2618 = vmul.f32 %v2285, 1.702
      %v2619 = vmul.f32 %v2396, 1.702
      %v2620 = vmul.f32 %v2398, 1.702
      %v2621 = vmul.f32 %v2509, 1.702
      %v2622 = vmul.f32 %v2511, 1.702
      %v2623 = vmul.f32 %v2176, 1.702
      %v2624 = vmul.f32 %v2178, 1.702
      %v2625 = vmul.f32 %v2289, 1.702
      %v2626 = vmul.f32 %v2291, 1.702
      %v2627 = vmul.f32 %v2402, 1.702
      %v2628 = vmul.f32 %v2404, 1.702
      %v2629 = vmul.f32 %v2515, 1.702
      %v2630 = vmul.f32 %v2517, 1.702
      %v2631 = vmul.f32 %v2180, 1.702
      %v2632 = vmul.f32 %v2182, 1.702
      %v2633 = vmul.f32 %v2293, 1.702
      %v2634 = vmul.f32 %v2295, 1.702
      %v2635 = vmul.f32 %v2406, 1.702
      %v2636 = vmul.f32 %v2408, 1.702
      %v2637 = vmul.f32 %v2519, 1.702
      %v2638 = vmul.f32 %v2521, 1.702
      %v2639 = vmul.f32 %v2186, 1.702
      %v2640 = vmul.f32 %v2188, 1.702
      %v2641 = vmul.f32 %v2299, 1.702
      %v2642 = vmul.f32 %v2301, 1.702
      %v2643 = vmul.f32 %v2412, 1.702
      %v2644 = vmul.f32 %v2414, 1.702
      %v2645 = vmul.f32 %v2525, 1.702
      %v2646 = vmul.f32 %v2527, 1.702
      %v2647 = vmul.f32 %v2190, 1.702
      %v2648 = vmul.f32 %v2192, 1.702
      %v2649 = vmul.f32 %v2303, 1.702
      %v2650 = vmul.f32 %v2305, 1.702
      %v2651 = vmul.f32 %v2416, 1.702
      %v2652 = vmul.f32 %v2418, 1.702
      %v2653 = vmul.f32 %v2529, 1.702
      %v2654 = vmul.f32 %v2531, 1.702
      %v2655 = vmul.f32 %v2196, 1.702
      %v2656 = vmul.f32 %v2198, 1.702
      %v2657 = vmul.f32 %v2309, 1.702
      %v2658 = vmul.f32 %v2311, 1.702
      %v2659 = vmul.f32 %v2422, 1.702
      %v2660 = vmul.f32 %v2424, 1.702
      %v2661 = vmul.f32 %v2535, 1.702
      %v2662 = vmul.f32 %v2537, 1.702
      %v2663 = vmul.f32 %v2200, 1.702
      %v2664 = vmul.f32 %v2202, 1.702
      %v2665 = vmul.f32 %v2313, 1.702
      %v2666 = vmul.f32 %v2315, 1.702
      %v2667 = vmul.f32 %v2426, 1.702
      %v2668 = vmul.f32 %v2428, 1.702
      %v2669 = vmul.f32 %v2539, 1.702
      %v2670 = vmul.f32 %v2541, 1.702
      %v2671 = vxor.u32 %v2543, 2147483648
      %v2672 = vxor.u32 %v2544, 2147483648
      %v2673 = vxor.u32 %v2545, 2147483648
      %v2674 = vxor.u32 %v2546, 2147483648
      %v2675 = vxor.u32 %v2547, 2147483648
      %v2676 = vxor.u32 %v2548, 2147483648
      %v2677 = vxor.u32 %v2549, 2147483648
      %v2678 = vxor.u32 %v2550, 2147483648
      %v2679 = vxor.u32 %v2551, 2147483648
      %v2680 = vxor.u32 %v2552, 2147483648
      %v2681 = vxor.u32 %v2553, 2147483648
      %v2682 = vxor.u32 %v2554, 2147483648
      %v2683 = vxor.u32 %v2555, 2147483648
      %v2684 = vxor.u32 %v2556, 2147483648
      %v2685 = vxor.u32 %v2557, 2147483648
      %v2686 = vxor.u32 %v2558, 2147483648
      %v2687 = vxor.u32 %v2559, 2147483648
      %v2688 = vxor.u32 %v2560, 2147483648
      %v2689 = vxor.u32 %v2561, 2147483648
      %v2690 = vxor.u32 %v2562, 2147483648
      %v2691 = vxor.u32 %v2563, 2147483648
      %v2692 = vxor.u32 %v2564, 2147483648
      %v2693 = vxor.u32 %v2565, 2147483648
      %v2694 = vxor.u32 %v2566, 2147483648
      %v2695 = vxor.u32 %v2567, 2147483648
      %v2696 = vxor.u32 %v2568, 2147483648
      %v2697 = vxor.u32 %v2569, 2147483648
      %v2698 = vxor.u32 %v2570, 2147483648
      %v2699 = vxor.u32 %v2571, 2147483648
      %v2700 = vxor.u32 %v2572, 2147483648
      %v2701 = vxor.u32 %v2573, 2147483648
      %v2702 = vxor.u32 %v2574, 2147483648
      %v2703 = vxor.u32 %v2575, 2147483648
      %v2704 = vxor.u32 %v2576, 2147483648
      %v2705 = vxor.u32 %v2577, 2147483648
      %v2706 = vxor.u32 %v2578, 2147483648
      %v2707 = vxor.u32 %v2579, 2147483648
      %v2708 = vxor.u32 %v2580, 2147483648
      %v2709 = vxor.u32 %v2581, 2147483648
      %v2710 = vxor.u32 %v2582, 2147483648
      %v2711 = vxor.u32 %v2583, 2147483648
      %v2712 = vxor.u32 %v2584, 2147483648
      %v2713 = vxor.u32 %v2585, 2147483648
      %v2714 = vxor.u32 %v2586, 2147483648
      %v2715 = vxor.u32 %v2587, 2147483648
      %v2716 = vxor.u32 %v2588, 2147483648
      %v2717 = vxor.u32 %v2589, 2147483648
      %v2718 = vxor.u32 %v2590, 2147483648
      %v2719 = vxor.u32 %v2591, 2147483648
      %v2720 = vxor.u32 %v2592, 2147483648
      %v2721 = vxor.u32 %v2593, 2147483648
      %v2722 = vxor.u32 %v2594, 2147483648
      %v2723 = vxor.u32 %v2595, 2147483648
      %v2724 = vxor.u32 %v2596, 2147483648
      %v2725 = vxor.u32 %v2597, 2147483648
      %v2726 = vxor.u32 %v2598, 2147483648
      %v2727 = vxor.u32 %v2599, 2147483648
      %v2728 = vxor.u32 %v2600, 2147483648
      %v2729 = vxor.u32 %v2601, 2147483648
      %v2730 = vxor.u32 %v2602, 2147483648
      %v2731 = vxor.u32 %v2603, 2147483648
      %v2732 = vxor.u32 %v2604, 2147483648
      %v2733 = vxor.u32 %v2605, 2147483648
      %v2734 = vxor.u32 %v2606, 2147483648
      %v2735 = vxor.u32 %v2607, 2147483648
      %v2736 = vxor.u32 %v2608, 2147483648
      %v2737 = vxor.u32 %v2609, 2147483648
      %v2738 = vxor.u32 %v2610, 2147483648
      %v2739 = vxor.u32 %v2611, 2147483648
      %v2740 = vxor.u32 %v2612, 2147483648
      %v2741 = vxor.u32 %v2613, 2147483648
      %v2742 = vxor.u32 %v2614, 2147483648
      %v2743 = vxor.u32 %v2615, 2147483648
      %v2744 = vxor.u32 %v2616, 2147483648
      %v2745 = vxor.u32 %v2617, 2147483648
      %v2746 = vxor.u32 %v2618, 2147483648
      %v2747 = vxor.u32 %v2619, 2147483648
      %v2748 = vxor.u32 %v2620, 2147483648
      %v2749 = vxor.u32 %v2621, 2147483648
      %v2750 = vxor.u32 %v2622, 2147483648
      %v2751 = vxor.u32 %v2623, 2147483648
      %v2752 = vxor.u32 %v2624, 2147483648
      %v2753 = vxor.u32 %v2625, 2147483648
      %v2754 = vxor.u32 %v2626, 2147483648
      %v2755 = vxor.u32 %v2627, 2147483648
      %v2756 = vxor.u32 %v2628, 2147483648
      %v2757 = vxor.u32 %v2629, 2147483648
      %v2758 = vxor.u32 %v2630, 2147483648
      %v2759 = vxor.u32 %v2631, 2147483648
      %v2760 = vxor.u32 %v2632, 2147483648
      %v2761 = vxor.u32 %v2633, 2147483648
      %v2762 = vxor.u32 %v2634, 2147483648
      %v2763 = vxor.u32 %v2635, 2147483648
      %v2764 = vxor.u32 %v2636, 2147483648
      %v2765 = vxor.u32 %v2637, 2147483648
      %v2766 = vxor.u32 %v2638, 2147483648
      %v2767 = vxor.u32 %v2639, 2147483648
      %v2768 = vxor.u32 %v2640, 2147483648
      %v2769 = vxor.u32 %v2641, 2147483648
      %v2770 = vxor.u32 %v2642, 2147483648
      %v2771 = vxor.u32 %v2643, 2147483648
      %v2772 = vxor.u32 %v2644, 2147483648
      %v2773 = vxor.u32 %v2645, 2147483648
      %v2774 = vxor.u32 %v2646, 2147483648
      %v2775 = vxor.u32 %v2647, 2147483648
      %v2776 = vxor.u32 %v2648, 2147483648
      %v2777 = vxor.u32 %v2649, 2147483648
      %v2778 = vxor.u32 %v2650, 2147483648
      %v2779 = vxor.u32 %v2651, 2147483648
      %v2780 = vxor.u32 %v2652, 2147483648
      %v2781 = vxor.u32 %v2653, 2147483648
      %v2782 = vxor.u32 %v2654, 2147483648
      %v2783 = vxor.u32 %v2655, 2147483648
      %v2784 = vxor.u32 %v2656, 2147483648
      %v2785 = vxor.u32 %v2657, 2147483648
      %v2786 = vxor.u32 %v2658, 2147483648
      %v2787 = vxor.u32 %v2659, 2147483648
      %v2788 = vxor.u32 %v2660, 2147483648
      %v2789 = vxor.u32 %v2661, 2147483648
      %v2790 = vxor.u32 %v2662, 2147483648
      %v2791 = vxor.u32 %v2663, 2147483648
      %v2792 = vxor.u32 %v2664, 2147483648
      %v2793 = vxor.u32 %v2665, 2147483648
      %v2794 = vxor.u32 %v2666, 2147483648
      %v2795 = vxor.u32 %v2667, 2147483648
      %v2796 = vxor.u32 %v2668, 2147483648
      %v2797 = vxor.u32 %v2669, 2147483648
      %v2798 = vxor.u32 %v2670, 2147483648
      %v2799 = vmul.f32 %v2671, 1.442695
      %v2800 = vpow.pop %v2799
      %v2801 = vmul.f32 %v2672, 1.442695
      %v2802 = vpow.pop %v2801
      %v2803 = vmul.f32 %v2673, 1.442695
      %v2804 = vpow.pop %v2803
      %v2805 = vmul.f32 %v2674, 1.442695
      %v2806 = vpow.pop %v2805
      %v2807 = vmul.f32 %v2675, 1.442695
      %v2808 = vpow.pop %v2807
      %v2809 = vmul.f32 %v2676, 1.442695
      %v2810 = vpow.pop %v2809
      %v2811 = vmul.f32 %v2677, 1.442695
      %v2812 = vpow.pop %v2811
      %v2813 = vmul.f32 %v2678, 1.442695
      %v2814 = vpow.pop %v2813
      %v2815 = vmul.f32 %v2679, 1.442695
      %v2816 = vpow.pop %v2815
      %v2817 = vmul.f32 %v2680, 1.442695
      %v2818 = vpow.pop %v2817
      %v2819 = vmul.f32 %v2681, 1.442695
      %v2820 = vpow.pop %v2819
      %v2821 = vmul.f32 %v2682, 1.442695
      %v2822 = vpow.pop %v2821
      %v2823 = vmul.f32 %v2683, 1.442695
      %v2824 = vpow.pop %v2823
      %v2825 = vmul.f32 %v2684, 1.442695
      %v2826 = vpow.pop %v2825
      %v2827 = vmul.f32 %v2685, 1.442695
      %v2828 = vpow.pop %v2827
      %v2829 = vmul.f32 %v2686, 1.442695
      %v2830 = vpow.pop %v2829
      %v2831 = vmul.f32 %v2687, 1.442695
      %v2832 = vpow.pop %v2831
      %v2833 = vmul.f32 %v2688, 1.442695
      %v2834 = vpow.pop %v2833
      %v2835 = vmul.f32 %v2689, 1.442695
      %v2836 = vpow.pop %v2835
      %v2837 = vmul.f32 %v2690, 1.442695
      %v2838 = vpow.pop %v2837
      %v2839 = vmul.f32 %v2691, 1.442695
      %v2840 = vpow.pop %v2839
      %v2841 = vmul.f32 %v2692, 1.442695
      %v2842 = vpow.pop %v2841
      %v2843 = vmul.f32 %v2693, 1.442695
      %v2844 = vpow.pop %v2843
      %v2845 = vmul.f32 %v2694, 1.442695
      %v2846 = vpow.pop %v2845
      %v2847 = vmul.f32 %v2695, 1.442695
      %v2848 = vpow.pop %v2847
      %v2849 = vmul.f32 %v2696, 1.442695
      %v2850 = vpow.pop %v2849
      %v2851 = vmul.f32 %v2697, 1.442695
      %v2852 = vpow.pop %v2851
      %v2853 = vmul.f32 %v2698, 1.442695
      %v2854 = vpow.pop %v2853
      %v2855 = vmul.f32 %v2699, 1.442695
      %v2856 = vpow.pop %v2855
      %v2857 = vmul.f32 %v2700, 1.442695
      %v2858 = vpow.pop %v2857
      %v2859 = vmul.f32 %v2701, 1.442695
      %v2860 = vpow.pop %v2859
      %v2861 = vmul.f32 %v2702, 1.442695
      %v2862 = vpow.pop %v2861
      %v2863 = vmul.f32 %v2703, 1.442695
      %v2864 = vpow.pop %v2863
      %v2865 = vmul.f32 %v2704, 1.442695
      %v2866 = vpow.pop %v2865
      %v2867 = vmul.f32 %v2705, 1.442695
      %v2868 = vpow.pop %v2867
      %v2869 = vmul.f32 %v2706, 1.442695
      %v2870 = vpow.pop %v2869
      %v2871 = vmul.f32 %v2707, 1.442695
      %v2872 = vpow.pop %v2871
      %v2873 = vmul.f32 %v2708, 1.442695
      %v2874 = vpow.pop %v2873
      %v2875 = vmul.f32 %v2709, 1.442695
      %v2876 = vpow.pop %v2875
      %v2877 = vmul.f32 %v2710, 1.442695
      %v2878 = vpow.pop %v2877
      %v2879 = vmul.f32 %v2711, 1.442695
      %v2880 = vpow.pop %v2879
      %v2881 = vmul.f32 %v2712, 1.442695
      %v2882 = vpow.pop %v2881
      %v2883 = vmul.f32 %v2713, 1.442695
      %v2884 = vpow.pop %v2883
      %v2885 = vmul.f32 %v2714, 1.442695
      %v2886 = vpow.pop %v2885
      %v2887 = vmul.f32 %v2715, 1.442695
      %v2888 = vpow.pop %v2887
      %v2889 = vmul.f32 %v2716, 1.442695
      %v2890 = vpow.pop %v2889
      %v2891 = vmul.f32 %v2717, 1.442695
      %v2892 = vpow.pop %v2891
      %v2893 = vmul.f32 %v2718, 1.442695
      %v2894 = vpow.pop %v2893
      %v2895 = vmul.f32 %v2719, 1.442695
      %v2896 = vpow.pop %v2895
      %v2897 = vmul.f32 %v2720, 1.442695
      %v2898 = vpow.pop %v2897
      %v2899 = vmul.f32 %v2721, 1.442695
      %v2900 = vpow.pop %v2899
      %v2901 = vmul.f32 %v2722, 1.442695
      %v2902 = vpow.pop %v2901
      %v2903 = vmul.f32 %v2723, 1.442695
      %v2904 = vpow.pop %v2903
      %v2905 = vmul.f32 %v2724, 1.442695
      %v2906 = vpow.pop %v2905
      %v2907 = vmul.f32 %v2725, 1.442695
      %v2908 = vpow.pop %v2907
      %v2909 = vmul.f32 %v2726, 1.442695
      %v2910 = vpow.pop %v2909
      %v2911 = vmul.f32 %v2727, 1.442695
      %v2912 = vpow.pop %v2911
      %v2913 = vmul.f32 %v2728, 1.442695
      %v2914 = vpow.pop %v2913
      %v2915 = vmul.f32 %v2729, 1.442695
      %v2916 = vpow.pop %v2915
      %v2917 = vmul.f32 %v2730, 1.442695
      %v2918 = vpow.pop %v2917
      %v2919 = vmul.f32 %v2731, 1.442695
      %v2920 = vpow.pop %v2919
      %v2921 = vmul.f32 %v2732, 1.442695
      %v2922 = vpow.pop %v2921
      %v2923 = vmul.f32 %v2733, 1.442695
      %v2924 = vpow.pop %v2923
      %v2925 = vmul.f32 %v2734, 1.442695
      %v2926 = vpow.pop %v2925
      %v2927 = vmul.f32 %v2735, 1.442695
      %v2928 = vpow.pop %v2927
      %v2929 = vmul.f32 %v2736, 1.442695
      %v2930 = vpow.pop %v2929
      %v2931 = vmul.f32 %v2737, 1.442695
      %v2932 = vpow.pop %v2931
      %v2933 = vmul.f32 %v2738, 1.442695
      %v2934 = vpow.pop %v2933
      %v2935 = vmul.f32 %v2739, 1.442695
      %v2936 = vpow.pop %v2935
      %v2937 = vmul.f32 %v2740, 1.442695
      %v2938 = vpow.pop %v2937
      %v2939 = vmul.f32 %v2741, 1.442695
      %v2940 = vpow.pop %v2939
      %v2941 = vmul.f32 %v2742, 1.442695
      %v2942 = vpow.pop %v2941
      %v2943 = vmul.f32 %v2743, 1.442695
      %v2944 = vpow.pop %v2943
      %v2945 = vmul.f32 %v2744, 1.442695
      %v2946 = vpow.pop %v2945
      %v2947 = vmul.f32 %v2745, 1.442695
      %v2948 = vpow.pop %v2947
      %v2949 = vmul.f32 %v2746, 1.442695
      %v2950 = vpow.pop %v2949
      %v2951 = vmul.f32 %v2747, 1.442695
      %v2952 = vpow.pop %v2951
      %v2953 = vmul.f32 %v2748, 1.442695
      %v2954 = vpow.pop %v2953
      %v2955 = vmul.f32 %v2749, 1.442695
      %v2956 = vpow.pop %v2955
      %v2957 = vmul.f32 %v2750, 1.442695
      %v2958 = vpow.pop %v2957
      %v2959 = vmul.f32 %v2751, 1.442695
      %v2960 = vpow.pop %v2959
      %v2961 = vmul.f32 %v2752, 1.442695
      %v2962 = vpow.pop %v2961
      %v2963 = vmul.f32 %v2753, 1.442695
      %v2964 = vpow.pop %v2963
      %v2965 = vmul.f32 %v2754, 1.442695
      %v2966 = vpow.pop %v2965
      %v2967 = vmul.f32 %v2755, 1.442695
      %v2968 = vpow.pop %v2967
      %v2969 = vmul.f32 %v2756, 1.442695
      %v2970 = vpow.pop %v2969
      %v2971 = vmul.f32 %v2757, 1.442695
      %v2972 = vpow.pop %v2971
      %v2973 = vmul.f32 %v2758, 1.442695
      %v2974 = vpow.pop %v2973
      %v2975 = vmul.f32 %v2759, 1.442695
      %v2976 = vpow.pop %v2975
      %v2977 = vmul.f32 %v2760, 1.442695
      %v2978 = vpow.pop %v2977
      %v2979 = vmul.f32 %v2761, 1.442695
      %v2980 = vpow.pop %v2979
      %v2981 = vmul.f32 %v2762, 1.442695
      %v2982 = vpow.pop %v2981
      %v2983 = vmul.f32 %v2763, 1.442695
      %v2984 = vpow.pop %v2983
      %v2985 = vmul.f32 %v2764, 1.442695
      %v2986 = vpow.pop %v2985
      %v2987 = vmul.f32 %v2765, 1.442695
      %v2988 = vpow.pop %v2987
      %v2989 = vmul.f32 %v2766, 1.442695
      %v2990 = vpow.pop %v2989
      %v2991 = vmul.f32 %v2767, 1.442695
      %v2992 = vpow.pop %v2991
      %v2993 = vmul.f32 %v2768, 1.442695
      %v2994 = vpow.pop %v2993
      %v2995 = vmul.f32 %v2769, 1.442695
      %v2996 = vpow.pop %v2995
      %v2997 = vmul.f32 %v2770, 1.442695
      %v2998 = vpow.pop %v2997
      %v2999 = vmul.f32 %v2771, 1.442695
      %v3000 = vpow.pop %v2999
      %v3001 = vmul.f32 %v2772, 1.442695
      %v3002 = vpow.pop %v3001
      %v3003 = vmul.f32 %v2773, 1.442695
      %v3004 = vpow.pop %v3003
      %v3005 = vmul.f32 %v2774, 1.442695
      %v3006 = vpow.pop %v3005
      %v3007 = vmul.f32 %v2775, 1.442695
      %v3008 = vpow.pop %v3007
      %v3009 = vmul.f32 %v2776, 1.442695
      %v3010 = vpow.pop %v3009
      %v3011 = vmul.f32 %v2777, 1.442695
      %v3012 = vpow.pop %v3011
      %v3013 = vmul.f32 %v2778, 1.442695
      %v3014 = vpow.pop %v3013
      %v3015 = vmul.f32 %v2779, 1.442695
      %v3016 = vpow.pop %v3015
      %v3017 = vmul.f32 %v2780, 1.442695
      %v3018 = vpow.pop %v3017
      %v3019 = vmul.f32 %v2781, 1.442695
      %v3020 = vpow.pop %v3019
      %v3021 = vmul.f32 %v2782, 1.442695
      %v3022 = vpow.pop %v3021
      %v3023 = vmul.f32 %v2783, 1.442695
      %v3024 = vpow.pop %v3023
      %v3025 = vmul.f32 %v2784, 1.442695
      %v3026 = vpow.pop %v3025
      %v3027 = vmul.f32 %v2785, 1.442695
      %v3028 = vpow.pop %v3027
      %v3029 = vmul.f32 %v2786, 1.442695
      %v3030 = vpow.pop %v3029
      %v3031 = vmul.f32 %v2787, 1.442695
      %v3032 = vpow.pop %v3031
      %v3033 = vmul.f32 %v2788, 1.442695
      %v3034 = vpow.pop %v3033
      %v3035 = vmul.f32 %v2789, 1.442695
      %v3036 = vpow.pop %v3035
      %v3037 = vmul.f32 %v2790, 1.442695
      %v3038 = vpow.pop %v3037
      %v3039 = vmul.f32 %v2791, 1.442695
      %v3040 = vpow.pop %v3039
      %v3041 = vmul.f32 %v2792, 1.442695
      %v3042 = vpow.pop %v3041
      %v3043 = vmul.f32 %v2793, 1.442695
      %v3044 = vpow.pop %v3043
      %v3045 = vmul.f32 %v2794, 1.442695
      %v3046 = vpow.pop %v3045
      %v3047 = vmul.f32 %v2795, 1.442695
      %v3048 = vpow.pop %v3047
      %v3049 = vmul.f32 %v2796, 1.442695
      %v3050 = vpow.pop %v3049
      %v3051 = vmul.f32 %v2797, 1.442695
      %v3052 = vpow.pop %v3051
      %v3053 = vmul.f32 %v2798, 1.442695
      %v3054 = vpow.pop %v3053
      %v3055 = vadd.f32 %v2800, 1.0
      %v3056 = vadd.f32 %v2802, 1.0
      %v3057 = vadd.f32 %v2804, 1.0
      %v3058 = vadd.f32 %v2806, 1.0
      %v3059 = vadd.f32 %v2808, 1.0
      %v3060 = vadd.f32 %v2810, 1.0
      %v3061 = vadd.f32 %v2812, 1.0
      %v3062 = vadd.f32 %v2814, 1.0
      %v3063 = vadd.f32 %v2816, 1.0
      %v3064 = vadd.f32 %v2818, 1.0
      %v3065 = vadd.f32 %v2820, 1.0
      %v3066 = vadd.f32 %v2822, 1.0
      %v3067 = vadd.f32 %v2824, 1.0
      %v3068 = vadd.f32 %v2826, 1.0
      %v3069 = vadd.f32 %v2828, 1.0
      %v3070 = vadd.f32 %v2830, 1.0
      %v3071 = vadd.f32 %v2832, 1.0
      %v3072 = vadd.f32 %v2834, 1.0
      %v3073 = vadd.f32 %v2836, 1.0
      %v3074 = vadd.f32 %v2838, 1.0
      %v3075 = vadd.f32 %v2840, 1.0
      %v3076 = vadd.f32 %v2842, 1.0
      %v3077 = vadd.f32 %v2844, 1.0
      %v3078 = vadd.f32 %v2846, 1.0
      %v3079 = vadd.f32 %v2848, 1.0
      %v3080 = vadd.f32 %v2850, 1.0
      %v3081 = vadd.f32 %v2852, 1.0
      %v3082 = vadd.f32 %v2854, 1.0
      %v3083 = vadd.f32 %v2856, 1.0
      %v3084 = vadd.f32 %v2858, 1.0
      %v3085 = vadd.f32 %v2860, 1.0
      %v3086 = vadd.f32 %v2862, 1.0
      %v3087 = vadd.f32 %v2864, 1.0
      %v3088 = vadd.f32 %v2866, 1.0
      %v3089 = vadd.f32 %v2868, 1.0
      %v3090 = vadd.f32 %v2870, 1.0
      %v3091 = vadd.f32 %v2872, 1.0
      %v3092 = vadd.f32 %v2874, 1.0
      %v3093 = vadd.f32 %v2876, 1.0
      %v3094 = vadd.f32 %v2878, 1.0
      %v3095 = vadd.f32 %v2880, 1.0
      %v3096 = vadd.f32 %v2882, 1.0
      %v3097 = vadd.f32 %v2884, 1.0
      %v3098 = vadd.f32 %v2886, 1.0
      %v3099 = vadd.f32 %v2888, 1.0
      %v3100 = vadd.f32 %v2890, 1.0
      %v3101 = vadd.f32 %v2892, 1.0
      %v3102 = vadd.f32 %v2894, 1.0
      %v3103 = vadd.f32 %v2896, 1.0
      %v3104 = vadd.f32 %v2898, 1.0
      %v3105 = vadd.f32 %v2900, 1.0
      %v3106 = vadd.f32 %v2902, 1.0
      %v3107 = vadd.f32 %v2904, 1.0
      %v3108 = vadd.f32 %v2906, 1.0
      %v3109 = vadd.f32 %v2908, 1.0
      %v3110 = vadd.f32 %v2910, 1.0
      %v3111 = vadd.f32 %v2912, 1.0
      %v3112 = vadd.f32 %v2914, 1.0
      %v3113 = vadd.f32 %v2916, 1.0
      %v3114 = vadd.f32 %v2918, 1.0
      %v3115 = vadd.f32 %v2920, 1.0
      %v3116 = vadd.f32 %v2922, 1.0
      %v3117 = vadd.f32 %v2924, 1.0
      %v3118 = vadd.f32 %v2926, 1.0
      %v3119 = vadd.f32 %v2928, 1.0
      %v3120 = vadd.f32 %v2930, 1.0
      %v3121 = vadd.f32 %v2932, 1.0
      %v3122 = vadd.f32 %v2934, 1.0
      %v3123 = vadd.f32 %v2936, 1.0
      %v3124 = vadd.f32 %v2938, 1.0
      %v3125 = vadd.f32 %v2940, 1.0
      %v3126 = vadd.f32 %v2942, 1.0
      %v3127 = vadd.f32 %v2944, 1.0
      %v3128 = vadd.f32 %v2946, 1.0
      %v3129 = vadd.f32 %v2948, 1.0
      %v3130 = vadd.f32 %v2950, 1.0
      %v3131 = vadd.f32 %v2952, 1.0
      %v3132 = vadd.f32 %v2954, 1.0
      %v3133 = vadd.f32 %v2956, 1.0
      %v3134 = vadd.f32 %v2958, 1.0
      %v3135 = vadd.f32 %v2960, 1.0
      %v3136 = vadd.f32 %v2962, 1.0
      %v3137 = vadd.f32 %v2964, 1.0
      %v3138 = vadd.f32 %v2966, 1.0
      %v3139 = vadd.f32 %v2968, 1.0
      %v3140 = vadd.f32 %v2970, 1.0
      %v3141 = vadd.f32 %v2972, 1.0
      %v3142 = vadd.f32 %v2974, 1.0
      %v3143 = vadd.f32 %v2976, 1.0
      %v3144 = vadd.f32 %v2978, 1.0
      %v3145 = vadd.f32 %v2980, 1.0
      %v3146 = vadd.f32 %v2982, 1.0
      %v3147 = vadd.f32 %v2984, 1.0
      %v3148 = vadd.f32 %v2986, 1.0
      %v3149 = vadd.f32 %v2988, 1.0
      %v3150 = vadd.f32 %v2990, 1.0
      %v3151 = vadd.f32 %v2992, 1.0
      %v3152 = vadd.f32 %v2994, 1.0
      %v3153 = vadd.f32 %v2996, 1.0
      %v3154 = vadd.f32 %v2998, 1.0
      %v3155 = vadd.f32 %v3000, 1.0
      %v3156 = vadd.f32 %v3002, 1.0
      %v3157 = vadd.f32 %v3004, 1.0
      %v3158 = vadd.f32 %v3006, 1.0
      %v3159 = vadd.f32 %v3008, 1.0
      %v3160 = vadd.f32 %v3010, 1.0
      %v3161 = vadd.f32 %v3012, 1.0
      %v3162 = vadd.f32 %v3014, 1.0
      %v3163 = vadd.f32 %v3016, 1.0
      %v3164 = vadd.f32 %v3018, 1.0
      %v3165 = vadd.f32 %v3020, 1.0
      %v3166 = vadd.f32 %v3022, 1.0
      %v3167 = vadd.f32 %v3024, 1.0
      %v3168 = vadd.f32 %v3026, 1.0
      %v3169 = vadd.f32 %v3028, 1.0
      %v3170 = vadd.f32 %v3030, 1.0
      %v3171 = vadd.f32 %v3032, 1.0
      %v3172 = vadd.f32 %v3034, 1.0
      %v3173 = vadd.f32 %v3036, 1.0
      %v3174 = vadd.f32 %v3038, 1.0
      %v3175 = vadd.f32 %v3040, 1.0
      %v3176 = vadd.f32 %v3042, 1.0
      %v3177 = vadd.f32 %v3044, 1.0
      %v3178 = vadd.f32 %v3046, 1.0
      %v3179 = vadd.f32 %v3048, 1.0
      %v3180 = vadd.f32 %v3050, 1.0
      %v3181 = vadd.f32 %v3052, 1.0
      %v3182 = vadd.f32 %v3054, 1.0
      %v3183 = vrcp.pop %v3055
      %v3184 = vmul.f32 1.0, %v3183
      %v3185 = vrcp.pop %v3056
      %v3186 = vmul.f32 1.0, %v3185
      %v3187 = vrcp.pop %v3057
      %v3188 = vmul.f32 1.0, %v3187
      %v3189 = vrcp.pop %v3058
      %v3190 = vmul.f32 1.0, %v3189
      %v3191 = vrcp.pop %v3059
      %v3192 = vmul.f32 1.0, %v3191
      %v3193 = vrcp.pop %v3060
      %v3194 = vmul.f32 1.0, %v3193
      %v3195 = vrcp.pop %v3061
      %v3196 = vmul.f32 1.0, %v3195
      %v3197 = vrcp.pop %v3062
      %v3198 = vmul.f32 1.0, %v3197
      %v3199 = vrcp.pop %v3063
      %v3200 = vmul.f32 1.0, %v3199
      %v3201 = vrcp.pop %v3064
      %v3202 = vmul.f32 1.0, %v3201
      %v3203 = vrcp.pop %v3065
      %v3204 = vmul.f32 1.0, %v3203
      %v3205 = vrcp.pop %v3066
      %v3206 = vmul.f32 1.0, %v3205
      %v3207 = vrcp.pop %v3067
      %v3208 = vmul.f32 1.0, %v3207
      %v3209 = vrcp.pop %v3068
      %v3210 = vmul.f32 1.0, %v3209
      %v3211 = vrcp.pop %v3069
      %v3212 = vmul.f32 1.0, %v3211
      %v3213 = vrcp.pop %v3070
      %v3214 = vmul.f32 1.0, %v3213
      %v3215 = vrcp.pop %v3071
      %v3216 = vmul.f32 1.0, %v3215
      %v3217 = vrcp.pop %v3072
      %v3218 = vmul.f32 1.0, %v3217
      %v3219 = vrcp.pop %v3073
      %v3220 = vmul.f32 1.0, %v3219
      %v3221 = vrcp.pop %v3074
      %v3222 = vmul.f32 1.0, %v3221
      %v3223 = vrcp.pop %v3075
      %v3224 = vmul.f32 1.0, %v3223
      %v3225 = vrcp.pop %v3076
      %v3226 = vmul.f32 1.0, %v3225
      %v3227 = vrcp.pop %v3077
      %v3228 = vmul.f32 1.0, %v3227
      %v3229 = vrcp.pop %v3078
      %v3230 = vmul.f32 1.0, %v3229
      %v3231 = vrcp.pop %v3079
      %v3232 = vmul.f32 1.0, %v3231
      %v3233 = vrcp.pop %v3080
      %v3234 = vmul.f32 1.0, %v3233
      %v3235 = vrcp.pop %v3081
      %v3236 = vmul.f32 1.0, %v3235
      %v3237 = vrcp.pop %v3082
      %v3238 = vmul.f32 1.0, %v3237
      %v3239 = vrcp.pop %v3083
      %v3240 = vmul.f32 1.0, %v3239
      %v3241 = vrcp.pop %v3084
      %v3242 = vmul.f32 1.0, %v3241
      %v3243 = vrcp.pop %v3085
      %v3244 = vmul.f32 1.0, %v3243
      %v3245 = vrcp.pop %v3086
      %v3246 = vmul.f32 1.0, %v3245
      %v3247 = vrcp.pop %v3087
      %v3248 = vmul.f32 1.0, %v3247
      %v3249 = vrcp.pop %v3088
      %v3250 = vmul.f32 1.0, %v3249
      %v3251 = vrcp.pop %v3089
      %v3252 = vmul.f32 1.0, %v3251
      %v3253 = vrcp.pop %v3090
      %v3254 = vmul.f32 1.0, %v3253
      %v3255 = vrcp.pop %v3091
      %v3256 = vmul.f32 1.0, %v3255
      %v3257 = vrcp.pop %v3092
      %v3258 = vmul.f32 1.0, %v3257
      %v3259 = vrcp.pop %v3093
      %v3260 = vmul.f32 1.0, %v3259
      %v3261 = vrcp.pop %v3094
      %v3262 = vmul.f32 1.0, %v3261
      %v3263 = vrcp.pop %v3095
      %v3264 = vmul.f32 1.0, %v3263
      %v3265 = vrcp.pop %v3096
      %v3266 = vmul.f32 1.0, %v3265
      %v3267 = vrcp.pop %v3097
      %v3268 = vmul.f32 1.0, %v3267
      %v3269 = vrcp.pop %v3098
      %v3270 = vmul.f32 1.0, %v3269
      %v3271 = vrcp.pop %v3099
      %v3272 = vmul.f32 1.0, %v3271
      %v3273 = vrcp.pop %v3100
      %v3274 = vmul.f32 1.0, %v3273
      %v3275 = vrcp.pop %v3101
      %v3276 = vmul.f32 1.0, %v3275
      %v3277 = vrcp.pop %v3102
      %v3278 = vmul.f32 1.0, %v3277
      %v3279 = vrcp.pop %v3103
      %v3280 = vmul.f32 1.0, %v3279
      %v3281 = vrcp.pop %v3104
      %v3282 = vmul.f32 1.0, %v3281
      %v3283 = vrcp.pop %v3105
      %v3284 = vmul.f32 1.0, %v3283
      %v3285 = vrcp.pop %v3106
      %v3286 = vmul.f32 1.0, %v3285
      %v3287 = vrcp.pop %v3107
      %v3288 = vmul.f32 1.0, %v3287
      %v3289 = vrcp.pop %v3108
      %v3290 = vmul.f32 1.0, %v3289
      %v3291 = vrcp.pop %v3109
      %v3292 = vmul.f32 1.0, %v3291
      %v3293 = vrcp.pop %v3110
      %v3294 = vmul.f32 1.0, %v3293
      %v3295 = vrcp.pop %v3111
      %v3296 = vmul.f32 1.0, %v3295
      %v3297 = vrcp.pop %v3112
      %v3298 = vmul.f32 1.0, %v3297
      %v3299 = vrcp.pop %v3113
      %v3300 = vmul.f32 1.0, %v3299
      %v3301 = vrcp.pop %v3114
      %v3302 = vmul.f32 1.0, %v3301
      %v3303 = vrcp.pop %v3115
      %v3304 = vmul.f32 1.0, %v3303
      %v3305 = vrcp.pop %v3116
      %v3306 = vmul.f32 1.0, %v3305
      %v3307 = vrcp.pop %v3117
      %v3308 = vmul.f32 1.0, %v3307
      %v3309 = vrcp.pop %v3118
      %v3310 = vmul.f32 1.0, %v3309
      %v3311 = vrcp.pop %v3119
      %v3312 = vmul.f32 1.0, %v3311
      %v3313 = vrcp.pop %v3120
      %v3314 = vmul.f32 1.0, %v3313
      %v3315 = vrcp.pop %v3121
      %v3316 = vmul.f32 1.0, %v3315
      %v3317 = vrcp.pop %v3122
      %v3318 = vmul.f32 1.0, %v3317
      %v3319 = vrcp.pop %v3123
      %v3320 = vmul.f32 1.0, %v3319
      %v3321 = vrcp.pop %v3124
      %v3322 = vmul.f32 1.0, %v3321
      %v3323 = vrcp.pop %v3125
      %v3324 = vmul.f32 1.0, %v3323
      %v3325 = vrcp.pop %v3126
      %v3326 = vmul.f32 1.0, %v3325
      %v3327 = vrcp.pop %v3127
      %v3328 = vmul.f32 1.0, %v3327
      %v3329 = vrcp.pop %v3128
      %v3330 = vmul.f32 1.0, %v3329
      %v3331 = vrcp.pop %v3129
      %v3332 = vmul.f32 1.0, %v3331
      %v3333 = vrcp.pop %v3130
      %v3334 = vmul.f32 1.0, %v3333
      %v3335 = vrcp.pop %v3131
      %v3336 = vmul.f32 1.0, %v3335
      %v3337 = vrcp.pop %v3132
      %v3338 = vmul.f32 1.0, %v3337
      %v3339 = vrcp.pop %v3133
      %v3340 = vmul.f32 1.0, %v3339
      %v3341 = vrcp.pop %v3134
      %v3342 = vmul.f32 1.0, %v3341
      %v3343 = vrcp.pop %v3135
      %v3344 = vmul.f32 1.0, %v3343
      %v3345 = vrcp.pop %v3136
      %v3346 = vmul.f32 1.0, %v3345
      %v3347 = vrcp.pop %v3137
      %v3348 = vmul.f32 1.0, %v3347
      %v3349 = vrcp.pop %v3138
      %v3350 = vmul.f32 1.0, %v3349
      %v3351 = vrcp.pop %v3139
      %v3352 = vmul.f32 1.0, %v3351
      %v3353 = vrcp.pop %v3140
      %v3354 = vmul.f32 1.0, %v3353
      %v3355 = vrcp.pop %v3141
      %v3356 = vmul.f32 1.0, %v3355
      %v3357 = vrcp.pop %v3142
      %v3358 = vmul.f32 1.0, %v3357
      %v3359 = vrcp.pop %v3143
      %v3360 = vmul.f32 1.0, %v3359
      %v3361 = vrcp.pop %v3144
      %v3362 = vmul.f32 1.0, %v3361
      %v3363 = vrcp.pop %v3145
      %v3364 = vmul.f32 1.0, %v3363
      %v3365 = vrcp.pop %v3146
      %v3366 = vmul.f32 1.0, %v3365
      %v3367 = vrcp.pop %v3147
      %v3368 = vmul.f32 1.0, %v3367
      %v3369 = vrcp.pop %v3148
      %v3370 = vmul.f32 1.0, %v3369
      %v3371 = vrcp.pop %v3149
      %v3372 = vmul.f32 1.0, %v3371
      %v3373 = vrcp.pop %v3150
      %v3374 = vmul.f32 1.0, %v3373
      %v3375 = vrcp.pop %v3151
      %v3376 = vmul.f32 1.0, %v3375
      %v3377 = vrcp.pop %v3152
      %v3378 = vmul.f32 1.0, %v3377
      %v3379 = vrcp.pop %v3153
      %v3380 = vmul.f32 1.0, %v3379
      %v3381 = vrcp.pop %v3154
      %v3382 = vmul.f32 1.0, %v3381
      %v3383 = vrcp.pop %v3155
      %v3384 = vmul.f32 1.0, %v3383
      %v3385 = vrcp.pop %v3156
      %v3386 = vmul.f32 1.0, %v3385
      %v3387 = vrcp.pop %v3157
      %v3388 = vmul.f32 1.0, %v3387
      %v3389 = vrcp.pop %v3158
      %v3390 = vmul.f32 1.0, %v3389
      %v3391 = vrcp.pop %v3159
      %v3392 = vmul.f32 1.0, %v3391
      %v3393 = vrcp.pop %v3160
      %v3394 = vmul.f32 1.0, %v3393
      %v3395 = vrcp.pop %v3161
      %v3396 = vmul.f32 1.0, %v3395
      %v3397 = vrcp.pop %v3162
      %v3398 = vmul.f32 1.0, %v3397
      %v3399 = vrcp.pop %v3163
      %v3400 = vmul.f32 1.0, %v3399
      %v3401 = vrcp.pop %v3164
      %v3402 = vmul.f32 1.0, %v3401
      %v3403 = vrcp.pop %v3165
      %v3404 = vmul.f32 1.0, %v3403
      %v3405 = vrcp.pop %v3166
      %v3406 = vmul.f32 1.0, %v3405
      %v3407 = vrcp.pop %v3167
      %v3408 = vmul.f32 1.0, %v3407
      %v3409 = vrcp.pop %v3168
      %v3410 = vmul.f32 1.0, %v3409
      %v3411 = vrcp.pop %v3169
      %v3412 = vmul.f32 1.0, %v3411
      %v3413 = vrcp.pop %v3170
      %v3414 = vmul.f32 1.0, %v3413
      %v3415 = vrcp.pop %v3171
      %v3416 = vmul.f32 1.0, %v3415
      %v3417 = vrcp.pop %v3172
      %v3418 = vmul.f32 1.0, %v3417
      %v3419 = vrcp.pop %v3173
      %v3420 = vmul.f32 1.0, %v3419
      %v3421 = vrcp.pop %v3174
      %v3422 = vmul.f32 1.0, %v3421
      %v3423 = vrcp.pop %v3175
      %v3424 = vmul.f32 1.0, %v3423
      %v3425 = vrcp.pop %v3176
      %v3426 = vmul.f32 1.0, %v3425
      %v3427 = vrcp.pop %v3177
      %v3428 = vmul.f32 1.0, %v3427
      %v3429 = vrcp.pop %v3178
      %v3430 = vmul.f32 1.0, %v3429
      %v3431 = vrcp.pop %v3179
      %v3432 = vmul.f32 1.0, %v3431
      %v3433 = vrcp.pop %v3180
      %v3434 = vmul.f32 1.0, %v3433
      %v3435 = vrcp.pop %v3181
      %v3436 = vmul.f32 1.0, %v3435
      %v3437 = vrcp.pop %v3182
      %v3438 = vmul.f32 1.0, %v3437
      %v3439 = vmul.f32 %v2126, %v3184
      %v3440 = vmul.f32 %v2128, %v3186
      %v3441 = vmul.f32 %v2239, %v3188
      %v3442 = vmul.f32 %v2241, %v3190
      %v3443 = vmul.f32 %v2352, %v3192
      %v3444 = vmul.f32 %v2354, %v3194
      %v3445 = vmul.f32 %v2465, %v3196
      %v3446 = vmul.f32 %v2467, %v3198
      %v3447 = vmul.f32 %v2130, %v3200
      %v3448 = vmul.f32 %v2132, %v3202
      %v3449 = vmul.f32 %v2243, %v3204
      %v3450 = vmul.f32 %v2245, %v3206
      %v3451 = vmul.f32 %v2356, %v3208
      %v3452 = vmul.f32 %v2358, %v3210
      %v3453 = vmul.f32 %v2469, %v3212
      %v3454 = vmul.f32 %v2471, %v3214
      %v3455 = vmul.f32 %v2136, %v3216
      %v3456 = vmul.f32 %v2138, %v3218
      %v3457 = vmul.f32 %v2249, %v3220
      %v3458 = vmul.f32 %v2251, %v3222
      %v3459 = vmul.f32 %v2362, %v3224
      %v3460 = vmul.f32 %v2364, %v3226
      %v3461 = vmul.f32 %v2475, %v3228
      %v3462 = vmul.f32 %v2477, %v3230
      %v3463 = vmul.f32 %v2140, %v3232
      %v3464 = vmul.f32 %v2142, %v3234
      %v3465 = vmul.f32 %v2253, %v3236
      %v3466 = vmul.f32 %v2255, %v3238
      %v3467 = vmul.f32 %v2366, %v3240
      %v3468 = vmul.f32 %v2368, %v3242
      %v3469 = vmul.f32 %v2479, %v3244
      %v3470 = vmul.f32 %v2481, %v3246
      %v3471 = vmul.f32 %v2146, %v3248
      %v3472 = vmul.f32 %v2148, %v3250
      %v3473 = vmul.f32 %v2259, %v3252
      %v3474 = vmul.f32 %v2261, %v3254
      %v3475 = vmul.f32 %v2372, %v3256
      %v3476 = vmul.f32 %v2374, %v3258
      %v3477 = vmul.f32 %v2485, %v3260
      %v3478 = vmul.f32 %v2487, %v3262
      %v3479 = vmul.f32 %v2150, %v3264
      %v3480 = vmul.f32 %v2152, %v3266
      %v3481 = vmul.f32 %v2263, %v3268
      %v3482 = vmul.f32 %v2265, %v3270
      %v3483 = vmul.f32 %v2376, %v3272
      %v3484 = vmul.f32 %v2378, %v3274
      %v3485 = vmul.f32 %v2489, %v3276
      %v3486 = vmul.f32 %v2491, %v3278
      %v3487 = vmul.f32 %v2156, %v3280
      %v3488 = vmul.f32 %v2158, %v3282
      %v3489 = vmul.f32 %v2269, %v3284
      %v3490 = vmul.f32 %v2271, %v3286
      %v3491 = vmul.f32 %v2382, %v3288
      %v3492 = vmul.f32 %v2384, %v3290
      %v3493 = vmul.f32 %v2495, %v3292
      %v3494 = vmul.f32 %v2497, %v3294
      %v3495 = vmul.f32 %v2160, %v3296
      %v3496 = vmul.f32 %v2162, %v3298
      %v3497 = vmul.f32 %v2273, %v3300
      %v3498 = vmul.f32 %v2275, %v3302
      %v3499 = vmul.f32 %v2386, %v3304
      %v3500 = vmul.f32 %v2388, %v3306
      %v3501 = vmul.f32 %v2499, %v3308
      %v3502 = vmul.f32 %v2501, %v3310
      %v3503 = vmul.f32 %v2166, %v3312
      %v3504 = vmul.f32 %v2168, %v3314
      %v3505 = vmul.f32 %v2279, %v3316
      %v3506 = vmul.f32 %v2281, %v3318
      %v3507 = vmul.f32 %v2392, %v3320
      %v3508 = vmul.f32 %v2394, %v3322
      %v3509 = vmul.f32 %v2505, %v3324
      %v3510 = vmul.f32 %v2507, %v3326
      %v3511 = vmul.f32 %v2170, %v3328
      %v3512 = vmul.f32 %v2172, %v3330
      %v3513 = vmul.f32 %v2283, %v3332
      %v3514 = vmul.f32 %v2285, %v3334
      %v3515 = vmul.f32 %v2396, %v3336
      %v3516 = vmul.f32 %v2398, %v3338
      %v3517 = vmul.f32 %v2509, %v3340
      %v3518 = vmul.f32 %v2511, %v3342
      %v3519 = vmul.f32 %v2176, %v3344
      %v3520 = vmul.f32 %v2178, %v3346
      %v3521 = vmul.f32 %v2289, %v3348
      %v3522 = vmul.f32 %v2291, %v3350
      %v3523 = vmul.f32 %v2402, %v3352
      %v3524 = vmul.f32 %v2404, %v3354
      %v3525 = vmul.f32 %v2515, %v3356
      %v3526 = vmul.f32 %v2517, %v3358
      %v3527 = vmul.f32 %v2180, %v3360
      %v3528 = vmul.f32 %v2182, %v3362
      %v3529 = vmul.f32 %v2293, %v3364
      %v3530 = vmul.f32 %v2295, %v3366
      %v3531 = vmul.f32 %v2406, %v3368
      %v3532 = vmul.f32 %v2408, %v3370
      %v3533 = vmul.f32 %v2519, %v3372
      %v3534 = vmul.f32 %v2521, %v3374
      %v3535 = vmul.f32 %v2186, %v3376
      %v3536 = vmul.f32 %v2188, %v3378
      %v3537 = vmul.f32 %v2299, %v3380
      %v3538 = vmul.f32 %v2301, %v3382
      %v3539 = vmul.f32 %v2412, %v3384
      %v3540 = vmul.f32 %v2414, %v3386
      %v3541 = vmul.f32 %v2525, %v3388
      %v3542 = vmul.f32 %v2527, %v3390
      %v3543 = vmul.f32 %v2190, %v3392
      %v3544 = vmul.f32 %v2192, %v3394
      %v3545 = vmul.f32 %v2303, %v3396
      %v3546 = vmul.f32 %v2305, %v3398
      %v3547 = vmul.f32 %v2416, %v3400
      %v3548 = vmul.f32 %v2418, %v3402
      %v3549 = vmul.f32 %v2529, %v3404
      %v3550 = vmul.f32 %v2531, %v3406
      %v3551 = vmul.f32 %v2196, %v3408
      %v3552 = vmul.f32 %v2198, %v3410
      %v3553 = vmul.f32 %v2309, %v3412
      %v3554 = vmul.f32 %v2311, %v3414
      %v3555 = vmul.f32 %v2422, %v3416
      %v3556 = vmul.f32 %v2424, %v3418
      %v3557 = vmul.f32 %v2535, %v3420
      %v3558 = vmul.f32 %v2537, %v3422
      %v3559 = vmul.f32 %v2200, %v3424
      %v3560 = vmul.f32 %v2202, %v3426
      %v3561 = vmul.f32 %v2313, %v3428
      %v3562 = vmul.f32 %v2315, %v3430
      %v3563 = vmul.f32 %v2426, %v3432
      %v3564 = vmul.f32 %v2428, %v3434
      %v3565 = vmul.f32 %v2539, %v3436
      %v3566 = vmul.f32 %v2541, %v3438
      %v3567 = vpack.c.bf16 %v3447, %v3439
      %v3568 = vpack.c.bf16 %v3448, %v3440
      %v3569 = vpack.c.bf16 %v3449, %v3441
      %v3570 = vpack.c.bf16 %v3450, %v3442
      %v3571 = vpack.c.bf16 %v3451, %v3443
      %v3572 = vpack.c.bf16 %v3452, %v3444
      %v3573 = vpack.c.bf16 %v3453, %v3445
      %v3574 = vpack.c.bf16 %v3454, %v3446
      %v3575 = vpack.c.bf16 %v3463, %v3455
      %v3576 = vpack.c.bf16 %v3464, %v3456
      %v3577 = vpack.c.bf16 %v3465, %v3457
      %v3578 = vpack.c.bf16 %v3466, %v3458
      %v3579 = vpack.c.bf16 %v3467, %v3459
      %v3580 = vpack.c.bf16 %v3468, %v3460
      %v3581 = vpack.c.bf16 %v3469, %v3461
      %v3582 = vpack.c.bf16 %v3470, %v3462
      %v3583 = vpack.c.bf16 %v3479, %v3471
      %v3584 = vpack.c.bf16 %v3480, %v3472
      %v3585 = vpack.c.bf16 %v3481, %v3473
      %v3586 = vpack.c.bf16 %v3482, %v3474
      %v3587 = vpack.c.bf16 %v3483, %v3475
      %v3588 = vpack.c.bf16 %v3484, %v3476
      %v3589 = vpack.c.bf16 %v3485, %v3477
      %v3590 = vpack.c.bf16 %v3486, %v3478
      %v3591 = vpack.c.bf16 %v3495, %v3487
      %v3592 = vpack.c.bf16 %v3496, %v3488
      %v3593 = vpack.c.bf16 %v3497, %v3489
      %v3594 = vpack.c.bf16 %v3498, %v3490
      %v3595 = vpack.c.bf16 %v3499, %v3491
      %v3596 = vpack.c.bf16 %v3500, %v3492
      %v3597 = vpack.c.bf16 %v3501, %v3493
      %v3598 = vpack.c.bf16 %v3502, %v3494
      %v3599 = vpack.c.bf16 %v3511, %v3503
      %v3600 = vpack.c.bf16 %v3512, %v3504
      %v3601 = vpack.c.bf16 %v3513, %v3505
      %v3602 = vpack.c.bf16 %v3514, %v3506
      %v3603 = vpack.c.bf16 %v3515, %v3507
      %v3604 = vpack.c.bf16 %v3516, %v3508
      %v3605 = vpack.c.bf16 %v3517, %v3509
      %v3606 = vpack.c.bf16 %v3518, %v3510
      %v3607 = vpack.c.bf16 %v3527, %v3519
      %v3608 = vpack.c.bf16 %v3528, %v3520
      %v3609 = vpack.c.bf16 %v3529, %v3521
      %v3610 = vpack.c.bf16 %v3530, %v3522
      %v3611 = vpack.c.bf16 %v3531, %v3523
      %v3612 = vpack.c.bf16 %v3532, %v3524
      %v3613 = vpack.c.bf16 %v3533, %v3525
      %v3614 = vpack.c.bf16 %v3534, %v3526
      %v3615 = vpack.c.bf16 %v3543, %v3535
      %v3616 = vpack.c.bf16 %v3544, %v3536
      %v3617 = vpack.c.bf16 %v3545, %v3537
      %v3618 = vpack.c.bf16 %v3546, %v3538
      %v3619 = vpack.c.bf16 %v3547, %v3539
      %v3620 = vpack.c.bf16 %v3548, %v3540
      %v3621 = vpack.c.bf16 %v3549, %v3541
      %v3622 = vpack.c.bf16 %v3550, %v3542
      %v3623 = vpack.c.bf16 %v3559, %v3551
      %v3624 = vpack.c.bf16 %v3560, %v3552
      %v3625 = vpack.c.bf16 %v3561, %v3553
      %v3626 = vpack.c.bf16 %v3562, %v3554
      %v3627 = vpack.c.bf16 %v3563, %v3555
      %v3628 = vpack.c.bf16 %v3564, %v3556
      %v3629 = vpack.c.bf16 %v3565, %v3557
      %v3630 = vpack.c.bf16 %v3566, %v3558
      %v3631 = vld [vmem:[%s8] sm:$0xff]
      %v3632 = vld [vmem:[%s8 + $0x8] sm:$0xff]
      %v3633 = vld [vmem:[%s8 + $0x10] sm:$0xff]
      %v3634 = vld [vmem:[%s8 + $0x18] sm:$0xff]
      %v3635 = vld [vmem:[%s8 + $0x20] sm:$0xff]
      %v3636 = vld [vmem:[%s8 + $0x28] sm:$0xff]
      %v3637 = vld [vmem:[%s8 + $0x30] sm:$0xff]
      %v3638 = vld [vmem:[%s8 + $0x38] sm:$0xff]
      %v3639 = vld [vmem:[%s8 + $0x40] sm:$0xff]
      %v3640 = vld [vmem:[%s8 + $0x48] sm:$0xff]
      %v3641 = vld [vmem:[%s8 + $0x50] sm:$0xff]
      %v3642 = vld [vmem:[%s8 + $0x58] sm:$0xff]
      %v3643 = vld [vmem:[%s8 + $0x60] sm:$0xff]
      %v3644 = vld [vmem:[%s8 + $0x68] sm:$0xff]
      %v3645 = vld [vmem:[%s8 + $0x70] sm:$0xff]
      %v3646 = vld [vmem:[%s8 + $0x78] sm:$0xff]
      %v3647 = vld [vmem:[%s8 + $0x80] sm:$0xff]
      %v3648 = vld [vmem:[%s8 + $0x88] sm:$0xff]
      %v3649 = vld [vmem:[%s8 + $0x90] sm:$0xff]
      %v3650 = vld [vmem:[%s8 + $0x98] sm:$0xff]
      %v3651 = vld [vmem:[%s8 + $0xa0] sm:$0xff]
      %v3652 = vld [vmem:[%s8 + $0xa8] sm:$0xff]
      %v3653 = vld [vmem:[%s8 + $0xb0] sm:$0xff]
      %v3654 = vld [vmem:[%s8 + $0xb8] sm:$0xff]
      %v3655 = vld [vmem:[%s8 + $0xc0] sm:$0xff]
      %v3656 = vld [vmem:[%s8 + $0xc8] sm:$0xff]
      %v3657 = vld [vmem:[%s8 + $0xd0] sm:$0xff]
      %v3658 = vld [vmem:[%s8 + $0xd8] sm:$0xff]
      %v3659 = vld [vmem:[%s8 + $0xe0] sm:$0xff]
      %v3660 = vld [vmem:[%s8 + $0xe8] sm:$0xff]
      %v3661 = vld [vmem:[%s8 + $0xf0] sm:$0xff]
      %v3662 = vld [vmem:[%s8 + $0xf8] sm:$0xff]
      %v3663 = vld [vmem:[%s8 + $0x100] sm:$0xff]
      %v3664 = vld [vmem:[%s8 + $0x108] sm:$0xff]
      %v3665 = vld [vmem:[%s8 + $0x110] sm:$0xff]
      %v3666 = vld [vmem:[%s8 + $0x118] sm:$0xff]
      %v3667 = vld [vmem:[%s8 + $0x120] sm:$0xff]
      %v3668 = vld [vmem:[%s8 + $0x128] sm:$0xff]
      %v3669 = vld [vmem:[%s8 + $0x130] sm:$0xff]
      %v3670 = vld [vmem:[%s8 + $0x138] sm:$0xff]
      %v3671 = vld [vmem:[%s8 + $0x140] sm:$0xff]
      %v3672 = vld [vmem:[%s8 + $0x148] sm:$0xff]
      %v3673 = vld [vmem:[%s8 + $0x150] sm:$0xff]
      %v3674 = vld [vmem:[%s8 + $0x158] sm:$0xff]
      %v3675 = vld [vmem:[%s8 + $0x160] sm:$0xff]
      %v3676 = vld [vmem:[%s8 + $0x168] sm:$0xff]
      %v3677 = vld [vmem:[%s8 + $0x170] sm:$0xff]
      %v3678 = vld [vmem:[%s8 + $0x178] sm:$0xff]
      %v3679 = vld [vmem:[%s8 + $0x180] sm:$0xff]
      %v3680 = vld [vmem:[%s8 + $0x188] sm:$0xff]
      %v3681 = vld [vmem:[%s8 + $0x190] sm:$0xff]
      %v3682 = vld [vmem:[%s8 + $0x198] sm:$0xff]
      %v3683 = vld [vmem:[%s8 + $0x1a0] sm:$0xff]
      %v3684 = vld [vmem:[%s8 + $0x1a8] sm:$0xff]
      %v3685 = vld [vmem:[%s8 + $0x1b0] sm:$0xff]
      %v3686 = vld [vmem:[%s8 + $0x1b8] sm:$0xff]
      %v3687 = vld [vmem:[%s8 + $0x1c0] sm:$0xff]
      %v3688 = vld [vmem:[%s8 + $0x1c8] sm:$0xff]
      %v3689 = vld [vmem:[%s8 + $0x1d0] sm:$0xff]
      %v3690 = vld [vmem:[%s8 + $0x1d8] sm:$0xff]
      %v3691 = vld [vmem:[%s8 + $0x1e0] sm:$0xff]
      %v3692 = vld [vmem:[%s8 + $0x1e8] sm:$0xff]
      %v3693 = vld [vmem:[%s8 + $0x1f0] sm:$0xff]
      %v3694 = vld [vmem:[%s8 + $0x1f8] sm:$0xff]
      %v3695 = vld [vmem:[%s8 + $0x200] sm:$0xff]
      %v3696 = vld [vmem:[%s8 + $0x208] sm:$0xff]
      %v3697 = vld [vmem:[%s8 + $0x210] sm:$0xff]
      %v3698 = vld [vmem:[%s8 + $0x218] sm:$0xff]
      %v3699 = vld [vmem:[%s8 + $0x220] sm:$0xff]
      %v3700 = vld [vmem:[%s8 + $0x228] sm:$0xff]
      %v3701 = vld [vmem:[%s8 + $0x230] sm:$0xff]
      %v3702 = vld [vmem:[%s8 + $0x238] sm:$0xff]
      %v3703 = vld [vmem:[%s8 + $0x240] sm:$0xff]
      %v3704 = vld [vmem:[%s8 + $0x248] sm:$0xff]
      %v3705 = vld [vmem:[%s8 + $0x250] sm:$0xff]
      %v3706 = vld [vmem:[%s8 + $0x258] sm:$0xff]
      %v3707 = vld [vmem:[%s8 + $0x260] sm:$0xff]
      %v3708 = vld [vmem:[%s8 + $0x268] sm:$0xff]
      %v3709 = vld [vmem:[%s8 + $0x270] sm:$0xff]
      %v3710 = vld [vmem:[%s8 + $0x278] sm:$0xff]
      %v3711 = vld [vmem:[%s8 + $0x280] sm:$0xff]
      %v3712 = vld [vmem:[%s8 + $0x288] sm:$0xff]
      %v3713 = vld [vmem:[%s8 + $0x290] sm:$0xff]
      %v3714 = vld [vmem:[%s8 + $0x298] sm:$0xff]
      %v3715 = vld [vmem:[%s8 + $0x2a0] sm:$0xff]
      %v3716 = vld [vmem:[%s8 + $0x2a8] sm:$0xff]
      %v3717 = vld [vmem:[%s8 + $0x2b0] sm:$0xff]
      %v3718 = vld [vmem:[%s8 + $0x2b8] sm:$0xff]
      %v3719 = vld [vmem:[%s8 + $0x2c0] sm:$0xff]
      %v3720 = vld [vmem:[%s8 + $0x2c8] sm:$0xff]
      %v3721 = vld [vmem:[%s8 + $0x2d0] sm:$0xff]
      %v3722 = vld [vmem:[%s8 + $0x2d8] sm:$0xff]
      %v3723 = vld [vmem:[%s8 + $0x2e0] sm:$0xff]
      %v3724 = vld [vmem:[%s8 + $0x2e8] sm:$0xff]
      %v3725 = vld [vmem:[%s8 + $0x2f0] sm:$0xff]
      %v3726 = vld [vmem:[%s8 + $0x2f8] sm:$0xff]
      %v3727 = vld [vmem:[%s8 + $0x300] sm:$0xff]
      %v3728 = vld [vmem:[%s8 + $0x308] sm:$0xff]
      %v3729 = vld [vmem:[%s8 + $0x310] sm:$0xff]
      %v3730 = vld [vmem:[%s8 + $0x318] sm:$0xff]
      %v3731 = vld [vmem:[%s8 + $0x320] sm:$0xff]
      %v3732 = vld [vmem:[%s8 + $0x328] sm:$0xff]
      %v3733 = vld [vmem:[%s8 + $0x330] sm:$0xff]
      %v3734 = vld [vmem:[%s8 + $0x338] sm:$0xff]
      %v3735 = vld [vmem:[%s8 + $0x340] sm:$0xff]
      %v3736 = vld [vmem:[%s8 + $0x348] sm:$0xff]
      %v3737 = vld [vmem:[%s8 + $0x350] sm:$0xff]
      %v3738 = vld [vmem:[%s8 + $0x358] sm:$0xff]
      %v3739 = vld [vmem:[%s8 + $0x360] sm:$0xff]
      %v3740 = vld [vmem:[%s8 + $0x368] sm:$0xff]
      %v3741 = vld [vmem:[%s8 + $0x370] sm:$0xff]
      %v3742 = vld [vmem:[%s8 + $0x378] sm:$0xff]
      %v3743 = vld [vmem:[%s8 + $0x380] sm:$0xff]
      %v3744 = vld [vmem:[%s8 + $0x388] sm:$0xff]
      %v3745 = vld [vmem:[%s8 + $0x390] sm:$0xff]
      %v3746 = vld [vmem:[%s8 + $0x398] sm:$0xff]
      %v3747 = vld [vmem:[%s8 + $0x3a0] sm:$0xff]
      %v3748 = vld [vmem:[%s8 + $0x3a8] sm:$0xff]
      %v3749 = vld [vmem:[%s8 + $0x3b0] sm:$0xff]
      %v3750 = vld [vmem:[%s8 + $0x3b8] sm:$0xff]
      %v3751 = vld [vmem:[%s8 + $0x3c0] sm:$0xff]
      %v3752 = vld [vmem:[%s8 + $0x3c8] sm:$0xff]
      %v3753 = vld [vmem:[%s8 + $0x3d0] sm:$0xff]
      %v3754 = vld [vmem:[%s8 + $0x3d8] sm:$0xff]
      %v3755 = vld [vmem:[%s8 + $0x3e0] sm:$0xff]
      %v3756 = vld [vmem:[%s8 + $0x3e8] sm:$0xff]
      %v3757 = vld [vmem:[%s8 + $0x3f0] sm:$0xff]
      %v3758 = vld [vmem:[%s8 + $0x3f8] sm:$0xff]
      %v3759 = vld [vmem:[%s9] sm:$0x3]
      %v3761 = vlaneseq
      %v3762 = vshrl.u32 %v3761, 7
      %v3763 = vsub.s32 0, %v3762
      %v3764 = vrot.slane %v3759, %v3763
      %v3765 = vlaneseq
      %v3766 = vshrl.u32 %v3765, 7
      %v3767 = vsub.s32 1, %v3766
      %v3768 = vrot.slane %v3759, %v3767
      %v3899 = vunpack.c.l.b16 %v3631
      %v3900 = vunpack.c.h.b16 %v3631
      %v3901 = vunpack.c.l.b16 %v3632
      %v3902 = vunpack.c.h.b16 %v3632
      %v3903 = vunpack.c.l.b16 %v3633
      %v3904 = vunpack.c.h.b16 %v3633
      %v3905 = vunpack.c.l.b16 %v3634
      %v3906 = vunpack.c.h.b16 %v3634
      %v3907 = vunpack.c.l.b16 %v3635
      %v3908 = vunpack.c.h.b16 %v3635
      %v3909 = vunpack.c.l.b16 %v3636
      %v3910 = vunpack.c.h.b16 %v3636
      %v3911 = vunpack.c.l.b16 %v3637
      %v3912 = vunpack.c.h.b16 %v3637
      %v3913 = vunpack.c.l.b16 %v3638
      %v3914 = vunpack.c.h.b16 %v3638
      %v3915 = vunpack.c.l.b16 %v3639
      %v3916 = vunpack.c.h.b16 %v3639
      %v3917 = vunpack.c.l.b16 %v3640
      %v3918 = vunpack.c.h.b16 %v3640
      %v3919 = vunpack.c.l.b16 %v3641
      %v3920 = vunpack.c.h.b16 %v3641
      %v3921 = vunpack.c.l.b16 %v3642
      %v3922 = vunpack.c.h.b16 %v3642
      %v3923 = vunpack.c.l.b16 %v3643
      %v3924 = vunpack.c.h.b16 %v3643
      %v3925 = vunpack.c.l.b16 %v3644
      %v3926 = vunpack.c.h.b16 %v3644
      %v3927 = vunpack.c.l.b16 %v3645
      %v3928 = vunpack.c.h.b16 %v3645
      %v3929 = vunpack.c.l.b16 %v3646
      %v3930 = vunpack.c.h.b16 %v3646
      %v3931 = vunpack.c.l.b16 %v3647
      %v3932 = vunpack.c.h.b16 %v3647
      %v3933 = vunpack.c.l.b16 %v3648
      %v3934 = vunpack.c.h.b16 %v3648
      %v3935 = vunpack.c.l.b16 %v3649
      %v3936 = vunpack.c.h.b16 %v3649
      %v3937 = vunpack.c.l.b16 %v3650
      %v3938 = vunpack.c.h.b16 %v3650
      %v3939 = vunpack.c.l.b16 %v3651
      %v3940 = vunpack.c.h.b16 %v3651
      %v3941 = vunpack.c.l.b16 %v3652
      %v3942 = vunpack.c.h.b16 %v3652
      %v3943 = vunpack.c.l.b16 %v3653
      %v3944 = vunpack.c.h.b16 %v3653
      %v3945 = vunpack.c.l.b16 %v3654
      %v3946 = vunpack.c.h.b16 %v3654
      %v3947 = vunpack.c.l.b16 %v3655
      %v3948 = vunpack.c.h.b16 %v3655
      %v3949 = vunpack.c.l.b16 %v3656
      %v3950 = vunpack.c.h.b16 %v3656
      %v3951 = vunpack.c.l.b16 %v3657
      %v3952 = vunpack.c.h.b16 %v3657
      %v3953 = vunpack.c.l.b16 %v3658
      %v3954 = vunpack.c.h.b16 %v3658
      %v3955 = vunpack.c.l.b16 %v3659
      %v3956 = vunpack.c.h.b16 %v3659
      %v3957 = vunpack.c.l.b16 %v3660
      %v3958 = vunpack.c.h.b16 %v3660
      %v3959 = vunpack.c.l.b16 %v3661
      %v3960 = vunpack.c.h.b16 %v3661
      %v3961 = vunpack.c.l.b16 %v3662
      %v3962 = vunpack.c.h.b16 %v3662
      %v3963 = vunpack.c.l.b16 %v3663
      %v3964 = vunpack.c.h.b16 %v3663
      %v3965 = vunpack.c.l.b16 %v3664
      %v3966 = vunpack.c.h.b16 %v3664
      %v3967 = vunpack.c.l.b16 %v3665
      %v3968 = vunpack.c.h.b16 %v3665
      %v3969 = vunpack.c.l.b16 %v3666
      %v3970 = vunpack.c.h.b16 %v3666
      %v3971 = vunpack.c.l.b16 %v3667
      %v3972 = vunpack.c.h.b16 %v3667
      %v3973 = vunpack.c.l.b16 %v3668
      %v3974 = vunpack.c.h.b16 %v3668
      %v3975 = vunpack.c.l.b16 %v3669
      %v3976 = vunpack.c.h.b16 %v3669
      %v3977 = vunpack.c.l.b16 %v3670
      %v3978 = vunpack.c.h.b16 %v3670
      %v3979 = vunpack.c.l.b16 %v3671
      %v3980 = vunpack.c.h.b16 %v3671
      %v3981 = vunpack.c.l.b16 %v3672
      %v3982 = vunpack.c.h.b16 %v3672
      %v3983 = vunpack.c.l.b16 %v3673
      %v3984 = vunpack.c.h.b16 %v3673
      %v3985 = vunpack.c.l.b16 %v3674
      %v3986 = vunpack.c.h.b16 %v3674
      %v3987 = vunpack.c.l.b16 %v3675
      %v3988 = vunpack.c.h.b16 %v3675
      %v3989 = vunpack.c.l.b16 %v3676
      %v3990 = vunpack.c.h.b16 %v3676
      %v3991 = vunpack.c.l.b16 %v3677
      %v3992 = vunpack.c.h.b16 %v3677
      %v3993 = vunpack.c.l.b16 %v3678
      %v3994 = vunpack.c.h.b16 %v3678
      %v3995 = vunpack.c.l.b16 %v3679
      %v3996 = vunpack.c.h.b16 %v3679
      %v3997 = vunpack.c.l.b16 %v3680
      %v3998 = vunpack.c.h.b16 %v3680
      %v3999 = vunpack.c.l.b16 %v3681
      %v4000 = vunpack.c.h.b16 %v3681
      %v4001 = vunpack.c.l.b16 %v3682
      %v4002 = vunpack.c.h.b16 %v3682
      %v4003 = vunpack.c.l.b16 %v3683
      %v4004 = vunpack.c.h.b16 %v3683
      %v4005 = vunpack.c.l.b16 %v3684
      %v4006 = vunpack.c.h.b16 %v3684
      %v4007 = vunpack.c.l.b16 %v3685
      %v4008 = vunpack.c.h.b16 %v3685
      %v4009 = vunpack.c.l.b16 %v3686
      %v4010 = vunpack.c.h.b16 %v3686
      %v4011 = vunpack.c.l.b16 %v3687
      %v4012 = vunpack.c.h.b16 %v3687
      %v4013 = vunpack.c.l.b16 %v3688
      %v4014 = vunpack.c.h.b16 %v3688
      %v4015 = vunpack.c.l.b16 %v3689
      %v4016 = vunpack.c.h.b16 %v3689
      %v4017 = vunpack.c.l.b16 %v3690
      %v4018 = vunpack.c.h.b16 %v3690
      %v4019 = vunpack.c.l.b16 %v3691
      %v4020 = vunpack.c.h.b16 %v3691
      %v4021 = vunpack.c.l.b16 %v3692
      %v4022 = vunpack.c.h.b16 %v3692
      %v4023 = vunpack.c.l.b16 %v3693
      %v4024 = vunpack.c.h.b16 %v3693
      %v4025 = vunpack.c.l.b16 %v3694
      %v4026 = vunpack.c.h.b16 %v3694
      %v4027 = vunpack.c.l.b16 %v3695
      %v4028 = vunpack.c.h.b16 %v3695
      %v4029 = vunpack.c.l.b16 %v3696
      %v4030 = vunpack.c.h.b16 %v3696
      %v4031 = vunpack.c.l.b16 %v3697
      %v4032 = vunpack.c.h.b16 %v3697
      %v4033 = vunpack.c.l.b16 %v3698
      %v4034 = vunpack.c.h.b16 %v3698
      %v4035 = vunpack.c.l.b16 %v3699
      %v4036 = vunpack.c.h.b16 %v3699
      %v4037 = vunpack.c.l.b16 %v3700
      %v4038 = vunpack.c.h.b16 %v3700
      %v4039 = vunpack.c.l.b16 %v3701
      %v4040 = vunpack.c.h.b16 %v3701
      %v4041 = vunpack.c.l.b16 %v3702
      %v4042 = vunpack.c.h.b16 %v3702
      %v4043 = vunpack.c.l.b16 %v3703
      %v4044 = vunpack.c.h.b16 %v3703
      %v4045 = vunpack.c.l.b16 %v3704
      %v4046 = vunpack.c.h.b16 %v3704
      %v4047 = vunpack.c.l.b16 %v3705
      %v4048 = vunpack.c.h.b16 %v3705
      %v4049 = vunpack.c.l.b16 %v3706
      %v4050 = vunpack.c.h.b16 %v3706
      %v4051 = vunpack.c.l.b16 %v3707
      %v4052 = vunpack.c.h.b16 %v3707
      %v4053 = vunpack.c.l.b16 %v3708
      %v4054 = vunpack.c.h.b16 %v3708
      %v4055 = vunpack.c.l.b16 %v3709
      %v4056 = vunpack.c.h.b16 %v3709
      %v4057 = vunpack.c.l.b16 %v3710
      %v4058 = vunpack.c.h.b16 %v3710
      %v4059 = vunpack.c.l.b16 %v3711
      %v4060 = vunpack.c.h.b16 %v3711
      %v4061 = vunpack.c.l.b16 %v3712
      %v4062 = vunpack.c.h.b16 %v3712
      %v4063 = vunpack.c.l.b16 %v3713
      %v4064 = vunpack.c.h.b16 %v3713
      %v4065 = vunpack.c.l.b16 %v3714
      %v4066 = vunpack.c.h.b16 %v3714
      %v4067 = vunpack.c.l.b16 %v3715
      %v4068 = vunpack.c.h.b16 %v3715
      %v4069 = vunpack.c.l.b16 %v3716
      %v4070 = vunpack.c.h.b16 %v3716
      %v4071 = vunpack.c.l.b16 %v3717
      %v4072 = vunpack.c.h.b16 %v3717
      %v4073 = vunpack.c.l.b16 %v3718
      %v4074 = vunpack.c.h.b16 %v3718
      %v4075 = vunpack.c.l.b16 %v3719
      %v4076 = vunpack.c.h.b16 %v3719
      %v4077 = vunpack.c.l.b16 %v3720
      %v4078 = vunpack.c.h.b16 %v3720
      %v4079 = vunpack.c.l.b16 %v3721
      %v4080 = vunpack.c.h.b16 %v3721
      %v4081 = vunpack.c.l.b16 %v3722
      %v4082 = vunpack.c.h.b16 %v3722
      %v4083 = vunpack.c.l.b16 %v3723
      %v4084 = vunpack.c.h.b16 %v3723
      %v4085 = vunpack.c.l.b16 %v3724
      %v4086 = vunpack.c.h.b16 %v3724
      %v4087 = vunpack.c.l.b16 %v3725
      %v4088 = vunpack.c.h.b16 %v3725
      %v4089 = vunpack.c.l.b16 %v3726
      %v4090 = vunpack.c.h.b16 %v3726
      %v4091 = vunpack.c.l.b16 %v3727
      %v4092 = vunpack.c.h.b16 %v3727
      %v4093 = vunpack.c.l.b16 %v3728
      %v4094 = vunpack.c.h.b16 %v3728
      %v4095 = vunpack.c.l.b16 %v3729
      %v4096 = vunpack.c.h.b16 %v3729
      %v4097 = vunpack.c.l.b16 %v3730
      %v4098 = vunpack.c.h.b16 %v3730
      %v4099 = vunpack.c.l.b16 %v3731
      %v4100 = vunpack.c.h.b16 %v3731
      %v4101 = vunpack.c.l.b16 %v3732
      %v4102 = vunpack.c.h.b16 %v3732
      %v4103 = vunpack.c.l.b16 %v3733
      %v4104 = vunpack.c.h.b16 %v3733
      %v4105 = vunpack.c.l.b16 %v3734
      %v4106 = vunpack.c.h.b16 %v3734
      %v4107 = vunpack.c.l.b16 %v3735
      %v4108 = vunpack.c.h.b16 %v3735
      %v4109 = vunpack.c.l.b16 %v3736
      %v4110 = vunpack.c.h.b16 %v3736
      %v4111 = vunpack.c.l.b16 %v3737
      %v4112 = vunpack.c.h.b16 %v3737
      %v4113 = vunpack.c.l.b16 %v3738
      %v4114 = vunpack.c.h.b16 %v3738
      %v4115 = vunpack.c.l.b16 %v3739
      %v4116 = vunpack.c.h.b16 %v3739
      %v4117 = vunpack.c.l.b16 %v3740
      %v4118 = vunpack.c.h.b16 %v3740
      %v4119 = vunpack.c.l.b16 %v3741
      %v4120 = vunpack.c.h.b16 %v3741
      %v4121 = vunpack.c.l.b16 %v3742
      %v4122 = vunpack.c.h.b16 %v3742
      %v4123 = vunpack.c.l.b16 %v3743
      %v4124 = vunpack.c.h.b16 %v3743
      %v4125 = vunpack.c.l.b16 %v3744
      %v4126 = vunpack.c.h.b16 %v3744
      %v4127 = vunpack.c.l.b16 %v3745
      %v4128 = vunpack.c.h.b16 %v3745
      %v4129 = vunpack.c.l.b16 %v3746
      %v4130 = vunpack.c.h.b16 %v3746
      %v4131 = vunpack.c.l.b16 %v3747
      %v4132 = vunpack.c.h.b16 %v3747
      %v4133 = vunpack.c.l.b16 %v3748
      %v4134 = vunpack.c.h.b16 %v3748
      %v4135 = vunpack.c.l.b16 %v3749
      %v4136 = vunpack.c.h.b16 %v3749
      %v4137 = vunpack.c.l.b16 %v3750
      %v4138 = vunpack.c.h.b16 %v3750
      %v4139 = vunpack.c.l.b16 %v3751
      %v4140 = vunpack.c.h.b16 %v3751
      %v4141 = vunpack.c.l.b16 %v3752
      %v4142 = vunpack.c.h.b16 %v3752
      %v4143 = vunpack.c.l.b16 %v3753
      %v4144 = vunpack.c.h.b16 %v3753
      %v4145 = vunpack.c.l.b16 %v3754
      %v4146 = vunpack.c.h.b16 %v3754
      %v4147 = vunpack.c.l.b16 %v3755
      %v4148 = vunpack.c.h.b16 %v3755
      %v4149 = vunpack.c.l.b16 %v3756
      %v4150 = vunpack.c.h.b16 %v3756
      %v4151 = vunpack.c.l.b16 %v3757
      %v4152 = vunpack.c.h.b16 %v3757
      %v4153 = vunpack.c.l.b16 %v3758
      %v4154 = vunpack.c.h.b16 %v3758
      %v4155 = vpack.c.b16 %v3901, %v3899
      %v4156 = vpack.c.b16 %v3902, %v3900
      %v4157 = vpack.c.b16 %v3905, %v3903
      %v4158 = vpack.c.b16 %v3906, %v3904
      %v4159 = vpack.c.b16 %v3909, %v3907
      %v4160 = vpack.c.b16 %v3910, %v3908
      %v4161 = vpack.c.b16 %v3913, %v3911
      %v4162 = vpack.c.b16 %v3914, %v3912
      %v4163 = vpack.c.b16 %v3917, %v3915
      %v4164 = vpack.c.b16 %v3918, %v3916
      %v4165 = vpack.c.b16 %v3921, %v3919
      %v4166 = vpack.c.b16 %v3922, %v3920
      %v4167 = vpack.c.b16 %v3925, %v3923
      %v4168 = vpack.c.b16 %v3926, %v3924
      %v4169 = vpack.c.b16 %v3929, %v3927
      %v4170 = vpack.c.b16 %v3930, %v3928
      %v4171 = vpack.c.b16 %v3933, %v3931
      %v4172 = vpack.c.b16 %v3934, %v3932
      %v4173 = vpack.c.b16 %v3937, %v3935
      %v4174 = vpack.c.b16 %v3938, %v3936
      %v4175 = vpack.c.b16 %v3941, %v3939
      %v4176 = vpack.c.b16 %v3942, %v3940
      %v4177 = vpack.c.b16 %v3945, %v3943
      %v4178 = vpack.c.b16 %v3946, %v3944
      %v4179 = vpack.c.b16 %v3949, %v3947
      %v4180 = vpack.c.b16 %v3950, %v3948
      %v4181 = vpack.c.b16 %v3953, %v3951
      %v4182 = vpack.c.b16 %v3954, %v3952
      %v4183 = vpack.c.b16 %v3957, %v3955
      %v4184 = vpack.c.b16 %v3958, %v3956
      %v4185 = vpack.c.b16 %v3961, %v3959
      %v4186 = vpack.c.b16 %v3962, %v3960
      %v4187 = vpack.c.b16 %v3965, %v3963
      %v4188 = vpack.c.b16 %v3966, %v3964
      %v4189 = vpack.c.b16 %v3969, %v3967
      %v4190 = vpack.c.b16 %v3970, %v3968
      %v4191 = vpack.c.b16 %v3973, %v3971
      %v4192 = vpack.c.b16 %v3974, %v3972
      %v4193 = vpack.c.b16 %v3977, %v3975
      %v4194 = vpack.c.b16 %v3978, %v3976
      %v4195 = vpack.c.b16 %v3981, %v3979
      %v4196 = vpack.c.b16 %v3982, %v3980
      %v4197 = vpack.c.b16 %v3985, %v3983
      %v4198 = vpack.c.b16 %v3986, %v3984
      %v4199 = vpack.c.b16 %v3989, %v3987
      %v4200 = vpack.c.b16 %v3990, %v3988
      %v4201 = vpack.c.b16 %v3993, %v3991
      %v4202 = vpack.c.b16 %v3994, %v3992
      %v4203 = vpack.c.b16 %v3997, %v3995
      %v4204 = vpack.c.b16 %v3998, %v3996
      %v4205 = vpack.c.b16 %v4001, %v3999
      %v4206 = vpack.c.b16 %v4002, %v4000
      %v4207 = vpack.c.b16 %v4005, %v4003
      %v4208 = vpack.c.b16 %v4006, %v4004
      %v4209 = vpack.c.b16 %v4009, %v4007
      %v4210 = vpack.c.b16 %v4010, %v4008
      %v4211 = vpack.c.b16 %v4013, %v4011
      %v4212 = vpack.c.b16 %v4014, %v4012
      %v4213 = vpack.c.b16 %v4017, %v4015
      %v4214 = vpack.c.b16 %v4018, %v4016
      %v4215 = vpack.c.b16 %v4021, %v4019
      %v4216 = vpack.c.b16 %v4022, %v4020
      %v4217 = vpack.c.b16 %v4025, %v4023
      %v4218 = vpack.c.b16 %v4026, %v4024
      %v4219 = vpack.c.b16 %v4029, %v4027
      %v4220 = vpack.c.b16 %v4030, %v4028
      %v4221 = vpack.c.b16 %v4033, %v4031
      %v4222 = vpack.c.b16 %v4034, %v4032
      %v4223 = vpack.c.b16 %v4037, %v4035
      %v4224 = vpack.c.b16 %v4038, %v4036
      %v4225 = vpack.c.b16 %v4041, %v4039
      %v4226 = vpack.c.b16 %v4042, %v4040
      %v4227 = vpack.c.b16 %v4045, %v4043
      %v4228 = vpack.c.b16 %v4046, %v4044
      %v4229 = vpack.c.b16 %v4049, %v4047
      %v4230 = vpack.c.b16 %v4050, %v4048
      %v4231 = vpack.c.b16 %v4053, %v4051
      %v4232 = vpack.c.b16 %v4054, %v4052
      %v4233 = vpack.c.b16 %v4057, %v4055
      %v4234 = vpack.c.b16 %v4058, %v4056
      %v4235 = vpack.c.b16 %v4061, %v4059
      %v4236 = vpack.c.b16 %v4062, %v4060
      %v4237 = vpack.c.b16 %v4065, %v4063
      %v4238 = vpack.c.b16 %v4066, %v4064
      %v4239 = vpack.c.b16 %v4069, %v4067
      %v4240 = vpack.c.b16 %v4070, %v4068
      %v4241 = vpack.c.b16 %v4073, %v4071
      %v4242 = vpack.c.b16 %v4074, %v4072
      %v4243 = vpack.c.b16 %v4077, %v4075
      %v4244 = vpack.c.b16 %v4078, %v4076
      %v4245 = vpack.c.b16 %v4081, %v4079
      %v4246 = vpack.c.b16 %v4082, %v4080
      %v4247 = vpack.c.b16 %v4085, %v4083
      %v4248 = vpack.c.b16 %v4086, %v4084
      %v4249 = vpack.c.b16 %v4089, %v4087
      %v4250 = vpack.c.b16 %v4090, %v4088
      %v4251 = vpack.c.b16 %v4093, %v4091
      %v4252 = vpack.c.b16 %v4094, %v4092
      %v4253 = vpack.c.b16 %v4097, %v4095
      %v4254 = vpack.c.b16 %v4098, %v4096
      %v4255 = vpack.c.b16 %v4101, %v4099
      %v4256 = vpack.c.b16 %v4102, %v4100
      %v4257 = vpack.c.b16 %v4105, %v4103
      %v4258 = vpack.c.b16 %v4106, %v4104
      %v4259 = vpack.c.b16 %v4109, %v4107
      %v4260 = vpack.c.b16 %v4110, %v4108
      %v4261 = vpack.c.b16 %v4113, %v4111
      %v4262 = vpack.c.b16 %v4114, %v4112
      %v4263 = vpack.c.b16 %v4117, %v4115
      %v4264 = vpack.c.b16 %v4118, %v4116
      %v4265 = vpack.c.b16 %v4121, %v4119
      %v4266 = vpack.c.b16 %v4122, %v4120
      %v4267 = vpack.c.b16 %v4125, %v4123
      %v4268 = vpack.c.b16 %v4126, %v4124
      %v4269 = vpack.c.b16 %v4129, %v4127
      %v4270 = vpack.c.b16 %v4130, %v4128
      %v4271 = vpack.c.b16 %v4133, %v4131
      %v4272 = vpack.c.b16 %v4134, %v4132
      %v4273 = vpack.c.b16 %v4137, %v4135
      %v4274 = vpack.c.b16 %v4138, %v4136
      %v4275 = vpack.c.b16 %v4141, %v4139
      %v4276 = vpack.c.b16 %v4142, %v4140
      %v4277 = vpack.c.b16 %v4145, %v4143
      %v4278 = vpack.c.b16 %v4146, %v4144
      %v4279 = vpack.c.b16 %v4149, %v4147
      %v4280 = vpack.c.b16 %v4150, %v4148
      %v4281 = vpack.c.b16 %v4153, %v4151
      %v4282 = vpack.c.b16 %v4154, %v4152
      %4411 = vmatprep.subr.bf16.mxu0 %v4170
      %4412 = vmatpush1.bf16.msra.mxu0 %v4169
      %4413 = vmatprep.subr.bf16.mxu0 %v4168
      %4414 = vmatpush1.bf16.msra.mxu0 %v4167
      %4415 = vmatprep.subr.bf16.mxu0 %v4166
      %4416 = vmatpush1.bf16.msra.mxu0 %v4165
      %4417 = vmatprep.subr.bf16.mxu0 %v4164
      %4418 = vmatpush1.bf16.msra.mxu0 %v4163
      %4419 = vmatprep.subr.bf16.mxu0 %v4162
      %4420 = vmatpush1.bf16.msra.mxu0 %v4161
      %4421 = vmatprep.subr.bf16.mxu0 %v4160
      %4422 = vmatpush1.bf16.msra.mxu0 %v4159
      %4423 = vmatprep.subr.bf16.mxu0 %v4158
      %4424 = vmatpush1.bf16.msra.mxu0 %v4157
      %4425 = vmatprep.subr.bf16.mxu0 %v4156
      %4426 = vmatpush1.bf16.msra.mxu0 %v4155
      %4427 = vmatprep.subr.bf16.mxu0 %v4186
      %4428 = vmatpush2.bf16.msra.mxu0 %v4185
      %4429 = vmatprep.subr.bf16.mxu0 %v4184
      %4430 = vmatpush2.bf16.msra.mxu0 %v4183
      %4431 = vmatprep.subr.bf16.mxu0 %v4182
      %4432 = vmatpush2.bf16.msra.mxu0 %v4181
      %4433 = vmatprep.subr.bf16.mxu0 %v4180
      %4434 = vmatpush2.bf16.msra.mxu0 %v4179
      %4435 = vmatprep.subr.bf16.mxu0 %v4178
      %4436 = vmatpush2.bf16.msra.mxu0 %v4177
      %4437 = vmatprep.subr.bf16.mxu0 %v4176
      %4438 = vmatpush2.bf16.msra.mxu0 %v4175
      %4439 = vmatprep.subr.bf16.mxu0 %v4174
      %4440 = vmatpush2.bf16.msra.mxu0 %v4173
      %4441 = vmatprep.subr.bf16.mxu0 %v4172
      %4442 = vmatpush2.bf16.msra.mxu0 %v4171
      %4443 = vmatprep.mubr.bf16.mxu0 %v3568
      %4444 = vmatmul.mubr.bf16.gmra.mxu0 %v3567
      %v4445 = vpop.f32.mrf.mxu0
      %v4446 = vadd.f32 %v3764, %v4445
      %v4447 = vpop.f32.mrf.mxu0
      %v4448 = vadd.f32 %v3768, %v4447
      %v4449 = vpop.f32.mrf.mxu0
      %v4450 = vadd.f32 %v3764, %v4449
      %v4451 = vpop.f32.mrf.mxu0
      %v4452 = vadd.f32 %v3768, %v4451
      %4453 = vmatprep.mubr.bf16.mxu0 %v3576
      %4454 = vmatmul.mubr.bf16.gmra.mxu0 %v3575
      %v4455 = vpop.f32.mrf.mxu0
      %v4456 = vadd.f32 %v3764, %v4455
      %v4457 = vpop.f32.mrf.mxu0
      %v4458 = vadd.f32 %v3768, %v4457
      %v4459 = vpop.f32.mrf.mxu0
      %v4460 = vadd.f32 %v3764, %v4459
      %v4461 = vpop.f32.mrf.mxu0
      %v4462 = vadd.f32 %v3768, %v4461
      %4463 = vmatprep.mubr.bf16.mxu0 %v3584
      %4464 = vmatmul.mubr.bf16.gmra.mxu0 %v3583
      %v4465 = vpop.f32.mrf.mxu0
      %v4466 = vadd.f32 %v3764, %v4465
      %v4467 = vpop.f32.mrf.mxu0
      %v4468 = vadd.f32 %v3768, %v4467
      %v4469 = vpop.f32.mrf.mxu0
      %v4470 = vadd.f32 %v3764, %v4469
      %v4471 = vpop.f32.mrf.mxu0
      %v4472 = vadd.f32 %v3768, %v4471
      %4473 = vmatprep.mubr.bf16.mxu0 %v3592
      %4474 = vmatmul.mubr.bf16.gmra.mxu0 %v3591
      %v4475 = vpop.f32.mrf.mxu0
      %v4476 = vadd.f32 %v3764, %v4475
      %v4477 = vpop.f32.mrf.mxu0
      %v4478 = vadd.f32 %v3768, %v4477
      %v4479 = vpop.f32.mrf.mxu0
      %v4480 = vadd.f32 %v3764, %v4479
      %v4481 = vpop.f32.mrf.mxu0
      %v4482 = vadd.f32 %v3768, %v4481
      %4483 = vmatprep.mubr.bf16.mxu0 %v3600
      %4484 = vmatmul.mubr.bf16.gmra.mxu0 %v3599
      %v4485 = vpop.f32.mrf.mxu0
      %v4486 = vadd.f32 %v3764, %v4485
      %v4487 = vpop.f32.mrf.mxu0
      %v4488 = vadd.f32 %v3768, %v4487
      %v4489 = vpop.f32.mrf.mxu0
      %v4490 = vadd.f32 %v3764, %v4489
      %v4491 = vpop.f32.mrf.mxu0
      %v4492 = vadd.f32 %v3768, %v4491
      %4493 = vmatprep.mubr.bf16.mxu0 %v3608
      %4494 = vmatmul.mubr.bf16.gmra.mxu0 %v3607
      %v4495 = vpop.f32.mrf.mxu0
      %v4496 = vadd.f32 %v3764, %v4495
      %v4497 = vpop.f32.mrf.mxu0
      %v4498 = vadd.f32 %v3768, %v4497
      %v4499 = vpop.f32.mrf.mxu0
      %v4500 = vadd.f32 %v3764, %v4499
      %v4501 = vpop.f32.mrf.mxu0
      %v4502 = vadd.f32 %v3768, %v4501
      %4503 = vmatprep.mubr.bf16.mxu0 %v3616
      %4504 = vmatmul.mubr.bf16.gmra.mxu0 %v3615
      %v4505 = vpop.f32.mrf.mxu0
      %v4506 = vadd.f32 %v3764, %v4505
      %v4507 = vpop.f32.mrf.mxu0
      %v4508 = vadd.f32 %v3768, %v4507
      %v4509 = vpop.f32.mrf.mxu0
      %v4510 = vadd.f32 %v3764, %v4509
      %v4511 = vpop.f32.mrf.mxu0
      %v4512 = vadd.f32 %v3768, %v4511
      %4513 = vmatprep.mubr.bf16.mxu0 %v3624
      %4514 = vmatmul.mubr.bf16.gmra.mxu0 %v3623
      %v4515 = vpop.f32.mrf.mxu0
      %v4516 = vadd.f32 %v3764, %v4515
      %v4517 = vpop.f32.mrf.mxu0
      %v4518 = vadd.f32 %v3768, %v4517
      %v4519 = vpop.f32.mrf.mxu0
      %v4520 = vadd.f32 %v3764, %v4519
      %v4521 = vpop.f32.mrf.mxu0
      %v4522 = vadd.f32 %v3768, %v4521
      %4523 = vdwg.mxu0
      %4524 = vmatprep.subr.bf16.mxu0 %v4202
      %4525 = vmatpush1.bf16.msra.mxu0 %v4201
      %4526 = vmatprep.subr.bf16.mxu0 %v4200
      %4527 = vmatpush1.bf16.msra.mxu0 %v4199
      %4528 = vmatprep.subr.bf16.mxu0 %v4198
      %4529 = vmatpush1.bf16.msra.mxu0 %v4197
      %4530 = vmatprep.subr.bf16.mxu0 %v4196
      %4531 = vmatpush1.bf16.msra.mxu0 %v4195
      %4532 = vmatprep.subr.bf16.mxu0 %v4194
      %4533 = vmatpush1.bf16.msra.mxu0 %v4193
      %4534 = vmatprep.subr.bf16.mxu0 %v4192
      %4535 = vmatpush1.bf16.msra.mxu0 %v4191
      %4536 = vmatprep.subr.bf16.mxu0 %v4190
      %4537 = vmatpush1.bf16.msra.mxu0 %v4189
      %4538 = vmatprep.subr.bf16.mxu0 %v4188
      %4539 = vmatpush1.bf16.msra.mxu0 %v4187
      %4540 = vmatprep.subr.bf16.mxu0 %v4218
      %4541 = vmatpush2.bf16.msra.mxu0 %v4217
      %4542 = vmatprep.subr.bf16.mxu0 %v4216
      %4543 = vmatpush2.bf16.msra.mxu0 %v4215
      %4544 = vmatprep.subr.bf16.mxu0 %v4214
      %4545 = vmatpush2.bf16.msra.mxu0 %v4213
      %4546 = vmatprep.subr.bf16.mxu0 %v4212
      %4547 = vmatpush2.bf16.msra.mxu0 %v4211
      %4548 = vmatprep.subr.bf16.mxu0 %v4210
      %4549 = vmatpush2.bf16.msra.mxu0 %v4209
      %4550 = vmatprep.subr.bf16.mxu0 %v4208
      %4551 = vmatpush2.bf16.msra.mxu0 %v4207
      %4552 = vmatprep.subr.bf16.mxu0 %v4206
      %4553 = vmatpush2.bf16.msra.mxu0 %v4205
      %4554 = vmatprep.subr.bf16.mxu0 %v4204
      %4555 = vmatpush2.bf16.msra.mxu0 %v4203
      %4556 = vmatprep.mubr.bf16.mxu0 %v3570
      %4557 = vmatmul.mubr.bf16.gmra.mxu0 %v3569
      %v4558 = vpop.f32.mrf.mxu0
      %v4559 = vadd.f32 %v4446, %v4558
      %v4560 = vpop.f32.mrf.mxu0
      %v4561 = vadd.f32 %v4448, %v4560
      %v4562 = vpop.f32.mrf.mxu0
      %v4563 = vadd.f32 %v4450, %v4562
      %v4564 = vpop.f32.mrf.mxu0
      %v4565 = vadd.f32 %v4452, %v4564
      %4566 = vmatprep.mubr.bf16.mxu0 %v3578
      %4567 = vmatmul.mubr.bf16.gmra.mxu0 %v3577
      %v4568 = vpop.f32.mrf.mxu0
      %v4569 = vadd.f32 %v4456, %v4568
      %v4570 = vpop.f32.mrf.mxu0
      %v4571 = vadd.f32 %v4458, %v4570
      %v4572 = vpop.f32.mrf.mxu0
      %v4573 = vadd.f32 %v4460, %v4572
      %v4574 = vpop.f32.mrf.mxu0
      %v4575 = vadd.f32 %v4462, %v4574
      %4576 = vmatprep.mubr.bf16.mxu0 %v3586
      %4577 = vmatmul.mubr.bf16.gmra.mxu0 %v3585
      %v4578 = vpop.f32.mrf.mxu0
      %v4579 = vadd.f32 %v4466, %v4578
      %v4580 = vpop.f32.mrf.mxu0
      %v4581 = vadd.f32 %v4468, %v4580
      %v4582 = vpop.f32.mrf.mxu0
      %v4583 = vadd.f32 %v4470, %v4582
      %v4584 = vpop.f32.mrf.mxu0
      %v4585 = vadd.f32 %v4472, %v4584
      %4586 = vmatprep.mubr.bf16.mxu0 %v3594
      %4587 = vmatmul.mubr.bf16.gmra.mxu0 %v3593
      %v4588 = vpop.f32.mrf.mxu0
      %v4589 = vadd.f32 %v4476, %v4588
      %v4590 = vpop.f32.mrf.mxu0
      %v4591 = vadd.f32 %v4478, %v4590
      %v4592 = vpop.f32.mrf.mxu0
      %v4593 = vadd.f32 %v4480, %v4592
      %v4594 = vpop.f32.mrf.mxu0
      %v4595 = vadd.f32 %v4482, %v4594
      %4596 = vmatprep.mubr.bf16.mxu0 %v3602
      %4597 = vmatmul.mubr.bf16.gmra.mxu0 %v3601
      %v4598 = vpop.f32.mrf.mxu0
      %v4599 = vadd.f32 %v4486, %v4598
      %v4600 = vpop.f32.mrf.mxu0
      %v4601 = vadd.f32 %v4488, %v4600
      %v4602 = vpop.f32.mrf.mxu0
      %v4603 = vadd.f32 %v4490, %v4602
      %v4604 = vpop.f32.mrf.mxu0
      %v4605 = vadd.f32 %v4492, %v4604
      %4606 = vmatprep.mubr.bf16.mxu0 %v3610
      %4607 = vmatmul.mubr.bf16.gmra.mxu0 %v3609
      %v4608 = vpop.f32.mrf.mxu0
      %v4609 = vadd.f32 %v4496, %v4608
      %v4610 = vpop.f32.mrf.mxu0
      %v4611 = vadd.f32 %v4498, %v4610
      %v4612 = vpop.f32.mrf.mxu0
      %v4613 = vadd.f32 %v4500, %v4612
      %v4614 = vpop.f32.mrf.mxu0
      %v4615 = vadd.f32 %v4502, %v4614
      %4616 = vmatprep.mubr.bf16.mxu0 %v3618
      %4617 = vmatmul.mubr.bf16.gmra.mxu0 %v3617
      %v4618 = vpop.f32.mrf.mxu0
      %v4619 = vadd.f32 %v4506, %v4618
      %v4620 = vpop.f32.mrf.mxu0
      %v4621 = vadd.f32 %v4508, %v4620
      %v4622 = vpop.f32.mrf.mxu0
      %v4623 = vadd.f32 %v4510, %v4622
      %v4624 = vpop.f32.mrf.mxu0
      %v4625 = vadd.f32 %v4512, %v4624
      %4626 = vmatprep.mubr.bf16.mxu0 %v3626
      %4627 = vmatmul.mubr.bf16.gmra.mxu0 %v3625
      %v4628 = vpop.f32.mrf.mxu0
      %v4629 = vadd.f32 %v4516, %v4628
      %v4630 = vpop.f32.mrf.mxu0
      %v4631 = vadd.f32 %v4518, %v4630
      %v4632 = vpop.f32.mrf.mxu0
      %v4633 = vadd.f32 %v4520, %v4632
      %v4634 = vpop.f32.mrf.mxu0
      %v4635 = vadd.f32 %v4522, %v4634
      %4636 = vdwg.mxu0
      %4637 = vmatprep.subr.bf16.mxu0 %v4234
      %4638 = vmatpush1.bf16.msra.mxu0 %v4233
      %4639 = vmatprep.subr.bf16.mxu0 %v4232
      %4640 = vmatpush1.bf16.msra.mxu0 %v4231
      %4641 = vmatprep.subr.bf16.mxu0 %v4230
      %4642 = vmatpush1.bf16.msra.mxu0 %v4229
      %4643 = vmatprep.subr.bf16.mxu0 %v4228
      %4644 = vmatpush1.bf16.msra.mxu0 %v4227
      %4645 = vmatprep.subr.bf16.mxu0 %v4226
      %4646 = vmatpush1.bf16.msra.mxu0 %v4225
      %4647 = vmatprep.subr.bf16.mxu0 %v4224
      %4648 = vmatpush1.bf16.msra.mxu0 %v4223
      %4649 = vmatprep.subr.bf16.mxu0 %v4222
      %4650 = vmatpush1.bf16.msra.mxu0 %v4221
      %4651 = vmatprep.subr.bf16.mxu0 %v4220
      %4652 = vmatpush1.bf16.msra.mxu0 %v4219
      %4653 = vmatprep.subr.bf16.mxu0 %v4250
      %4654 = vmatpush2.bf16.msra.mxu0 %v4249
      %4655 = vmatprep.subr.bf16.mxu0 %v4248
      %4656 = vmatpush2.bf16.msra.mxu0 %v4247
      %4657 = vmatprep.subr.bf16.mxu0 %v4246
      %4658 = vmatpush2.bf16.msra.mxu0 %v4245
      %4659 = vmatprep.subr.bf16.mxu0 %v4244
      %4660 = vmatpush2.bf16.msra.mxu0 %v4243
      %4661 = vmatprep.subr.bf16.mxu0 %v4242
      %4662 = vmatpush2.bf16.msra.mxu0 %v4241
      %4663 = vmatprep.subr.bf16.mxu0 %v4240
      %4664 = vmatpush2.bf16.msra.mxu0 %v4239
      %4665 = vmatprep.subr.bf16.mxu0 %v4238
      %4666 = vmatpush2.bf16.msra.mxu0 %v4237
      %4667 = vmatprep.subr.bf16.mxu0 %v4236
      %4668 = vmatpush2.bf16.msra.mxu0 %v4235
      %4669 = vmatprep.mubr.bf16.mxu0 %v3572
      %4670 = vmatmul.mubr.bf16.gmra.mxu0 %v3571
      %v4671 = vpop.f32.mrf.mxu0
      %v4672 = vadd.f32 %v4559, %v4671
      %v4673 = vpop.f32.mrf.mxu0
      %v4674 = vadd.f32 %v4561, %v4673
      %v4675 = vpop.f32.mrf.mxu0
      %v4676 = vadd.f32 %v4563, %v4675
      %v4677 = vpop.f32.mrf.mxu0
      %v4678 = vadd.f32 %v4565, %v4677
      %4679 = vmatprep.mubr.bf16.mxu0 %v3580
      %4680 = vmatmul.mubr.bf16.gmra.mxu0 %v3579
      %v4681 = vpop.f32.mrf.mxu0
      %v4682 = vadd.f32 %v4569, %v4681
      %v4683 = vpop.f32.mrf.mxu0
      %v4684 = vadd.f32 %v4571, %v4683
      %v4685 = vpop.f32.mrf.mxu0
      %v4686 = vadd.f32 %v4573, %v4685
      %v4687 = vpop.f32.mrf.mxu0
      %v4688 = vadd.f32 %v4575, %v4687
      %4689 = vmatprep.mubr.bf16.mxu0 %v3588
      %4690 = vmatmul.mubr.bf16.gmra.mxu0 %v3587
      %v4691 = vpop.f32.mrf.mxu0
      %v4692 = vadd.f32 %v4579, %v4691
      %v4693 = vpop.f32.mrf.mxu0
      %v4694 = vadd.f32 %v4581, %v4693
      %v4695 = vpop.f32.mrf.mxu0
      %v4696 = vadd.f32 %v4583, %v4695
      %v4697 = vpop.f32.mrf.mxu0
      %v4698 = vadd.f32 %v4585, %v4697
      %4699 = vmatprep.mubr.bf16.mxu0 %v3596
      %4700 = vmatmul.mubr.bf16.gmra.mxu0 %v3595
      %v4701 = vpop.f32.mrf.mxu0
      %v4702 = vadd.f32 %v4589, %v4701
      %v4703 = vpop.f32.mrf.mxu0
      %v4704 = vadd.f32 %v4591, %v4703
      %v4705 = vpop.f32.mrf.mxu0
      %v4706 = vadd.f32 %v4593, %v4705
      %v4707 = vpop.f32.mrf.mxu0
      %v4708 = vadd.f32 %v4595, %v4707
      %4709 = vmatprep.mubr.bf16.mxu0 %v3604
      %4710 = vmatmul.mubr.bf16.gmra.mxu0 %v3603
      %v4711 = vpop.f32.mrf.mxu0
      %v4712 = vadd.f32 %v4599, %v4711
      %v4713 = vpop.f32.mrf.mxu0
      %v4714 = vadd.f32 %v4601, %v4713
      %v4715 = vpop.f32.mrf.mxu0
      %v4716 = vadd.f32 %v4603, %v4715
      %v4717 = vpop.f32.mrf.mxu0
      %v4718 = vadd.f32 %v4605, %v4717
      %4719 = vmatprep.mubr.bf16.mxu0 %v3612
      %4720 = vmatmul.mubr.bf16.gmra.mxu0 %v3611
      %v4721 = vpop.f32.mrf.mxu0
      %v4722 = vadd.f32 %v4609, %v4721
      %v4723 = vpop.f32.mrf.mxu0
      %v4724 = vadd.f32 %v4611, %v4723
      %v4725 = vpop.f32.mrf.mxu0
      %v4726 = vadd.f32 %v4613, %v4725
      %v4727 = vpop.f32.mrf.mxu0
      %v4728 = vadd.f32 %v4615, %v4727
      %4729 = vmatprep.mubr.bf16.mxu0 %v3620
      %4730 = vmatmul.mubr.bf16.gmra.mxu0 %v3619
      %v4731 = vpop.f32.mrf.mxu0
      %v4732 = vadd.f32 %v4619, %v4731
      %v4733 = vpop.f32.mrf.mxu0
      %v4734 = vadd.f32 %v4621, %v4733
      %v4735 = vpop.f32.mrf.mxu0
      %v4736 = vadd.f32 %v4623, %v4735
      %v4737 = vpop.f32.mrf.mxu0
      %v4738 = vadd.f32 %v4625, %v4737
      %4739 = vmatprep.mubr.bf16.mxu0 %v3628
      %4740 = vmatmul.mubr.bf16.gmra.mxu0 %v3627
      %v4741 = vpop.f32.mrf.mxu0
      %v4742 = vadd.f32 %v4629, %v4741
      %v4743 = vpop.f32.mrf.mxu0
      %v4744 = vadd.f32 %v4631, %v4743
      %v4745 = vpop.f32.mrf.mxu0
      %v4746 = vadd.f32 %v4633, %v4745
      %v4747 = vpop.f32.mrf.mxu0
      %v4748 = vadd.f32 %v4635, %v4747
      %4749 = vdwg.mxu0
      %4750 = vmatprep.subr.bf16.mxu0 %v4266
      %4751 = vmatpush1.bf16.msra.mxu0 %v4265
      %4752 = vmatprep.subr.bf16.mxu0 %v4264
      %4753 = vmatpush1.bf16.msra.mxu0 %v4263
      %4754 = vmatprep.subr.bf16.mxu0 %v4262
      %4755 = vmatpush1.bf16.msra.mxu0 %v4261
      %4756 = vmatprep.subr.bf16.mxu0 %v4260
      %4757 = vmatpush1.bf16.msra.mxu0 %v4259
      %4758 = vmatprep.subr.bf16.mxu0 %v4258
      %4759 = vmatpush1.bf16.msra.mxu0 %v4257
      %4760 = vmatprep.subr.bf16.mxu0 %v4256
      %4761 = vmatpush1.bf16.msra.mxu0 %v4255
      %4762 = vmatprep.subr.bf16.mxu0 %v4254
      %4763 = vmatpush1.bf16.msra.mxu0 %v4253
      %4764 = vmatprep.subr.bf16.mxu0 %v4252
      %4765 = vmatpush1.bf16.msra.mxu0 %v4251
      %4766 = vmatprep.subr.bf16.mxu0 %v4282
      %4767 = vmatpush2.bf16.msra.mxu0 %v4281
      %4768 = vmatprep.subr.bf16.mxu0 %v4280
      %4769 = vmatpush2.bf16.msra.mxu0 %v4279
      %4770 = vmatprep.subr.bf16.mxu0 %v4278
      %4771 = vmatpush2.bf16.msra.mxu0 %v4277
      %4772 = vmatprep.subr.bf16.mxu0 %v4276
      %4773 = vmatpush2.bf16.msra.mxu0 %v4275
      %4774 = vmatprep.subr.bf16.mxu0 %v4274
      %4775 = vmatpush2.bf16.msra.mxu0 %v4273
      %4776 = vmatprep.subr.bf16.mxu0 %v4272
      %4777 = vmatpush2.bf16.msra.mxu0 %v4271
      %4778 = vmatprep.subr.bf16.mxu0 %v4270
      %4779 = vmatpush2.bf16.msra.mxu0 %v4269
      %4780 = vmatprep.subr.bf16.mxu0 %v4268
      %4781 = vmatpush2.bf16.msra.mxu0 %v4267
      %4782 = vmatprep.mubr.bf16.mxu0 %v3574
      %4783 = vmatmul.mubr.bf16.gmra.mxu0 %v3573
      %v4784 = vpop.f32.mrf.mxu0
      %v4785 = vadd.f32 %v4672, %v4784
      %v4786 = vpop.f32.mrf.mxu0
      %v4787 = vadd.f32 %v4674, %v4786
      %v4788 = vpop.f32.mrf.mxu0
      %v4789 = vadd.f32 %v4676, %v4788
      %v4790 = vpop.f32.mrf.mxu0
      %v4791 = vadd.f32 %v4678, %v4790
      %4792 = vmatprep.mubr.bf16.mxu0 %v3582
      %4793 = vmatmul.mubr.bf16.gmra.mxu0 %v3581
      %v4794 = vpop.f32.mrf.mxu0
      %v4795 = vadd.f32 %v4682, %v4794
      %v4796 = vpop.f32.mrf.mxu0
      %v4797 = vadd.f32 %v4684, %v4796
      %v4798 = vpop.f32.mrf.mxu0
      %v4799 = vadd.f32 %v4686, %v4798
      %v4800 = vpop.f32.mrf.mxu0
      %v4801 = vadd.f32 %v4688, %v4800
      %4802 = vmatprep.mubr.bf16.mxu0 %v3590
      %4803 = vmatmul.mubr.bf16.gmra.mxu0 %v3589
      %v4804 = vpop.f32.mrf.mxu0
      %v4805 = vadd.f32 %v4692, %v4804
      %v4806 = vpop.f32.mrf.mxu0
      %v4807 = vadd.f32 %v4694, %v4806
      %v4808 = vpop.f32.mrf.mxu0
      %v4809 = vadd.f32 %v4696, %v4808
      %v4810 = vpop.f32.mrf.mxu0
      %v4811 = vadd.f32 %v4698, %v4810
      %4812 = vmatprep.mubr.bf16.mxu0 %v3598
      %4813 = vmatmul.mubr.bf16.gmra.mxu0 %v3597
      %v4814 = vpop.f32.mrf.mxu0
      %v4815 = vadd.f32 %v4702, %v4814
      %v4816 = vpop.f32.mrf.mxu0
      %v4817 = vadd.f32 %v4704, %v4816
      %v4818 = vpop.f32.mrf.mxu0
      %v4819 = vadd.f32 %v4706, %v4818
      %v4820 = vpop.f32.mrf.mxu0
      %v4821 = vadd.f32 %v4708, %v4820
      %4822 = vmatprep.mubr.bf16.mxu0 %v3606
      %4823 = vmatmul.mubr.bf16.gmra.mxu0 %v3605
      %v4824 = vpop.f32.mrf.mxu0
      %v4825 = vadd.f32 %v4712, %v4824
      %v4826 = vpop.f32.mrf.mxu0
      %v4827 = vadd.f32 %v4714, %v4826
      %v4828 = vpop.f32.mrf.mxu0
      %v4829 = vadd.f32 %v4716, %v4828
      %v4830 = vpop.f32.mrf.mxu0
      %v4831 = vadd.f32 %v4718, %v4830
      %4832 = vmatprep.mubr.bf16.mxu0 %v3614
      %4833 = vmatmul.mubr.bf16.gmra.mxu0 %v3613
      %v4834 = vpop.f32.mrf.mxu0
      %v4835 = vadd.f32 %v4722, %v4834
      %v4836 = vpop.f32.mrf.mxu0
      %v4837 = vadd.f32 %v4724, %v4836
      %v4838 = vpop.f32.mrf.mxu0
      %v4839 = vadd.f32 %v4726, %v4838
      %v4840 = vpop.f32.mrf.mxu0
      %v4841 = vadd.f32 %v4728, %v4840
      %4842 = vmatprep.mubr.bf16.mxu0 %v3622
      %4843 = vmatmul.mubr.bf16.gmra.mxu0 %v3621
      %v4844 = vpop.f32.mrf.mxu0
      %v4845 = vadd.f32 %v4732, %v4844
      %v4846 = vpop.f32.mrf.mxu0
      %v4847 = vadd.f32 %v4734, %v4846
      %v4848 = vpop.f32.mrf.mxu0
      %v4849 = vadd.f32 %v4736, %v4848
      %v4850 = vpop.f32.mrf.mxu0
      %v4851 = vadd.f32 %v4738, %v4850
      %4852 = vmatprep.mubr.bf16.mxu0 %v3630
      %4853 = vmatmul.mubr.bf16.gmra.mxu0 %v3629
      %v4854 = vpop.f32.mrf.mxu0
      %v4855 = vadd.f32 %v4742, %v4854
      %v4856 = vpop.f32.mrf.mxu0
      %v4857 = vadd.f32 %v4744, %v4856
      %v4858 = vpop.f32.mrf.mxu0
      %v4859 = vadd.f32 %v4746, %v4858
      %v4860 = vpop.f32.mrf.mxu0
      %v4861 = vadd.f32 %v4748, %v4860
      %4862 = vdwg.mxu0
      %v4863 = vadd.f32 %v888, %v4785
      %v4864 = vadd.f32 %v889, %v4787
      %v4865 = vadd.f32 %v890, %v4789
      %v4866 = vadd.f32 %v891, %v4791
      %v4867 = vadd.f32 %v892, %v4795
      %v4868 = vadd.f32 %v893, %v4797
      %v4869 = vadd.f32 %v894, %v4799
      %v4870 = vadd.f32 %v895, %v4801
      %v4871 = vadd.f32 %v896, %v4805
      %v4872 = vadd.f32 %v897, %v4807
      %v4873 = vadd.f32 %v898, %v4809
      %v4874 = vadd.f32 %v899, %v4811
      %v4875 = vadd.f32 %v900, %v4815
      %v4876 = vadd.f32 %v901, %v4817
      %v4877 = vadd.f32 %v902, %v4819
      %v4878 = vadd.f32 %v903, %v4821
      %v4879 = vadd.f32 %v904, %v4825
      %v4880 = vadd.f32 %v905, %v4827
      %v4881 = vadd.f32 %v906, %v4829
      %v4882 = vadd.f32 %v907, %v4831
      %v4883 = vadd.f32 %v908, %v4835
      %v4884 = vadd.f32 %v909, %v4837
      %v4885 = vadd.f32 %v910, %v4839
      %v4886 = vadd.f32 %v911, %v4841
      %v4887 = vadd.f32 %v912, %v4845
      %v4888 = vadd.f32 %v913, %v4847
      %v4889 = vadd.f32 %v914, %v4849
      %v4890 = vadd.f32 %v915, %v4851
      %v4891 = vadd.f32 %v916, %v4855
      %v4892 = vadd.f32 %v917, %v4857
      %v4893 = vadd.f32 %v918, %v4859
      %v4894 = vadd.f32 %v919, %v4861
      %4895 = vst [vmem:[%s441] sm:$0xff] %v4863
      %4896 = vst [vmem:[%s441 + $0x8] sm:$0xff] %v4864
      %4897 = vst [vmem:[%s441 + $0x10] sm:$0xff] %v4865
      %4898 = vst [vmem:[%s441 + $0x18] sm:$0xff] %v4866
      %4899 = vst [vmem:[%s441 + $0x20] sm:$0xff] %v4867
      %4900 = vst [vmem:[%s441 + $0x28] sm:$0xff] %v4868
      %4901 = vst [vmem:[%s441 + $0x30] sm:$0xff] %v4869
      %4902 = vst [vmem:[%s441 + $0x38] sm:$0xff] %v4870
      %4903 = vst [vmem:[%s441 + $0x40] sm:$0xff] %v4871
      %4904 = vst [vmem:[%s441 + $0x48] sm:$0xff] %v4872
      %4905 = vst [vmem:[%s441 + $0x50] sm:$0xff] %v4873
      %4906 = vst [vmem:[%s441 + $0x58] sm:$0xff] %v4874
      %4907 = vst [vmem:[%s441 + $0x60] sm:$0xff] %v4875
      %4908 = vst [vmem:[%s441 + $0x68] sm:$0xff] %v4876
      %4909 = vst [vmem:[%s441 + $0x70] sm:$0xff] %v4877
      %4910 = vst [vmem:[%s441 + $0x78] sm:$0xff] %v4878
      %4911 = vst [vmem:[%s441 + $0x80] sm:$0xff] %v4879
      %4912 = vst [vmem:[%s441 + $0x88] sm:$0xff] %v4880
      %4913 = vst [vmem:[%s441 + $0x90] sm:$0xff] %v4881
      %4914 = vst [vmem:[%s441 + $0x98] sm:$0xff] %v4882
      %4915 = vst [vmem:[%s441 + $0xa0] sm:$0xff] %v4883
      %4916 = vst [vmem:[%s441 + $0xa8] sm:$0xff] %v4884
      %4917 = vst [vmem:[%s441 + $0xb0] sm:$0xff] %v4885
      %4918 = vst [vmem:[%s441 + $0xb8] sm:$0xff] %v4886
      %4919 = vst [vmem:[%s441 + $0xc0] sm:$0xff] %v4887
      %4920 = vst [vmem:[%s441 + $0xc8] sm:$0xff] %v4888
      %4921 = vst [vmem:[%s441 + $0xd0] sm:$0xff] %v4889
      %4922 = vst [vmem:[%s441 + $0xd8] sm:$0xff] %v4890
      %4923 = vst [vmem:[%s441 + $0xe0] sm:$0xff] %v4891
      %4924 = vst [vmem:[%s441 + $0xe8] sm:$0xff] %v4892
      %4925 = vst [vmem:[%s441 + $0xf0] sm:$0xff] %v4893
      %4926 = vst [vmem:[%s441 + $0xf8] sm:$0xff] %v4894
      %s4927 = smul.u32 16, %s26
      %p4928 = scmp.lt.s32.totalorder %s25, 1
      %s4929 = scalar_select %p4928, %s25, 1
      %p4930 = scmp.lt.s32.totalorder %s4927, 15
      %s4931 = scalar_select %p4930, %s4927, 15
      %s4932 = smul.addr %s4931, 2
      %s4933 = smul.addr %s4929, 32
      %s4934 = sadd.s32 %s4932, %s4933
      %s4935 = smul.addr %s4934, 8
      %s4936 = scalar_lea.vmem %s10, %s4935
      // Predicated region
      $region61: #{transformer_forward.8} parent=59 // pred_check
        %p4937 = pneg %p277
      $region62: #{transformer_forward.8} parent=59 // pred_check_branch
        %4939 = sbr.rel (%p4937) target = $region64
      $region63: #{transformer_forward.8} parent=59 // pred_region
        %s4940 = smul.u32 16, %s26
      $region64: #{transformer_forward.8} parent=59 // pred_fallthru
        _
    $region60: #{transformer_forward.8} parent=5 // pred_fallthru
      _
    %p4941 = scmp.le.s32.totalorder 2, %s16
    // Predicated region
    $region65: #{transformer_forward.8} parent=5 // pred_check
      %p4942 = pneg %p4941
    $region66: #{transformer_forward.8} parent=5 // pred_check_branch
      %4944 = sbr.rel (%p4942) target = $region68
    $region67: #{transformer_forward.8} parent=5 // pred_region
      %s4945 = ssub.s32 %s16, 2
      // Predicated region
      $region69: #{transformer_forward.8} parent=67 // pred_check
        %p4946 = pneg %p283
      $region70: #{transformer_forward.8} parent=67 // pred_check_branch
        %4948 = sbr.rel (%p4946) target = $region72
      $region71: #{transformer_forward.8} parent=67 // pred_region
        %s4949 = smul.u32 16, %s28
        %p4950 = scmp.lt.s32.totalorder %s27, 1
        %s4951 = scalar_select %p4950, %s27, 1
        %p4952 = scmp.lt.s32.totalorder %s4949, 15
        %s4953 = scalar_select %p4952, %s4949, 15
        %s4954 = smul.addr %s4953, 2
        %s4955 = smul.addr %s4951, 32
        %s4956 = sadd.s32 %s4954, %s4955
        %s4957 = smul.addr %s4956, 8
        %s4958 = scalar_lea.vmem %s10, %s4957
      $region72: #{transformer_forward.8} parent=67 // pred_fallthru
        _
    $region68: #{transformer_forward.8} parent=5 // pred_fallthru
      _
  $region6: #{transformer_forward.8} parent=0 // loop_footer
    %s20 = sadd.s32 1, %s16
  $region7: #{transformer_forward.8} parent=0 // loop_footer_branch
    %15 = sbr.rel target = $region3
  $region8: #{transformer_forward.8} parent=0 // loop_exit
    _

</llo_original>
